<compile_context>
chip_gen: v5e
topology: v5e:2x2
jax: 0.10.0
libtpu: 0.0.40
codegen_flags: <defaults>
</compile_context>

<pallas_src>
import functools

import jax
import jax.numpy as jnp
from jax.experimental import pallas as pl
from jax.experimental.pallas import tpu as pltpu


# ---------------------------------------------------------------------------
# Kernels
# ---------------------------------------------------------------------------
def fc4_kernel(x_ref, w4_ref, b4_ref, h_ref):
    """h = relu(x @ W4 + b4); bf16 operands, f32 MXU accumulation, bf16 out."""
    h = jnp.dot(x_ref[...], w4_ref[...], preferred_element_type=jnp.float32)
    h = jnp.maximum(h + b4_ref[...], 0.0)          # (B, H) + (1, H) broadcast
    h_ref[...] = h.astype(h_ref.dtype)


def fc5_kernel(h_ref, w5_ref, b5_ref, o_ref):
    """y[:, tile] = tanh(h @ W5[:, tile] + b5[tile]); pure weight-streaming step."""
    y = jnp.dot(h_ref[...], w5_ref[...], preferred_element_type=jnp.float32)
    y = y + b5_ref[...]                            # (B, TN) + (1, TN) broadcast
    o_ref[...] = jnp.tanh(y).astype(o_ref.dtype)


# ---------------------------------------------------------------------------
# Wrapper
# ---------------------------------------------------------------------------
def _pick_tile_n(d_out, max_tile=2048):
    """Largest column tile <= max_tile that divides d_out and is a multiple of 128."""
    if d_out <= max_tile:
        return d_out
    for t in range(max_tile, 0, -128):
        if d_out % t == 0:
            return t
    return d_out


@functools.partial(jax.jit, static_argnames=("num_points", "tile_n"))
def point_decoder(x, w4, b4, w5, b5, *, num_points, tile_n=None):
    """x: (B, 512) -> (B, 3, num_points), matching PointDecoder.forward."""
    B, D_in = x.shape
    H = w4.shape[1]                    # 1024
    D_out = w5.shape[1]                # num_points * 3
    assert D_out == num_points * 3

    if tile_n is None:
        tile_n = _pick_tile_n(D_out)
    assert D_out % tile_n == 0
    n_tiles = D_out // tile_n

    # bf16 weight stream, f32 biases / accumulation.
    x_bf = x.astype(jnp.bfloat16)
    w4 = w4.astype(jnp.bfloat16)
    w5 = w5.astype(jnp.bfloat16)
    b4_2d = b4.reshape(1, H).astype(jnp.float32)
    b5_2d = b5.reshape(1, D_out).astype(jnp.float32)

    # --- fc4 (+relu): single-step kernel; output h is bf16 for the fc5 MXU lhs.
    h = pl.pallas_call(
        fc4_kernel,
        out_shape=jax.ShapeDtypeStruct((B, H), jnp.bfloat16),
        grid_spec=pltpu.PrefetchScalarGridSpec(
            num_scalar_prefetch=0,
            grid=(1,),
            in_specs=[
                pl.BlockSpec((B, D_in), lambda i: (0, 0)),
                pl.BlockSpec((D_in, H), lambda i: (0, 0)),
                pl.BlockSpec((1, H), lambda i: (0, 0)),
            ],
            out_specs=pl.BlockSpec((B, H), lambda i: (0, 0)),
        ),
        compiler_params=pltpu.CompilerParams(
            dimension_semantics=("arbitrary",),
        ),
    )(x_bf, w4, b4_2d)

    # --- fc5 (+tanh): stream W5 column tiles; no cross-step state -> "parallel"
    # grid (v7x shards tiles across its 2 TensorCores).
    flat = pl.pallas_call(
        fc5_kernel,
        out_shape=jax.ShapeDtypeStruct((B, D_out), jnp.float32),
        grid_spec=pltpu.PrefetchScalarGridSpec(
            num_scalar_prefetch=0,
            grid=(n_tiles,),
            in_specs=[
                pl.BlockSpec((B, H), lambda j: (0, 0)),        # h (resident)
                pl.BlockSpec((H, tile_n), lambda j: (0, j)),   # W5 column tile
                pl.BlockSpec((1, tile_n), lambda j: (0, j)),   # b5 tile
            ],
            out_specs=pl.BlockSpec((B, tile_n), lambda j: (0, j)),
        ),
        compiler_params=pltpu.CompilerParams(
            dimension_semantics=("parallel",),
            # Double-buffered bf16 W5 tiles (tile_n<=2048 -> <=8 MiB) plus output
            # buffers; 32 MiB comfortably covers v5e's 16 MiB scoped default.
            vmem_limit_bytes=32 * 1024 * 1024,
        ),
    )(h, w5, b5_2d)

    # PyTorch: x.view(batchsize, 3, num_points) == row-major reshape.
    return flat.reshape(B, 3, num_points)


# ---------------------------------------------------------------------------
# Parameters / reference
# ---------------------------------------------------------------------------
def init_params(key, num_points):
    """Deterministic synthetic parameters with PyTorch Linear shapes
    (stored transposed to (in, out); weights kept in bf16 for streaming)."""
    k4w, k4b, k5w, k5b = jax.random.split(key, 4)
    d_in, hidden, d_out = 512, 1024, num_points * 3
    w4 = (jax.random.normal(k4w, (d_in, hidden), jnp.float32)
          * (1.0 / d_in) ** 0.5).astype(jnp.bfloat16)
    b4 = jax.random.normal(k4b, (hidden,), jnp.float32) * 0.01
    w5 = (jax.random.normal(k5w, (hidden, d_out), jnp.float32)
          * (1.0 / hidden) ** 0.5).astype(jnp.bfloat16)
    b5 = jax.random.normal(k5b, (d_out,), jnp.float32) * 0.01
    return w4, b4, w5, b5


def reference(x, w4, b4, w5, b5, num_points):
    """Pure-JAX reference with the same precision flow as the kernels."""
    h = jnp.dot(x.astype(jnp.bfloat16), w4.astype(jnp.bfloat16),
                preferred_element_type=jnp.float32)
    h = jnp.maximum(h + b4, 0.0).astype(jnp.bfloat16)
    y = jnp.dot(h, w5.astype(jnp.bfloat16),
                preferred_element_type=jnp.float32) + b5
    y = jnp.tanh(y)
    return y.reshape(x.shape[0], 3, num_points)


if __name__ == "__main__":
    # Small-but-representative shapes: fc4 input is fixed at 512, hidden 1024.
    # num_points=1024 -> D_out=3072, so the default tile picker chooses 1536 and
    # the fc5 grid actually has multiple column tiles (exercises the streaming path).
    # (Module default is num_points=2048; larger batch B amortizes the W5 stream.)
    B = 8
    NUM_POINTS = 1024

    key = jax.random.PRNGKey(0)
    kx, kp = jax.random.split(key)
    x = jax.random.normal(kx, (B, 512), jnp.float32)
    w4, b4, w5, b5 = init_params(kp, NUM_POINTS)

    out = point_decoder(x, w4, b4, w5, b5, num_points=NUM_POINTS)
    out = jax.block_until_ready(out)

    ref = reference(x, w4, b4, w5, b5, NUM_POINTS)
    assert out.shape == (B, 3, NUM_POINTS), out.shape
    max_err = float(jnp.max(jnp.abs(out - ref)))
    assert jnp.allclose(out, ref, atol=2e-3, rtol=2e-3), max_err

    print("KERNEL_OK")
</pallas_src>

<mosaic_0001>
module attributes {stable_mosaic.version = 11 : i64} {
  func.func @fc4_kernel(%arg0: i32, %arg1: memref<8x512xbf16, #tpu.memory_space<vmem>>, %arg2: memref<512x1024xbf16, #tpu.memory_space<vmem>>, %arg3: memref<1x1024xf32, #tpu.memory_space<vmem>>, %arg4: memref<8x1024xbf16, #tpu.memory_space<vmem>>) attributes {dimension_semantics = [#tpu.dimension_semantics<arbitrary>], iteration_bounds = array<i64: 1>, scalar_prefetch = 0 : i64, scratch_operands = 0 : i64, tpu.core_type = #tpu.core_type<tc>, window_params = [{pipeline_mode = #tpu.pipeline_mode<synchronous>, transform_indices = @transform_0, window_bounds = array<i64: 8, 512>}, {pipeline_mode = #tpu.pipeline_mode<synchronous>, transform_indices = @transform_1, window_bounds = array<i64: 512, 1024>}, {pipeline_mode = #tpu.pipeline_mode<synchronous>, transform_indices = @transform_2, window_bounds = array<i64: 1, 1024>}, {pipeline_mode = #tpu.pipeline_mode<synchronous>, transform_indices = @transform_3, window_bounds = array<i64: 8, 1024>}]} {
    %c0 = arith.constant 0 : index
    %c0_0 = arith.constant 0 : index
    %0 = vector.load %arg1[%c0, %c0_0] : memref<8x512xbf16, #tpu.memory_space<vmem>>, vector<8x512xbf16>
    %c0_1 = arith.constant 0 : index
    %c0_2 = arith.constant 0 : index
    %1 = vector.load %arg2[%c0_1, %c0_2] : memref<512x1024xbf16, #tpu.memory_space<vmem>>, vector<512x1024xbf16>
    %cst = arith.constant dense<0.000000e+00> : vector<8x1024xf32>
    %2 = tpu.matmul %0, %1, %cst {dimension_numbers = #tpu.dot_dimension_numbers<[1], [0], [0], [1], [0, 0, 1, 1], [], []>} : vector<8x512xbf16>, vector<512x1024xbf16>, vector<8x1024xf32> -> vector<8x1024xf32>
    %c0_3 = arith.constant 0 : index
    %c0_4 = arith.constant 0 : index
    %3 = vector.load %arg3[%c0_3, %c0_4] : memref<1x1024xf32, #tpu.memory_space<vmem>>, vector<1x1024xf32>
    %4 = vector.broadcast %3 : vector<1x1024xf32> to vector<8x1024xf32>
    %5 = arith.addf %2, %4 : vector<8x1024xf32>
    %cst_5 = arith.constant 0.000000e+00 : f32
    %6 = vector.broadcast %cst_5 : f32 to vector<8x1024xf32>
    %7 = arith.maximumf %5, %6 : vector<8x1024xf32>
    %8 = arith.truncf %7 : vector<8x1024xf32> to vector<8x1024xbf16>
    %c0_6 = arith.constant 0 : index
    %c0_7 = arith.constant 0 : index
    %9 = vector.load %arg4[%c0_6, %c0_7] : memref<8x1024xbf16, #tpu.memory_space<vmem>>, vector<8x1024xbf16>
    tpu.vector_store %arg4[%c0_6, %c0_7], %8 {strides = array<i32>} : memref<8x1024xbf16, #tpu.memory_space<vmem>>, vector<8x1024xbf16>,
    return
  }
  func.func @transform_0(%arg0: i32) -> (i32, i32) {
    %c0_i32 = arith.constant 0 : i32
    %c0_i32_0 = arith.constant 0 : i32
    %c0_i32_1 = arith.constant 0 : i32
    return %c0_i32, %c0_i32_0 : i32, i32
  }
  func.func @transform_1(%arg0: i32) -> (i32, i32) {
    %c0_i32 = arith.constant 0 : i32
    %c0_i32_0 = arith.constant 0 : i32
    %c0_i32_1 = arith.constant 0 : i32
    return %c0_i32, %c0_i32_0 : i32, i32
  }
  func.func @transform_2(%arg0: i32) -> (i32, i32) {
    %c0_i32 = arith.constant 0 : i32
    %c0_i32_0 = arith.constant 0 : i32
    %c0_i32_1 = arith.constant 0 : i32
    return %c0_i32, %c0_i32_0 : i32, i32
  }
  func.func @transform_3(%arg0: i32) -> (i32, i32) {
    %c0_i32 = arith.constant 0 : i32
    %c0_i32_0 = arith.constant 0 : i32
    %c0_i32_1 = arith.constant 0 : i32
    return %c0_i32, %c0_i32_0 : i32, i32
  }
}

module attributes {stable_mosaic.version = 11 : i64} {
  func.func @fc5_kernel(%arg0: i32, %arg1: memref<8x1024xbf16, #tpu.memory_space<vmem>>, %arg2: memref<1024x1536xbf16, #tpu.memory_space<vmem>>, %arg3: memref<1x1536xf32, #tpu.memory_space<vmem>>, %arg4: memref<8x1536xf32, #tpu.memory_space<vmem>>) attributes {dimension_semantics = [#tpu.dimension_semantics<parallel>], iteration_bounds = array<i64: 2>, scalar_prefetch = 0 : i64, scratch_operands = 0 : i64, tpu.core_type = #tpu.core_type<tc>, window_params = [{pipeline_mode = #tpu.pipeline_mode<synchronous>, transform_indices = @transform_0, window_bounds = array<i64: 8, 1024>}, {transform_indices = @transform_1, window_bounds = array<i64: 1024, 1536>}, {transform_indices = @transform_2, window_bounds = array<i64: 1, 1536>}, {transform_indices = @transform_3, window_bounds = array<i64: 8, 1536>}]} {
    %c0 = arith.constant 0 : index
    %c0_0 = arith.constant 0 : index
    %0 = vector.load %arg1[%c0, %c0_0] : memref<8x1024xbf16, #tpu.memory_space<vmem>>, vector<8x1024xbf16>
    %c0_1 = arith.constant 0 : index
    %c0_2 = arith.constant 0 : index
    %1 = vector.load %arg2[%c0_1, %c0_2] : memref<1024x1536xbf16, #tpu.memory_space<vmem>>, vector<1024x1536xbf16>
    %cst = arith.constant dense<0.000000e+00> : vector<8x1536xf32>
    %2 = tpu.matmul %0, %1, %cst {dimension_numbers = #tpu.dot_dimension_numbers<[1], [0], [0], [1], [0, 0, 1, 1], [], []>} : vector<8x1024xbf16>, vector<1024x1536xbf16>, vector<8x1536xf32> -> vector<8x1536xf32>
    %c0_3 = arith.constant 0 : index
    %c0_4 = arith.constant 0 : index
    %3 = vector.load %arg3[%c0_3, %c0_4] : memref<1x1536xf32, #tpu.memory_space<vmem>>, vector<1x1536xf32>
    %4 = vector.broadcast %3 : vector<1x1536xf32> to vector<8x1536xf32>
    %5 = arith.addf %2, %4 : vector<8x1536xf32>
    %6 = math.tanh %5 : vector<8x1536xf32>
    %c0_5 = arith.constant 0 : index
    %c0_6 = arith.constant 0 : index
    %7 = vector.load %arg4[%c0_5, %c0_6] : memref<8x1536xf32, #tpu.memory_space<vmem>>, vector<8x1536xf32>
    tpu.vector_store %arg4[%c0_5, %c0_6], %6 {strides = array<i32>} : memref<8x1536xf32, #tpu.memory_space<vmem>>, vector<8x1536xf32>,
    return
  }
  func.func @transform_0(%arg0: i32) -> (i32, i32) {
    %c0_i32 = arith.constant 0 : i32
    %c0_i32_0 = arith.constant 0 : i32
    %c0_i32_1 = arith.constant 0 : i32
    return %c0_i32, %c0_i32_0 : i32, i32
  }
  func.func @transform_1(%arg0: i32) -> (i32, i32) {
    %c0_i32 = arith.constant 0 : i32
    %c0_i32_0 = arith.constant 0 : i32
    return %c0_i32, %arg0 : i32, i32
  }
  func.func @transform_2(%arg0: i32) -> (i32, i32) {
    %c0_i32 = arith.constant 0 : i32
    %c0_i32_0 = arith.constant 0 : i32
    return %c0_i32, %arg0 : i32, i32
  }
  func.func @transform_3(%arg0: i32) -> (i32, i32) {
    %c0_i32 = arith.constant 0 : i32
    %c0_i32_0 = arith.constant 0 : i32
    return %c0_i32, %arg0 : i32, i32
  }
}

</mosaic_0001>

<llo_original>
// kernel: point_decoder.2
$region0: #{point_decoder.2}
  #allocation0 [shape = 'u32[]', space=smem, size = 0x4, offset = 0x4, fixed_abs, tag = 'smem constant byte address 0x4 - core index']
  #allocation1 [shape = 'u32[72,128]{1,0:T(1,128)}', space=vmem, size = 0x9000, scoped, tag = 'internal scratch']
  %s0 = inlined_call_operand.vmem [shape: bf16[8,512], index: 0, kind: input, shape index: {}]
  %s1 = inlined_call_operand.hbm [shape: bf16[512,1024], index: 1, kind: input, shape index: {}]
  %s2 = inlined_call_operand.hbm [shape: f32[1,1024], index: 2, kind: input, shape index: {}]
  %s3 = inlined_call_operand.vmem [shape: bf16[8,1024], index: 3, kind: output, shape index: {}]
  %s4 = sld [smem:[#allocation0]]
  $region30: #{point_decoder.2} parent=0
    _
  %s6 = ssub.s32 1, %s4
  %s7 = scalar_select 0, %s6, %s4
  $region1: #{point_decoder.2} parent=0
    #allocation2 [shape = 'u8[1048576]{0}', space=vmem, size = 0x100000, scoped, tag = 'input window, operand 1, single buffered']
    #allocation3 [shape = 's32[1]{0}', space=sflag, size = 0x4, scoped, tag = 'scoped memory for point_decoder.2']
    #allocation4 [shape = 'u8[4096]{0}', space=vmem, size = 0x1000, scoped, tag = 'input window, operand 2, single buffered']
    #allocation5 [shape = 's32[1]{0}', space=sflag, size = 0x4, scoped, tag = 'scoped memory for point_decoder.2']
    %8 = vsyncpa [#allocation3], 0
    %9 = vsyncpa [#allocation5], 0
    // Predicated region
    $region2: #{point_decoder.2} parent=1 // pred_check
      _
    $region3: #{point_decoder.2} parent=1 // pred_check_branch
      %11 = sbr.rel (0) target = $region5
    $region4: #{point_decoder.2} parent=1 // pred_region
      _
    $region5: #{point_decoder.2} parent=1 // pred_fallthru
      _
    // Predicated region
    $region6: #{point_decoder.2} parent=1 // pred_check
      _
    $region7: #{point_decoder.2} parent=1 // pred_check_branch
      %13 = sbr.rel (0) target = $region9
    $region8: #{point_decoder.2} parent=1 // pred_region
      %15 = vsyncadd [#allocation3], 0
      %s16 = sshll.u32 %s1, 4
      %s17 = int_to_ptr.hbm [resolvable:$true] %s16
      %s18 = sshll.u32 [#allocation2], 4
      %s19 = int_to_ptr.vmem [resolvable:$true] %s18
      %24 = dma.hbm_to_vmem [thread:$0]  %s17, 32768, %s19, [#allocation3], 512, 512, 32
    $region9: #{point_decoder.2} parent=1 // pred_fallthru
      _
    // Predicated region
    $region10: #{point_decoder.2} parent=1 // pred_check
      _
    $region11: #{point_decoder.2} parent=1 // pred_check_branch
      %26 = sbr.rel (0) target = $region13
    $region12: #{point_decoder.2} parent=1 // pred_region
      %28 = vsyncadd [#allocation5], 0
      %s30 = sshll.u32 %s2, 4
      %s31 = int_to_ptr.hbm [resolvable:$true] %s30
      %s32 = sshll.u32 [#allocation4], 4
      %s33 = int_to_ptr.vmem [resolvable:$true] %s32
      %35 = dma.hbm_to_vmem [thread:$0]  %s31, 128, %s33, [#allocation5]
    $region13: #{point_decoder.2} parent=1 // pred_fallthru
      _
    // Predicated region
    $region14: #{point_decoder.2} parent=1 // pred_check
      _
    $region15: #{point_decoder.2} parent=1 // pred_check_branch
      %37 = sbr.rel (0) target = $region17
    $region16: #{point_decoder.2} parent=1 // pred_region
      %39 = dma.done [#allocation3], 32768
    $region17: #{point_decoder.2} parent=1 // pred_fallthru
      _
    // Predicated region
    $region18: #{point_decoder.2} parent=1 // pred_check
      _
    $region19: #{point_decoder.2} parent=1 // pred_check_branch
      %41 = sbr.rel (0) target = $region21
    $region20: #{point_decoder.2} parent=1 // pred_region
      %43 = dma.done [#allocation5], 128
    $region21: #{point_decoder.2} parent=1 // pred_fallthru
      _
    %v44 = vld [vmem:[%s0] sm:$0xff]
    %v45 = vld [vmem:[%s0 + $0x8] sm:$0xff]
    %v46 = vld [vmem:[#allocation2] sm:$0xff]
    %v47 = vld [vmem:[#allocation2 + $0x8] sm:$0xff]
    %v48 = vld [vmem:[#allocation2 + $0x10] sm:$0xff]
    %v49 = vld [vmem:[#allocation2 + $0x18] sm:$0xff]
    %v50 = vld [vmem:[#allocation2 + $0x20] sm:$0xff]
    %v51 = vld [vmem:[#allocation2 + $0x28] sm:$0xff]
    %v52 = vld [vmem:[#allocation2 + $0x30] sm:$0xff]
    %v53 = vld [vmem:[#allocation2 + $0x38] sm:$0xff]
    %v54 = vld [vmem:[#allocation2 + $0x40] sm:$0xff]
    %v55 = vld [vmem:[#allocation2 + $0x48] sm:$0xff]
    %v56 = vld [vmem:[#allocation2 + $0x50] sm:$0xff]
    %v57 = vld [vmem:[#allocation2 + $0x58] sm:$0xff]
    %v58 = vld [vmem:[#allocation2 + $0x60] sm:$0xff]
    %v59 = vld [vmem:[#allocation2 + $0x68] sm:$0xff]
    %v60 = vld [vmem:[#allocation2 + $0x70] sm:$0xff]
    %v61 = vld [vmem:[#allocation2 + $0x78] sm:$0xff]
    %v62 = vld [vmem:[#allocation2 + $0x80] sm:$0xff]
    %v63 = vld [vmem:[#allocation2 + $0x88] sm:$0xff]
    %v64 = vld [vmem:[#allocation2 + $0x90] sm:$0xff]
    %v65 = vld [vmem:[#allocation2 + $0x98] sm:$0xff]
    %v66 = vld [vmem:[#allocation2 + $0xa0] sm:$0xff]
    %v67 = vld [vmem:[#allocation2 + $0xa8] sm:$0xff]
    %v68 = vld [vmem:[#allocation2 + $0xb0] sm:$0xff]
    %v69 = vld [vmem:[#allocation2 + $0xb8] sm:$0xff]
    %v70 = vld [vmem:[#allocation2 + $0xc0] sm:$0xff]
    %v71 = vld [vmem:[#allocation2 + $0xc8] sm:$0xff]
    %v72 = vld [vmem:[#allocation2 + $0xd0] sm:$0xff]
    %v73 = vld [vmem:[#allocation2 + $0xd8] sm:$0xff]
    %v74 = vld [vmem:[#allocation2 + $0xe0] sm:$0xff]
    %v75 = vld [vmem:[#allocation2 + $0xe8] sm:$0xff]
    %v76 = vld [vmem:[#allocation2 + $0xf0] sm:$0xff]
    %v77 = vld [vmem:[#allocation2 + $0xf8] sm:$0xff]
    %v78 = vld [vmem:[#allocation2 + $0x100] sm:$0xff]
    %v79 = vld [vmem:[#allocation2 + $0x108] sm:$0xff]
    %v80 = vld [vmem:[#allocation2 + $0x110] sm:$0xff]
    %v81 = vld [vmem:[#allocation2 + $0x118] sm:$0xff]
    %v82 = vld [vmem:[#allocation2 + $0x120] sm:$0xff]
    %v83 = vld [vmem:[#allocation2 + $0x128] sm:$0xff]
    %v84 = vld [vmem:[#allocation2 + $0x130] sm:$0xff]
    %v85 = vld [vmem:[#allocation2 + $0x138] sm:$0xff]
    %v86 = vld [vmem:[#allocation2 + $0x140] sm:$0xff]
    %v87 = vld [vmem:[#allocation2 + $0x148] sm:$0xff]
    %v88 = vld [vmem:[#allocation2 + $0x150] sm:$0xff]
    %v89 = vld [vmem:[#allocation2 + $0x158] sm:$0xff]
    %v90 = vld [vmem:[#allocation2 + $0x160] sm:$0xff]
    %v91 = vld [vmem:[#allocation2 + $0x168] sm:$0xff]
    %v92 = vld [vmem:[#allocation2 + $0x170] sm:$0xff]
    %v93 = vld [vmem:[#allocation2 + $0x178] sm:$0xff]
    %v94 = vld [vmem:[#allocation2 + $0x180] sm:$0xff]
    %v95 = vld [vmem:[#allocation2 + $0x188] sm:$0xff]
    %v96 = vld [vmem:[#allocation2 + $0x190] sm:$0xff]
    %v97 = vld [vmem:[#allocation2 + $0x198] sm:$0xff]
    %v98 = vld [vmem:[#allocation2 + $0x1a0] sm:$0xff]
    %v99 = vld [vmem:[#allocation2 + $0x1a8] sm:$0xff]
    %v100 = vld [vmem:[#allocation2 + $0x1b0] sm:$0xff]
    %v101 = vld [vmem:[#allocation2 + $0x1b8] sm:$0xff]
    %v102 = vld [vmem:[#allocation2 + $0x1c0] sm:$0xff]
    %v103 = vld [vmem:[#allocation2 + $0x1c8] sm:$0xff]
    %v104 = vld [vmem:[#allocation2 + $0x1d0] sm:$0xff]
    %v105 = vld [vmem:[#allocation2 + $0x1d8] sm:$0xff]
    %v106 = vld [vmem:[#allocation2 + $0x1e0] sm:$0xff]
    %v107 = vld [vmem:[#allocation2 + $0x1e8] sm:$0xff]
    %v108 = vld [vmem:[#allocation2 + $0x1f0] sm:$0xff]
    %v109 = vld [vmem:[#allocation2 + $0x1f8] sm:$0xff]
    %v110 = vld [vmem:[#allocation2 + $0x200] sm:$0xff]
    %v111 = vld [vmem:[#allocation2 + $0x208] sm:$0xff]
    %v112 = vld [vmem:[#allocation2 + $0x210] sm:$0xff]
    %v113 = vld [vmem:[#allocation2 + $0x218] sm:$0xff]
    %v114 = vld [vmem:[#allocation2 + $0x220] sm:$0xff]
    %v115 = vld [vmem:[#allocation2 + $0x228] sm:$0xff]
    %v116 = vld [vmem:[#allocation2 + $0x230] sm:$0xff]
    %v117 = vld [vmem:[#allocation2 + $0x238] sm:$0xff]
    %v118 = vld [vmem:[#allocation2 + $0x240] sm:$0xff]
    %v119 = vld [vmem:[#allocation2 + $0x248] sm:$0xff]
    %v120 = vld [vmem:[#allocation2 + $0x250] sm:$0xff]
    %v121 = vld [vmem:[#allocation2 + $0x258] sm:$0xff]
    %v122 = vld [vmem:[#allocation2 + $0x260] sm:$0xff]
    %v123 = vld [vmem:[#allocation2 + $0x268] sm:$0xff]
    %v124 = vld [vmem:[#allocation2 + $0x270] sm:$0xff]
    %v125 = vld [vmem:[#allocation2 + $0x278] sm:$0xff]
    %v126 = vld [vmem:[#allocation2 + $0x280] sm:$0xff]
    %v127 = vld [vmem:[#allocation2 + $0x288] sm:$0xff]
    %v128 = vld [vmem:[#allocation2 + $0x290] sm:$0xff]
    %v129 = vld [vmem:[#allocation2 + $0x298] sm:$0xff]
    %v130 = vld [vmem:[#allocation2 + $0x2a0] sm:$0xff]
    %v131 = vld [vmem:[#allocation2 + $0x2a8] sm:$0xff]
    %v132 = vld [vmem:[#allocation2 + $0x2b0] sm:$0xff]
    %v133 = vld [vmem:[#allocation2 + $0x2b8] sm:$0xff]
    %v134 = vld [vmem:[#allocation2 + $0x2c0] sm:$0xff]
    %v135 = vld [vmem:[#allocation2 + $0x2c8] sm:$0xff]
    %v136 = vld [vmem:[#allocation2 + $0x2d0] sm:$0xff]
    %v137 = vld [vmem:[#allocation2 + $0x2d8] sm:$0xff]
    %v138 = vld [vmem:[#allocation2 + $0x2e0] sm:$0xff]
    %v139 = vld [vmem:[#allocation2 + $0x2e8] sm:$0xff]
    %v140 = vld [vmem:[#allocation2 + $0x2f0] sm:$0xff]
    %v141 = vld [vmem:[#allocation2 + $0x2f8] sm:$0xff]
    %v142 = vld [vmem:[#allocation2 + $0x300] sm:$0xff]
    %v143 = vld [vmem:[#allocation2 + $0x308] sm:$0xff]
    %v144 = vld [vmem:[#allocation2 + $0x310] sm:$0xff]
    %v145 = vld [vmem:[#allocation2 + $0x318] sm:$0xff]
    %v146 = vld [vmem:[#allocation2 + $0x320] sm:$0xff]
    %v147 = vld [vmem:[#allocation2 + $0x328] sm:$0xff]
    %v148 = vld [vmem:[#allocation2 + $0x330] sm:$0xff]
    %v149 = vld [vmem:[#allocation2 + $0x338] sm:$0xff]
    %v150 = vld [vmem:[#allocation2 + $0x340] sm:$0xff]
    %v151 = vld [vmem:[#allocation2 + $0x348] sm:$0xff]
    %v152 = vld [vmem:[#allocation2 + $0x350] sm:$0xff]
    %v153 = vld [vmem:[#allocation2 + $0x358] sm:$0xff]
    %v154 = vld [vmem:[#allocation2 + $0x360] sm:$0xff]
    %v155 = vld [vmem:[#allocation2 + $0x368] sm:$0xff]
    %v156 = vld [vmem:[#allocation2 + $0x370] sm:$0xff]
    %v157 = vld [vmem:[#allocation2 + $0x378] sm:$0xff]
    %v158 = vld [vmem:[#allocation2 + $0x380] sm:$0xff]
    %v159 = vld [vmem:[#allocation2 + $0x388] sm:$0xff]
    %v160 = vld [vmem:[#allocation2 + $0x390] sm:$0xff]
    %v161 = vld [vmem:[#allocation2 + $0x398] sm:$0xff]
    %v162 = vld [vmem:[#allocation2 + $0x3a0] sm:$0xff]
    %v163 = vld [vmem:[#allocation2 + $0x3a8] sm:$0xff]
    %v164 = vld [vmem:[#allocation2 + $0x3b0] sm:$0xff]
    %v165 = vld [vmem:[#allocation2 + $0x3b8] sm:$0xff]
    %v166 = vld [vmem:[#allocation2 + $0x3c0] sm:$0xff]
    %v167 = vld [vmem:[#allocation2 + $0x3c8] sm:$0xff]
    %v168 = vld [vmem:[#allocation2 + $0x3d0] sm:$0xff]
    %v169 = vld [vmem:[#allocation2 + $0x3d8] sm:$0xff]
    %v170 = vld [vmem:[#allocation2 + $0x3e0] sm:$0xff]
    %v171 = vld [vmem:[#allocation2 + $0x3e8] sm:$0xff]
    %v172 = vld [vmem:[#allocation2 + $0x3f0] sm:$0xff]
    %v173 = vld [vmem:[#allocation2 + $0x3f8] sm:$0xff]
    %v174 = vld [vmem:[#allocation2 + $0x400] sm:$0xff]
    %v175 = vld [vmem:[#allocation2 + $0x408] sm:$0xff]
    %v176 = vld [vmem:[#allocation2 + $0x410] sm:$0xff]
    %v177 = vld [vmem:[#allocation2 + $0x418] sm:$0xff]
    %v178 = vld [vmem:[#allocation2 + $0x420] sm:$0xff]
    %v179 = vld [vmem:[#allocation2 + $0x428] sm:$0xff]
    %v180 = vld [vmem:[#allocation2 + $0x430] sm:$0xff]
    %v181 = vld [vmem:[#allocation2 + $0x438] sm:$0xff]
    %v182 = vld [vmem:[#allocation2 + $0x440] sm:$0xff]
    %v183 = vld [vmem:[#allocation2 + $0x448] sm:$0xff]
    %v184 = vld [vmem:[#allocation2 + $0x450] sm:$0xff]
    %v185 = vld [vmem:[#allocation2 + $0x458] sm:$0xff]
    %v186 = vld [vmem:[#allocation2 + $0x460] sm:$0xff]
    %v187 = vld [vmem:[#allocation2 + $0x468] sm:$0xff]
    %v188 = vld [vmem:[#allocation2 + $0x470] sm:$0xff]
    %v189 = vld [vmem:[#allocation2 + $0x478] sm:$0xff]
    %v190 = vld [vmem:[#allocation2 + $0x480] sm:$0xff]
    %v191 = vld [vmem:[#allocation2 + $0x488] sm:$0xff]
    %v192 = vld [vmem:[#allocation2 + $0x490] sm:$0xff]
    %v193 = vld [vmem:[#allocation2 + $0x498] sm:$0xff]
    %v194 = vld [vmem:[#allocation2 + $0x4a0] sm:$0xff]
    %v195 = vld [vmem:[#allocation2 + $0x4a8] sm:$0xff]
    %v196 = vld [vmem:[#allocation2 + $0x4b0] sm:$0xff]
    %v197 = vld [vmem:[#allocation2 + $0x4b8] sm:$0xff]
    %v198 = vld [vmem:[#allocation2 + $0x4c0] sm:$0xff]
    %v199 = vld [vmem:[#allocation2 + $0x4c8] sm:$0xff]
    %v200 = vld [vmem:[#allocation2 + $0x4d0] sm:$0xff]
    %v201 = vld [vmem:[#allocation2 + $0x4d8] sm:$0xff]
    %v202 = vld [vmem:[#allocation2 + $0x4e0] sm:$0xff]
    %v203 = vld [vmem:[#allocation2 + $0x4e8] sm:$0xff]
    %v204 = vld [vmem:[#allocation2 + $0x4f0] sm:$0xff]
    %v205 = vld [vmem:[#allocation2 + $0x4f8] sm:$0xff]
    %v206 = vld [vmem:[#allocation2 + $0x500] sm:$0xff]
    %v207 = vld [vmem:[#allocation2 + $0x508] sm:$0xff]
    %v208 = vld [vmem:[#allocation2 + $0x510] sm:$0xff]
    %v209 = vld [vmem:[#allocation2 + $0x518] sm:$0xff]
    %v210 = vld [vmem:[#allocation2 + $0x520] sm:$0xff]
    %v211 = vld [vmem:[#allocation2 + $0x528] sm:$0xff]
    %v212 = vld [vmem:[#allocation2 + $0x530] sm:$0xff]
    %v213 = vld [vmem:[#allocation2 + $0x538] sm:$0xff]
    %v214 = vld [vmem:[#allocation2 + $0x540] sm:$0xff]
    %v215 = vld [vmem:[#allocation2 + $0x548] sm:$0xff]
    %v216 = vld [vmem:[#allocation2 + $0x550] sm:$0xff]
    %v217 = vld [vmem:[#allocation2 + $0x558] sm:$0xff]
    %v218 = vld [vmem:[#allocation2 + $0x560] sm:$0xff]
    %v219 = vld [vmem:[#allocation2 + $0x568] sm:$0xff]
    %v220 = vld [vmem:[#allocation2 + $0x570] sm:$0xff]
    %v221 = vld [vmem:[#allocation2 + $0x578] sm:$0xff]
    %v222 = vld [vmem:[#allocation2 + $0x580] sm:$0xff]
    %v223 = vld [vmem:[#allocation2 + $0x588] sm:$0xff]
    %v224 = vld [vmem:[#allocation2 + $0x590] sm:$0xff]
    %v225 = vld [vmem:[#allocation2 + $0x598] sm:$0xff]
    %v226 = vld [vmem:[#allocation2 + $0x5a0] sm:$0xff]
    %v227 = vld [vmem:[#allocation2 + $0x5a8] sm:$0xff]
    %v228 = vld [vmem:[#allocation2 + $0x5b0] sm:$0xff]
    %v229 = vld [vmem:[#allocation2 + $0x5b8] sm:$0xff]
    %v230 = vld [vmem:[#allocation2 + $0x5c0] sm:$0xff]
    %v231 = vld [vmem:[#allocation2 + $0x5c8] sm:$0xff]
    %v232 = vld [vmem:[#allocation2 + $0x5d0] sm:$0xff]
    %v233 = vld [vmem:[#allocation2 + $0x5d8] sm:$0xff]
    %v234 = vld [vmem:[#allocation2 + $0x5e0] sm:$0xff]
    %v235 = vld [vmem:[#allocation2 + $0x5e8] sm:$0xff]
    %v236 = vld [vmem:[#allocation2 + $0x5f0] sm:$0xff]
    %v237 = vld [vmem:[#allocation2 + $0x5f8] sm:$0xff]
    %v238 = vld [vmem:[#allocation2 + $0x600] sm:$0xff]
    %v239 = vld [vmem:[#allocation2 + $0x608] sm:$0xff]
    %v240 = vld [vmem:[#allocation2 + $0x610] sm:$0xff]
    %v241 = vld [vmem:[#allocation2 + $0x618] sm:$0xff]
    %v242 = vld [vmem:[#allocation2 + $0x620] sm:$0xff]
    %v243 = vld [vmem:[#allocation2 + $0x628] sm:$0xff]
    %v244 = vld [vmem:[#allocation2 + $0x630] sm:$0xff]
    %v245 = vld [vmem:[#allocation2 + $0x638] sm:$0xff]
    %v246 = vld [vmem:[#allocation2 + $0x640] sm:$0xff]
    %v247 = vld [vmem:[#allocation2 + $0x648] sm:$0xff]
    %v248 = vld [vmem:[#allocation2 + $0x650] sm:$0xff]
    %v249 = vld [vmem:[#allocation2 + $0x658] sm:$0xff]
    %v250 = vld [vmem:[#allocation2 + $0x660] sm:$0xff]
    %v251 = vld [vmem:[#allocation2 + $0x668] sm:$0xff]
    %v252 = vld [vmem:[#allocation2 + $0x670] sm:$0xff]
    %v253 = vld [vmem:[#allocation2 + $0x678] sm:$0xff]
    %v254 = vld [vmem:[#allocation2 + $0x680] sm:$0xff]
    %v255 = vld [vmem:[#allocation2 + $0x688] sm:$0xff]
    %v256 = vld [vmem:[#allocation2 + $0x690] sm:$0xff]
    %v257 = vld [vmem:[#allocation2 + $0x698] sm:$0xff]
    %v258 = vld [vmem:[#allocation2 + $0x6a0] sm:$0xff]
    %v259 = vld [vmem:[#allocation2 + $0x6a8] sm:$0xff]
    %v260 = vld [vmem:[#allocation2 + $0x6b0] sm:$0xff]
    %v261 = vld [vmem:[#allocation2 + $0x6b8] sm:$0xff]
    %v262 = vld [vmem:[#allocation2 + $0x6c0] sm:$0xff]
    %v263 = vld [vmem:[#allocation2 + $0x6c8] sm:$0xff]
    %v264 = vld [vmem:[#allocation2 + $0x6d0] sm:$0xff]
    %v265 = vld [vmem:[#allocation2 + $0x6d8] sm:$0xff]
    %v266 = vld [vmem:[#allocation2 + $0x6e0] sm:$0xff]
    %v267 = vld [vmem:[#allocation2 + $0x6e8] sm:$0xff]
    %v268 = vld [vmem:[#allocation2 + $0x6f0] sm:$0xff]
    %v269 = vld [vmem:[#allocation2 + $0x6f8] sm:$0xff]
    %v270 = vld [vmem:[#allocation2 + $0x700] sm:$0xff]
    %v271 = vld [vmem:[#allocation2 + $0x708] sm:$0xff]
    %v272 = vld [vmem:[#allocation2 + $0x710] sm:$0xff]
    %v273 = vld [vmem:[#allocation2 + $0x718] sm:$0xff]
    %v274 = vld [vmem:[#allocation2 + $0x720] sm:$0xff]
    %v275 = vld [vmem:[#allocation2 + $0x728] sm:$0xff]
    %v276 = vld [vmem:[#allocation2 + $0x730] sm:$0xff]
    %v277 = vld [vmem:[#allocation2 + $0x738] sm:$0xff]
    %v278 = vld [vmem:[#allocation2 + $0x740] sm:$0xff]
    %v279 = vld [vmem:[#allocation2 + $0x748] sm:$0xff]
    %v280 = vld [vmem:[#allocation2 + $0x750] sm:$0xff]
    %v281 = vld [vmem:[#allocation2 + $0x758] sm:$0xff]
    %v282 = vld [vmem:[#allocation2 + $0x760] sm:$0xff]
    %v283 = vld [vmem:[#allocation2 + $0x768] sm:$0xff]
    %v284 = vld [vmem:[#allocation2 + $0x770] sm:$0xff]
    %v285 = vld [vmem:[#allocation2 + $0x778] sm:$0xff]
    %v286 = vld [vmem:[#allocation2 + $0x780] sm:$0xff]
    %v287 = vld [vmem:[#allocation2 + $0x788] sm:$0xff]
    %v288 = vld [vmem:[#allocation2 + $0x790] sm:$0xff]
    %v289 = vld [vmem:[#allocation2 + $0x798] sm:$0xff]
    %v290 = vld [vmem:[#allocation2 + $0x7a0] sm:$0xff]
    %v291 = vld [vmem:[#allocation2 + $0x7a8] sm:$0xff]
    %v292 = vld [vmem:[#allocation2 + $0x7b0] sm:$0xff]
    %v293 = vld [vmem:[#allocation2 + $0x7b8] sm:$0xff]
    %v294 = vld [vmem:[#allocation2 + $0x7c0] sm:$0xff]
    %v295 = vld [vmem:[#allocation2 + $0x7c8] sm:$0xff]
    %v296 = vld [vmem:[#allocation2 + $0x7d0] sm:$0xff]
    %v297 = vld [vmem:[#allocation2 + $0x7d8] sm:$0xff]
    %v298 = vld [vmem:[#allocation2 + $0x7e0] sm:$0xff]
    %v299 = vld [vmem:[#allocation2 + $0x7e8] sm:$0xff]
    %v300 = vld [vmem:[#allocation2 + $0x7f0] sm:$0xff]
    %v301 = vld [vmem:[#allocation2 + $0x7f8] sm:$0xff]
    %v302 = vld [vmem:[#allocation4] sm:$0xff]
    %v304 = vperm.slane %v302, 0
    %v305 = vperm.slane %v302, 1
    %v306 = vperm.slane %v302, 2
    %v307 = vperm.slane %v302, 3
    %v308 = vperm.slane %v302, 4
    %v309 = vperm.slane %v302, 5
    %v310 = vperm.slane %v302, 6
    %v311 = vperm.slane %v302, 7
    %v322 = vunpack.c.l.b16 %v44
    %v323 = vunpack.c.h.b16 %v44
    %v324 = vunpack.c.l.b16 %v45
    %v325 = vunpack.c.h.b16 %v45
    %v326 = vpack.c.b16 %v322, %v322
    %v327 = vpack.c.b16 %v323, %v323
    %v328 = vpack.c.b16 %v324, %v324
    %v329 = vpack.c.b16 %v325, %v325
    %v590 = vunpack.c.l.b16 %v46
    %v591 = vunpack.c.h.b16 %v46
    %v592 = vunpack.c.l.b16 %v47
    %v593 = vunpack.c.h.b16 %v47
    %v594 = vunpack.c.l.b16 %v48
    %v595 = vunpack.c.h.b16 %v48
    %v596 = vunpack.c.l.b16 %v49
    %v597 = vunpack.c.h.b16 %v49
    %v598 = vunpack.c.l.b16 %v50
    %v599 = vunpack.c.h.b16 %v50
    %v600 = vunpack.c.l.b16 %v51
    %v601 = vunpack.c.h.b16 %v51
    %v602 = vunpack.c.l.b16 %v52
    %v603 = vunpack.c.h.b16 %v52
    %v604 = vunpack.c.l.b16 %v53
    %v605 = vunpack.c.h.b16 %v53
    %v606 = vunpack.c.l.b16 %v54
    %v607 = vunpack.c.h.b16 %v54
    %v608 = vunpack.c.l.b16 %v55
    %v609 = vunpack.c.h.b16 %v55
    %v610 = vunpack.c.l.b16 %v56
    %v611 = vunpack.c.h.b16 %v56
    %v612 = vunpack.c.l.b16 %v57
    %v613 = vunpack.c.h.b16 %v57
    %v614 = vunpack.c.l.b16 %v58
    %v615 = vunpack.c.h.b16 %v58
    %v616 = vunpack.c.l.b16 %v59
    %v617 = vunpack.c.h.b16 %v59
    %v618 = vunpack.c.l.b16 %v60
    %v619 = vunpack.c.h.b16 %v60
    %v620 = vunpack.c.l.b16 %v61
    %v621 = vunpack.c.h.b16 %v61
    %v622 = vunpack.c.l.b16 %v62
    %v623 = vunpack.c.h.b16 %v62
    %v624 = vunpack.c.l.b16 %v63
    %v625 = vunpack.c.h.b16 %v63
    %v626 = vunpack.c.l.b16 %v64
    %v627 = vunpack.c.h.b16 %v64
    %v628 = vunpack.c.l.b16 %v65
    %v629 = vunpack.c.h.b16 %v65
    %v630 = vunpack.c.l.b16 %v66
    %v631 = vunpack.c.h.b16 %v66
    %v632 = vunpack.c.l.b16 %v67
    %v633 = vunpack.c.h.b16 %v67
    %v634 = vunpack.c.l.b16 %v68
    %v635 = vunpack.c.h.b16 %v68
    %v636 = vunpack.c.l.b16 %v69
    %v637 = vunpack.c.h.b16 %v69
    %v638 = vunpack.c.l.b16 %v70
    %v639 = vunpack.c.h.b16 %v70
    %v640 = vunpack.c.l.b16 %v71
    %v641 = vunpack.c.h.b16 %v71
    %v642 = vunpack.c.l.b16 %v72
    %v643 = vunpack.c.h.b16 %v72
    %v644 = vunpack.c.l.b16 %v73
    %v645 = vunpack.c.h.b16 %v73
    %v646 = vunpack.c.l.b16 %v74
    %v647 = vunpack.c.h.b16 %v74
    %v648 = vunpack.c.l.b16 %v75
    %v649 = vunpack.c.h.b16 %v75
    %v650 = vunpack.c.l.b16 %v76
    %v651 = vunpack.c.h.b16 %v76
    %v652 = vunpack.c.l.b16 %v77
    %v653 = vunpack.c.h.b16 %v77
    %v654 = vunpack.c.l.b16 %v78
    %v655 = vunpack.c.h.b16 %v78
    %v656 = vunpack.c.l.b16 %v79
    %v657 = vunpack.c.h.b16 %v79
    %v658 = vunpack.c.l.b16 %v80
    %v659 = vunpack.c.h.b16 %v80
    %v660 = vunpack.c.l.b16 %v81
    %v661 = vunpack.c.h.b16 %v81
    %v662 = vunpack.c.l.b16 %v82
    %v663 = vunpack.c.h.b16 %v82
    %v664 = vunpack.c.l.b16 %v83
    %v665 = vunpack.c.h.b16 %v83
    %v666 = vunpack.c.l.b16 %v84
    %v667 = vunpack.c.h.b16 %v84
    %v668 = vunpack.c.l.b16 %v85
    %v669 = vunpack.c.h.b16 %v85
    %v670 = vunpack.c.l.b16 %v86
    %v671 = vunpack.c.h.b16 %v86
    %v672 = vunpack.c.l.b16 %v87
    %v673 = vunpack.c.h.b16 %v87
    %v674 = vunpack.c.l.b16 %v88
    %v675 = vunpack.c.h.b16 %v88
    %v676 = vunpack.c.l.b16 %v89
    %v677 = vunpack.c.h.b16 %v89
    %v678 = vunpack.c.l.b16 %v90
    %v679 = vunpack.c.h.b16 %v90
    %v680 = vunpack.c.l.b16 %v91
    %v681 = vunpack.c.h.b16 %v91
    %v682 = vunpack.c.l.b16 %v92
    %v683 = vunpack.c.h.b16 %v92
    %v684 = vunpack.c.l.b16 %v93
    %v685 = vunpack.c.h.b16 %v93
    %v686 = vunpack.c.l.b16 %v94
    %v687 = vunpack.c.h.b16 %v94
    %v688 = vunpack.c.l.b16 %v95
    %v689 = vunpack.c.h.b16 %v95
    %v690 = vunpack.c.l.b16 %v96
    %v691 = vunpack.c.h.b16 %v96
    %v692 = vunpack.c.l.b16 %v97
    %v693 = vunpack.c.h.b16 %v97
    %v694 = vunpack.c.l.b16 %v98
    %v695 = vunpack.c.h.b16 %v98
    %v696 = vunpack.c.l.b16 %v99
    %v697 = vunpack.c.h.b16 %v99
    %v698 = vunpack.c.l.b16 %v100
    %v699 = vunpack.c.h.b16 %v100
    %v700 = vunpack.c.l.b16 %v101
    %v701 = vunpack.c.h.b16 %v101
    %v702 = vunpack.c.l.b16 %v102
    %v703 = vunpack.c.h.b16 %v102
    %v704 = vunpack.c.l.b16 %v103
    %v705 = vunpack.c.h.b16 %v103
    %v706 = vunpack.c.l.b16 %v104
    %v707 = vunpack.c.h.b16 %v104
    %v708 = vunpack.c.l.b16 %v105
    %v709 = vunpack.c.h.b16 %v105
    %v710 = vunpack.c.l.b16 %v106
    %v711 = vunpack.c.h.b16 %v106
    %v712 = vunpack.c.l.b16 %v107
    %v713 = vunpack.c.h.b16 %v107
    %v714 = vunpack.c.l.b16 %v108
    %v715 = vunpack.c.h.b16 %v108
    %v716 = vunpack.c.l.b16 %v109
    %v717 = vunpack.c.h.b16 %v109
    %v718 = vunpack.c.l.b16 %v110
    %v719 = vunpack.c.h.b16 %v110
    %v720 = vunpack.c.l.b16 %v111
    %v721 = vunpack.c.h.b16 %v111
    %v722 = vunpack.c.l.b16 %v112
    %v723 = vunpack.c.h.b16 %v112
    %v724 = vunpack.c.l.b16 %v113
    %v725 = vunpack.c.h.b16 %v113
    %v726 = vunpack.c.l.b16 %v114
    %v727 = vunpack.c.h.b16 %v114
    %v728 = vunpack.c.l.b16 %v115
    %v729 = vunpack.c.h.b16 %v115
    %v730 = vunpack.c.l.b16 %v116
    %v731 = vunpack.c.h.b16 %v116
    %v732 = vunpack.c.l.b16 %v117
    %v733 = vunpack.c.h.b16 %v117
    %v734 = vunpack.c.l.b16 %v118
    %v735 = vunpack.c.h.b16 %v118
    %v736 = vunpack.c.l.b16 %v119
    %v737 = vunpack.c.h.b16 %v119
    %v738 = vunpack.c.l.b16 %v120
    %v739 = vunpack.c.h.b16 %v120
    %v740 = vunpack.c.l.b16 %v121
    %v741 = vunpack.c.h.b16 %v121
    %v742 = vunpack.c.l.b16 %v122
    %v743 = vunpack.c.h.b16 %v122
    %v744 = vunpack.c.l.b16 %v123
    %v745 = vunpack.c.h.b16 %v123
    %v746 = vunpack.c.l.b16 %v124
    %v747 = vunpack.c.h.b16 %v124
    %v748 = vunpack.c.l.b16 %v125
    %v749 = vunpack.c.h.b16 %v125
    %v750 = vunpack.c.l.b16 %v126
    %v751 = vunpack.c.h.b16 %v126
    %v752 = vunpack.c.l.b16 %v127
    %v753 = vunpack.c.h.b16 %v127
    %v754 = vunpack.c.l.b16 %v128
    %v755 = vunpack.c.h.b16 %v128
    %v756 = vunpack.c.l.b16 %v129
    %v757 = vunpack.c.h.b16 %v129
    %v758 = vunpack.c.l.b16 %v130
    %v759 = vunpack.c.h.b16 %v130
    %v760 = vunpack.c.l.b16 %v131
    %v761 = vunpack.c.h.b16 %v131
    %v762 = vunpack.c.l.b16 %v132
    %v763 = vunpack.c.h.b16 %v132
    %v764 = vunpack.c.l.b16 %v133
    %v765 = vunpack.c.h.b16 %v133
    %v766 = vunpack.c.l.b16 %v134
    %v767 = vunpack.c.h.b16 %v134
    %v768 = vunpack.c.l.b16 %v135
    %v769 = vunpack.c.h.b16 %v135
    %v770 = vunpack.c.l.b16 %v136
    %v771 = vunpack.c.h.b16 %v136
    %v772 = vunpack.c.l.b16 %v137
    %v773 = vunpack.c.h.b16 %v137
    %v774 = vunpack.c.l.b16 %v138
    %v775 = vunpack.c.h.b16 %v138
    %v776 = vunpack.c.l.b16 %v139
    %v777 = vunpack.c.h.b16 %v139
    %v778 = vunpack.c.l.b16 %v140
    %v779 = vunpack.c.h.b16 %v140
    %v780 = vunpack.c.l.b16 %v141
    %v781 = vunpack.c.h.b16 %v141
    %v782 = vunpack.c.l.b16 %v142
    %v783 = vunpack.c.h.b16 %v142
    %v784 = vunpack.c.l.b16 %v143
    %v785 = vunpack.c.h.b16 %v143
    %v786 = vunpack.c.l.b16 %v144
    %v787 = vunpack.c.h.b16 %v144
    %v788 = vunpack.c.l.b16 %v145
    %v789 = vunpack.c.h.b16 %v145
    %v790 = vunpack.c.l.b16 %v146
    %v791 = vunpack.c.h.b16 %v146
    %v792 = vunpack.c.l.b16 %v147
    %v793 = vunpack.c.h.b16 %v147
    %v794 = vunpack.c.l.b16 %v148
    %v795 = vunpack.c.h.b16 %v148
    %v796 = vunpack.c.l.b16 %v149
    %v797 = vunpack.c.h.b16 %v149
    %v798 = vunpack.c.l.b16 %v150
    %v799 = vunpack.c.h.b16 %v150
    %v800 = vunpack.c.l.b16 %v151
    %v801 = vunpack.c.h.b16 %v151
    %v802 = vunpack.c.l.b16 %v152
    %v803 = vunpack.c.h.b16 %v152
    %v804 = vunpack.c.l.b16 %v153
    %v805 = vunpack.c.h.b16 %v153
    %v806 = vunpack.c.l.b16 %v154
    %v807 = vunpack.c.h.b16 %v154
    %v808 = vunpack.c.l.b16 %v155
    %v809 = vunpack.c.h.b16 %v155
    %v810 = vunpack.c.l.b16 %v156
    %v811 = vunpack.c.h.b16 %v156
    %v812 = vunpack.c.l.b16 %v157
    %v813 = vunpack.c.h.b16 %v157
    %v814 = vunpack.c.l.b16 %v158
    %v815 = vunpack.c.h.b16 %v158
    %v816 = vunpack.c.l.b16 %v159
    %v817 = vunpack.c.h.b16 %v159
    %v818 = vunpack.c.l.b16 %v160
    %v819 = vunpack.c.h.b16 %v160
    %v820 = vunpack.c.l.b16 %v161
    %v821 = vunpack.c.h.b16 %v161
    %v822 = vunpack.c.l.b16 %v162
    %v823 = vunpack.c.h.b16 %v162
    %v824 = vunpack.c.l.b16 %v163
    %v825 = vunpack.c.h.b16 %v163
    %v826 = vunpack.c.l.b16 %v164
    %v827 = vunpack.c.h.b16 %v164
    %v828 = vunpack.c.l.b16 %v165
    %v829 = vunpack.c.h.b16 %v165
    %v830 = vunpack.c.l.b16 %v166
    %v831 = vunpack.c.h.b16 %v166
    %v832 = vunpack.c.l.b16 %v167
    %v833 = vunpack.c.h.b16 %v167
    %v834 = vunpack.c.l.b16 %v168
    %v835 = vunpack.c.h.b16 %v168
    %v836 = vunpack.c.l.b16 %v169
    %v837 = vunpack.c.h.b16 %v169
    %v838 = vunpack.c.l.b16 %v170
    %v839 = vunpack.c.h.b16 %v170
    %v840 = vunpack.c.l.b16 %v171
    %v841 = vunpack.c.h.b16 %v171
    %v842 = vunpack.c.l.b16 %v172
    %v843 = vunpack.c.h.b16 %v172
    %v844 = vunpack.c.l.b16 %v173
    %v845 = vunpack.c.h.b16 %v173
    %v846 = vunpack.c.l.b16 %v174
    %v847 = vunpack.c.h.b16 %v174
    %v848 = vunpack.c.l.b16 %v175
    %v849 = vunpack.c.h.b16 %v175
    %v850 = vunpack.c.l.b16 %v176
    %v851 = vunpack.c.h.b16 %v176
    %v852 = vunpack.c.l.b16 %v177
    %v853 = vunpack.c.h.b16 %v177
    %v854 = vunpack.c.l.b16 %v178
    %v855 = vunpack.c.h.b16 %v178
    %v856 = vunpack.c.l.b16 %v179
    %v857 = vunpack.c.h.b16 %v179
    %v858 = vunpack.c.l.b16 %v180
    %v859 = vunpack.c.h.b16 %v180
    %v860 = vunpack.c.l.b16 %v181
    %v861 = vunpack.c.h.b16 %v181
    %v862 = vunpack.c.l.b16 %v182
    %v863 = vunpack.c.h.b16 %v182
    %v864 = vunpack.c.l.b16 %v183
    %v865 = vunpack.c.h.b16 %v183
    %v866 = vunpack.c.l.b16 %v184
    %v867 = vunpack.c.h.b16 %v184
    %v868 = vunpack.c.l.b16 %v185
    %v869 = vunpack.c.h.b16 %v185
    %v870 = vunpack.c.l.b16 %v186
    %v871 = vunpack.c.h.b16 %v186
    %v872 = vunpack.c.l.b16 %v187
    %v873 = vunpack.c.h.b16 %v187
    %v874 = vunpack.c.l.b16 %v188
    %v875 = vunpack.c.h.b16 %v188
    %v876 = vunpack.c.l.b16 %v189
    %v877 = vunpack.c.h.b16 %v189
    %v878 = vunpack.c.l.b16 %v190
    %v879 = vunpack.c.h.b16 %v190
    %v880 = vunpack.c.l.b16 %v191
    %v881 = vunpack.c.h.b16 %v191
    %v882 = vunpack.c.l.b16 %v192
    %v883 = vunpack.c.h.b16 %v192
    %v884 = vunpack.c.l.b16 %v193
    %v885 = vunpack.c.h.b16 %v193
    %v886 = vunpack.c.l.b16 %v194
    %v887 = vunpack.c.h.b16 %v194
    %v888 = vunpack.c.l.b16 %v195
    %v889 = vunpack.c.h.b16 %v195
    %v890 = vunpack.c.l.b16 %v196
    %v891 = vunpack.c.h.b16 %v196
    %v892 = vunpack.c.l.b16 %v197
    %v893 = vunpack.c.h.b16 %v197
    %v894 = vunpack.c.l.b16 %v198
    %v895 = vunpack.c.h.b16 %v198
    %v896 = vunpack.c.l.b16 %v199
    %v897 = vunpack.c.h.b16 %v199
    %v898 = vunpack.c.l.b16 %v200
    %v899 = vunpack.c.h.b16 %v200
    %v900 = vunpack.c.l.b16 %v201
    %v901 = vunpack.c.h.b16 %v201
    %v902 = vunpack.c.l.b16 %v202
    %v903 = vunpack.c.h.b16 %v202
    %v904 = vunpack.c.l.b16 %v203
    %v905 = vunpack.c.h.b16 %v203
    %v906 = vunpack.c.l.b16 %v204
    %v907 = vunpack.c.h.b16 %v204
    %v908 = vunpack.c.l.b16 %v205
    %v909 = vunpack.c.h.b16 %v205
    %v910 = vunpack.c.l.b16 %v206
    %v911 = vunpack.c.h.b16 %v206
    %v912 = vunpack.c.l.b16 %v207
    %v913 = vunpack.c.h.b16 %v207
    %v914 = vunpack.c.l.b16 %v208
    %v915 = vunpack.c.h.b16 %v208
    %v916 = vunpack.c.l.b16 %v209
    %v917 = vunpack.c.h.b16 %v209
    %v918 = vunpack.c.l.b16 %v210
    %v919 = vunpack.c.h.b16 %v210
    %v920 = vunpack.c.l.b16 %v211
    %v921 = vunpack.c.h.b16 %v211
    %v922 = vunpack.c.l.b16 %v212
    %v923 = vunpack.c.h.b16 %v212
    %v924 = vunpack.c.l.b16 %v213
    %v925 = vunpack.c.h.b16 %v213
    %v926 = vunpack.c.l.b16 %v214
    %v927 = vunpack.c.h.b16 %v214
    %v928 = vunpack.c.l.b16 %v215
    %v929 = vunpack.c.h.b16 %v215
    %v930 = vunpack.c.l.b16 %v216
    %v931 = vunpack.c.h.b16 %v216
    %v932 = vunpack.c.l.b16 %v217
    %v933 = vunpack.c.h.b16 %v217
    %v934 = vunpack.c.l.b16 %v218
    %v935 = vunpack.c.h.b16 %v218
    %v936 = vunpack.c.l.b16 %v219
    %v937 = vunpack.c.h.b16 %v219
    %v938 = vunpack.c.l.b16 %v220
    %v939 = vunpack.c.h.b16 %v220
    %v940 = vunpack.c.l.b16 %v221
    %v941 = vunpack.c.h.b16 %v221
    %v942 = vunpack.c.l.b16 %v222
    %v943 = vunpack.c.h.b16 %v222
    %v944 = vunpack.c.l.b16 %v223
    %v945 = vunpack.c.h.b16 %v223
    %v946 = vunpack.c.l.b16 %v224
    %v947 = vunpack.c.h.b16 %v224
    %v948 = vunpack.c.l.b16 %v225
    %v949 = vunpack.c.h.b16 %v225
    %v950 = vunpack.c.l.b16 %v226
    %v951 = vunpack.c.h.b16 %v226
    %v952 = vunpack.c.l.b16 %v227
    %v953 = vunpack.c.h.b16 %v227
    %v954 = vunpack.c.l.b16 %v228
    %v955 = vunpack.c.h.b16 %v228
    %v956 = vunpack.c.l.b16 %v229
    %v957 = vunpack.c.h.b16 %v229
    %v958 = vunpack.c.l.b16 %v230
    %v959 = vunpack.c.h.b16 %v230
    %v960 = vunpack.c.l.b16 %v231
    %v961 = vunpack.c.h.b16 %v231
    %v962 = vunpack.c.l.b16 %v232
    %v963 = vunpack.c.h.b16 %v232
    %v964 = vunpack.c.l.b16 %v233
    %v965 = vunpack.c.h.b16 %v233
    %v966 = vunpack.c.l.b16 %v234
    %v967 = vunpack.c.h.b16 %v234
    %v968 = vunpack.c.l.b16 %v235
    %v969 = vunpack.c.h.b16 %v235
    %v970 = vunpack.c.l.b16 %v236
    %v971 = vunpack.c.h.b16 %v236
    %v972 = vunpack.c.l.b16 %v237
    %v973 = vunpack.c.h.b16 %v237
    %v974 = vunpack.c.l.b16 %v238
    %v975 = vunpack.c.h.b16 %v238
    %v976 = vunpack.c.l.b16 %v239
    %v977 = vunpack.c.h.b16 %v239
    %v978 = vunpack.c.l.b16 %v240
    %v979 = vunpack.c.h.b16 %v240
    %v980 = vunpack.c.l.b16 %v241
    %v981 = vunpack.c.h.b16 %v241
    %v982 = vunpack.c.l.b16 %v242
    %v983 = vunpack.c.h.b16 %v242
    %v984 = vunpack.c.l.b16 %v243
    %v985 = vunpack.c.h.b16 %v243
    %v986 = vunpack.c.l.b16 %v244
    %v987 = vunpack.c.h.b16 %v244
    %v988 = vunpack.c.l.b16 %v245
    %v989 = vunpack.c.h.b16 %v245
    %v990 = vunpack.c.l.b16 %v246
    %v991 = vunpack.c.h.b16 %v246
    %v992 = vunpack.c.l.b16 %v247
    %v993 = vunpack.c.h.b16 %v247
    %v994 = vunpack.c.l.b16 %v248
    %v995 = vunpack.c.h.b16 %v248
    %v996 = vunpack.c.l.b16 %v249
    %v997 = vunpack.c.h.b16 %v249
    %v998 = vunpack.c.l.b16 %v250
    %v999 = vunpack.c.h.b16 %v250
    %v1000 = vunpack.c.l.b16 %v251
    %v1001 = vunpack.c.h.b16 %v251
    %v1002 = vunpack.c.l.b16 %v252
    %v1003 = vunpack.c.h.b16 %v252
    %v1004 = vunpack.c.l.b16 %v253
    %v1005 = vunpack.c.h.b16 %v253
    %v1006 = vunpack.c.l.b16 %v254
    %v1007 = vunpack.c.h.b16 %v254
    %v1008 = vunpack.c.l.b16 %v255
    %v1009 = vunpack.c.h.b16 %v255
    %v1010 = vunpack.c.l.b16 %v256
    %v1011 = vunpack.c.h.b16 %v256
    %v1012 = vunpack.c.l.b16 %v257
    %v1013 = vunpack.c.h.b16 %v257
    %v1014 = vunpack.c.l.b16 %v258
    %v1015 = vunpack.c.h.b16 %v258
    %v1016 = vunpack.c.l.b16 %v259
    %v1017 = vunpack.c.h.b16 %v259
    %v1018 = vunpack.c.l.b16 %v260
    %v1019 = vunpack.c.h.b16 %v260
    %v1020 = vunpack.c.l.b16 %v261
    %v1021 = vunpack.c.h.b16 %v261
    %v1022 = vunpack.c.l.b16 %v262
    %v1023 = vunpack.c.h.b16 %v262
    %v1024 = vunpack.c.l.b16 %v263
    %v1025 = vunpack.c.h.b16 %v263
    %v1026 = vunpack.c.l.b16 %v264
    %v1027 = vunpack.c.h.b16 %v264
    %v1028 = vunpack.c.l.b16 %v265
    %v1029 = vunpack.c.h.b16 %v265
    %v1030 = vunpack.c.l.b16 %v266
    %v1031 = vunpack.c.h.b16 %v266
    %v1032 = vunpack.c.l.b16 %v267
    %v1033 = vunpack.c.h.b16 %v267
    %v1034 = vunpack.c.l.b16 %v268
    %v1035 = vunpack.c.h.b16 %v268
    %v1036 = vunpack.c.l.b16 %v269
    %v1037 = vunpack.c.h.b16 %v269
    %v1038 = vunpack.c.l.b16 %v270
    %v1039 = vunpack.c.h.b16 %v270
    %v1040 = vunpack.c.l.b16 %v271
    %v1041 = vunpack.c.h.b16 %v271
    %v1042 = vunpack.c.l.b16 %v272
    %v1043 = vunpack.c.h.b16 %v272
    %v1044 = vunpack.c.l.b16 %v273
    %v1045 = vunpack.c.h.b16 %v273
    %v1046 = vunpack.c.l.b16 %v274
    %v1047 = vunpack.c.h.b16 %v274
    %v1048 = vunpack.c.l.b16 %v275
    %v1049 = vunpack.c.h.b16 %v275
    %v1050 = vunpack.c.l.b16 %v276
    %v1051 = vunpack.c.h.b16 %v276
    %v1052 = vunpack.c.l.b16 %v277
    %v1053 = vunpack.c.h.b16 %v277
    %v1054 = vunpack.c.l.b16 %v278
    %v1055 = vunpack.c.h.b16 %v278
    %v1056 = vunpack.c.l.b16 %v279
    %v1057 = vunpack.c.h.b16 %v279
    %v1058 = vunpack.c.l.b16 %v280
    %v1059 = vunpack.c.h.b16 %v280
    %v1060 = vunpack.c.l.b16 %v281
    %v1061 = vunpack.c.h.b16 %v281
    %v1062 = vunpack.c.l.b16 %v282
    %v1063 = vunpack.c.h.b16 %v282
    %v1064 = vunpack.c.l.b16 %v283
    %v1065 = vunpack.c.h.b16 %v283
    %v1066 = vunpack.c.l.b16 %v284
    %v1067 = vunpack.c.h.b16 %v284
    %v1068 = vunpack.c.l.b16 %v285
    %v1069 = vunpack.c.h.b16 %v285
    %v1070 = vunpack.c.l.b16 %v286
    %v1071 = vunpack.c.h.b16 %v286
    %v1072 = vunpack.c.l.b16 %v287
    %v1073 = vunpack.c.h.b16 %v287
    %v1074 = vunpack.c.l.b16 %v288
    %v1075 = vunpack.c.h.b16 %v288
    %v1076 = vunpack.c.l.b16 %v289
    %v1077 = vunpack.c.h.b16 %v289
    %v1078 = vunpack.c.l.b16 %v290
    %v1079 = vunpack.c.h.b16 %v290
    %v1080 = vunpack.c.l.b16 %v291
    %v1081 = vunpack.c.h.b16 %v291
    %v1082 = vunpack.c.l.b16 %v292
    %v1083 = vunpack.c.h.b16 %v292
    %v1084 = vunpack.c.l.b16 %v293
    %v1085 = vunpack.c.h.b16 %v293
    %v1086 = vunpack.c.l.b16 %v294
    %v1087 = vunpack.c.h.b16 %v294
    %v1088 = vunpack.c.l.b16 %v295
    %v1089 = vunpack.c.h.b16 %v295
    %v1090 = vunpack.c.l.b16 %v296
    %v1091 = vunpack.c.h.b16 %v296
    %v1092 = vunpack.c.l.b16 %v297
    %v1093 = vunpack.c.h.b16 %v297
    %v1094 = vunpack.c.l.b16 %v298
    %v1095 = vunpack.c.h.b16 %v298
    %v1096 = vunpack.c.l.b16 %v299
    %v1097 = vunpack.c.h.b16 %v299
    %v1098 = vunpack.c.l.b16 %v300
    %v1099 = vunpack.c.h.b16 %v300
    %v1100 = vunpack.c.l.b16 %v301
    %v1101 = vunpack.c.h.b16 %v301
    %v1102 = vpack.c.b16 %v598, %v590
    %v1103 = vpack.c.b16 %v599, %v591
    %v1104 = vpack.c.b16 %v600, %v592
    %v1105 = vpack.c.b16 %v601, %v593
    %v1106 = vpack.c.b16 %v602, %v594
    %v1107 = vpack.c.b16 %v603, %v595
    %v1108 = vpack.c.b16 %v604, %v596
    %v1109 = vpack.c.b16 %v605, %v597
    %v1110 = vpack.c.b16 %v614, %v606
    %v1111 = vpack.c.b16 %v615, %v607
    %v1112 = vpack.c.b16 %v616, %v608
    %v1113 = vpack.c.b16 %v617, %v609
    %v1114 = vpack.c.b16 %v618, %v610
    %v1115 = vpack.c.b16 %v619, %v611
    %v1116 = vpack.c.b16 %v620, %v612
    %v1117 = vpack.c.b16 %v621, %v613
    %v1118 = vpack.c.b16 %v630, %v622
    %v1119 = vpack.c.b16 %v631, %v623
    %v1120 = vpack.c.b16 %v632, %v624
    %v1121 = vpack.c.b16 %v633, %v625
    %v1122 = vpack.c.b16 %v634, %v626
    %v1123 = vpack.c.b16 %v635, %v627
    %v1124 = vpack.c.b16 %v636, %v628
    %v1125 = vpack.c.b16 %v637, %v629
    %v1126 = vpack.c.b16 %v646, %v638
    %v1127 = vpack.c.b16 %v647, %v639
    %v1128 = vpack.c.b16 %v648, %v640
    %v1129 = vpack.c.b16 %v649, %v641
    %v1130 = vpack.c.b16 %v650, %v642
    %v1131 = vpack.c.b16 %v651, %v643
    %v1132 = vpack.c.b16 %v652, %v644
    %v1133 = vpack.c.b16 %v653, %v645
    %v1134 = vpack.c.b16 %v662, %v654
    %v1135 = vpack.c.b16 %v663, %v655
    %v1136 = vpack.c.b16 %v664, %v656
    %v1137 = vpack.c.b16 %v665, %v657
    %v1138 = vpack.c.b16 %v666, %v658
    %v1139 = vpack.c.b16 %v667, %v659
    %v1140 = vpack.c.b16 %v668, %v660
    %v1141 = vpack.c.b16 %v669, %v661
    %v1142 = vpack.c.b16 %v678, %v670
    %v1143 = vpack.c.b16 %v679, %v671
    %v1144 = vpack.c.b16 %v680, %v672
    %v1145 = vpack.c.b16 %v681, %v673
    %v1146 = vpack.c.b16 %v682, %v674
    %v1147 = vpack.c.b16 %v683, %v675
    %v1148 = vpack.c.b16 %v684, %v676
    %v1149 = vpack.c.b16 %v685, %v677
    %v1150 = vpack.c.b16 %v694, %v686
    %v1151 = vpack.c.b16 %v695, %v687
    %v1152 = vpack.c.b16 %v696, %v688
    %v1153 = vpack.c.b16 %v697, %v689
    %v1154 = vpack.c.b16 %v698, %v690
    %v1155 = vpack.c.b16 %v699, %v691
    %v1156 = vpack.c.b16 %v700, %v692
    %v1157 = vpack.c.b16 %v701, %v693
    %v1158 = vpack.c.b16 %v710, %v702
    %v1159 = vpack.c.b16 %v711, %v703
    %v1160 = vpack.c.b16 %v712, %v704
    %v1161 = vpack.c.b16 %v713, %v705
    %v1162 = vpack.c.b16 %v714, %v706
    %v1163 = vpack.c.b16 %v715, %v707
    %v1164 = vpack.c.b16 %v716, %v708
    %v1165 = vpack.c.b16 %v717, %v709
    %v1166 = vpack.c.b16 %v726, %v718
    %v1167 = vpack.c.b16 %v727, %v719
    %v1168 = vpack.c.b16 %v728, %v720
    %v1169 = vpack.c.b16 %v729, %v721
    %v1170 = vpack.c.b16 %v730, %v722
    %v1171 = vpack.c.b16 %v731, %v723
    %v1172 = vpack.c.b16 %v732, %v724
    %v1173 = vpack.c.b16 %v733, %v725
    %v1174 = vpack.c.b16 %v742, %v734
    %v1175 = vpack.c.b16 %v743, %v735
    %v1176 = vpack.c.b16 %v744, %v736
    %v1177 = vpack.c.b16 %v745, %v737
    %v1178 = vpack.c.b16 %v746, %v738
    %v1179 = vpack.c.b16 %v747, %v739
    %v1180 = vpack.c.b16 %v748, %v740
    %v1181 = vpack.c.b16 %v749, %v741
    %v1182 = vpack.c.b16 %v758, %v750
    %v1183 = vpack.c.b16 %v759, %v751
    %v1184 = vpack.c.b16 %v760, %v752
    %v1185 = vpack.c.b16 %v761, %v753
    %v1186 = vpack.c.b16 %v762, %v754
    %v1187 = vpack.c.b16 %v763, %v755
    %v1188 = vpack.c.b16 %v764, %v756
    %v1189 = vpack.c.b16 %v765, %v757
    %v1190 = vpack.c.b16 %v774, %v766
    %v1191 = vpack.c.b16 %v775, %v767
    %v1192 = vpack.c.b16 %v776, %v768
    %v1193 = vpack.c.b16 %v777, %v769
    %v1194 = vpack.c.b16 %v778, %v770
    %v1195 = vpack.c.b16 %v779, %v771
    %v1196 = vpack.c.b16 %v780, %v772
    %v1197 = vpack.c.b16 %v781, %v773
    %v1198 = vpack.c.b16 %v790, %v782
    %v1199 = vpack.c.b16 %v791, %v783
    %v1200 = vpack.c.b16 %v792, %v784
    %v1201 = vpack.c.b16 %v793, %v785
    %v1202 = vpack.c.b16 %v794, %v786
    %v1203 = vpack.c.b16 %v795, %v787
    %v1204 = vpack.c.b16 %v796, %v788
    %v1205 = vpack.c.b16 %v797, %v789
    %v1206 = vpack.c.b16 %v806, %v798
    %v1207 = vpack.c.b16 %v807, %v799
    %v1208 = vpack.c.b16 %v808, %v800
    %v1209 = vpack.c.b16 %v809, %v801
    %v1210 = vpack.c.b16 %v810, %v802
    %v1211 = vpack.c.b16 %v811, %v803
    %v1212 = vpack.c.b16 %v812, %v804
    %v1213 = vpack.c.b16 %v813, %v805
    %v1214 = vpack.c.b16 %v822, %v814
    %v1215 = vpack.c.b16 %v823, %v815
    %v1216 = vpack.c.b16 %v824, %v816
    %v1217 = vpack.c.b16 %v825, %v817
    %v1218 = vpack.c.b16 %v826, %v818
    %v1219 = vpack.c.b16 %v827, %v819
    %v1220 = vpack.c.b16 %v828, %v820
    %v1221 = vpack.c.b16 %v829, %v821
    %v1222 = vpack.c.b16 %v838, %v830
    %v1223 = vpack.c.b16 %v839, %v831
    %v1224 = vpack.c.b16 %v840, %v832
    %v1225 = vpack.c.b16 %v841, %v833
    %v1226 = vpack.c.b16 %v842, %v834
    %v1227 = vpack.c.b16 %v843, %v835
    %v1228 = vpack.c.b16 %v844, %v836
    %v1229 = vpack.c.b16 %v845, %v837
    %v1230 = vpack.c.b16 %v854, %v846
    %v1231 = vpack.c.b16 %v855, %v847
    %v1232 = vpack.c.b16 %v856, %v848
    %v1233 = vpack.c.b16 %v857, %v849
    %v1234 = vpack.c.b16 %v858, %v850
    %v1235 = vpack.c.b16 %v859, %v851
    %v1236 = vpack.c.b16 %v860, %v852
    %v1237 = vpack.c.b16 %v861, %v853
    %v1238 = vpack.c.b16 %v870, %v862
    %v1239 = vpack.c.b16 %v871, %v863
    %v1240 = vpack.c.b16 %v872, %v864
    %v1241 = vpack.c.b16 %v873, %v865
    %v1242 = vpack.c.b16 %v874, %v866
    %v1243 = vpack.c.b16 %v875, %v867
    %v1244 = vpack.c.b16 %v876, %v868
    %v1245 = vpack.c.b16 %v877, %v869
    %v1246 = vpack.c.b16 %v886, %v878
    %v1247 = vpack.c.b16 %v887, %v879
    %v1248 = vpack.c.b16 %v888, %v880
    %v1249 = vpack.c.b16 %v889, %v881
    %v1250 = vpack.c.b16 %v890, %v882
    %v1251 = vpack.c.b16 %v891, %v883
    %v1252 = vpack.c.b16 %v892, %v884
    %v1253 = vpack.c.b16 %v893, %v885
    %v1254 = vpack.c.b16 %v902, %v894
    %v1255 = vpack.c.b16 %v903, %v895
    %v1256 = vpack.c.b16 %v904, %v896
    %v1257 = vpack.c.b16 %v905, %v897
    %v1258 = vpack.c.b16 %v906, %v898
    %v1259 = vpack.c.b16 %v907, %v899
    %v1260 = vpack.c.b16 %v908, %v900
    %v1261 = vpack.c.b16 %v909, %v901
    %v1262 = vpack.c.b16 %v918, %v910
    %v1263 = vpack.c.b16 %v919, %v911
    %v1264 = vpack.c.b16 %v920, %v912
    %v1265 = vpack.c.b16 %v921, %v913
    %v1266 = vpack.c.b16 %v922, %v914
    %v1267 = vpack.c.b16 %v923, %v915
    %v1268 = vpack.c.b16 %v924, %v916
    %v1269 = vpack.c.b16 %v925, %v917
    %v1270 = vpack.c.b16 %v934, %v926
    %v1271 = vpack.c.b16 %v935, %v927
    %v1272 = vpack.c.b16 %v936, %v928
    %v1273 = vpack.c.b16 %v937, %v929
    %v1274 = vpack.c.b16 %v938, %v930
    %v1275 = vpack.c.b16 %v939, %v931
    %v1276 = vpack.c.b16 %v940, %v932
    %v1277 = vpack.c.b16 %v941, %v933
    %v1278 = vpack.c.b16 %v950, %v942
    %v1279 = vpack.c.b16 %v951, %v943
    %v1280 = vpack.c.b16 %v952, %v944
    %v1281 = vpack.c.b16 %v953, %v945
    %v1282 = vpack.c.b16 %v954, %v946
    %v1283 = vpack.c.b16 %v955, %v947
    %v1284 = vpack.c.b16 %v956, %v948
    %v1285 = vpack.c.b16 %v957, %v949
    %v1286 = vpack.c.b16 %v966, %v958
    %v1287 = vpack.c.b16 %v967, %v959
    %v1288 = vpack.c.b16 %v968, %v960
    %v1289 = vpack.c.b16 %v969, %v961
    %v1290 = vpack.c.b16 %v970, %v962
    %v1291 = vpack.c.b16 %v971, %v963
    %v1292 = vpack.c.b16 %v972, %v964
    %v1293 = vpack.c.b16 %v973, %v965
    %v1294 = vpack.c.b16 %v982, %v974
    %v1295 = vpack.c.b16 %v983, %v975
    %v1296 = vpack.c.b16 %v984, %v976
    %v1297 = vpack.c.b16 %v985, %v977
    %v1298 = vpack.c.b16 %v986, %v978
    %v1299 = vpack.c.b16 %v987, %v979
    %v1300 = vpack.c.b16 %v988, %v980
    %v1301 = vpack.c.b16 %v989, %v981
    %v1302 = vpack.c.b16 %v998, %v990
    %v1303 = vpack.c.b16 %v999, %v991
    %v1304 = vpack.c.b16 %v1000, %v992
    %v1305 = vpack.c.b16 %v1001, %v993
    %v1306 = vpack.c.b16 %v1002, %v994
    %v1307 = vpack.c.b16 %v1003, %v995
    %v1308 = vpack.c.b16 %v1004, %v996
    %v1309 = vpack.c.b16 %v1005, %v997
    %v1310 = vpack.c.b16 %v1014, %v1006
    %v1311 = vpack.c.b16 %v1015, %v1007
    %v1312 = vpack.c.b16 %v1016, %v1008
    %v1313 = vpack.c.b16 %v1017, %v1009
    %v1314 = vpack.c.b16 %v1018, %v1010
    %v1315 = vpack.c.b16 %v1019, %v1011
    %v1316 = vpack.c.b16 %v1020, %v1012
    %v1317 = vpack.c.b16 %v1021, %v1013
    %v1318 = vpack.c.b16 %v1030, %v1022
    %v1319 = vpack.c.b16 %v1031, %v1023
    %v1320 = vpack.c.b16 %v1032, %v1024
    %v1321 = vpack.c.b16 %v1033, %v1025
    %v1322 = vpack.c.b16 %v1034, %v1026
    %v1323 = vpack.c.b16 %v1035, %v1027
    %v1324 = vpack.c.b16 %v1036, %v1028
    %v1325 = vpack.c.b16 %v1037, %v1029
    %v1326 = vpack.c.b16 %v1046, %v1038
    %v1327 = vpack.c.b16 %v1047, %v1039
    %v1328 = vpack.c.b16 %v1048, %v1040
    %v1329 = vpack.c.b16 %v1049, %v1041
    %v1330 = vpack.c.b16 %v1050, %v1042
    %v1331 = vpack.c.b16 %v1051, %v1043
    %v1332 = vpack.c.b16 %v1052, %v1044
    %v1333 = vpack.c.b16 %v1053, %v1045
    %v1334 = vpack.c.b16 %v1062, %v1054
    %v1335 = vpack.c.b16 %v1063, %v1055
    %v1336 = vpack.c.b16 %v1064, %v1056
    %v1337 = vpack.c.b16 %v1065, %v1057
    %v1338 = vpack.c.b16 %v1066, %v1058
    %v1339 = vpack.c.b16 %v1067, %v1059
    %v1340 = vpack.c.b16 %v1068, %v1060
    %v1341 = vpack.c.b16 %v1069, %v1061
    %v1342 = vpack.c.b16 %v1078, %v1070
    %v1343 = vpack.c.b16 %v1079, %v1071
    %v1344 = vpack.c.b16 %v1080, %v1072
    %v1345 = vpack.c.b16 %v1081, %v1073
    %v1346 = vpack.c.b16 %v1082, %v1074
    %v1347 = vpack.c.b16 %v1083, %v1075
    %v1348 = vpack.c.b16 %v1084, %v1076
    %v1349 = vpack.c.b16 %v1085, %v1077
    %v1350 = vpack.c.b16 %v1094, %v1086
    %v1351 = vpack.c.b16 %v1095, %v1087
    %v1352 = vpack.c.b16 %v1096, %v1088
    %v1353 = vpack.c.b16 %v1097, %v1089
    %v1354 = vpack.c.b16 %v1098, %v1090
    %v1355 = vpack.c.b16 %v1099, %v1091
    %v1356 = vpack.c.b16 %v1100, %v1092
    %v1357 = vpack.c.b16 %v1101, %v1093
    %1614 = vmatpush.bf16.msra.mxu0 %v1158
    %1615 = vmatpush.bf16.msra.mxu0 %v1150
    %1616 = vmatpush.bf16.msra.mxu0 %v1142
    %1617 = vmatpush.bf16.msra.mxu0 %v1134
    %1618 = vmatpush.bf16.msra.mxu0 %v1126
    %1619 = vmatpush.bf16.msra.mxu0 %v1118
    %1620 = vmatpush.bf16.msra.mxu0 %v1110
    %1621 = vmatpush.bf16.msra.mxu0 %v1102
    %1622 = vmatmul.bf16.gmra.mxu0 %v326
    %v1623 = vpop.f32.mrf.mxu0
    %v1624 = vadd.f32 %v304, %v1623
    %v1625 = vpop.f32.mrf.mxu0
    %1626 = vdwg.mxu0
    %1627 = vmatpush.bf16.msra.mxu0 %v1222
    %1628 = vmatpush.bf16.msra.mxu0 %v1214
    %1629 = vmatpush.bf16.msra.mxu0 %v1206
    %1630 = vmatpush.bf16.msra.mxu0 %v1198
    %1631 = vmatpush.bf16.msra.mxu0 %v1190
    %1632 = vmatpush.bf16.msra.mxu0 %v1182
    %1633 = vmatpush.bf16.msra.mxu0 %v1174
    %1634 = vmatpush.bf16.msra.mxu0 %v1166
    %1635 = vmatmul.bf16.gmra.mxu0 %v327
    %v1636 = vpop.f32.mrf.mxu0
    %v1637 = vadd.f32 %v1624, %v1636
    %v1638 = vpop.f32.mrf.mxu0
    %1639 = vdwg.mxu0
    %1640 = vmatpush.bf16.msra.mxu0 %v1286
    %1641 = vmatpush.bf16.msra.mxu0 %v1278
    %1642 = vmatpush.bf16.msra.mxu0 %v1270
    %1643 = vmatpush.bf16.msra.mxu0 %v1262
    %1644 = vmatpush.bf16.msra.mxu0 %v1254
    %1645 = vmatpush.bf16.msra.mxu0 %v1246
    %1646 = vmatpush.bf16.msra.mxu0 %v1238
    %1647 = vmatpush.bf16.msra.mxu0 %v1230
    %1648 = vmatmul.bf16.gmra.mxu0 %v328
    %v1649 = vpop.f32.mrf.mxu0
    %v1650 = vadd.f32 %v1637, %v1649
    %v1651 = vpop.f32.mrf.mxu0
    %1652 = vdwg.mxu0
    %1653 = vmatpush.bf16.msra.mxu0 %v1350
    %1654 = vmatpush.bf16.msra.mxu0 %v1342
    %1655 = vmatpush.bf16.msra.mxu0 %v1334
    %1656 = vmatpush.bf16.msra.mxu0 %v1326
    %1657 = vmatpush.bf16.msra.mxu0 %v1318
    %1658 = vmatpush.bf16.msra.mxu0 %v1310
    %1659 = vmatpush.bf16.msra.mxu0 %v1302
    %1660 = vmatpush.bf16.msra.mxu0 %v1294
    %1661 = vmatmul.bf16.gmra.mxu0 %v329
    %v1662 = vpop.f32.mrf.mxu0
    %v1663 = vadd.f32 %v1650, %v1662
    %v1664 = vpop.f32.mrf.mxu0
    %1665 = vdwg.mxu0
    %1666 = vmatpush.bf16.msra.mxu0 %v1159
    %1667 = vmatpush.bf16.msra.mxu0 %v1151
    %1668 = vmatpush.bf16.msra.mxu0 %v1143
    %1669 = vmatpush.bf16.msra.mxu0 %v1135
    %1670 = vmatpush.bf16.msra.mxu0 %v1127
    %1671 = vmatpush.bf16.msra.mxu0 %v1119
    %1672 = vmatpush.bf16.msra.mxu0 %v1111
    %1673 = vmatpush.bf16.msra.mxu0 %v1103
    %1674 = vmatmul.bf16.gmra.mxu0 %v326
    %v1675 = vpop.f32.mrf.mxu0
    %v1676 = vadd.f32 %v305, %v1675
    %v1677 = vpop.f32.mrf.mxu0
    %1678 = vdwg.mxu0
    %1679 = vmatpush.bf16.msra.mxu0 %v1223
    %1680 = vmatpush.bf16.msra.mxu0 %v1215
    %1681 = vmatpush.bf16.msra.mxu0 %v1207
    %1682 = vmatpush.bf16.msra.mxu0 %v1199
    %1683 = vmatpush.bf16.msra.mxu0 %v1191
    %1684 = vmatpush.bf16.msra.mxu0 %v1183
    %1685 = vmatpush.bf16.msra.mxu0 %v1175
    %1686 = vmatpush.bf16.msra.mxu0 %v1167
    %1687 = vmatmul.bf16.gmra.mxu0 %v327
    %v1688 = vpop.f32.mrf.mxu0
    %v1689 = vadd.f32 %v1676, %v1688
    %v1690 = vpop.f32.mrf.mxu0
    %1691 = vdwg.mxu0
    %1692 = vmatpush.bf16.msra.mxu0 %v1287
    %1693 = vmatpush.bf16.msra.mxu0 %v1279
    %1694 = vmatpush.bf16.msra.mxu0 %v1271
    %1695 = vmatpush.bf16.msra.mxu0 %v1263
    %1696 = vmatpush.bf16.msra.mxu0 %v1255
    %1697 = vmatpush.bf16.msra.mxu0 %v1247
    %1698 = vmatpush.bf16.msra.mxu0 %v1239
    %1699 = vmatpush.bf16.msra.mxu0 %v1231
    %1700 = vmatmul.bf16.gmra.mxu0 %v328
    %v1701 = vpop.f32.mrf.mxu0
    %v1702 = vadd.f32 %v1689, %v1701
    %v1703 = vpop.f32.mrf.mxu0
    %1704 = vdwg.mxu0
    %1705 = vmatpush.bf16.msra.mxu0 %v1351
    %1706 = vmatpush.bf16.msra.mxu0 %v1343
    %1707 = vmatpush.bf16.msra.mxu0 %v1335
    %1708 = vmatpush.bf16.msra.mxu0 %v1327
    %1709 = vmatpush.bf16.msra.mxu0 %v1319
    %1710 = vmatpush.bf16.msra.mxu0 %v1311
    %1711 = vmatpush.bf16.msra.mxu0 %v1303
    %1712 = vmatpush.bf16.msra.mxu0 %v1295
    %1713 = vmatmul.bf16.gmra.mxu0 %v329
    %v1714 = vpop.f32.mrf.mxu0
    %v1715 = vadd.f32 %v1702, %v1714
    %v1716 = vpop.f32.mrf.mxu0
    %1717 = vdwg.mxu0
    %1718 = vmatpush.bf16.msra.mxu0 %v1160
    %1719 = vmatpush.bf16.msra.mxu0 %v1152
    %1720 = vmatpush.bf16.msra.mxu0 %v1144
    %1721 = vmatpush.bf16.msra.mxu0 %v1136
    %1722 = vmatpush.bf16.msra.mxu0 %v1128
    %1723 = vmatpush.bf16.msra.mxu0 %v1120
    %1724 = vmatpush.bf16.msra.mxu0 %v1112
    %1725 = vmatpush.bf16.msra.mxu0 %v1104
    %1726 = vmatmul.bf16.gmra.mxu0 %v326
    %v1727 = vpop.f32.mrf.mxu0
    %v1728 = vadd.f32 %v306, %v1727
    %v1729 = vpop.f32.mrf.mxu0
    %1730 = vdwg.mxu0
    %1731 = vmatpush.bf16.msra.mxu0 %v1224
    %1732 = vmatpush.bf16.msra.mxu0 %v1216
    %1733 = vmatpush.bf16.msra.mxu0 %v1208
    %1734 = vmatpush.bf16.msra.mxu0 %v1200
    %1735 = vmatpush.bf16.msra.mxu0 %v1192
    %1736 = vmatpush.bf16.msra.mxu0 %v1184
    %1737 = vmatpush.bf16.msra.mxu0 %v1176
    %1738 = vmatpush.bf16.msra.mxu0 %v1168
    %1739 = vmatmul.bf16.gmra.mxu0 %v327
    %v1740 = vpop.f32.mrf.mxu0
    %v1741 = vadd.f32 %v1728, %v1740
    %v1742 = vpop.f32.mrf.mxu0
    %1743 = vdwg.mxu0
    %1744 = vmatpush.bf16.msra.mxu0 %v1288
    %1745 = vmatpush.bf16.msra.mxu0 %v1280
    %1746 = vmatpush.bf16.msra.mxu0 %v1272
    %1747 = vmatpush.bf16.msra.mxu0 %v1264
    %1748 = vmatpush.bf16.msra.mxu0 %v1256
    %1749 = vmatpush.bf16.msra.mxu0 %v1248
    %1750 = vmatpush.bf16.msra.mxu0 %v1240
    %1751 = vmatpush.bf16.msra.mxu0 %v1232
    %1752 = vmatmul.bf16.gmra.mxu0 %v328
    %v1753 = vpop.f32.mrf.mxu0
    %v1754 = vadd.f32 %v1741, %v1753
    %v1755 = vpop.f32.mrf.mxu0
    %1756 = vdwg.mxu0
    %1757 = vmatpush.bf16.msra.mxu0 %v1352
    %1758 = vmatpush.bf16.msra.mxu0 %v1344
    %1759 = vmatpush.bf16.msra.mxu0 %v1336
    %1760 = vmatpush.bf16.msra.mxu0 %v1328
    %1761 = vmatpush.bf16.msra.mxu0 %v1320
    %1762 = vmatpush.bf16.msra.mxu0 %v1312
    %1763 = vmatpush.bf16.msra.mxu0 %v1304
    %1764 = vmatpush.bf16.msra.mxu0 %v1296
    %1765 = vmatmul.bf16.gmra.mxu0 %v329
    %v1766 = vpop.f32.mrf.mxu0
    %v1767 = vadd.f32 %v1754, %v1766
    %v1768 = vpop.f32.mrf.mxu0
    %1769 = vdwg.mxu0
    %1770 = vmatpush.bf16.msra.mxu0 %v1161
    %1771 = vmatpush.bf16.msra.mxu0 %v1153
    %1772 = vmatpush.bf16.msra.mxu0 %v1145
    %1773 = vmatpush.bf16.msra.mxu0 %v1137
    %1774 = vmatpush.bf16.msra.mxu0 %v1129
    %1775 = vmatpush.bf16.msra.mxu0 %v1121
    %1776 = vmatpush.bf16.msra.mxu0 %v1113
    %1777 = vmatpush.bf16.msra.mxu0 %v1105
    %1778 = vmatmul.bf16.gmra.mxu0 %v326
    %v1779 = vpop.f32.mrf.mxu0
    %v1780 = vadd.f32 %v307, %v1779
    %v1781 = vpop.f32.mrf.mxu0
    %1782 = vdwg.mxu0
    %1783 = vmatpush.bf16.msra.mxu0 %v1225
    %1784 = vmatpush.bf16.msra.mxu0 %v1217
    %1785 = vmatpush.bf16.msra.mxu0 %v1209
    %1786 = vmatpush.bf16.msra.mxu0 %v1201
    %1787 = vmatpush.bf16.msra.mxu0 %v1193
    %1788 = vmatpush.bf16.msra.mxu0 %v1185
    %1789 = vmatpush.bf16.msra.mxu0 %v1177
    %1790 = vmatpush.bf16.msra.mxu0 %v1169
    %1791 = vmatmul.bf16.gmra.mxu0 %v327
    %v1792 = vpop.f32.mrf.mxu0
    %v1793 = vadd.f32 %v1780, %v1792
    %v1794 = vpop.f32.mrf.mxu0
    %1795 = vdwg.mxu0
    %1796 = vmatpush.bf16.msra.mxu0 %v1289
    %1797 = vmatpush.bf16.msra.mxu0 %v1281
    %1798 = vmatpush.bf16.msra.mxu0 %v1273
    %1799 = vmatpush.bf16.msra.mxu0 %v1265
    %1800 = vmatpush.bf16.msra.mxu0 %v1257
    %1801 = vmatpush.bf16.msra.mxu0 %v1249
    %1802 = vmatpush.bf16.msra.mxu0 %v1241
    %1803 = vmatpush.bf16.msra.mxu0 %v1233
    %1804 = vmatmul.bf16.gmra.mxu0 %v328
    %v1805 = vpop.f32.mrf.mxu0
    %v1806 = vadd.f32 %v1793, %v1805
    %v1807 = vpop.f32.mrf.mxu0
    %1808 = vdwg.mxu0
    %1809 = vmatpush.bf16.msra.mxu0 %v1353
    %1810 = vmatpush.bf16.msra.mxu0 %v1345
    %1811 = vmatpush.bf16.msra.mxu0 %v1337
    %1812 = vmatpush.bf16.msra.mxu0 %v1329
    %1813 = vmatpush.bf16.msra.mxu0 %v1321
    %1814 = vmatpush.bf16.msra.mxu0 %v1313
    %1815 = vmatpush.bf16.msra.mxu0 %v1305
    %1816 = vmatpush.bf16.msra.mxu0 %v1297
    %1817 = vmatmul.bf16.gmra.mxu0 %v329
    %v1818 = vpop.f32.mrf.mxu0
    %v1819 = vadd.f32 %v1806, %v1818
    %v1820 = vpop.f32.mrf.mxu0
    %1821 = vdwg.mxu0
    %1822 = vmatpush.bf16.msra.mxu0 %v1162
    %1823 = vmatpush.bf16.msra.mxu0 %v1154
    %1824 = vmatpush.bf16.msra.mxu0 %v1146
    %1825 = vmatpush.bf16.msra.mxu0 %v1138
    %1826 = vmatpush.bf16.msra.mxu0 %v1130
    %1827 = vmatpush.bf16.msra.mxu0 %v1122
    %1828 = vmatpush.bf16.msra.mxu0 %v1114
    %1829 = vmatpush.bf16.msra.mxu0 %v1106
    %1830 = vmatmul.bf16.gmra.mxu0 %v326
    %v1831 = vpop.f32.mrf.mxu0
    %v1832 = vadd.f32 %v308, %v1831
    %v1833 = vpop.f32.mrf.mxu0
    %1834 = vdwg.mxu0
    %1835 = vmatpush.bf16.msra.mxu0 %v1226
    %1836 = vmatpush.bf16.msra.mxu0 %v1218
    %1837 = vmatpush.bf16.msra.mxu0 %v1210
    %1838 = vmatpush.bf16.msra.mxu0 %v1202
    %1839 = vmatpush.bf16.msra.mxu0 %v1194
    %1840 = vmatpush.bf16.msra.mxu0 %v1186
    %1841 = vmatpush.bf16.msra.mxu0 %v1178
    %1842 = vmatpush.bf16.msra.mxu0 %v1170
    %1843 = vmatmul.bf16.gmra.mxu0 %v327
    %v1844 = vpop.f32.mrf.mxu0
    %v1845 = vadd.f32 %v1832, %v1844
    %v1846 = vpop.f32.mrf.mxu0
    %1847 = vdwg.mxu0
    %1848 = vmatpush.bf16.msra.mxu0 %v1290
    %1849 = vmatpush.bf16.msra.mxu0 %v1282
    %1850 = vmatpush.bf16.msra.mxu0 %v1274
    %1851 = vmatpush.bf16.msra.mxu0 %v1266
    %1852 = vmatpush.bf16.msra.mxu0 %v1258
    %1853 = vmatpush.bf16.msra.mxu0 %v1250
    %1854 = vmatpush.bf16.msra.mxu0 %v1242
    %1855 = vmatpush.bf16.msra.mxu0 %v1234
    %1856 = vmatmul.bf16.gmra.mxu0 %v328
    %v1857 = vpop.f32.mrf.mxu0
    %v1858 = vadd.f32 %v1845, %v1857
    %v1859 = vpop.f32.mrf.mxu0
    %1860 = vdwg.mxu0
    %1861 = vmatpush.bf16.msra.mxu0 %v1354
    %1862 = vmatpush.bf16.msra.mxu0 %v1346
    %1863 = vmatpush.bf16.msra.mxu0 %v1338
    %1864 = vmatpush.bf16.msra.mxu0 %v1330
    %1865 = vmatpush.bf16.msra.mxu0 %v1322
    %1866 = vmatpush.bf16.msra.mxu0 %v1314
    %1867 = vmatpush.bf16.msra.mxu0 %v1306
    %1868 = vmatpush.bf16.msra.mxu0 %v1298
    %1869 = vmatmul.bf16.gmra.mxu0 %v329
    %v1870 = vpop.f32.mrf.mxu0
    %v1871 = vadd.f32 %v1858, %v1870
    %v1872 = vpop.f32.mrf.mxu0
    %1873 = vdwg.mxu0
    %1874 = vmatpush.bf16.msra.mxu0 %v1163
    %1875 = vmatpush.bf16.msra.mxu0 %v1155
    %1876 = vmatpush.bf16.msra.mxu0 %v1147
    %1877 = vmatpush.bf16.msra.mxu0 %v1139
    %1878 = vmatpush.bf16.msra.mxu0 %v1131
    %1879 = vmatpush.bf16.msra.mxu0 %v1123
    %1880 = vmatpush.bf16.msra.mxu0 %v1115
    %1881 = vmatpush.bf16.msra.mxu0 %v1107
    %1882 = vmatmul.bf16.gmra.mxu0 %v326
    %v1883 = vpop.f32.mrf.mxu0
    %v1884 = vadd.f32 %v309, %v1883
    %v1885 = vpop.f32.mrf.mxu0
    %1886 = vdwg.mxu0
    %1887 = vmatpush.bf16.msra.mxu0 %v1227
    %1888 = vmatpush.bf16.msra.mxu0 %v1219
    %1889 = vmatpush.bf16.msra.mxu0 %v1211
    %1890 = vmatpush.bf16.msra.mxu0 %v1203
    %1891 = vmatpush.bf16.msra.mxu0 %v1195
    %1892 = vmatpush.bf16.msra.mxu0 %v1187
    %1893 = vmatpush.bf16.msra.mxu0 %v1179
    %1894 = vmatpush.bf16.msra.mxu0 %v1171
    %1895 = vmatmul.bf16.gmra.mxu0 %v327
    %v1896 = vpop.f32.mrf.mxu0
    %v1897 = vadd.f32 %v1884, %v1896
    %v1898 = vpop.f32.mrf.mxu0
    %1899 = vdwg.mxu0
    %1900 = vmatpush.bf16.msra.mxu0 %v1291
    %1901 = vmatpush.bf16.msra.mxu0 %v1283
    %1902 = vmatpush.bf16.msra.mxu0 %v1275
    %1903 = vmatpush.bf16.msra.mxu0 %v1267
    %1904 = vmatpush.bf16.msra.mxu0 %v1259
    %1905 = vmatpush.bf16.msra.mxu0 %v1251
    %1906 = vmatpush.bf16.msra.mxu0 %v1243
    %1907 = vmatpush.bf16.msra.mxu0 %v1235
    %1908 = vmatmul.bf16.gmra.mxu0 %v328
    %v1909 = vpop.f32.mrf.mxu0
    %v1910 = vadd.f32 %v1897, %v1909
    %v1911 = vpop.f32.mrf.mxu0
    %1912 = vdwg.mxu0
    %1913 = vmatpush.bf16.msra.mxu0 %v1355
    %1914 = vmatpush.bf16.msra.mxu0 %v1347
    %1915 = vmatpush.bf16.msra.mxu0 %v1339
    %1916 = vmatpush.bf16.msra.mxu0 %v1331
    %1917 = vmatpush.bf16.msra.mxu0 %v1323
    %1918 = vmatpush.bf16.msra.mxu0 %v1315
    %1919 = vmatpush.bf16.msra.mxu0 %v1307
    %1920 = vmatpush.bf16.msra.mxu0 %v1299
    %1921 = vmatmul.bf16.gmra.mxu0 %v329
    %v1922 = vpop.f32.mrf.mxu0
    %v1923 = vadd.f32 %v1910, %v1922
    %v1924 = vpop.f32.mrf.mxu0
    %1925 = vdwg.mxu0
    %1926 = vmatpush.bf16.msra.mxu0 %v1164
    %1927 = vmatpush.bf16.msra.mxu0 %v1156
    %1928 = vmatpush.bf16.msra.mxu0 %v1148
    %1929 = vmatpush.bf16.msra.mxu0 %v1140
    %1930 = vmatpush.bf16.msra.mxu0 %v1132
    %1931 = vmatpush.bf16.msra.mxu0 %v1124
    %1932 = vmatpush.bf16.msra.mxu0 %v1116
    %1933 = vmatpush.bf16.msra.mxu0 %v1108
    %1934 = vmatmul.bf16.gmra.mxu0 %v326
    %v1935 = vpop.f32.mrf.mxu0
    %v1936 = vadd.f32 %v310, %v1935
    %v1937 = vpop.f32.mrf.mxu0
    %1938 = vdwg.mxu0
    %1939 = vmatpush.bf16.msra.mxu0 %v1228
    %1940 = vmatpush.bf16.msra.mxu0 %v1220
    %1941 = vmatpush.bf16.msra.mxu0 %v1212
    %1942 = vmatpush.bf16.msra.mxu0 %v1204
    %1943 = vmatpush.bf16.msra.mxu0 %v1196
    %1944 = vmatpush.bf16.msra.mxu0 %v1188
    %1945 = vmatpush.bf16.msra.mxu0 %v1180
    %1946 = vmatpush.bf16.msra.mxu0 %v1172
    %1947 = vmatmul.bf16.gmra.mxu0 %v327
    %v1948 = vpop.f32.mrf.mxu0
    %v1949 = vadd.f32 %v1936, %v1948
    %v1950 = vpop.f32.mrf.mxu0
    %1951 = vdwg.mxu0
    %1952 = vmatpush.bf16.msra.mxu0 %v1292
    %1953 = vmatpush.bf16.msra.mxu0 %v1284
    %1954 = vmatpush.bf16.msra.mxu0 %v1276
    %1955 = vmatpush.bf16.msra.mxu0 %v1268
    %1956 = vmatpush.bf16.msra.mxu0 %v1260
    %1957 = vmatpush.bf16.msra.mxu0 %v1252
    %1958 = vmatpush.bf16.msra.mxu0 %v1244
    %1959 = vmatpush.bf16.msra.mxu0 %v1236
    %1960 = vmatmul.bf16.gmra.mxu0 %v328
    %v1961 = vpop.f32.mrf.mxu0
    %v1962 = vadd.f32 %v1949, %v1961
    %v1963 = vpop.f32.mrf.mxu0
    %1964 = vdwg.mxu0
    %1965 = vmatpush.bf16.msra.mxu0 %v1356
    %1966 = vmatpush.bf16.msra.mxu0 %v1348
    %1967 = vmatpush.bf16.msra.mxu0 %v1340
    %1968 = vmatpush.bf16.msra.mxu0 %v1332
    %1969 = vmatpush.bf16.msra.mxu0 %v1324
    %1970 = vmatpush.bf16.msra.mxu0 %v1316
    %1971 = vmatpush.bf16.msra.mxu0 %v1308
    %1972 = vmatpush.bf16.msra.mxu0 %v1300
    %1973 = vmatmul.bf16.gmra.mxu0 %v329
    %v1974 = vpop.f32.mrf.mxu0
    %v1975 = vadd.f32 %v1962, %v1974
    %v1976 = vpop.f32.mrf.mxu0
    %1977 = vdwg.mxu0
    %1978 = vmatpush.bf16.msra.mxu0 %v1165
    %1979 = vmatpush.bf16.msra.mxu0 %v1157
    %1980 = vmatpush.bf16.msra.mxu0 %v1149
    %1981 = vmatpush.bf16.msra.mxu0 %v1141
    %1982 = vmatpush.bf16.msra.mxu0 %v1133
    %1983 = vmatpush.bf16.msra.mxu0 %v1125
    %1984 = vmatpush.bf16.msra.mxu0 %v1117
    %1985 = vmatpush.bf16.msra.mxu0 %v1109
    %1986 = vmatmul.bf16.gmra.mxu0 %v326
    %v1987 = vpop.f32.mrf.mxu0
    %v1988 = vadd.f32 %v311, %v1987
    %v1989 = vpop.f32.mrf.mxu0
    %1990 = vdwg.mxu0
    %1991 = vmatpush.bf16.msra.mxu0 %v1229
    %1992 = vmatpush.bf16.msra.mxu0 %v1221
    %1993 = vmatpush.bf16.msra.mxu0 %v1213
    %1994 = vmatpush.bf16.msra.mxu0 %v1205
    %1995 = vmatpush.bf16.msra.mxu0 %v1197
    %1996 = vmatpush.bf16.msra.mxu0 %v1189
    %1997 = vmatpush.bf16.msra.mxu0 %v1181
    %1998 = vmatpush.bf16.msra.mxu0 %v1173
    %1999 = vmatmul.bf16.gmra.mxu0 %v327
    %v2000 = vpop.f32.mrf.mxu0
    %v2001 = vadd.f32 %v1988, %v2000
    %v2002 = vpop.f32.mrf.mxu0
    %2003 = vdwg.mxu0
    %2004 = vmatpush.bf16.msra.mxu0 %v1293
    %2005 = vmatpush.bf16.msra.mxu0 %v1285
    %2006 = vmatpush.bf16.msra.mxu0 %v1277
    %2007 = vmatpush.bf16.msra.mxu0 %v1269
    %2008 = vmatpush.bf16.msra.mxu0 %v1261
    %2009 = vmatpush.bf16.msra.mxu0 %v1253
    %2010 = vmatpush.bf16.msra.mxu0 %v1245
    %2011 = vmatpush.bf16.msra.mxu0 %v1237
    %2012 = vmatmul.bf16.gmra.mxu0 %v328
    %v2013 = vpop.f32.mrf.mxu0
    %v2014 = vadd.f32 %v2001, %v2013
    %v2015 = vpop.f32.mrf.mxu0
    %2016 = vdwg.mxu0
    %2017 = vmatpush.bf16.msra.mxu0 %v1357
    %2018 = vmatpush.bf16.msra.mxu0 %v1349
    %2019 = vmatpush.bf16.msra.mxu0 %v1341
    %2020 = vmatpush.bf16.msra.mxu0 %v1333
    %2021 = vmatpush.bf16.msra.mxu0 %v1325
    %2022 = vmatpush.bf16.msra.mxu0 %v1317
    %2023 = vmatpush.bf16.msra.mxu0 %v1309
    %2024 = vmatpush.bf16.msra.mxu0 %v1301
    %2025 = vmatmul.bf16.gmra.mxu0 %v329
    %v2026 = vpop.f32.mrf.mxu0
    %v2027 = vadd.f32 %v2014, %v2026
    %v2028 = vpop.f32.mrf.mxu0
    %2029 = vdwg.mxu0
    %v2030 = vmax.f32 %v1663, 0.0
    %v2031 = vmax.f32 %v1715, 0.0
    %v2032 = vmax.f32 %v1767, 0.0
    %v2033 = vmax.f32 %v1819, 0.0
    %v2034 = vmax.f32 %v1871, 0.0
    %v2035 = vmax.f32 %v1923, 0.0
    %v2036 = vmax.f32 %v1975, 0.0
    %v2037 = vmax.f32 %v2027, 0.0
    %v2038 = vpack.c.bf16 %v2031, %v2030
    %v2039 = vpack.c.bf16 %v2033, %v2032
    %v2040 = vpack.c.bf16 %v2035, %v2034
    %v2041 = vpack.c.bf16 %v2037, %v2036
    %2042 = vst [vmem:[%s3] sm:$0xff] %v2038
    %2043 = vst [vmem:[%s3 + $0x8] sm:$0xff] %v2039
    %2044 = vst [vmem:[%s3 + $0x10] sm:$0xff] %v2040
    %2045 = vst [vmem:[%s3 + $0x18] sm:$0xff] %v2041
    // Predicated region
    $region22: #{point_decoder.2} parent=1 // pred_check
      _
    $region23: #{point_decoder.2} parent=1 // pred_check_branch
      %2047 = sbr.rel (0) target = $region25
    $region24: #{point_decoder.2} parent=1 // pred_region
      _
    $region25: #{point_decoder.2} parent=1 // pred_fallthru
      _
    // Predicated region
    $region26: #{point_decoder.2} parent=1 // pred_check
      _
    $region27: #{point_decoder.2} parent=1 // pred_check_branch
      %2049 = sbr.rel (0) target = $region29
    $region28: #{point_decoder.2} parent=1 // pred_region
      _
    $region29: #{point_decoder.2} parent=1 // pred_fallthru
      _
    %2050 = vsyncpa [#allocation3], 1
    %2051 = vsyncpa [#allocation5], 1

// kernel: point_decoder.3
$region0: #{point_decoder.3}
  #allocation0 [shape = 'u32[]', space=smem, size = 0x4, offset = 0x4, fixed_abs, tag = 'smem constant byte address 0x4 - core index']
  #allocation1 [shape = 'u32[72,128]{1,0:T(1,128)}', space=vmem, size = 0x9000, scoped, tag = 'internal scratch']
  %s0 = inlined_call_operand.vmem [shape: bf16[8,1024], index: 0, kind: input, shape index: {}]
  %s1 = inlined_call_operand.hbm [shape: bf16[1024,3072], index: 1, kind: input, shape index: {}]
  %s2 = inlined_call_operand.hbm [shape: f32[1,3072], index: 2, kind: input, shape index: {}]
  %s3 = inlined_call_operand.hbm [shape: f32[8,3072], index: 3, kind: output, shape index: {}]
  %s4 = sld [smem:[#allocation0]]
  $region53: #{point_decoder.3} parent=0
    _
  %s6 = ssub.s32 1, %s4
  %s7 = scalar_select 0, %s6, %s4
  $region1: #{point_decoder.3} parent=0
    #allocation2 [shape = 'u8[6291456]{0}', space=vmem, size = 0x600000, scoped, tag = 'input window, operand 1']
    #allocation3 [shape = 's32[2]{0}', space=sflag, size = 0x8, scoped, tag = 'scoped memory for point_decoder.3']
    #allocation4 [shape = 's32[2]{0}', space=sflag, size = 0x8, scoped, tag = 'scoped memory for point_decoder.3']
    #allocation5 [shape = 'u8[12288]{0}', space=vmem, size = 0x3000, scoped, tag = 'input window, operand 2']
    #allocation6 [shape = 's32[2]{0}', space=sflag, size = 0x8, scoped, tag = 'scoped memory for point_decoder.3']
    #allocation7 [shape = 'u8[98304]{0}', space=vmem, size = 0x18000, scoped, tag = 'output window, operand 0']
    %8 = vsyncpa [#allocation3], 0
    %s9 = scalar_lea.sflag [#allocation3], 1
    %10 = vsyncpa %s9, 0
    %11 = vsyncpa [#allocation6], 0
    %s12 = scalar_lea.sflag [#allocation6], 1
    %13 = vsyncpa %s12, 0
    %14 = vsyncpa [#allocation4], 0
    %s15 = scalar_lea.sflag [#allocation4], 1
    %16 = vsyncpa %s15, 0
    loop: start=0, step=1, limit=4
    $region2: #{point_decoder.3} parent=1 // loop_pre_header
      _
    $region3: #{point_decoder.3} parent=1 // loop_header
      %s18 = sphi 0, %s22
      %p19 = scmp.ge.s32.totalorder %s18, 4
      %s26 = sphi 0, %s26
      %s28 = sphi 0, %s26
      %s29 = sphi 0, %s28
      %s43 = sphi 0, %s29
      %s49 = sphi 0, %s51
      %s52 = sphi 0, %s49
      %s53 = sphi 0, %s52
      %s69 = sphi 0, %s53
      %s75 = sphi 0, %s77
      %s78 = sphi 0, %s75
      %s79 = sphi 0, %s78
      %s95 = sphi 0, %s79
      %s101 = sphi 0, %s103
      %s104 = sphi 0, %s101
      %s105 = sphi 0, %s104
      %s121 = sphi 0, %s105
    $region4: #{point_decoder.3} parent=1 // loop_header_branch
      %21 = sbr.rel (%p19) target = $region8
    $region5: #{point_decoder.3} parent=1 // loop_body
      %s23 = ssub.s32 %s18, 1
      %s24 = ssub.s32 %s18, 2
      %s25 = sadd.s32 %s18, 1
      %s27 = sadd.s32 %s26, 1
      %p30 = scmp.eq.s32.totalorder %s18, 1
      %p31 = scmp.ne.s32.totalorder %s26, %s28
      %p32 = scmp.eq.s32.totalorder %s18, 0
      %p33 = por %p31, %p32
      %p34 = scmp.ne.s32.totalorder %s26, %s28
      %p35 = scmp.eq.s32.totalorder %s23, 1
      %p36 = por %p34, %p35
      %p37 = scmp.ne.s32.totalorder %s28, %s29
      %p38 = scmp.eq.s32.totalorder %s23, 0
      %p39 = por %p37, %p38
      %p40 = scmp.ne.s32.totalorder %s28, %s29
      %p41 = scmp.eq.s32.totalorder %s24, 1
      %p42 = por %p40, %p41
      %p44 = scmp.ne.s32.totalorder %s29, %s43
      %p45 = scmp.eq.s32.totalorder %s24, 0
      %p46 = por %p44, %p45
      %s47 = ssub.s32 %s18, %s25
      %p48 = scmp.eq.s32.totalorder %s47, 0
      %s50 = sadd.s32 %s49, 1
      %s51 = scalar_select %p48, %s49, %s50
      %p54 = pneg %p48
      %p55 = scmp.eq.s32.totalorder %s18, 1
      %p56 = por %p54, %p55
      %p57 = scmp.ne.s32.totalorder %s49, %s52
      %p58 = scmp.eq.s32.totalorder %s18, 0
      %p59 = por %p57, %p58
      %p60 = scmp.ne.s32.totalorder %s49, %s52
      %p61 = scmp.eq.s32.totalorder %s23, 1
      %p62 = por %p60, %p61
      %p63 = scmp.ne.s32.totalorder %s52, %s53
      %p64 = scmp.eq.s32.totalorder %s23, 0
      %p65 = por %p63, %p64
      %p66 = scmp.ne.s32.totalorder %s52, %s53
      %p67 = scmp.eq.s32.totalorder %s24, 1
      %p68 = por %p66, %p67
      %p70 = scmp.ne.s32.totalorder %s53, %s69
      %p71 = scmp.eq.s32.totalorder %s24, 0
      %p72 = por %p70, %p71
      %s73 = ssub.s32 %s18, %s25
      %p74 = scmp.eq.s32.totalorder %s73, 0
      %s76 = sadd.s32 %s75, 1
      %s77 = scalar_select %p74, %s75, %s76
      %p80 = pneg %p74
      %p81 = scmp.eq.s32.totalorder %s18, 1
      %p82 = por %p80, %p81
      %p83 = scmp.ne.s32.totalorder %s75, %s78
      %p84 = scmp.eq.s32.totalorder %s18, 0
      %p85 = por %p83, %p84
      %p86 = scmp.ne.s32.totalorder %s75, %s78
      %p87 = scmp.eq.s32.totalorder %s23, 1
      %p88 = por %p86, %p87
      %p89 = scmp.ne.s32.totalorder %s78, %s79
      %p90 = scmp.eq.s32.totalorder %s23, 0
      %p91 = por %p89, %p90
      %p92 = scmp.ne.s32.totalorder %s78, %s79
      %p93 = scmp.eq.s32.totalorder %s24, 1
      %p94 = por %p92, %p93
      %p96 = scmp.ne.s32.totalorder %s79, %s95
      %p97 = scmp.eq.s32.totalorder %s24, 0
      %p98 = por %p96, %p97
      %s99 = ssub.s32 %s18, %s25
      %p100 = scmp.eq.s32.totalorder %s99, 0
      %s102 = sadd.s32 %s101, 1
      %s103 = scalar_select %p100, %s101, %s102
      %p106 = pneg %p100
      %p107 = scmp.eq.s32.totalorder %s18, 1
      %p108 = por %p106, %p107
      %p109 = scmp.ne.s32.totalorder %s101, %s104
      %p110 = scmp.eq.s32.totalorder %s18, 0
      %p111 = por %p109, %p110
      %p112 = scmp.ne.s32.totalorder %s101, %s104
      %p113 = scmp.eq.s32.totalorder %s23, 1
      %p114 = por %p112, %p113
      %p115 = scmp.ne.s32.totalorder %s104, %s105
      %p116 = scmp.eq.s32.totalorder %s23, 0
      %p117 = por %p115, %p116
      %p118 = scmp.ne.s32.totalorder %s104, %s105
      %p119 = scmp.eq.s32.totalorder %s24, 1
      %p120 = por %p118, %p119
      %p122 = scmp.ne.s32.totalorder %s105, %s121
      %p123 = scmp.eq.s32.totalorder %s24, 0
      %p124 = por %p122, %p123
      %p125 = scmp.le.s32.totalorder 1, %s18
      %p126 = scmp.lt.s32.totalorder %s18, 3
      %p127 = pnand %p125, %p126
      %p128 = pneg %p127
      // Predicated region
      $region9: #{point_decoder.3} parent=5 // pred_check
        _
      $region10: #{point_decoder.3} parent=5 // pred_check_branch
        %130 = sbr.rel (%p127) target = $region12
      $region11: #{point_decoder.3} parent=5 // pred_region
        %s131 = ssub.s32 %s18, 1
        // Predicated region
        $region13: #{point_decoder.3} parent=11 // pred_check
          %p132 = pneg %p39
        $region14: #{point_decoder.3} parent=11 // pred_check_branch
          %134 = sbr.rel (%p132) target = $region16
        $region15: #{point_decoder.3} parent=11 // pred_region
          _
        $region16: #{point_decoder.3} parent=11 // pred_fallthru
          _
      $region12: #{point_decoder.3} parent=5 // pred_fallthru
        _
      %p135 = scmp.lt.s32.totalorder %s18, 2
      // Predicated region
      $region17: #{point_decoder.3} parent=5 // pred_check
        %p136 = pneg %p135
      $region18: #{point_decoder.3} parent=5 // pred_check_branch
        %138 = sbr.rel (%p136) target = $region20
      $region19: #{point_decoder.3} parent=5 // pred_region
        // Predicated region
        $region21: #{point_decoder.3} parent=19 // pred_check
          %p139 = pneg %p59
        $region22: #{point_decoder.3} parent=19 // pred_check_branch
          %141 = sbr.rel (%p139) target = $region24
        $region23: #{point_decoder.3} parent=19 // pred_region
          %s142 = sand.u32 %s49, 1
          %s143 = scalar_lea.sflag [#allocation3], %s142
          %s144 = sand.u32 %s49, 1
          %s145 = smul.addr %s144, 6144
          %s146 = scalar_lea.vmem [#allocation2], %s145
          %s147 = smul.u32 12, %s18
          %149 = vsyncadd %s143, 0
          %s150 = smul.addr %s147, 4
          %s151 = scalar_lea.hbm %s1, %s150
          %s152 = sshll.u32 %s151, 4
          %s153 = int_to_ptr.hbm [resolvable:$true] %s152
          %s154 = sshll.u32 %s146, 4
          %s155 = int_to_ptr.vmem [resolvable:$true] %s154
          %160 = dma.hbm_to_vmem [thread:$0]  %s153, 98304, %s155, %s143, 1536, 768, 48
        $region24: #{point_decoder.3} parent=19 // pred_fallthru
          _
        // Predicated region
        $region25: #{point_decoder.3} parent=19 // pred_check
          %p161 = pneg %p85
        $region26: #{point_decoder.3} parent=19 // pred_check_branch
          %163 = sbr.rel (%p161) target = $region28
        $region27: #{point_decoder.3} parent=19 // pred_region
          %s164 = sand.u32 %s75, 1
          %s165 = scalar_lea.sflag [#allocation6], %s164
          %s166 = sand.u32 %s75, 1
          %s167 = smul.addr %s166, 12
          %s168 = scalar_lea.vmem [#allocation5], %s167
          %s169 = smul.u32 12, %s18
          %171 = vsyncadd %s165, 0
          %s172 = scalar_lea.hbm %s2, %s169
          %s174 = sshll.u32 %s172, 4
          %s175 = int_to_ptr.hbm [resolvable:$true] %s174
          %s176 = sshll.u32 %s168, 4
          %s177 = int_to_ptr.vmem [resolvable:$true] %s176
          %179 = dma.hbm_to_vmem [thread:$0]  %s175, 192, %s177, %s165
        $region28: #{point_decoder.3} parent=19 // pred_fallthru
          _
      $region20: #{point_decoder.3} parent=5 // pred_fallthru
        _
      %p180 = scmp.le.s32.totalorder 1, %s18
      %p181 = scmp.lt.s32.totalorder %s18, 3
      %p182 = pnand %p180, %p181
      %p183 = pneg %p182
      // Predicated region
      $region29: #{point_decoder.3} parent=5 // pred_check
        _
      $region30: #{point_decoder.3} parent=5 // pred_check_branch
        %185 = sbr.rel (%p182) target = $region32
      $region31: #{point_decoder.3} parent=5 // pred_region
        %s186 = ssub.s32 %s18, 1
        %s187 = sand.u32 %s52, 1
        %s188 = scalar_lea.sflag [#allocation3], %s187
        %s189 = sand.u32 %s52, 1
        %s190 = smul.addr %s189, 6144
        %s191 = scalar_lea.vmem [#allocation2], %s190
        // Predicated region
        $region33: #{point_decoder.3} parent=31 // pred_check
          %p192 = pneg %p65
        $region34: #{point_decoder.3} parent=31 // pred_check_branch
          %194 = sbr.rel (%p192) target = $region36
        $region35: #{point_decoder.3} parent=31 // pred_region
          %196 = dma.done %s188, 98304
        $region36: #{point_decoder.3} parent=31 // pred_fallthru
          _
        %s197 = sand.u32 %s78, 1
        %s198 = scalar_lea.sflag [#allocation6], %s197
        %s199 = sand.u32 %s78, 1
        %s200 = smul.addr %s199, 12
        %s201 = scalar_lea.vmem [#allocation5], %s200
        // Predicated region
        $region37: #{point_decoder.3} parent=31 // pred_check
          %p202 = pneg %p91
        $region38: #{point_decoder.3} parent=31 // pred_check_branch
          %204 = sbr.rel (%p202) target = $region40
        $region39: #{point_decoder.3} parent=31 // pred_region
          %206 = dma.done %s198, 192
        $region40: #{point_decoder.3} parent=31 // pred_fallthru
          _
        %p207 = pneg %p39
        %p208 = pneg %p36
        %s209 = sand.u32 %s52, 1
        %s210 = scalar_lea.sflag [#allocation3], %s209
        %s211 = sand.u32 %s52, 1
        %s212 = smul.addr %s211, 6144
        %s213 = scalar_lea.vmem [#allocation2], %s212
        %p214 = pneg %p65
        %p215 = pneg %p62
        %s216 = sand.u32 %s78, 1
        %s217 = scalar_lea.sflag [#allocation6], %s216
        %s218 = sand.u32 %s78, 1
        %s219 = smul.addr %s218, 12
        %s220 = scalar_lea.vmem [#allocation5], %s219
        %p221 = pneg %p91
        %p222 = pneg %p88
        %p223 = pneg %p117
        %p224 = pneg %p114
        %s225 = sand.u32 %s104, 1
        %s226 = scalar_lea.sflag [#allocation4], %s225
        %s227 = sand.u32 %s104, 1
        %s228 = smul.addr %s227, 96
        %s229 = scalar_lea.vmem [#allocation7], %s228
        %s230 = smul.u32 12, %s23
        %s231 = smul.u32 12, %s23
        %s232 = smul.u32 12, %s23
        %v233 = vld [vmem:[%s0] sm:$0xff]
        %v234 = vld [vmem:[%s0 + $0x8] sm:$0xff]
        %v235 = vld [vmem:[%s0 + $0x10] sm:$0xff]
        %v236 = vld [vmem:[%s0 + $0x18] sm:$0xff]
        %v237 = vld [vmem:[%s191] sm:$0xff]
        %v238 = vld [vmem:[%s191 + $0x8] sm:$0xff]
        %v239 = vld [vmem:[%s191 + $0x10] sm:$0xff]
        %v240 = vld [vmem:[%s191 + $0x18] sm:$0xff]
        %v241 = vld [vmem:[%s191 + $0x20] sm:$0xff]
        %v242 = vld [vmem:[%s191 + $0x28] sm:$0xff]
        %v243 = vld [vmem:[%s191 + $0x30] sm:$0xff]
        %v244 = vld [vmem:[%s191 + $0x38] sm:$0xff]
        %v245 = vld [vmem:[%s191 + $0x40] sm:$0xff]
        %v246 = vld [vmem:[%s191 + $0x48] sm:$0xff]
        %v247 = vld [vmem:[%s191 + $0x50] sm:$0xff]
        %v248 = vld [vmem:[%s191 + $0x58] sm:$0xff]
        %v249 = vld [vmem:[%s191 + $0x60] sm:$0xff]
        %v250 = vld [vmem:[%s191 + $0x68] sm:$0xff]
        %v251 = vld [vmem:[%s191 + $0x70] sm:$0xff]
        %v252 = vld [vmem:[%s191 + $0x78] sm:$0xff]
        %v253 = vld [vmem:[%s191 + $0x80] sm:$0xff]
        %v254 = vld [vmem:[%s191 + $0x88] sm:$0xff]
        %v255 = vld [vmem:[%s191 + $0x90] sm:$0xff]
        %v256 = vld [vmem:[%s191 + $0x98] sm:$0xff]
        %v257 = vld [vmem:[%s191 + $0xa0] sm:$0xff]
        %v258 = vld [vmem:[%s191 + $0xa8] sm:$0xff]
        %v259 = vld [vmem:[%s191 + $0xb0] sm:$0xff]
        %v260 = vld [vmem:[%s191 + $0xb8] sm:$0xff]
        %v261 = vld [vmem:[%s191 + $0xc0] sm:$0xff]
        %v262 = vld [vmem:[%s191 + $0xc8] sm:$0xff]
        %v263 = vld [vmem:[%s191 + $0xd0] sm:$0xff]
        %v264 = vld [vmem:[%s191 + $0xd8] sm:$0xff]
        %v265 = vld [vmem:[%s191 + $0xe0] sm:$0xff]
        %v266 = vld [vmem:[%s191 + $0xe8] sm:$0xff]
        %v267 = vld [vmem:[%s191 + $0xf0] sm:$0xff]
        %v268 = vld [vmem:[%s191 + $0xf8] sm:$0xff]
        %v269 = vld [vmem:[%s191 + $0x100] sm:$0xff]
        %v270 = vld [vmem:[%s191 + $0x108] sm:$0xff]
        %v271 = vld [vmem:[%s191 + $0x110] sm:$0xff]
        %v272 = vld [vmem:[%s191 + $0x118] sm:$0xff]
        %v273 = vld [vmem:[%s191 + $0x120] sm:$0xff]
        %v274 = vld [vmem:[%s191 + $0x128] sm:$0xff]
        %v275 = vld [vmem:[%s191 + $0x130] sm:$0xff]
        %v276 = vld [vmem:[%s191 + $0x138] sm:$0xff]
        %v277 = vld [vmem:[%s191 + $0x140] sm:$0xff]
        %v278 = vld [vmem:[%s191 + $0x148] sm:$0xff]
        %v279 = vld [vmem:[%s191 + $0x150] sm:$0xff]
        %v280 = vld [vmem:[%s191 + $0x158] sm:$0xff]
        %v281 = vld [vmem:[%s191 + $0x160] sm:$0xff]
        %v282 = vld [vmem:[%s191 + $0x168] sm:$0xff]
        %v283 = vld [vmem:[%s191 + $0x170] sm:$0xff]
        %v284 = vld [vmem:[%s191 + $0x178] sm:$0xff]
        %v285 = vld [vmem:[%s191 + $0x180] sm:$0xff]
        %v286 = vld [vmem:[%s191 + $0x188] sm:$0xff]
        %v287 = vld [vmem:[%s191 + $0x190] sm:$0xff]
        %v288 = vld [vmem:[%s191 + $0x198] sm:$0xff]
        %v289 = vld [vmem:[%s191 + $0x1a0] sm:$0xff]
        %v290 = vld [vmem:[%s191 + $0x1a8] sm:$0xff]
        %v291 = vld [vmem:[%s191 + $0x1b0] sm:$0xff]
        %v292 = vld [vmem:[%s191 + $0x1b8] sm:$0xff]
        %v293 = vld [vmem:[%s191 + $0x1c0] sm:$0xff]
        %v294 = vld [vmem:[%s191 + $0x1c8] sm:$0xff]
        %v295 = vld [vmem:[%s191 + $0x1d0] sm:$0xff]
        %v296 = vld [vmem:[%s191 + $0x1d8] sm:$0xff]
        %v297 = vld [vmem:[%s191 + $0x1e0] sm:$0xff]
        %v298 = vld [vmem:[%s191 + $0x1e8] sm:$0xff]
        %v299 = vld [vmem:[%s191 + $0x1f0] sm:$0xff]
        %v300 = vld [vmem:[%s191 + $0x1f8] sm:$0xff]
        %v301 = vld [vmem:[%s191 + $0x200] sm:$0xff]
        %v302 = vld [vmem:[%s191 + $0x208] sm:$0xff]
        %v303 = vld [vmem:[%s191 + $0x210] sm:$0xff]
        %v304 = vld [vmem:[%s191 + $0x218] sm:$0xff]
        %v305 = vld [vmem:[%s191 + $0x220] sm:$0xff]
        %v306 = vld [vmem:[%s191 + $0x228] sm:$0xff]
        %v307 = vld [vmem:[%s191 + $0x230] sm:$0xff]
        %v308 = vld [vmem:[%s191 + $0x238] sm:$0xff]
        %v309 = vld [vmem:[%s191 + $0x240] sm:$0xff]
        %v310 = vld [vmem:[%s191 + $0x248] sm:$0xff]
        %v311 = vld [vmem:[%s191 + $0x250] sm:$0xff]
        %v312 = vld [vmem:[%s191 + $0x258] sm:$0xff]
        %v313 = vld [vmem:[%s191 + $0x260] sm:$0xff]
        %v314 = vld [vmem:[%s191 + $0x268] sm:$0xff]
        %v315 = vld [vmem:[%s191 + $0x270] sm:$0xff]
        %v316 = vld [vmem:[%s191 + $0x278] sm:$0xff]
        %v317 = vld [vmem:[%s191 + $0x280] sm:$0xff]
        %v318 = vld [vmem:[%s191 + $0x288] sm:$0xff]
        %v319 = vld [vmem:[%s191 + $0x290] sm:$0xff]
        %v320 = vld [vmem:[%s191 + $0x298] sm:$0xff]
        %v321 = vld [vmem:[%s191 + $0x2a0] sm:$0xff]
        %v322 = vld [vmem:[%s191 + $0x2a8] sm:$0xff]
        %v323 = vld [vmem:[%s191 + $0x2b0] sm:$0xff]
        %v324 = vld [vmem:[%s191 + $0x2b8] sm:$0xff]
        %v325 = vld [vmem:[%s191 + $0x2c0] sm:$0xff]
        %v326 = vld [vmem:[%s191 + $0x2c8] sm:$0xff]
        %v327 = vld [vmem:[%s191 + $0x2d0] sm:$0xff]
        %v328 = vld [vmem:[%s191 + $0x2d8] sm:$0xff]
        %v329 = vld [vmem:[%s191 + $0x2e0] sm:$0xff]
        %v330 = vld [vmem:[%s191 + $0x2e8] sm:$0xff]
        %v331 = vld [vmem:[%s191 + $0x2f0] sm:$0xff]
        %v332 = vld [vmem:[%s191 + $0x2f8] sm:$0xff]
        %v333 = vld [vmem:[%s191 + $0x300] sm:$0xff]
        %v334 = vld [vmem:[%s191 + $0x308] sm:$0xff]
        %v335 = vld [vmem:[%s191 + $0x310] sm:$0xff]
        %v336 = vld [vmem:[%s191 + $0x318] sm:$0xff]
        %v337 = vld [vmem:[%s191 + $0x320] sm:$0xff]
        %v338 = vld [vmem:[%s191 + $0x328] sm:$0xff]
        %v339 = vld [vmem:[%s191 + $0x330] sm:$0xff]
        %v340 = vld [vmem:[%s191 + $0x338] sm:$0xff]
        %v341 = vld [vmem:[%s191 + $0x340] sm:$0xff]
        %v342 = vld [vmem:[%s191 + $0x348] sm:$0xff]
        %v343 = vld [vmem:[%s191 + $0x350] sm:$0xff]
        %v344 = vld [vmem:[%s191 + $0x358] sm:$0xff]
        %v345 = vld [vmem:[%s191 + $0x360] sm:$0xff]
        %v346 = vld [vmem:[%s191 + $0x368] sm:$0xff]
        %v347 = vld [vmem:[%s191 + $0x370] sm:$0xff]
        %v348 = vld [vmem:[%s191 + $0x378] sm:$0xff]
        %v349 = vld [vmem:[%s191 + $0x380] sm:$0xff]
        %v350 = vld [vmem:[%s191 + $0x388] sm:$0xff]
        %v351 = vld [vmem:[%s191 + $0x390] sm:$0xff]
        %v352 = vld [vmem:[%s191 + $0x398] sm:$0xff]
        %v353 = vld [vmem:[%s191 + $0x3a0] sm:$0xff]
        %v354 = vld [vmem:[%s191 + $0x3a8] sm:$0xff]
        %v355 = vld [vmem:[%s191 + $0x3b0] sm:$0xff]
        %v356 = vld [vmem:[%s191 + $0x3b8] sm:$0xff]
        %v357 = vld [vmem:[%s191 + $0x3c0] sm:$0xff]
        %v358 = vld [vmem:[%s191 + $0x3c8] sm:$0xff]
        %v359 = vld [vmem:[%s191 + $0x3d0] sm:$0xff]
        %v360 = vld [vmem:[%s191 + $0x3d8] sm:$0xff]
        %v361 = vld [vmem:[%s191 + $0x3e0] sm:$0xff]
        %v362 = vld [vmem:[%s191 + $0x3e8] sm:$0xff]
        %v363 = vld [vmem:[%s191 + $0x3f0] sm:$0xff]
        %v364 = vld [vmem:[%s191 + $0x3f8] sm:$0xff]
        %v365 = vld [vmem:[%s191 + $0x400] sm:$0xff]
        %v366 = vld [vmem:[%s191 + $0x408] sm:$0xff]
        %v367 = vld [vmem:[%s191 + $0x410] sm:$0xff]
        %v368 = vld [vmem:[%s191 + $0x418] sm:$0xff]
        %v369 = vld [vmem:[%s191 + $0x420] sm:$0xff]
        %v370 = vld [vmem:[%s191 + $0x428] sm:$0xff]
        %v371 = vld [vmem:[%s191 + $0x430] sm:$0xff]
        %v372 = vld [vmem:[%s191 + $0x438] sm:$0xff]
        %v373 = vld [vmem:[%s191 + $0x440] sm:$0xff]
        %v374 = vld [vmem:[%s191 + $0x448] sm:$0xff]
        %v375 = vld [vmem:[%s191 + $0x450] sm:$0xff]
        %v376 = vld [vmem:[%s191 + $0x458] sm:$0xff]
        %v377 = vld [vmem:[%s191 + $0x460] sm:$0xff]
        %v378 = vld [vmem:[%s191 + $0x468] sm:$0xff]
        %v379 = vld [vmem:[%s191 + $0x470] sm:$0xff]
        %v380 = vld [vmem:[%s191 + $0x478] sm:$0xff]
        %v381 = vld [vmem:[%s191 + $0x480] sm:$0xff]
        %v382 = vld [vmem:[%s191 + $0x488] sm:$0xff]
        %v383 = vld [vmem:[%s191 + $0x490] sm:$0xff]
        %v384 = vld [vmem:[%s191 + $0x498] sm:$0xff]
        %v385 = vld [vmem:[%s191 + $0x4a0] sm:$0xff]
        %v386 = vld [vmem:[%s191 + $0x4a8] sm:$0xff]
        %v387 = vld [vmem:[%s191 + $0x4b0] sm:$0xff]
        %v388 = vld [vmem:[%s191 + $0x4b8] sm:$0xff]
        %v389 = vld [vmem:[%s191 + $0x4c0] sm:$0xff]
        %v390 = vld [vmem:[%s191 + $0x4c8] sm:$0xff]
        %v391 = vld [vmem:[%s191 + $0x4d0] sm:$0xff]
        %v392 = vld [vmem:[%s191 + $0x4d8] sm:$0xff]
        %v393 = vld [vmem:[%s191 + $0x4e0] sm:$0xff]
        %v394 = vld [vmem:[%s191 + $0x4e8] sm:$0xff]
        %v395 = vld [vmem:[%s191 + $0x4f0] sm:$0xff]
        %v396 = vld [vmem:[%s191 + $0x4f8] sm:$0xff]
        %v397 = vld [vmem:[%s191 + $0x500] sm:$0xff]
        %v398 = vld [vmem:[%s191 + $0x508] sm:$0xff]
        %v399 = vld [vmem:[%s191 + $0x510] sm:$0xff]
        %v400 = vld [vmem:[%s191 + $0x518] sm:$0xff]
        %v401 = vld [vmem:[%s191 + $0x520] sm:$0xff]
        %v402 = vld [vmem:[%s191 + $0x528] sm:$0xff]
        %v403 = vld [vmem:[%s191 + $0x530] sm:$0xff]
        %v404 = vld [vmem:[%s191 + $0x538] sm:$0xff]
        %v405 = vld [vmem:[%s191 + $0x540] sm:$0xff]
        %v406 = vld [vmem:[%s191 + $0x548] sm:$0xff]
        %v407 = vld [vmem:[%s191 + $0x550] sm:$0xff]
        %v408 = vld [vmem:[%s191 + $0x558] sm:$0xff]
        %v409 = vld [vmem:[%s191 + $0x560] sm:$0xff]
        %v410 = vld [vmem:[%s191 + $0x568] sm:$0xff]
        %v411 = vld [vmem:[%s191 + $0x570] sm:$0xff]
        %v412 = vld [vmem:[%s191 + $0x578] sm:$0xff]
        %v413 = vld [vmem:[%s191 + $0x580] sm:$0xff]
        %v414 = vld [vmem:[%s191 + $0x588] sm:$0xff]
        %v415 = vld [vmem:[%s191 + $0x590] sm:$0xff]
        %v416 = vld [vmem:[%s191 + $0x598] sm:$0xff]
        %v417 = vld [vmem:[%s191 + $0x5a0] sm:$0xff]
        %v418 = vld [vmem:[%s191 + $0x5a8] sm:$0xff]
        %v419 = vld [vmem:[%s191 + $0x5b0] sm:$0xff]
        %v420 = vld [vmem:[%s191 + $0x5b8] sm:$0xff]
        %v421 = vld [vmem:[%s191 + $0x5c0] sm:$0xff]
        %v422 = vld [vmem:[%s191 + $0x5c8] sm:$0xff]
        %v423 = vld [vmem:[%s191 + $0x5d0] sm:$0xff]
        %v424 = vld [vmem:[%s191 + $0x5d8] sm:$0xff]
        %v425 = vld [vmem:[%s191 + $0x5e0] sm:$0xff]
        %v426 = vld [vmem:[%s191 + $0x5e8] sm:$0xff]
        %v427 = vld [vmem:[%s191 + $0x5f0] sm:$0xff]
        %v428 = vld [vmem:[%s191 + $0x5f8] sm:$0xff]
        %v429 = vld [vmem:[%s191 + $0x600] sm:$0xff]
        %v430 = vld [vmem:[%s191 + $0x608] sm:$0xff]
        %v431 = vld [vmem:[%s191 + $0x610] sm:$0xff]
        %v432 = vld [vmem:[%s191 + $0x618] sm:$0xff]
        %v433 = vld [vmem:[%s191 + $0x620] sm:$0xff]
        %v434 = vld [vmem:[%s191 + $0x628] sm:$0xff]
        %v435 = vld [vmem:[%s191 + $0x630] sm:$0xff]
        %v436 = vld [vmem:[%s191 + $0x638] sm:$0xff]
        %v437 = vld [vmem:[%s191 + $0x640] sm:$0xff]
        %v438 = vld [vmem:[%s191 + $0x648] sm:$0xff]
        %v439 = vld [vmem:[%s191 + $0x650] sm:$0xff]
        %v440 = vld [vmem:[%s191 + $0x658] sm:$0xff]
        %v441 = vld [vmem:[%s191 + $0x660] sm:$0xff]
        %v442 = vld [vmem:[%s191 + $0x668] sm:$0xff]
        %v443 = vld [vmem:[%s191 + $0x670] sm:$0xff]
        %v444 = vld [vmem:[%s191 + $0x678] sm:$0xff]
        %v445 = vld [vmem:[%s191 + $0x680] sm:$0xff]
        %v446 = vld [vmem:[%s191 + $0x688] sm:$0xff]
        %v447 = vld [vmem:[%s191 + $0x690] sm:$0xff]
        %v448 = vld [vmem:[%s191 + $0x698] sm:$0xff]
        %v449 = vld [vmem:[%s191 + $0x6a0] sm:$0xff]
        %v450 = vld [vmem:[%s191 + $0x6a8] sm:$0xff]
        %v451 = vld [vmem:[%s191 + $0x6b0] sm:$0xff]
        %v452 = vld [vmem:[%s191 + $0x6b8] sm:$0xff]
        %v453 = vld [vmem:[%s191 + $0x6c0] sm:$0xff]
        %v454 = vld [vmem:[%s191 + $0x6c8] sm:$0xff]
        %v455 = vld [vmem:[%s191 + $0x6d0] sm:$0xff]
        %v456 = vld [vmem:[%s191 + $0x6d8] sm:$0xff]
        %v457 = vld [vmem:[%s191 + $0x6e0] sm:$0xff]
        %v458 = vld [vmem:[%s191 + $0x6e8] sm:$0xff]
        %v459 = vld [vmem:[%s191 + $0x6f0] sm:$0xff]
        %v460 = vld [vmem:[%s191 + $0x6f8] sm:$0xff]
        %v461 = vld [vmem:[%s191 + $0x700] sm:$0xff]
        %v462 = vld [vmem:[%s191 + $0x708] sm:$0xff]
        %v463 = vld [vmem:[%s191 + $0x710] sm:$0xff]
        %v464 = vld [vmem:[%s191 + $0x718] sm:$0xff]
        %v465 = vld [vmem:[%s191 + $0x720] sm:$0xff]
        %v466 = vld [vmem:[%s191 + $0x728] sm:$0xff]
        %v467 = vld [vmem:[%s191 + $0x730] sm:$0xff]
        %v468 = vld [vmem:[%s191 + $0x738] sm:$0xff]
        %v469 = vld [vmem:[%s191 + $0x740] sm:$0xff]
        %v470 = vld [vmem:[%s191 + $0x748] sm:$0xff]
        %v471 = vld [vmem:[%s191 + $0x750] sm:$0xff]
        %v472 = vld [vmem:[%s191 + $0x758] sm:$0xff]
        %v473 = vld [vmem:[%s191 + $0x760] sm:$0xff]
        %v474 = vld [vmem:[%s191 + $0x768] sm:$0xff]
        %v475 = vld [vmem:[%s191 + $0x770] sm:$0xff]
        %v476 = vld [vmem:[%s191 + $0x778] sm:$0xff]
        %v477 = vld [vmem:[%s191 + $0x780] sm:$0xff]
        %v478 = vld [vmem:[%s191 + $0x788] sm:$0xff]
        %v479 = vld [vmem:[%s191 + $0x790] sm:$0xff]
        %v480 = vld [vmem:[%s191 + $0x798] sm:$0xff]
        %v481 = vld [vmem:[%s191 + $0x7a0] sm:$0xff]
        %v482 = vld [vmem:[%s191 + $0x7a8] sm:$0xff]
        %v483 = vld [vmem:[%s191 + $0x7b0] sm:$0xff]
        %v484 = vld [vmem:[%s191 + $0x7b8] sm:$0xff]
        %v485 = vld [vmem:[%s191 + $0x7c0] sm:$0xff]
        %v486 = vld [vmem:[%s191 + $0x7c8] sm:$0xff]
        %v487 = vld [vmem:[%s191 + $0x7d0] sm:$0xff]
        %v488 = vld [vmem:[%s191 + $0x7d8] sm:$0xff]
        %v489 = vld [vmem:[%s191 + $0x7e0] sm:$0xff]
        %v490 = vld [vmem:[%s191 + $0x7e8] sm:$0xff]
        %v491 = vld [vmem:[%s191 + $0x7f0] sm:$0xff]
        %v492 = vld [vmem:[%s191 + $0x7f8] sm:$0xff]
        %v493 = vld [vmem:[%s191 + $0x800] sm:$0xff]
        %v494 = vld [vmem:[%s191 + $0x808] sm:$0xff]
        %v495 = vld [vmem:[%s191 + $0x810] sm:$0xff]
        %v496 = vld [vmem:[%s191 + $0x818] sm:$0xff]
        %v497 = vld [vmem:[%s191 + $0x820] sm:$0xff]
        %v498 = vld [vmem:[%s191 + $0x828] sm:$0xff]
        %v499 = vld [vmem:[%s191 + $0x830] sm:$0xff]
        %v500 = vld [vmem:[%s191 + $0x838] sm:$0xff]
        %v501 = vld [vmem:[%s191 + $0x840] sm:$0xff]
        %v502 = vld [vmem:[%s191 + $0x848] sm:$0xff]
        %v503 = vld [vmem:[%s191 + $0x850] sm:$0xff]
        %v504 = vld [vmem:[%s191 + $0x858] sm:$0xff]
        %v505 = vld [vmem:[%s191 + $0x860] sm:$0xff]
        %v506 = vld [vmem:[%s191 + $0x868] sm:$0xff]
        %v507 = vld [vmem:[%s191 + $0x870] sm:$0xff]
        %v508 = vld [vmem:[%s191 + $0x878] sm:$0xff]
        %v509 = vld [vmem:[%s191 + $0x880] sm:$0xff]
        %v510 = vld [vmem:[%s191 + $0x888] sm:$0xff]
        %v511 = vld [vmem:[%s191 + $0x890] sm:$0xff]
        %v512 = vld [vmem:[%s191 + $0x898] sm:$0xff]
        %v513 = vld [vmem:[%s191 + $0x8a0] sm:$0xff]
        %v514 = vld [vmem:[%s191 + $0x8a8] sm:$0xff]
        %v515 = vld [vmem:[%s191 + $0x8b0] sm:$0xff]
        %v516 = vld [vmem:[%s191 + $0x8b8] sm:$0xff]
        %v517 = vld [vmem:[%s191 + $0x8c0] sm:$0xff]
        %v518 = vld [vmem:[%s191 + $0x8c8] sm:$0xff]
        %v519 = vld [vmem:[%s191 + $0x8d0] sm:$0xff]
        %v520 = vld [vmem:[%s191 + $0x8d8] sm:$0xff]
        %v521 = vld [vmem:[%s191 + $0x8e0] sm:$0xff]
        %v522 = vld [vmem:[%s191 + $0x8e8] sm:$0xff]
        %v523 = vld [vmem:[%s191 + $0x8f0] sm:$0xff]
        %v524 = vld [vmem:[%s191 + $0x8f8] sm:$0xff]
        %v525 = vld [vmem:[%s191 + $0x900] sm:$0xff]
        %v526 = vld [vmem:[%s191 + $0x908] sm:$0xff]
        %v527 = vld [vmem:[%s191 + $0x910] sm:$0xff]
        %v528 = vld [vmem:[%s191 + $0x918] sm:$0xff]
        %v529 = vld [vmem:[%s191 + $0x920] sm:$0xff]
        %v530 = vld [vmem:[%s191 + $0x928] sm:$0xff]
        %v531 = vld [vmem:[%s191 + $0x930] sm:$0xff]
        %v532 = vld [vmem:[%s191 + $0x938] sm:$0xff]
        %v533 = vld [vmem:[%s191 + $0x940] sm:$0xff]
        %v534 = vld [vmem:[%s191 + $0x948] sm:$0xff]
        %v535 = vld [vmem:[%s191 + $0x950] sm:$0xff]
        %v536 = vld [vmem:[%s191 + $0x958] sm:$0xff]
        %v537 = vld [vmem:[%s191 + $0x960] sm:$0xff]
        %v538 = vld [vmem:[%s191 + $0x968] sm:$0xff]
        %v539 = vld [vmem:[%s191 + $0x970] sm:$0xff]
        %v540 = vld [vmem:[%s191 + $0x978] sm:$0xff]
        %v541 = vld [vmem:[%s191 + $0x980] sm:$0xff]
        %v542 = vld [vmem:[%s191 + $0x988] sm:$0xff]
        %v543 = vld [vmem:[%s191 + $0x990] sm:$0xff]
        %v544 = vld [vmem:[%s191 + $0x998] sm:$0xff]
        %v545 = vld [vmem:[%s191 + $0x9a0] sm:$0xff]
        %v546 = vld [vmem:[%s191 + $0x9a8] sm:$0xff]
        %v547 = vld [vmem:[%s191 + $0x9b0] sm:$0xff]
        %v548 = vld [vmem:[%s191 + $0x9b8] sm:$0xff]
        %v549 = vld [vmem:[%s191 + $0x9c0] sm:$0xff]
        %v550 = vld [vmem:[%s191 + $0x9c8] sm:$0xff]
        %v551 = vld [vmem:[%s191 + $0x9d0] sm:$0xff]
        %v552 = vld [vmem:[%s191 + $0x9d8] sm:$0xff]
        %v553 = vld [vmem:[%s191 + $0x9e0] sm:$0xff]
        %v554 = vld [vmem:[%s191 + $0x9e8] sm:$0xff]
        %v555 = vld [vmem:[%s191 + $0x9f0] sm:$0xff]
        %v556 = vld [vmem:[%s191 + $0x9f8] sm:$0xff]
        %v557 = vld [vmem:[%s191 + $0xa00] sm:$0xff]
        %v558 = vld [vmem:[%s191 + $0xa08] sm:$0xff]
        %v559 = vld [vmem:[%s191 + $0xa10] sm:$0xff]
        %v560 = vld [vmem:[%s191 + $0xa18] sm:$0xff]
        %v561 = vld [vmem:[%s191 + $0xa20] sm:$0xff]
        %v562 = vld [vmem:[%s191 + $0xa28] sm:$0xff]
        %v563 = vld [vmem:[%s191 + $0xa30] sm:$0xff]
        %v564 = vld [vmem:[%s191 + $0xa38] sm:$0xff]
        %v565 = vld [vmem:[%s191 + $0xa40] sm:$0xff]
        %v566 = vld [vmem:[%s191 + $0xa48] sm:$0xff]
        %v567 = vld [vmem:[%s191 + $0xa50] sm:$0xff]
        %v568 = vld [vmem:[%s191 + $0xa58] sm:$0xff]
        %v569 = vld [vmem:[%s191 + $0xa60] sm:$0xff]
        %v570 = vld [vmem:[%s191 + $0xa68] sm:$0xff]
        %v571 = vld [vmem:[%s191 + $0xa70] sm:$0xff]
        %v572 = vld [vmem:[%s191 + $0xa78] sm:$0xff]
        %v573 = vld [vmem:[%s191 + $0xa80] sm:$0xff]
        %v574 = vld [vmem:[%s191 + $0xa88] sm:$0xff]
        %v575 = vld [vmem:[%s191 + $0xa90] sm:$0xff]
        %v576 = vld [vmem:[%s191 + $0xa98] sm:$0xff]
        %v577 = vld [vmem:[%s191 + $0xaa0] sm:$0xff]
        %v578 = vld [vmem:[%s191 + $0xaa8] sm:$0xff]
        %v579 = vld [vmem:[%s191 + $0xab0] sm:$0xff]
        %v580 = vld [vmem:[%s191 + $0xab8] sm:$0xff]
        %v581 = vld [vmem:[%s191 + $0xac0] sm:$0xff]
        %v582 = vld [vmem:[%s191 + $0xac8] sm:$0xff]
        %v583 = vld [vmem:[%s191 + $0xad0] sm:$0xff]
        %v584 = vld [vmem:[%s191 + $0xad8] sm:$0xff]
        %v585 = vld [vmem:[%s191 + $0xae0] sm:$0xff]
        %v586 = vld [vmem:[%s191 + $0xae8] sm:$0xff]
        %v587 = vld [vmem:[%s191 + $0xaf0] sm:$0xff]
        %v588 = vld [vmem:[%s191 + $0xaf8] sm:$0xff]
        %v589 = vld [vmem:[%s191 + $0xb00] sm:$0xff]
        %v590 = vld [vmem:[%s191 + $0xb08] sm:$0xff]
        %v591 = vld [vmem:[%s191 + $0xb10] sm:$0xff]
        %v592 = vld [vmem:[%s191 + $0xb18] sm:$0xff]
        %v593 = vld [vmem:[%s191 + $0xb20] sm:$0xff]
        %v594 = vld [vmem:[%s191 + $0xb28] sm:$0xff]
        %v595 = vld [vmem:[%s191 + $0xb30] sm:$0xff]
        %v596 = vld [vmem:[%s191 + $0xb38] sm:$0xff]
        %v597 = vld [vmem:[%s191 + $0xb40] sm:$0xff]
        %v598 = vld [vmem:[%s191 + $0xb48] sm:$0xff]
        %v599 = vld [vmem:[%s191 + $0xb50] sm:$0xff]
        %v600 = vld [vmem:[%s191 + $0xb58] sm:$0xff]
        %v601 = vld [vmem:[%s191 + $0xb60] sm:$0xff]
        %v602 = vld [vmem:[%s191 + $0xb68] sm:$0xff]
        %v603 = vld [vmem:[%s191 + $0xb70] sm:$0xff]
        %v604 = vld [vmem:[%s191 + $0xb78] sm:$0xff]
        %v605 = vld [vmem:[%s191 + $0xb80] sm:$0xff]
        %v606 = vld [vmem:[%s191 + $0xb88] sm:$0xff]
        %v607 = vld [vmem:[%s191 + $0xb90] sm:$0xff]
        %v608 = vld [vmem:[%s191 + $0xb98] sm:$0xff]
        %v609 = vld [vmem:[%s191 + $0xba0] sm:$0xff]
        %v610 = vld [vmem:[%s191 + $0xba8] sm:$0xff]
        %v611 = vld [vmem:[%s191 + $0xbb0] sm:$0xff]
        %v612 = vld [vmem:[%s191 + $0xbb8] sm:$0xff]
        %v613 = vld [vmem:[%s191 + $0xbc0] sm:$0xff]
        %v614 = vld [vmem:[%s191 + $0xbc8] sm:$0xff]
        %v615 = vld [vmem:[%s191 + $0xbd0] sm:$0xff]
        %v616 = vld [vmem:[%s191 + $0xbd8] sm:$0xff]
        %v617 = vld [vmem:[%s191 + $0xbe0] sm:$0xff]
        %v618 = vld [vmem:[%s191 + $0xbe8] sm:$0xff]
        %v619 = vld [vmem:[%s191 + $0xbf0] sm:$0xff]
        %v620 = vld [vmem:[%s191 + $0xbf8] sm:$0xff]
        %v621 = vld [vmem:[%s191 + $0xc00] sm:$0xff]
        %v622 = vld [vmem:[%s191 + $0xc08] sm:$0xff]
        %v623 = vld [vmem:[%s191 + $0xc10] sm:$0xff]
        %v624 = vld [vmem:[%s191 + $0xc18] sm:$0xff]
        %v625 = vld [vmem:[%s191 + $0xc20] sm:$0xff]
        %v626 = vld [vmem:[%s191 + $0xc28] sm:$0xff]
        %v627 = vld [vmem:[%s191 + $0xc30] sm:$0xff]
        %v628 = vld [vmem:[%s191 + $0xc38] sm:$0xff]
        %v629 = vld [vmem:[%s191 + $0xc40] sm:$0xff]
        %v630 = vld [vmem:[%s191 + $0xc48] sm:$0xff]
        %v631 = vld [vmem:[%s191 + $0xc50] sm:$0xff]
        %v632 = vld [vmem:[%s191 + $0xc58] sm:$0xff]
        %v633 = vld [vmem:[%s191 + $0xc60] sm:$0xff]
        %v634 = vld [vmem:[%s191 + $0xc68] sm:$0xff]
        %v635 = vld [vmem:[%s191 + $0xc70] sm:$0xff]
        %v636 = vld [vmem:[%s191 + $0xc78] sm:$0xff]
        %v637 = vld [vmem:[%s191 + $0xc80] sm:$0xff]
        %v638 = vld [vmem:[%s191 + $0xc88] sm:$0xff]
        %v639 = vld [vmem:[%s191 + $0xc90] sm:$0xff]
        %v640 = vld [vmem:[%s191 + $0xc98] sm:$0xff]
        %v641 = vld [vmem:[%s191 + $0xca0] sm:$0xff]
        %v642 = vld [vmem:[%s191 + $0xca8] sm:$0xff]
        %v643 = vld [vmem:[%s191 + $0xcb0] sm:$0xff]
        %v644 = vld [vmem:[%s191 + $0xcb8] sm:$0xff]
        %v645 = vld [vmem:[%s191 + $0xcc0] sm:$0xff]
        %v646 = vld [vmem:[%s191 + $0xcc8] sm:$0xff]
        %v647 = vld [vmem:[%s191 + $0xcd0] sm:$0xff]
        %v648 = vld [vmem:[%s191 + $0xcd8] sm:$0xff]
        %v649 = vld [vmem:[%s191 + $0xce0] sm:$0xff]
        %v650 = vld [vmem:[%s191 + $0xce8] sm:$0xff]
        %v651 = vld [vmem:[%s191 + $0xcf0] sm:$0xff]
        %v652 = vld [vmem:[%s191 + $0xcf8] sm:$0xff]
        %v653 = vld [vmem:[%s191 + $0xd00] sm:$0xff]
        %v654 = vld [vmem:[%s191 + $0xd08] sm:$0xff]
        %v655 = vld [vmem:[%s191 + $0xd10] sm:$0xff]
        %v656 = vld [vmem:[%s191 + $0xd18] sm:$0xff]
        %v657 = vld [vmem:[%s191 + $0xd20] sm:$0xff]
        %v658 = vld [vmem:[%s191 + $0xd28] sm:$0xff]
        %v659 = vld [vmem:[%s191 + $0xd30] sm:$0xff]
        %v660 = vld [vmem:[%s191 + $0xd38] sm:$0xff]
        %v661 = vld [vmem:[%s191 + $0xd40] sm:$0xff]
        %v662 = vld [vmem:[%s191 + $0xd48] sm:$0xff]
        %v663 = vld [vmem:[%s191 + $0xd50] sm:$0xff]
        %v664 = vld [vmem:[%s191 + $0xd58] sm:$0xff]
        %v665 = vld [vmem:[%s191 + $0xd60] sm:$0xff]
        %v666 = vld [vmem:[%s191 + $0xd68] sm:$0xff]
        %v667 = vld [vmem:[%s191 + $0xd70] sm:$0xff]
        %v668 = vld [vmem:[%s191 + $0xd78] sm:$0xff]
        %v669 = vld [vmem:[%s191 + $0xd80] sm:$0xff]
        %v670 = vld [vmem:[%s191 + $0xd88] sm:$0xff]
        %v671 = vld [vmem:[%s191 + $0xd90] sm:$0xff]
        %v672 = vld [vmem:[%s191 + $0xd98] sm:$0xff]
        %v673 = vld [vmem:[%s191 + $0xda0] sm:$0xff]
        %v674 = vld [vmem:[%s191 + $0xda8] sm:$0xff]
        %v675 = vld [vmem:[%s191 + $0xdb0] sm:$0xff]
        %v676 = vld [vmem:[%s191 + $0xdb8] sm:$0xff]
        %v677 = vld [vmem:[%s191 + $0xdc0] sm:$0xff]
        %v678 = vld [vmem:[%s191 + $0xdc8] sm:$0xff]
        %v679 = vld [vmem:[%s191 + $0xdd0] sm:$0xff]
        %v680 = vld [vmem:[%s191 + $0xdd8] sm:$0xff]
        %v681 = vld [vmem:[%s191 + $0xde0] sm:$0xff]
        %v682 = vld [vmem:[%s191 + $0xde8] sm:$0xff]
        %v683 = vld [vmem:[%s191 + $0xdf0] sm:$0xff]
        %v684 = vld [vmem:[%s191 + $0xdf8] sm:$0xff]
        %v685 = vld [vmem:[%s191 + $0xe00] sm:$0xff]
        %v686 = vld [vmem:[%s191 + $0xe08] sm:$0xff]
        %v687 = vld [vmem:[%s191 + $0xe10] sm:$0xff]
        %v688 = vld [vmem:[%s191 + $0xe18] sm:$0xff]
        %v689 = vld [vmem:[%s191 + $0xe20] sm:$0xff]
        %v690 = vld [vmem:[%s191 + $0xe28] sm:$0xff]
        %v691 = vld [vmem:[%s191 + $0xe30] sm:$0xff]
        %v692 = vld [vmem:[%s191 + $0xe38] sm:$0xff]
        %v693 = vld [vmem:[%s191 + $0xe40] sm:$0xff]
        %v694 = vld [vmem:[%s191 + $0xe48] sm:$0xff]
        %v695 = vld [vmem:[%s191 + $0xe50] sm:$0xff]
        %v696 = vld [vmem:[%s191 + $0xe58] sm:$0xff]
        %v697 = vld [vmem:[%s191 + $0xe60] sm:$0xff]
        %v698 = vld [vmem:[%s191 + $0xe68] sm:$0xff]
        %v699 = vld [vmem:[%s191 + $0xe70] sm:$0xff]
        %v700 = vld [vmem:[%s191 + $0xe78] sm:$0xff]
        %v701 = vld [vmem:[%s191 + $0xe80] sm:$0xff]
        %v702 = vld [vmem:[%s191 + $0xe88] sm:$0xff]
        %v703 = vld [vmem:[%s191 + $0xe90] sm:$0xff]
        %v704 = vld [vmem:[%s191 + $0xe98] sm:$0xff]
        %v705 = vld [vmem:[%s191 + $0xea0] sm:$0xff]
        %v706 = vld [vmem:[%s191 + $0xea8] sm:$0xff]
        %v707 = vld [vmem:[%s191 + $0xeb0] sm:$0xff]
        %v708 = vld [vmem:[%s191 + $0xeb8] sm:$0xff]
        %v709 = vld [vmem:[%s191 + $0xec0] sm:$0xff]
        %v710 = vld [vmem:[%s191 + $0xec8] sm:$0xff]
        %v711 = vld [vmem:[%s191 + $0xed0] sm:$0xff]
        %v712 = vld [vmem:[%s191 + $0xed8] sm:$0xff]
        %v713 = vld [vmem:[%s191 + $0xee0] sm:$0xff]
        %v714 = vld [vmem:[%s191 + $0xee8] sm:$0xff]
        %v715 = vld [vmem:[%s191 + $0xef0] sm:$0xff]
        %v716 = vld [vmem:[%s191 + $0xef8] sm:$0xff]
        %v717 = vld [vmem:[%s191 + $0xf00] sm:$0xff]
        %v718 = vld [vmem:[%s191 + $0xf08] sm:$0xff]
        %v719 = vld [vmem:[%s191 + $0xf10] sm:$0xff]
        %v720 = vld [vmem:[%s191 + $0xf18] sm:$0xff]
        %v721 = vld [vmem:[%s191 + $0xf20] sm:$0xff]
        %v722 = vld [vmem:[%s191 + $0xf28] sm:$0xff]
        %v723 = vld [vmem:[%s191 + $0xf30] sm:$0xff]
        %v724 = vld [vmem:[%s191 + $0xf38] sm:$0xff]
        %v725 = vld [vmem:[%s191 + $0xf40] sm:$0xff]
        %v726 = vld [vmem:[%s191 + $0xf48] sm:$0xff]
        %v727 = vld [vmem:[%s191 + $0xf50] sm:$0xff]
        %v728 = vld [vmem:[%s191 + $0xf58] sm:$0xff]
        %v729 = vld [vmem:[%s191 + $0xf60] sm:$0xff]
        %v730 = vld [vmem:[%s191 + $0xf68] sm:$0xff]
        %v731 = vld [vmem:[%s191 + $0xf70] sm:$0xff]
        %v732 = vld [vmem:[%s191 + $0xf78] sm:$0xff]
        %v733 = vld [vmem:[%s191 + $0xf80] sm:$0xff]
        %v734 = vld [vmem:[%s191 + $0xf88] sm:$0xff]
        %v735 = vld [vmem:[%s191 + $0xf90] sm:$0xff]
        %v736 = vld [vmem:[%s191 + $0xf98] sm:$0xff]
        %v737 = vld [vmem:[%s191 + $0xfa0] sm:$0xff]
        %v738 = vld [vmem:[%s191 + $0xfa8] sm:$0xff]
        %v739 = vld [vmem:[%s191 + $0xfb0] sm:$0xff]
        %v740 = vld [vmem:[%s191 + $0xfb8] sm:$0xff]
        %v741 = vld [vmem:[%s191 + $0xfc0] sm:$0xff]
        %v742 = vld [vmem:[%s191 + $0xfc8] sm:$0xff]
        %v743 = vld [vmem:[%s191 + $0xfd0] sm:$0xff]
        %v744 = vld [vmem:[%s191 + $0xfd8] sm:$0xff]
        %v745 = vld [vmem:[%s191 + $0xfe0] sm:$0xff]
        %v746 = vld [vmem:[%s191 + $0xfe8] sm:$0xff]
        %v747 = vld [vmem:[%s191 + $0xff0] sm:$0xff]
        %v748 = vld [vmem:[%s191 + $0xff8] sm:$0xff]
        %v749 = vld [vmem:[%s191 + $0x1000] sm:$0xff]
        %v750 = vld [vmem:[%s191 + $0x1008] sm:$0xff]
        %v751 = vld [vmem:[%s191 + $0x1010] sm:$0xff]
        %v752 = vld [vmem:[%s191 + $0x1018] sm:$0xff]
        %v753 = vld [vmem:[%s191 + $0x1020] sm:$0xff]
        %v754 = vld [vmem:[%s191 + $0x1028] sm:$0xff]
        %v755 = vld [vmem:[%s191 + $0x1030] sm:$0xff]
        %v756 = vld [vmem:[%s191 + $0x1038] sm:$0xff]
        %v757 = vld [vmem:[%s191 + $0x1040] sm:$0xff]
        %v758 = vld [vmem:[%s191 + $0x1048] sm:$0xff]
        %v759 = vld [vmem:[%s191 + $0x1050] sm:$0xff]
        %v760 = vld [vmem:[%s191 + $0x1058] sm:$0xff]
        %v761 = vld [vmem:[%s191 + $0x1060] sm:$0xff]
        %v762 = vld [vmem:[%s191 + $0x1068] sm:$0xff]
        %v763 = vld [vmem:[%s191 + $0x1070] sm:$0xff]
        %v764 = vld [vmem:[%s191 + $0x1078] sm:$0xff]
        %v765 = vld [vmem:[%s191 + $0x1080] sm:$0xff]
        %v766 = vld [vmem:[%s191 + $0x1088] sm:$0xff]
        %v767 = vld [vmem:[%s191 + $0x1090] sm:$0xff]
        %v768 = vld [vmem:[%s191 + $0x1098] sm:$0xff]
        %v769 = vld [vmem:[%s191 + $0x10a0] sm:$0xff]
        %v770 = vld [vmem:[%s191 + $0x10a8] sm:$0xff]
        %v771 = vld [vmem:[%s191 + $0x10b0] sm:$0xff]
        %v772 = vld [vmem:[%s191 + $0x10b8] sm:$0xff]
        %v773 = vld [vmem:[%s191 + $0x10c0] sm:$0xff]
        %v774 = vld [vmem:[%s191 + $0x10c8] sm:$0xff]
        %v775 = vld [vmem:[%s191 + $0x10d0] sm:$0xff]
        %v776 = vld [vmem:[%s191 + $0x10d8] sm:$0xff]
        %v777 = vld [vmem:[%s191 + $0x10e0] sm:$0xff]
        %v778 = vld [vmem:[%s191 + $0x10e8] sm:$0xff]
        %v779 = vld [vmem:[%s191 + $0x10f0] sm:$0xff]
        %v780 = vld [vmem:[%s191 + $0x10f8] sm:$0xff]
        %v781 = vld [vmem:[%s191 + $0x1100] sm:$0xff]
        %v782 = vld [vmem:[%s191 + $0x1108] sm:$0xff]
        %v783 = vld [vmem:[%s191 + $0x1110] sm:$0xff]
        %v784 = vld [vmem:[%s191 + $0x1118] sm:$0xff]
        %v785 = vld [vmem:[%s191 + $0x1120] sm:$0xff]
        %v786 = vld [vmem:[%s191 + $0x1128] sm:$0xff]
        %v787 = vld [vmem:[%s191 + $0x1130] sm:$0xff]
        %v788 = vld [vmem:[%s191 + $0x1138] sm:$0xff]
        %v789 = vld [vmem:[%s191 + $0x1140] sm:$0xff]
        %v790 = vld [vmem:[%s191 + $0x1148] sm:$0xff]
        %v791 = vld [vmem:[%s191 + $0x1150] sm:$0xff]
        %v792 = vld [vmem:[%s191 + $0x1158] sm:$0xff]
        %v793 = vld [vmem:[%s191 + $0x1160] sm:$0xff]
        %v794 = vld [vmem:[%s191 + $0x1168] sm:$0xff]
        %v795 = vld [vmem:[%s191 + $0x1170] sm:$0xff]
        %v796 = vld [vmem:[%s191 + $0x1178] sm:$0xff]
        %v797 = vld [vmem:[%s191 + $0x1180] sm:$0xff]
        %v798 = vld [vmem:[%s191 + $0x1188] sm:$0xff]
        %v799 = vld [vmem:[%s191 + $0x1190] sm:$0xff]
        %v800 = vld [vmem:[%s191 + $0x1198] sm:$0xff]
        %v801 = vld [vmem:[%s191 + $0x11a0] sm:$0xff]
        %v802 = vld [vmem:[%s191 + $0x11a8] sm:$0xff]
        %v803 = vld [vmem:[%s191 + $0x11b0] sm:$0xff]
        %v804 = vld [vmem:[%s191 + $0x11b8] sm:$0xff]
        %v805 = vld [vmem:[%s191 + $0x11c0] sm:$0xff]
        %v806 = vld [vmem:[%s191 + $0x11c8] sm:$0xff]
        %v807 = vld [vmem:[%s191 + $0x11d0] sm:$0xff]
        %v808 = vld [vmem:[%s191 + $0x11d8] sm:$0xff]
        %v809 = vld [vmem:[%s191 + $0x11e0] sm:$0xff]
        %v810 = vld [vmem:[%s191 + $0x11e8] sm:$0xff]
        %v811 = vld [vmem:[%s191 + $0x11f0] sm:$0xff]
        %v812 = vld [vmem:[%s191 + $0x11f8] sm:$0xff]
        %v813 = vld [vmem:[%s191 + $0x1200] sm:$0xff]
        %v814 = vld [vmem:[%s191 + $0x1208] sm:$0xff]
        %v815 = vld [vmem:[%s191 + $0x1210] sm:$0xff]
        %v816 = vld [vmem:[%s191 + $0x1218] sm:$0xff]
        %v817 = vld [vmem:[%s191 + $0x1220] sm:$0xff]
        %v818 = vld [vmem:[%s191 + $0x1228] sm:$0xff]
        %v819 = vld [vmem:[%s191 + $0x1230] sm:$0xff]
        %v820 = vld [vmem:[%s191 + $0x1238] sm:$0xff]
        %v821 = vld [vmem:[%s191 + $0x1240] sm:$0xff]
        %v822 = vld [vmem:[%s191 + $0x1248] sm:$0xff]
        %v823 = vld [vmem:[%s191 + $0x1250] sm:$0xff]
        %v824 = vld [vmem:[%s191 + $0x1258] sm:$0xff]
        %v825 = vld [vmem:[%s191 + $0x1260] sm:$0xff]
        %v826 = vld [vmem:[%s191 + $0x1268] sm:$0xff]
        %v827 = vld [vmem:[%s191 + $0x1270] sm:$0xff]
        %v828 = vld [vmem:[%s191 + $0x1278] sm:$0xff]
        %v829 = vld [vmem:[%s191 + $0x1280] sm:$0xff]
        %v830 = vld [vmem:[%s191 + $0x1288] sm:$0xff]
        %v831 = vld [vmem:[%s191 + $0x1290] sm:$0xff]
        %v832 = vld [vmem:[%s191 + $0x1298] sm:$0xff]
        %v833 = vld [vmem:[%s191 + $0x12a0] sm:$0xff]
        %v834 = vld [vmem:[%s191 + $0x12a8] sm:$0xff]
        %v835 = vld [vmem:[%s191 + $0x12b0] sm:$0xff]
        %v836 = vld [vmem:[%s191 + $0x12b8] sm:$0xff]
        %v837 = vld [vmem:[%s191 + $0x12c0] sm:$0xff]
        %v838 = vld [vmem:[%s191 + $0x12c8] sm:$0xff]
        %v839 = vld [vmem:[%s191 + $0x12d0] sm:$0xff]
        %v840 = vld [vmem:[%s191 + $0x12d8] sm:$0xff]
        %v841 = vld [vmem:[%s191 + $0x12e0] sm:$0xff]
        %v842 = vld [vmem:[%s191 + $0x12e8] sm:$0xff]
        %v843 = vld [vmem:[%s191 + $0x12f0] sm:$0xff]
        %v844 = vld [vmem:[%s191 + $0x12f8] sm:$0xff]
        %v845 = vld [vmem:[%s191 + $0x1300] sm:$0xff]
        %v846 = vld [vmem:[%s191 + $0x1308] sm:$0xff]
        %v847 = vld [vmem:[%s191 + $0x1310] sm:$0xff]
        %v848 = vld [vmem:[%s191 + $0x1318] sm:$0xff]
        %v849 = vld [vmem:[%s191 + $0x1320] sm:$0xff]
        %v850 = vld [vmem:[%s191 + $0x1328] sm:$0xff]
        %v851 = vld [vmem:[%s191 + $0x1330] sm:$0xff]
        %v852 = vld [vmem:[%s191 + $0x1338] sm:$0xff]
        %v853 = vld [vmem:[%s191 + $0x1340] sm:$0xff]
        %v854 = vld [vmem:[%s191 + $0x1348] sm:$0xff]
        %v855 = vld [vmem:[%s191 + $0x1350] sm:$0xff]
        %v856 = vld [vmem:[%s191 + $0x1358] sm:$0xff]
        %v857 = vld [vmem:[%s191 + $0x1360] sm:$0xff]
        %v858 = vld [vmem:[%s191 + $0x1368] sm:$0xff]
        %v859 = vld [vmem:[%s191 + $0x1370] sm:$0xff]
        %v860 = vld [vmem:[%s191 + $0x1378] sm:$0xff]
        %v861 = vld [vmem:[%s191 + $0x1380] sm:$0xff]
        %v862 = vld [vmem:[%s191 + $0x1388] sm:$0xff]
        %v863 = vld [vmem:[%s191 + $0x1390] sm:$0xff]
        %v864 = vld [vmem:[%s191 + $0x1398] sm:$0xff]
        %v865 = vld [vmem:[%s191 + $0x13a0] sm:$0xff]
        %v866 = vld [vmem:[%s191 + $0x13a8] sm:$0xff]
        %v867 = vld [vmem:[%s191 + $0x13b0] sm:$0xff]
        %v868 = vld [vmem:[%s191 + $0x13b8] sm:$0xff]
        %v869 = vld [vmem:[%s191 + $0x13c0] sm:$0xff]
        %v870 = vld [vmem:[%s191 + $0x13c8] sm:$0xff]
        %v871 = vld [vmem:[%s191 + $0x13d0] sm:$0xff]
        %v872 = vld [vmem:[%s191 + $0x13d8] sm:$0xff]
        %v873 = vld [vmem:[%s191 + $0x13e0] sm:$0xff]
        %v874 = vld [vmem:[%s191 + $0x13e8] sm:$0xff]
        %v875 = vld [vmem:[%s191 + $0x13f0] sm:$0xff]
        %v876 = vld [vmem:[%s191 + $0x13f8] sm:$0xff]
        %v877 = vld [vmem:[%s191 + $0x1400] sm:$0xff]
        %v878 = vld [vmem:[%s191 + $0x1408] sm:$0xff]
        %v879 = vld [vmem:[%s191 + $0x1410] sm:$0xff]
        %v880 = vld [vmem:[%s191 + $0x1418] sm:$0xff]
        %v881 = vld [vmem:[%s191 + $0x1420] sm:$0xff]
        %v882 = vld [vmem:[%s191 + $0x1428] sm:$0xff]
        %v883 = vld [vmem:[%s191 + $0x1430] sm:$0xff]
        %v884 = vld [vmem:[%s191 + $0x1438] sm:$0xff]
        %v885 = vld [vmem:[%s191 + $0x1440] sm:$0xff]
        %v886 = vld [vmem:[%s191 + $0x1448] sm:$0xff]
        %v887 = vld [vmem:[%s191 + $0x1450] sm:$0xff]
        %v888 = vld [vmem:[%s191 + $0x1458] sm:$0xff]
        %v889 = vld [vmem:[%s191 + $0x1460] sm:$0xff]
        %v890 = vld [vmem:[%s191 + $0x1468] sm:$0xff]
        %v891 = vld [vmem:[%s191 + $0x1470] sm:$0xff]
        %v892 = vld [vmem:[%s191 + $0x1478] sm:$0xff]
        %v893 = vld [vmem:[%s191 + $0x1480] sm:$0xff]
        %v894 = vld [vmem:[%s191 + $0x1488] sm:$0xff]
        %v895 = vld [vmem:[%s191 + $0x1490] sm:$0xff]
        %v896 = vld [vmem:[%s191 + $0x1498] sm:$0xff]
        %v897 = vld [vmem:[%s191 + $0x14a0] sm:$0xff]
        %v898 = vld [vmem:[%s191 + $0x14a8] sm:$0xff]
        %v899 = vld [vmem:[%s191 + $0x14b0] sm:$0xff]
        %v900 = vld [vmem:[%s191 + $0x14b8] sm:$0xff]
        %v901 = vld [vmem:[%s191 + $0x14c0] sm:$0xff]
        %v902 = vld [vmem:[%s191 + $0x14c8] sm:$0xff]
        %v903 = vld [vmem:[%s191 + $0x14d0] sm:$0xff]
        %v904 = vld [vmem:[%s191 + $0x14d8] sm:$0xff]
        %v905 = vld [vmem:[%s191 + $0x14e0] sm:$0xff]
        %v906 = vld [vmem:[%s191 + $0x14e8] sm:$0xff]
        %v907 = vld [vmem:[%s191 + $0x14f0] sm:$0xff]
        %v908 = vld [vmem:[%s191 + $0x14f8] sm:$0xff]
        %v909 = vld [vmem:[%s191 + $0x1500] sm:$0xff]
        %v910 = vld [vmem:[%s191 + $0x1508] sm:$0xff]
        %v911 = vld [vmem:[%s191 + $0x1510] sm:$0xff]
        %v912 = vld [vmem:[%s191 + $0x1518] sm:$0xff]
        %v913 = vld [vmem:[%s191 + $0x1520] sm:$0xff]
        %v914 = vld [vmem:[%s191 + $0x1528] sm:$0xff]
        %v915 = vld [vmem:[%s191 + $0x1530] sm:$0xff]
        %v916 = vld [vmem:[%s191 + $0x1538] sm:$0xff]
        %v917 = vld [vmem:[%s191 + $0x1540] sm:$0xff]
        %v918 = vld [vmem:[%s191 + $0x1548] sm:$0xff]
        %v919 = vld [vmem:[%s191 + $0x1550] sm:$0xff]
        %v920 = vld [vmem:[%s191 + $0x1558] sm:$0xff]
        %v921 = vld [vmem:[%s191 + $0x1560] sm:$0xff]
        %v922 = vld [vmem:[%s191 + $0x1568] sm:$0xff]
        %v923 = vld [vmem:[%s191 + $0x1570] sm:$0xff]
        %v924 = vld [vmem:[%s191 + $0x1578] sm:$0xff]
        %v925 = vld [vmem:[%s191 + $0x1580] sm:$0xff]
        %v926 = vld [vmem:[%s191 + $0x1588] sm:$0xff]
        %v927 = vld [vmem:[%s191 + $0x1590] sm:$0xff]
        %v928 = vld [vmem:[%s191 + $0x1598] sm:$0xff]
        %v929 = vld [vmem:[%s191 + $0x15a0] sm:$0xff]
        %v930 = vld [vmem:[%s191 + $0x15a8] sm:$0xff]
        %v931 = vld [vmem:[%s191 + $0x15b0] sm:$0xff]
        %v932 = vld [vmem:[%s191 + $0x15b8] sm:$0xff]
        %v933 = vld [vmem:[%s191 + $0x15c0] sm:$0xff]
        %v934 = vld [vmem:[%s191 + $0x15c8] sm:$0xff]
        %v935 = vld [vmem:[%s191 + $0x15d0] sm:$0xff]
        %v936 = vld [vmem:[%s191 + $0x15d8] sm:$0xff]
        %v937 = vld [vmem:[%s191 + $0x15e0] sm:$0xff]
        %v938 = vld [vmem:[%s191 + $0x15e8] sm:$0xff]
        %v939 = vld [vmem:[%s191 + $0x15f0] sm:$0xff]
        %v940 = vld [vmem:[%s191 + $0x15f8] sm:$0xff]
        %v941 = vld [vmem:[%s191 + $0x1600] sm:$0xff]
        %v942 = vld [vmem:[%s191 + $0x1608] sm:$0xff]
        %v943 = vld [vmem:[%s191 + $0x1610] sm:$0xff]
        %v944 = vld [vmem:[%s191 + $0x1618] sm:$0xff]
        %v945 = vld [vmem:[%s191 + $0x1620] sm:$0xff]
        %v946 = vld [vmem:[%s191 + $0x1628] sm:$0xff]
        %v947 = vld [vmem:[%s191 + $0x1630] sm:$0xff]
        %v948 = vld [vmem:[%s191 + $0x1638] sm:$0xff]
        %v949 = vld [vmem:[%s191 + $0x1640] sm:$0xff]
        %v950 = vld [vmem:[%s191 + $0x1648] sm:$0xff]
        %v951 = vld [vmem:[%s191 + $0x1650] sm:$0xff]
        %v952 = vld [vmem:[%s191 + $0x1658] sm:$0xff]
        %v953 = vld [vmem:[%s191 + $0x1660] sm:$0xff]
        %v954 = vld [vmem:[%s191 + $0x1668] sm:$0xff]
        %v955 = vld [vmem:[%s191 + $0x1670] sm:$0xff]
        %v956 = vld [vmem:[%s191 + $0x1678] sm:$0xff]
        %v957 = vld [vmem:[%s191 + $0x1680] sm:$0xff]
        %v958 = vld [vmem:[%s191 + $0x1688] sm:$0xff]
        %v959 = vld [vmem:[%s191 + $0x1690] sm:$0xff]
        %v960 = vld [vmem:[%s191 + $0x1698] sm:$0xff]
        %v961 = vld [vmem:[%s191 + $0x16a0] sm:$0xff]
        %v962 = vld [vmem:[%s191 + $0x16a8] sm:$0xff]
        %v963 = vld [vmem:[%s191 + $0x16b0] sm:$0xff]
        %v964 = vld [vmem:[%s191 + $0x16b8] sm:$0xff]
        %v965 = vld [vmem:[%s191 + $0x16c0] sm:$0xff]
        %v966 = vld [vmem:[%s191 + $0x16c8] sm:$0xff]
        %v967 = vld [vmem:[%s191 + $0x16d0] sm:$0xff]
        %v968 = vld [vmem:[%s191 + $0x16d8] sm:$0xff]
        %v969 = vld [vmem:[%s191 + $0x16e0] sm:$0xff]
        %v970 = vld [vmem:[%s191 + $0x16e8] sm:$0xff]
        %v971 = vld [vmem:[%s191 + $0x16f0] sm:$0xff]
        %v972 = vld [vmem:[%s191 + $0x16f8] sm:$0xff]
        %v973 = vld [vmem:[%s191 + $0x1700] sm:$0xff]
        %v974 = vld [vmem:[%s191 + $0x1708] sm:$0xff]
        %v975 = vld [vmem:[%s191 + $0x1710] sm:$0xff]
        %v976 = vld [vmem:[%s191 + $0x1718] sm:$0xff]
        %v977 = vld [vmem:[%s191 + $0x1720] sm:$0xff]
        %v978 = vld [vmem:[%s191 + $0x1728] sm:$0xff]
        %v979 = vld [vmem:[%s191 + $0x1730] sm:$0xff]
        %v980 = vld [vmem:[%s191 + $0x1738] sm:$0xff]
        %v981 = vld [vmem:[%s191 + $0x1740] sm:$0xff]
        %v982 = vld [vmem:[%s191 + $0x1748] sm:$0xff]
        %v983 = vld [vmem:[%s191 + $0x1750] sm:$0xff]
        %v984 = vld [vmem:[%s191 + $0x1758] sm:$0xff]
        %v985 = vld [vmem:[%s191 + $0x1760] sm:$0xff]
        %v986 = vld [vmem:[%s191 + $0x1768] sm:$0xff]
        %v987 = vld [vmem:[%s191 + $0x1770] sm:$0xff]
        %v988 = vld [vmem:[%s191 + $0x1778] sm:$0xff]
        %v989 = vld [vmem:[%s191 + $0x1780] sm:$0xff]
        %v990 = vld [vmem:[%s191 + $0x1788] sm:$0xff]
        %v991 = vld [vmem:[%s191 + $0x1790] sm:$0xff]
        %v992 = vld [vmem:[%s191 + $0x1798] sm:$0xff]
        %v993 = vld [vmem:[%s191 + $0x17a0] sm:$0xff]
        %v994 = vld [vmem:[%s191 + $0x17a8] sm:$0xff]
        %v995 = vld [vmem:[%s191 + $0x17b0] sm:$0xff]
        %v996 = vld [vmem:[%s191 + $0x17b8] sm:$0xff]
        %v997 = vld [vmem:[%s191 + $0x17c0] sm:$0xff]
        %v998 = vld [vmem:[%s191 + $0x17c8] sm:$0xff]
        %v999 = vld [vmem:[%s191 + $0x17d0] sm:$0xff]
        %v1000 = vld [vmem:[%s191 + $0x17d8] sm:$0xff]
        %v1001 = vld [vmem:[%s191 + $0x17e0] sm:$0xff]
        %v1002 = vld [vmem:[%s191 + $0x17e8] sm:$0xff]
        %v1003 = vld [vmem:[%s191 + $0x17f0] sm:$0xff]
        %v1004 = vld [vmem:[%s191 + $0x17f8] sm:$0xff]
        %v1005 = vld [vmem:[%s201] sm:$0xff]
        %v1006 = vld [vmem:[%s201 + $0x8] sm:$0xf]
        %v1009 = vperm.slane %v1005, 0
        %v1010 = vperm.slane %v1005, 1
        %v1011 = vperm.slane %v1005, 2
        %v1012 = vperm.slane %v1005, 3
        %v1013 = vperm.slane %v1005, 4
        %v1014 = vperm.slane %v1005, 5
        %v1015 = vperm.slane %v1005, 6
        %v1016 = vperm.slane %v1005, 7
        %v1017 = vperm.slane %v1006, 0
        %v1018 = vperm.slane %v1006, 1
        %v1019 = vperm.slane %v1006, 2
        %v1020 = vperm.slane %v1006, 3
        %v1037 = vunpack.c.l.b16 %v233
        %v1038 = vunpack.c.h.b16 %v233
        %v1039 = vunpack.c.l.b16 %v234
        %v1040 = vunpack.c.h.b16 %v234
        %v1041 = vunpack.c.l.b16 %v235
        %v1042 = vunpack.c.h.b16 %v235
        %v1043 = vunpack.c.l.b16 %v236
        %v1044 = vunpack.c.h.b16 %v236
        %v1045 = vpack.c.b16 %v1037, %v1037
        %v1046 = vpack.c.b16 %v1038, %v1038
        %v1047 = vpack.c.b16 %v1039, %v1039
        %v1048 = vpack.c.b16 %v1040, %v1040
        %v1049 = vpack.c.b16 %v1041, %v1041
        %v1050 = vpack.c.b16 %v1042, %v1042
        %v1051 = vpack.c.b16 %v1043, %v1043
        %v1052 = vpack.c.b16 %v1044, %v1044
        %v1829 = vunpack.c.l.b16 %v237
        %v1830 = vunpack.c.h.b16 %v237
        %v1831 = vunpack.c.l.b16 %v238
        %v1832 = vunpack.c.h.b16 %v238
        %v1833 = vunpack.c.l.b16 %v239
        %v1834 = vunpack.c.h.b16 %v239
        %v1835 = vunpack.c.l.b16 %v240
        %v1836 = vunpack.c.h.b16 %v240
        %v1837 = vunpack.c.l.b16 %v241
        %v1838 = vunpack.c.h.b16 %v241
        %v1839 = vunpack.c.l.b16 %v242
        %v1840 = vunpack.c.h.b16 %v242
        %v1841 = vunpack.c.l.b16 %v243
        %v1842 = vunpack.c.h.b16 %v243
        %v1843 = vunpack.c.l.b16 %v244
        %v1844 = vunpack.c.h.b16 %v244
        %v1845 = vunpack.c.l.b16 %v245
        %v1846 = vunpack.c.h.b16 %v245
        %v1847 = vunpack.c.l.b16 %v246
        %v1848 = vunpack.c.h.b16 %v246
        %v1849 = vunpack.c.l.b16 %v247
        %v1850 = vunpack.c.h.b16 %v247
        %v1851 = vunpack.c.l.b16 %v248
        %v1852 = vunpack.c.h.b16 %v248
        %v1853 = vunpack.c.l.b16 %v249
        %v1854 = vunpack.c.h.b16 %v249
        %v1855 = vunpack.c.l.b16 %v250
        %v1856 = vunpack.c.h.b16 %v250
        %v1857 = vunpack.c.l.b16 %v251
        %v1858 = vunpack.c.h.b16 %v251
        %v1859 = vunpack.c.l.b16 %v252
        %v1860 = vunpack.c.h.b16 %v252
        %v1861 = vunpack.c.l.b16 %v253
        %v1862 = vunpack.c.h.b16 %v253
        %v1863 = vunpack.c.l.b16 %v254
        %v1864 = vunpack.c.h.b16 %v254
        %v1865 = vunpack.c.l.b16 %v255
        %v1866 = vunpack.c.h.b16 %v255
        %v1867 = vunpack.c.l.b16 %v256
        %v1868 = vunpack.c.h.b16 %v256
        %v1869 = vunpack.c.l.b16 %v257
        %v1870 = vunpack.c.h.b16 %v257
        %v1871 = vunpack.c.l.b16 %v258
        %v1872 = vunpack.c.h.b16 %v258
        %v1873 = vunpack.c.l.b16 %v259
        %v1874 = vunpack.c.h.b16 %v259
        %v1875 = vunpack.c.l.b16 %v260
        %v1876 = vunpack.c.h.b16 %v260
        %v1877 = vunpack.c.l.b16 %v261
        %v1878 = vunpack.c.h.b16 %v261
        %v1879 = vunpack.c.l.b16 %v262
        %v1880 = vunpack.c.h.b16 %v262
        %v1881 = vunpack.c.l.b16 %v263
        %v1882 = vunpack.c.h.b16 %v263
        %v1883 = vunpack.c.l.b16 %v264
        %v1884 = vunpack.c.h.b16 %v264
        %v1885 = vunpack.c.l.b16 %v265
        %v1886 = vunpack.c.h.b16 %v265
        %v1887 = vunpack.c.l.b16 %v266
        %v1888 = vunpack.c.h.b16 %v266
        %v1889 = vunpack.c.l.b16 %v267
        %v1890 = vunpack.c.h.b16 %v267
        %v1891 = vunpack.c.l.b16 %v268
        %v1892 = vunpack.c.h.b16 %v268
        %v1893 = vunpack.c.l.b16 %v269
        %v1894 = vunpack.c.h.b16 %v269
        %v1895 = vunpack.c.l.b16 %v270
        %v1896 = vunpack.c.h.b16 %v270
        %v1897 = vunpack.c.l.b16 %v271
        %v1898 = vunpack.c.h.b16 %v271
        %v1899 = vunpack.c.l.b16 %v272
        %v1900 = vunpack.c.h.b16 %v272
        %v1901 = vunpack.c.l.b16 %v273
        %v1902 = vunpack.c.h.b16 %v273
        %v1903 = vunpack.c.l.b16 %v274
        %v1904 = vunpack.c.h.b16 %v274
        %v1905 = vunpack.c.l.b16 %v275
        %v1906 = vunpack.c.h.b16 %v275
        %v1907 = vunpack.c.l.b16 %v276
        %v1908 = vunpack.c.h.b16 %v276
        %v1909 = vunpack.c.l.b16 %v277
        %v1910 = vunpack.c.h.b16 %v277
        %v1911 = vunpack.c.l.b16 %v278
        %v1912 = vunpack.c.h.b16 %v278
        %v1913 = vunpack.c.l.b16 %v279
        %v1914 = vunpack.c.h.b16 %v279
        %v1915 = vunpack.c.l.b16 %v280
        %v1916 = vunpack.c.h.b16 %v280
        %v1917 = vunpack.c.l.b16 %v281
        %v1918 = vunpack.c.h.b16 %v281
        %v1919 = vunpack.c.l.b16 %v282
        %v1920 = vunpack.c.h.b16 %v282
        %v1921 = vunpack.c.l.b16 %v283
        %v1922 = vunpack.c.h.b16 %v283
        %v1923 = vunpack.c.l.b16 %v284
        %v1924 = vunpack.c.h.b16 %v284
        %v1925 = vunpack.c.l.b16 %v285
        %v1926 = vunpack.c.h.b16 %v285
        %v1927 = vunpack.c.l.b16 %v286
        %v1928 = vunpack.c.h.b16 %v286
        %v1929 = vunpack.c.l.b16 %v287
        %v1930 = vunpack.c.h.b16 %v287
        %v1931 = vunpack.c.l.b16 %v288
        %v1932 = vunpack.c.h.b16 %v288
        %v1933 = vunpack.c.l.b16 %v289
        %v1934 = vunpack.c.h.b16 %v289
        %v1935 = vunpack.c.l.b16 %v290
        %v1936 = vunpack.c.h.b16 %v290
        %v1937 = vunpack.c.l.b16 %v291
        %v1938 = vunpack.c.h.b16 %v291
        %v1939 = vunpack.c.l.b16 %v292
        %v1940 = vunpack.c.h.b16 %v292
        %v1941 = vunpack.c.l.b16 %v293
        %v1942 = vunpack.c.h.b16 %v293
        %v1943 = vunpack.c.l.b16 %v294
        %v1944 = vunpack.c.h.b16 %v294
        %v1945 = vunpack.c.l.b16 %v295
        %v1946 = vunpack.c.h.b16 %v295
        %v1947 = vunpack.c.l.b16 %v296
        %v1948 = vunpack.c.h.b16 %v296
        %v1949 = vunpack.c.l.b16 %v297
        %v1950 = vunpack.c.h.b16 %v297
        %v1951 = vunpack.c.l.b16 %v298
        %v1952 = vunpack.c.h.b16 %v298
        %v1953 = vunpack.c.l.b16 %v299
        %v1954 = vunpack.c.h.b16 %v299
        %v1955 = vunpack.c.l.b16 %v300
        %v1956 = vunpack.c.h.b16 %v300
        %v1957 = vunpack.c.l.b16 %v301
        %v1958 = vunpack.c.h.b16 %v301
        %v1959 = vunpack.c.l.b16 %v302
        %v1960 = vunpack.c.h.b16 %v302
        %v1961 = vunpack.c.l.b16 %v303
        %v1962 = vunpack.c.h.b16 %v303
        %v1963 = vunpack.c.l.b16 %v304
        %v1964 = vunpack.c.h.b16 %v304
        %v1965 = vunpack.c.l.b16 %v305
        %v1966 = vunpack.c.h.b16 %v305
        %v1967 = vunpack.c.l.b16 %v306
        %v1968 = vunpack.c.h.b16 %v306
        %v1969 = vunpack.c.l.b16 %v307
        %v1970 = vunpack.c.h.b16 %v307
        %v1971 = vunpack.c.l.b16 %v308
        %v1972 = vunpack.c.h.b16 %v308
        %v1973 = vunpack.c.l.b16 %v309
        %v1974 = vunpack.c.h.b16 %v309
        %v1975 = vunpack.c.l.b16 %v310
        %v1976 = vunpack.c.h.b16 %v310
        %v1977 = vunpack.c.l.b16 %v311
        %v1978 = vunpack.c.h.b16 %v311
        %v1979 = vunpack.c.l.b16 %v312
        %v1980 = vunpack.c.h.b16 %v312
        %v1981 = vunpack.c.l.b16 %v313
        %v1982 = vunpack.c.h.b16 %v313
        %v1983 = vunpack.c.l.b16 %v314
        %v1984 = vunpack.c.h.b16 %v314
        %v1985 = vunpack.c.l.b16 %v315
        %v1986 = vunpack.c.h.b16 %v315
        %v1987 = vunpack.c.l.b16 %v316
        %v1988 = vunpack.c.h.b16 %v316
        %v1989 = vunpack.c.l.b16 %v317
        %v1990 = vunpack.c.h.b16 %v317
        %v1991 = vunpack.c.l.b16 %v318
        %v1992 = vunpack.c.h.b16 %v318
        %v1993 = vunpack.c.l.b16 %v319
        %v1994 = vunpack.c.h.b16 %v319
        %v1995 = vunpack.c.l.b16 %v320
        %v1996 = vunpack.c.h.b16 %v320
        %v1997 = vunpack.c.l.b16 %v321
        %v1998 = vunpack.c.h.b16 %v321
        %v1999 = vunpack.c.l.b16 %v322
        %v2000 = vunpack.c.h.b16 %v322
        %v2001 = vunpack.c.l.b16 %v323
        %v2002 = vunpack.c.h.b16 %v323
        %v2003 = vunpack.c.l.b16 %v324
        %v2004 = vunpack.c.h.b16 %v324
        %v2005 = vunpack.c.l.b16 %v325
        %v2006 = vunpack.c.h.b16 %v325
        %v2007 = vunpack.c.l.b16 %v326
        %v2008 = vunpack.c.h.b16 %v326
        %v2009 = vunpack.c.l.b16 %v327
        %v2010 = vunpack.c.h.b16 %v327
        %v2011 = vunpack.c.l.b16 %v328
        %v2012 = vunpack.c.h.b16 %v328
        %v2013 = vunpack.c.l.b16 %v329
        %v2014 = vunpack.c.h.b16 %v329
        %v2015 = vunpack.c.l.b16 %v330
        %v2016 = vunpack.c.h.b16 %v330
        %v2017 = vunpack.c.l.b16 %v331
        %v2018 = vunpack.c.h.b16 %v331
        %v2019 = vunpack.c.l.b16 %v332
        %v2020 = vunpack.c.h.b16 %v332
        %v2021 = vunpack.c.l.b16 %v333
        %v2022 = vunpack.c.h.b16 %v333
        %v2023 = vunpack.c.l.b16 %v334
        %v2024 = vunpack.c.h.b16 %v334
        %v2025 = vunpack.c.l.b16 %v335
        %v2026 = vunpack.c.h.b16 %v335
        %v2027 = vunpack.c.l.b16 %v336
        %v2028 = vunpack.c.h.b16 %v336
        %v2029 = vunpack.c.l.b16 %v337
        %v2030 = vunpack.c.h.b16 %v337
        %v2031 = vunpack.c.l.b16 %v338
        %v2032 = vunpack.c.h.b16 %v338
        %v2033 = vunpack.c.l.b16 %v339
        %v2034 = vunpack.c.h.b16 %v339
        %v2035 = vunpack.c.l.b16 %v340
        %v2036 = vunpack.c.h.b16 %v340
        %v2037 = vunpack.c.l.b16 %v341
        %v2038 = vunpack.c.h.b16 %v341
        %v2039 = vunpack.c.l.b16 %v342
        %v2040 = vunpack.c.h.b16 %v342
        %v2041 = vunpack.c.l.b16 %v343
        %v2042 = vunpack.c.h.b16 %v343
        %v2043 = vunpack.c.l.b16 %v344
        %v2044 = vunpack.c.h.b16 %v344
        %v2045 = vunpack.c.l.b16 %v345
        %v2046 = vunpack.c.h.b16 %v345
        %v2047 = vunpack.c.l.b16 %v346
        %v2048 = vunpack.c.h.b16 %v346
        %v2049 = vunpack.c.l.b16 %v347
        %v2050 = vunpack.c.h.b16 %v347
        %v2051 = vunpack.c.l.b16 %v348
        %v2052 = vunpack.c.h.b16 %v348
        %v2053 = vunpack.c.l.b16 %v349
        %v2054 = vunpack.c.h.b16 %v349
        %v2055 = vunpack.c.l.b16 %v350
        %v2056 = vunpack.c.h.b16 %v350
        %v2057 = vunpack.c.l.b16 %v351
        %v2058 = vunpack.c.h.b16 %v351
        %v2059 = vunpack.c.l.b16 %v352
        %v2060 = vunpack.c.h.b16 %v352
        %v2061 = vunpack.c.l.b16 %v353
        %v2062 = vunpack.c.h.b16 %v353
        %v2063 = vunpack.c.l.b16 %v354
        %v2064 = vunpack.c.h.b16 %v354
        %v2065 = vunpack.c.l.b16 %v355
        %v2066 = vunpack.c.h.b16 %v355
        %v2067 = vunpack.c.l.b16 %v356
        %v2068 = vunpack.c.h.b16 %v356
        %v2069 = vunpack.c.l.b16 %v357
        %v2070 = vunpack.c.h.b16 %v357
        %v2071 = vunpack.c.l.b16 %v358
        %v2072 = vunpack.c.h.b16 %v358
        %v2073 = vunpack.c.l.b16 %v359
        %v2074 = vunpack.c.h.b16 %v359
        %v2075 = vunpack.c.l.b16 %v360
        %v2076 = vunpack.c.h.b16 %v360
        %v2077 = vunpack.c.l.b16 %v361
        %v2078 = vunpack.c.h.b16 %v361
        %v2079 = vunpack.c.l.b16 %v362
        %v2080 = vunpack.c.h.b16 %v362
        %v2081 = vunpack.c.l.b16 %v363
        %v2082 = vunpack.c.h.b16 %v363
        %v2083 = vunpack.c.l.b16 %v364
        %v2084 = vunpack.c.h.b16 %v364
        %v2085 = vunpack.c.l.b16 %v365
        %v2086 = vunpack.c.h.b16 %v365
        %v2087 = vunpack.c.l.b16 %v366
        %v2088 = vunpack.c.h.b16 %v366
        %v2089 = vunpack.c.l.b16 %v367
        %v2090 = vunpack.c.h.b16 %v367
        %v2091 = vunpack.c.l.b16 %v368
        %v2092 = vunpack.c.h.b16 %v368
        %v2093 = vunpack.c.l.b16 %v369
        %v2094 = vunpack.c.h.b16 %v369
        %v2095 = vunpack.c.l.b16 %v370
        %v2096 = vunpack.c.h.b16 %v370
        %v2097 = vunpack.c.l.b16 %v371
        %v2098 = vunpack.c.h.b16 %v371
        %v2099 = vunpack.c.l.b16 %v372
        %v2100 = vunpack.c.h.b16 %v372
        %v2101 = vunpack.c.l.b16 %v373
        %v2102 = vunpack.c.h.b16 %v373
        %v2103 = vunpack.c.l.b16 %v374
        %v2104 = vunpack.c.h.b16 %v374
        %v2105 = vunpack.c.l.b16 %v375
        %v2106 = vunpack.c.h.b16 %v375
        %v2107 = vunpack.c.l.b16 %v376
        %v2108 = vunpack.c.h.b16 %v376
        %v2109 = vunpack.c.l.b16 %v377
        %v2110 = vunpack.c.h.b16 %v377
        %v2111 = vunpack.c.l.b16 %v378
        %v2112 = vunpack.c.h.b16 %v378
        %v2113 = vunpack.c.l.b16 %v379
        %v2114 = vunpack.c.h.b16 %v379
        %v2115 = vunpack.c.l.b16 %v380
        %v2116 = vunpack.c.h.b16 %v380
        %v2117 = vunpack.c.l.b16 %v381
        %v2118 = vunpack.c.h.b16 %v381
        %v2119 = vunpack.c.l.b16 %v382
        %v2120 = vunpack.c.h.b16 %v382
        %v2121 = vunpack.c.l.b16 %v383
        %v2122 = vunpack.c.h.b16 %v383
        %v2123 = vunpack.c.l.b16 %v384
        %v2124 = vunpack.c.h.b16 %v384
        %v2125 = vunpack.c.l.b16 %v385
        %v2126 = vunpack.c.h.b16 %v385
        %v2127 = vunpack.c.l.b16 %v386
        %v2128 = vunpack.c.h.b16 %v386
        %v2129 = vunpack.c.l.b16 %v387
        %v2130 = vunpack.c.h.b16 %v387
        %v2131 = vunpack.c.l.b16 %v388
        %v2132 = vunpack.c.h.b16 %v388
        %v2133 = vunpack.c.l.b16 %v389
        %v2134 = vunpack.c.h.b16 %v389
        %v2135 = vunpack.c.l.b16 %v390
        %v2136 = vunpack.c.h.b16 %v390
        %v2137 = vunpack.c.l.b16 %v391
        %v2138 = vunpack.c.h.b16 %v391
        %v2139 = vunpack.c.l.b16 %v392
        %v2140 = vunpack.c.h.b16 %v392
        %v2141 = vunpack.c.l.b16 %v393
        %v2142 = vunpack.c.h.b16 %v393
        %v2143 = vunpack.c.l.b16 %v394
        %v2144 = vunpack.c.h.b16 %v394
        %v2145 = vunpack.c.l.b16 %v395
        %v2146 = vunpack.c.h.b16 %v395
        %v2147 = vunpack.c.l.b16 %v396
        %v2148 = vunpack.c.h.b16 %v396
        %v2149 = vunpack.c.l.b16 %v397
        %v2150 = vunpack.c.h.b16 %v397
        %v2151 = vunpack.c.l.b16 %v398
        %v2152 = vunpack.c.h.b16 %v398
        %v2153 = vunpack.c.l.b16 %v399
        %v2154 = vunpack.c.h.b16 %v399
        %v2155 = vunpack.c.l.b16 %v400
        %v2156 = vunpack.c.h.b16 %v400
        %v2157 = vunpack.c.l.b16 %v401
        %v2158 = vunpack.c.h.b16 %v401
        %v2159 = vunpack.c.l.b16 %v402
        %v2160 = vunpack.c.h.b16 %v402
        %v2161 = vunpack.c.l.b16 %v403
        %v2162 = vunpack.c.h.b16 %v403
        %v2163 = vunpack.c.l.b16 %v404
        %v2164 = vunpack.c.h.b16 %v404
        %v2165 = vunpack.c.l.b16 %v405
        %v2166 = vunpack.c.h.b16 %v405
        %v2167 = vunpack.c.l.b16 %v406
        %v2168 = vunpack.c.h.b16 %v406
        %v2169 = vunpack.c.l.b16 %v407
        %v2170 = vunpack.c.h.b16 %v407
        %v2171 = vunpack.c.l.b16 %v408
        %v2172 = vunpack.c.h.b16 %v408
        %v2173 = vunpack.c.l.b16 %v409
        %v2174 = vunpack.c.h.b16 %v409
        %v2175 = vunpack.c.l.b16 %v410
        %v2176 = vunpack.c.h.b16 %v410
        %v2177 = vunpack.c.l.b16 %v411
        %v2178 = vunpack.c.h.b16 %v411
        %v2179 = vunpack.c.l.b16 %v412
        %v2180 = vunpack.c.h.b16 %v412
        %v2181 = vunpack.c.l.b16 %v413
        %v2182 = vunpack.c.h.b16 %v413
        %v2183 = vunpack.c.l.b16 %v414
        %v2184 = vunpack.c.h.b16 %v414
        %v2185 = vunpack.c.l.b16 %v415
        %v2186 = vunpack.c.h.b16 %v415
        %v2187 = vunpack.c.l.b16 %v416
        %v2188 = vunpack.c.h.b16 %v416
        %v2189 = vunpack.c.l.b16 %v417
        %v2190 = vunpack.c.h.b16 %v417
        %v2191 = vunpack.c.l.b16 %v418
        %v2192 = vunpack.c.h.b16 %v418
        %v2193 = vunpack.c.l.b16 %v419
        %v2194 = vunpack.c.h.b16 %v419
        %v2195 = vunpack.c.l.b16 %v420
        %v2196 = vunpack.c.h.b16 %v420
        %v2197 = vunpack.c.l.b16 %v421
        %v2198 = vunpack.c.h.b16 %v421
        %v2199 = vunpack.c.l.b16 %v422
        %v2200 = vunpack.c.h.b16 %v422
        %v2201 = vunpack.c.l.b16 %v423
        %v2202 = vunpack.c.h.b16 %v423
        %v2203 = vunpack.c.l.b16 %v424
        %v2204 = vunpack.c.h.b16 %v424
        %v2205 = vunpack.c.l.b16 %v425
        %v2206 = vunpack.c.h.b16 %v425
        %v2207 = vunpack.c.l.b16 %v426
        %v2208 = vunpack.c.h.b16 %v426
        %v2209 = vunpack.c.l.b16 %v427
        %v2210 = vunpack.c.h.b16 %v427
        %v2211 = vunpack.c.l.b16 %v428
        %v2212 = vunpack.c.h.b16 %v428
        %v2213 = vunpack.c.l.b16 %v429
        %v2214 = vunpack.c.h.b16 %v429
        %v2215 = vunpack.c.l.b16 %v430
        %v2216 = vunpack.c.h.b16 %v430
        %v2217 = vunpack.c.l.b16 %v431
        %v2218 = vunpack.c.h.b16 %v431
        %v2219 = vunpack.c.l.b16 %v432
        %v2220 = vunpack.c.h.b16 %v432
        %v2221 = vunpack.c.l.b16 %v433
        %v2222 = vunpack.c.h.b16 %v433
        %v2223 = vunpack.c.l.b16 %v434
        %v2224 = vunpack.c.h.b16 %v434
        %v2225 = vunpack.c.l.b16 %v435
        %v2226 = vunpack.c.h.b16 %v435
        %v2227 = vunpack.c.l.b16 %v436
        %v2228 = vunpack.c.h.b16 %v436
        %v2229 = vunpack.c.l.b16 %v437
        %v2230 = vunpack.c.h.b16 %v437
        %v2231 = vunpack.c.l.b16 %v438
        %v2232 = vunpack.c.h.b16 %v438
        %v2233 = vunpack.c.l.b16 %v439
        %v2234 = vunpack.c.h.b16 %v439
        %v2235 = vunpack.c.l.b16 %v440
        %v2236 = vunpack.c.h.b16 %v440
        %v2237 = vunpack.c.l.b16 %v441
        %v2238 = vunpack.c.h.b16 %v441
        %v2239 = vunpack.c.l.b16 %v442
        %v2240 = vunpack.c.h.b16 %v442
        %v2241 = vunpack.c.l.b16 %v443
        %v2242 = vunpack.c.h.b16 %v443
        %v2243 = vunpack.c.l.b16 %v444
        %v2244 = vunpack.c.h.b16 %v444
        %v2245 = vunpack.c.l.b16 %v445
        %v2246 = vunpack.c.h.b16 %v445
        %v2247 = vunpack.c.l.b16 %v446
        %v2248 = vunpack.c.h.b16 %v446
        %v2249 = vunpack.c.l.b16 %v447
        %v2250 = vunpack.c.h.b16 %v447
        %v2251 = vunpack.c.l.b16 %v448
        %v2252 = vunpack.c.h.b16 %v448
        %v2253 = vunpack.c.l.b16 %v449
        %v2254 = vunpack.c.h.b16 %v449
        %v2255 = vunpack.c.l.b16 %v450
        %v2256 = vunpack.c.h.b16 %v450
        %v2257 = vunpack.c.l.b16 %v451
        %v2258 = vunpack.c.h.b16 %v451
        %v2259 = vunpack.c.l.b16 %v452
        %v2260 = vunpack.c.h.b16 %v452
        %v2261 = vunpack.c.l.b16 %v453
        %v2262 = vunpack.c.h.b16 %v453
        %v2263 = vunpack.c.l.b16 %v454
        %v2264 = vunpack.c.h.b16 %v454
        %v2265 = vunpack.c.l.b16 %v455
        %v2266 = vunpack.c.h.b16 %v455
        %v2267 = vunpack.c.l.b16 %v456
        %v2268 = vunpack.c.h.b16 %v456
        %v2269 = vunpack.c.l.b16 %v457
        %v2270 = vunpack.c.h.b16 %v457
        %v2271 = vunpack.c.l.b16 %v458
        %v2272 = vunpack.c.h.b16 %v458
        %v2273 = vunpack.c.l.b16 %v459
        %v2274 = vunpack.c.h.b16 %v459
        %v2275 = vunpack.c.l.b16 %v460
        %v2276 = vunpack.c.h.b16 %v460
        %v2277 = vunpack.c.l.b16 %v461
        %v2278 = vunpack.c.h.b16 %v461
        %v2279 = vunpack.c.l.b16 %v462
        %v2280 = vunpack.c.h.b16 %v462
        %v2281 = vunpack.c.l.b16 %v463
        %v2282 = vunpack.c.h.b16 %v463
        %v2283 = vunpack.c.l.b16 %v464
        %v2284 = vunpack.c.h.b16 %v464
        %v2285 = vunpack.c.l.b16 %v465
        %v2286 = vunpack.c.h.b16 %v465
        %v2287 = vunpack.c.l.b16 %v466
        %v2288 = vunpack.c.h.b16 %v466
        %v2289 = vunpack.c.l.b16 %v467
        %v2290 = vunpack.c.h.b16 %v467
        %v2291 = vunpack.c.l.b16 %v468
        %v2292 = vunpack.c.h.b16 %v468
        %v2293 = vunpack.c.l.b16 %v469
        %v2294 = vunpack.c.h.b16 %v469
        %v2295 = vunpack.c.l.b16 %v470
        %v2296 = vunpack.c.h.b16 %v470
        %v2297 = vunpack.c.l.b16 %v471
        %v2298 = vunpack.c.h.b16 %v471
        %v2299 = vunpack.c.l.b16 %v472
        %v2300 = vunpack.c.h.b16 %v472
        %v2301 = vunpack.c.l.b16 %v473
        %v2302 = vunpack.c.h.b16 %v473
        %v2303 = vunpack.c.l.b16 %v474
        %v2304 = vunpack.c.h.b16 %v474
        %v2305 = vunpack.c.l.b16 %v475
        %v2306 = vunpack.c.h.b16 %v475
        %v2307 = vunpack.c.l.b16 %v476
        %v2308 = vunpack.c.h.b16 %v476
        %v2309 = vunpack.c.l.b16 %v477
        %v2310 = vunpack.c.h.b16 %v477
        %v2311 = vunpack.c.l.b16 %v478
        %v2312 = vunpack.c.h.b16 %v478
        %v2313 = vunpack.c.l.b16 %v479
        %v2314 = vunpack.c.h.b16 %v479
        %v2315 = vunpack.c.l.b16 %v480
        %v2316 = vunpack.c.h.b16 %v480
        %v2317 = vunpack.c.l.b16 %v481
        %v2318 = vunpack.c.h.b16 %v481
        %v2319 = vunpack.c.l.b16 %v482
        %v2320 = vunpack.c.h.b16 %v482
        %v2321 = vunpack.c.l.b16 %v483
        %v2322 = vunpack.c.h.b16 %v483
        %v2323 = vunpack.c.l.b16 %v484
        %v2324 = vunpack.c.h.b16 %v484
        %v2325 = vunpack.c.l.b16 %v485
        %v2326 = vunpack.c.h.b16 %v485
        %v2327 = vunpack.c.l.b16 %v486
        %v2328 = vunpack.c.h.b16 %v486
        %v2329 = vunpack.c.l.b16 %v487
        %v2330 = vunpack.c.h.b16 %v487
        %v2331 = vunpack.c.l.b16 %v488
        %v2332 = vunpack.c.h.b16 %v488
        %v2333 = vunpack.c.l.b16 %v489
        %v2334 = vunpack.c.h.b16 %v489
        %v2335 = vunpack.c.l.b16 %v490
        %v2336 = vunpack.c.h.b16 %v490
        %v2337 = vunpack.c.l.b16 %v491
        %v2338 = vunpack.c.h.b16 %v491
        %v2339 = vunpack.c.l.b16 %v492
        %v2340 = vunpack.c.h.b16 %v492
        %v2341 = vunpack.c.l.b16 %v493
        %v2342 = vunpack.c.h.b16 %v493
        %v2343 = vunpack.c.l.b16 %v494
        %v2344 = vunpack.c.h.b16 %v494
        %v2345 = vunpack.c.l.b16 %v495
        %v2346 = vunpack.c.h.b16 %v495
        %v2347 = vunpack.c.l.b16 %v496
        %v2348 = vunpack.c.h.b16 %v496
        %v2349 = vunpack.c.l.b16 %v497
        %v2350 = vunpack.c.h.b16 %v497
        %v2351 = vunpack.c.l.b16 %v498
        %v2352 = vunpack.c.h.b16 %v498
        %v2353 = vunpack.c.l.b16 %v499
        %v2354 = vunpack.c.h.b16 %v499
        %v2355 = vunpack.c.l.b16 %v500
        %v2356 = vunpack.c.h.b16 %v500
        %v2357 = vunpack.c.l.b16 %v501
        %v2358 = vunpack.c.h.b16 %v501
        %v2359 = vunpack.c.l.b16 %v502
        %v2360 = vunpack.c.h.b16 %v502
        %v2361 = vunpack.c.l.b16 %v503
        %v2362 = vunpack.c.h.b16 %v503
        %v2363 = vunpack.c.l.b16 %v504
        %v2364 = vunpack.c.h.b16 %v504
        %v2365 = vunpack.c.l.b16 %v505
        %v2366 = vunpack.c.h.b16 %v505
        %v2367 = vunpack.c.l.b16 %v506
        %v2368 = vunpack.c.h.b16 %v506
        %v2369 = vunpack.c.l.b16 %v507
        %v2370 = vunpack.c.h.b16 %v507
        %v2371 = vunpack.c.l.b16 %v508
        %v2372 = vunpack.c.h.b16 %v508
        %v2373 = vunpack.c.l.b16 %v509
        %v2374 = vunpack.c.h.b16 %v509
        %v2375 = vunpack.c.l.b16 %v510
        %v2376 = vunpack.c.h.b16 %v510
        %v2377 = vunpack.c.l.b16 %v511
        %v2378 = vunpack.c.h.b16 %v511
        %v2379 = vunpack.c.l.b16 %v512
        %v2380 = vunpack.c.h.b16 %v512
        %v2381 = vunpack.c.l.b16 %v513
        %v2382 = vunpack.c.h.b16 %v513
        %v2383 = vunpack.c.l.b16 %v514
        %v2384 = vunpack.c.h.b16 %v514
        %v2385 = vunpack.c.l.b16 %v515
        %v2386 = vunpack.c.h.b16 %v515
        %v2387 = vunpack.c.l.b16 %v516
        %v2388 = vunpack.c.h.b16 %v516
        %v2389 = vunpack.c.l.b16 %v517
        %v2390 = vunpack.c.h.b16 %v517
        %v2391 = vunpack.c.l.b16 %v518
        %v2392 = vunpack.c.h.b16 %v518
        %v2393 = vunpack.c.l.b16 %v519
        %v2394 = vunpack.c.h.b16 %v519
        %v2395 = vunpack.c.l.b16 %v520
        %v2396 = vunpack.c.h.b16 %v520
        %v2397 = vunpack.c.l.b16 %v521
        %v2398 = vunpack.c.h.b16 %v521
        %v2399 = vunpack.c.l.b16 %v522
        %v2400 = vunpack.c.h.b16 %v522
        %v2401 = vunpack.c.l.b16 %v523
        %v2402 = vunpack.c.h.b16 %v523
        %v2403 = vunpack.c.l.b16 %v524
        %v2404 = vunpack.c.h.b16 %v524
        %v2405 = vunpack.c.l.b16 %v525
        %v2406 = vunpack.c.h.b16 %v525
        %v2407 = vunpack.c.l.b16 %v526
        %v2408 = vunpack.c.h.b16 %v526
        %v2409 = vunpack.c.l.b16 %v527
        %v2410 = vunpack.c.h.b16 %v527
        %v2411 = vunpack.c.l.b16 %v528
        %v2412 = vunpack.c.h.b16 %v528
        %v2413 = vunpack.c.l.b16 %v529
        %v2414 = vunpack.c.h.b16 %v529
        %v2415 = vunpack.c.l.b16 %v530
        %v2416 = vunpack.c.h.b16 %v530
        %v2417 = vunpack.c.l.b16 %v531
        %v2418 = vunpack.c.h.b16 %v531
        %v2419 = vunpack.c.l.b16 %v532
        %v2420 = vunpack.c.h.b16 %v532
        %v2421 = vunpack.c.l.b16 %v533
        %v2422 = vunpack.c.h.b16 %v533
        %v2423 = vunpack.c.l.b16 %v534
        %v2424 = vunpack.c.h.b16 %v534
        %v2425 = vunpack.c.l.b16 %v535
        %v2426 = vunpack.c.h.b16 %v535
        %v2427 = vunpack.c.l.b16 %v536
        %v2428 = vunpack.c.h.b16 %v536
        %v2429 = vunpack.c.l.b16 %v537
        %v2430 = vunpack.c.h.b16 %v537
        %v2431 = vunpack.c.l.b16 %v538
        %v2432 = vunpack.c.h.b16 %v538
        %v2433 = vunpack.c.l.b16 %v539
        %v2434 = vunpack.c.h.b16 %v539
        %v2435 = vunpack.c.l.b16 %v540
        %v2436 = vunpack.c.h.b16 %v540
        %v2437 = vunpack.c.l.b16 %v541
        %v2438 = vunpack.c.h.b16 %v541
        %v2439 = vunpack.c.l.b16 %v542
        %v2440 = vunpack.c.h.b16 %v542
        %v2441 = vunpack.c.l.b16 %v543
        %v2442 = vunpack.c.h.b16 %v543
        %v2443 = vunpack.c.l.b16 %v544
        %v2444 = vunpack.c.h.b16 %v544
        %v2445 = vunpack.c.l.b16 %v545
        %v2446 = vunpack.c.h.b16 %v545
        %v2447 = vunpack.c.l.b16 %v546
        %v2448 = vunpack.c.h.b16 %v546
        %v2449 = vunpack.c.l.b16 %v547
        %v2450 = vunpack.c.h.b16 %v547
        %v2451 = vunpack.c.l.b16 %v548
        %v2452 = vunpack.c.h.b16 %v548
        %v2453 = vunpack.c.l.b16 %v549
        %v2454 = vunpack.c.h.b16 %v549
        %v2455 = vunpack.c.l.b16 %v550
        %v2456 = vunpack.c.h.b16 %v550
        %v2457 = vunpack.c.l.b16 %v551
        %v2458 = vunpack.c.h.b16 %v551
        %v2459 = vunpack.c.l.b16 %v552
        %v2460 = vunpack.c.h.b16 %v552
        %v2461 = vunpack.c.l.b16 %v553
        %v2462 = vunpack.c.h.b16 %v553
        %v2463 = vunpack.c.l.b16 %v554
        %v2464 = vunpack.c.h.b16 %v554
        %v2465 = vunpack.c.l.b16 %v555
        %v2466 = vunpack.c.h.b16 %v555
        %v2467 = vunpack.c.l.b16 %v556
        %v2468 = vunpack.c.h.b16 %v556
        %v2469 = vunpack.c.l.b16 %v557
        %v2470 = vunpack.c.h.b16 %v557
        %v2471 = vunpack.c.l.b16 %v558
        %v2472 = vunpack.c.h.b16 %v558
        %v2473 = vunpack.c.l.b16 %v559
        %v2474 = vunpack.c.h.b16 %v559
        %v2475 = vunpack.c.l.b16 %v560
        %v2476 = vunpack.c.h.b16 %v560
        %v2477 = vunpack.c.l.b16 %v561
        %v2478 = vunpack.c.h.b16 %v561
        %v2479 = vunpack.c.l.b16 %v562
        %v2480 = vunpack.c.h.b16 %v562
        %v2481 = vunpack.c.l.b16 %v563
        %v2482 = vunpack.c.h.b16 %v563
        %v2483 = vunpack.c.l.b16 %v564
        %v2484 = vunpack.c.h.b16 %v564
        %v2485 = vunpack.c.l.b16 %v565
        %v2486 = vunpack.c.h.b16 %v565
        %v2487 = vunpack.c.l.b16 %v566
        %v2488 = vunpack.c.h.b16 %v566
        %v2489 = vunpack.c.l.b16 %v567
        %v2490 = vunpack.c.h.b16 %v567
        %v2491 = vunpack.c.l.b16 %v568
        %v2492 = vunpack.c.h.b16 %v568
        %v2493 = vunpack.c.l.b16 %v569
        %v2494 = vunpack.c.h.b16 %v569
        %v2495 = vunpack.c.l.b16 %v570
        %v2496 = vunpack.c.h.b16 %v570
        %v2497 = vunpack.c.l.b16 %v571
        %v2498 = vunpack.c.h.b16 %v571
        %v2499 = vunpack.c.l.b16 %v572
        %v2500 = vunpack.c.h.b16 %v572
        %v2501 = vunpack.c.l.b16 %v573
        %v2502 = vunpack.c.h.b16 %v573
        %v2503 = vunpack.c.l.b16 %v574
        %v2504 = vunpack.c.h.b16 %v574
        %v2505 = vunpack.c.l.b16 %v575
        %v2506 = vunpack.c.h.b16 %v575
        %v2507 = vunpack.c.l.b16 %v576
        %v2508 = vunpack.c.h.b16 %v576
        %v2509 = vunpack.c.l.b16 %v577
        %v2510 = vunpack.c.h.b16 %v577
        %v2511 = vunpack.c.l.b16 %v578
        %v2512 = vunpack.c.h.b16 %v578
        %v2513 = vunpack.c.l.b16 %v579
        %v2514 = vunpack.c.h.b16 %v579
        %v2515 = vunpack.c.l.b16 %v580
        %v2516 = vunpack.c.h.b16 %v580
        %v2517 = vunpack.c.l.b16 %v581
        %v2518 = vunpack.c.h.b16 %v581
        %v2519 = vunpack.c.l.b16 %v582
        %v2520 = vunpack.c.h.b16 %v582
        %v2521 = vunpack.c.l.b16 %v583
        %v2522 = vunpack.c.h.b16 %v583
        %v2523 = vunpack.c.l.b16 %v584
        %v2524 = vunpack.c.h.b16 %v584
        %v2525 = vunpack.c.l.b16 %v585
        %v2526 = vunpack.c.h.b16 %v585
        %v2527 = vunpack.c.l.b16 %v586
        %v2528 = vunpack.c.h.b16 %v586
        %v2529 = vunpack.c.l.b16 %v587
        %v2530 = vunpack.c.h.b16 %v587
        %v2531 = vunpack.c.l.b16 %v588
        %v2532 = vunpack.c.h.b16 %v588
        %v2533 = vunpack.c.l.b16 %v589
        %v2534 = vunpack.c.h.b16 %v589
        %v2535 = vunpack.c.l.b16 %v590
        %v2536 = vunpack.c.h.b16 %v590
        %v2537 = vunpack.c.l.b16 %v591
        %v2538 = vunpack.c.h.b16 %v591
        %v2539 = vunpack.c.l.b16 %v592
        %v2540 = vunpack.c.h.b16 %v592
        %v2541 = vunpack.c.l.b16 %v593
        %v2542 = vunpack.c.h.b16 %v593
        %v2543 = vunpack.c.l.b16 %v594
        %v2544 = vunpack.c.h.b16 %v594
        %v2545 = vunpack.c.l.b16 %v595
        %v2546 = vunpack.c.h.b16 %v595
        %v2547 = vunpack.c.l.b16 %v596
        %v2548 = vunpack.c.h.b16 %v596
        %v2549 = vunpack.c.l.b16 %v597
        %v2550 = vunpack.c.h.b16 %v597
        %v2551 = vunpack.c.l.b16 %v598
        %v2552 = vunpack.c.h.b16 %v598
        %v2553 = vunpack.c.l.b16 %v599
        %v2554 = vunpack.c.h.b16 %v599
        %v2555 = vunpack.c.l.b16 %v600
        %v2556 = vunpack.c.h.b16 %v600
        %v2557 = vunpack.c.l.b16 %v601
        %v2558 = vunpack.c.h.b16 %v601
        %v2559 = vunpack.c.l.b16 %v602
        %v2560 = vunpack.c.h.b16 %v602
        %v2561 = vunpack.c.l.b16 %v603
        %v2562 = vunpack.c.h.b16 %v603
        %v2563 = vunpack.c.l.b16 %v604
        %v2564 = vunpack.c.h.b16 %v604
        %v2565 = vunpack.c.l.b16 %v605
        %v2566 = vunpack.c.h.b16 %v605
        %v2567 = vunpack.c.l.b16 %v606
        %v2568 = vunpack.c.h.b16 %v606
        %v2569 = vunpack.c.l.b16 %v607
        %v2570 = vunpack.c.h.b16 %v607
        %v2571 = vunpack.c.l.b16 %v608
        %v2572 = vunpack.c.h.b16 %v608
        %v2573 = vunpack.c.l.b16 %v609
        %v2574 = vunpack.c.h.b16 %v609
        %v2575 = vunpack.c.l.b16 %v610
        %v2576 = vunpack.c.h.b16 %v610
        %v2577 = vunpack.c.l.b16 %v611
        %v2578 = vunpack.c.h.b16 %v611
        %v2579 = vunpack.c.l.b16 %v612
        %v2580 = vunpack.c.h.b16 %v612
        %v2581 = vunpack.c.l.b16 %v613
        %v2582 = vunpack.c.h.b16 %v613
        %v2583 = vunpack.c.l.b16 %v614
        %v2584 = vunpack.c.h.b16 %v614
        %v2585 = vunpack.c.l.b16 %v615
        %v2586 = vunpack.c.h.b16 %v615
        %v2587 = vunpack.c.l.b16 %v616
        %v2588 = vunpack.c.h.b16 %v616
        %v2589 = vunpack.c.l.b16 %v617
        %v2590 = vunpack.c.h.b16 %v617
        %v2591 = vunpack.c.l.b16 %v618
        %v2592 = vunpack.c.h.b16 %v618
        %v2593 = vunpack.c.l.b16 %v619
        %v2594 = vunpack.c.h.b16 %v619
        %v2595 = vunpack.c.l.b16 %v620
        %v2596 = vunpack.c.h.b16 %v620
        %v2597 = vunpack.c.l.b16 %v621
        %v2598 = vunpack.c.h.b16 %v621
        %v2599 = vunpack.c.l.b16 %v622
        %v2600 = vunpack.c.h.b16 %v622
        %v2601 = vunpack.c.l.b16 %v623
        %v2602 = vunpack.c.h.b16 %v623
        %v2603 = vunpack.c.l.b16 %v624
        %v2604 = vunpack.c.h.b16 %v624
        %v2605 = vunpack.c.l.b16 %v625
        %v2606 = vunpack.c.h.b16 %v625
        %v2607 = vunpack.c.l.b16 %v626
        %v2608 = vunpack.c.h.b16 %v626
        %v2609 = vunpack.c.l.b16 %v627
        %v2610 = vunpack.c.h.b16 %v627
        %v2611 = vunpack.c.l.b16 %v628
        %v2612 = vunpack.c.h.b16 %v628
        %v2613 = vunpack.c.l.b16 %v629
        %v2614 = vunpack.c.h.b16 %v629
        %v2615 = vunpack.c.l.b16 %v630
        %v2616 = vunpack.c.h.b16 %v630
        %v2617 = vunpack.c.l.b16 %v631
        %v2618 = vunpack.c.h.b16 %v631
        %v2619 = vunpack.c.l.b16 %v632
        %v2620 = vunpack.c.h.b16 %v632
        %v2621 = vunpack.c.l.b16 %v633
        %v2622 = vunpack.c.h.b16 %v633
        %v2623 = vunpack.c.l.b16 %v634
        %v2624 = vunpack.c.h.b16 %v634
        %v2625 = vunpack.c.l.b16 %v635
        %v2626 = vunpack.c.h.b16 %v635
        %v2627 = vunpack.c.l.b16 %v636
        %v2628 = vunpack.c.h.b16 %v636
        %v2629 = vunpack.c.l.b16 %v637
        %v2630 = vunpack.c.h.b16 %v637
        %v2631 = vunpack.c.l.b16 %v638
        %v2632 = vunpack.c.h.b16 %v638
        %v2633 = vunpack.c.l.b16 %v639
        %v2634 = vunpack.c.h.b16 %v639
        %v2635 = vunpack.c.l.b16 %v640
        %v2636 = vunpack.c.h.b16 %v640
        %v2637 = vunpack.c.l.b16 %v641
        %v2638 = vunpack.c.h.b16 %v641
        %v2639 = vunpack.c.l.b16 %v642
        %v2640 = vunpack.c.h.b16 %v642
        %v2641 = vunpack.c.l.b16 %v643
        %v2642 = vunpack.c.h.b16 %v643
        %v2643 = vunpack.c.l.b16 %v644
        %v2644 = vunpack.c.h.b16 %v644
        %v2645 = vunpack.c.l.b16 %v645
        %v2646 = vunpack.c.h.b16 %v645
        %v2647 = vunpack.c.l.b16 %v646
        %v2648 = vunpack.c.h.b16 %v646
        %v2649 = vunpack.c.l.b16 %v647
        %v2650 = vunpack.c.h.b16 %v647
        %v2651 = vunpack.c.l.b16 %v648
        %v2652 = vunpack.c.h.b16 %v648
        %v2653 = vunpack.c.l.b16 %v649
        %v2654 = vunpack.c.h.b16 %v649
        %v2655 = vunpack.c.l.b16 %v650
        %v2656 = vunpack.c.h.b16 %v650
        %v2657 = vunpack.c.l.b16 %v651
        %v2658 = vunpack.c.h.b16 %v651
        %v2659 = vunpack.c.l.b16 %v652
        %v2660 = vunpack.c.h.b16 %v652
        %v2661 = vunpack.c.l.b16 %v653
        %v2662 = vunpack.c.h.b16 %v653
        %v2663 = vunpack.c.l.b16 %v654
        %v2664 = vunpack.c.h.b16 %v654
        %v2665 = vunpack.c.l.b16 %v655
        %v2666 = vunpack.c.h.b16 %v655
        %v2667 = vunpack.c.l.b16 %v656
        %v2668 = vunpack.c.h.b16 %v656
        %v2669 = vunpack.c.l.b16 %v657
        %v2670 = vunpack.c.h.b16 %v657
        %v2671 = vunpack.c.l.b16 %v658
        %v2672 = vunpack.c.h.b16 %v658
        %v2673 = vunpack.c.l.b16 %v659
        %v2674 = vunpack.c.h.b16 %v659
        %v2675 = vunpack.c.l.b16 %v660
        %v2676 = vunpack.c.h.b16 %v660
        %v2677 = vunpack.c.l.b16 %v661
        %v2678 = vunpack.c.h.b16 %v661
        %v2679 = vunpack.c.l.b16 %v662
        %v2680 = vunpack.c.h.b16 %v662
        %v2681 = vunpack.c.l.b16 %v663
        %v2682 = vunpack.c.h.b16 %v663
        %v2683 = vunpack.c.l.b16 %v664
        %v2684 = vunpack.c.h.b16 %v664
        %v2685 = vunpack.c.l.b16 %v665
        %v2686 = vunpack.c.h.b16 %v665
        %v2687 = vunpack.c.l.b16 %v666
        %v2688 = vunpack.c.h.b16 %v666
        %v2689 = vunpack.c.l.b16 %v667
        %v2690 = vunpack.c.h.b16 %v667
        %v2691 = vunpack.c.l.b16 %v668
        %v2692 = vunpack.c.h.b16 %v668
        %v2693 = vunpack.c.l.b16 %v669
        %v2694 = vunpack.c.h.b16 %v669
        %v2695 = vunpack.c.l.b16 %v670
        %v2696 = vunpack.c.h.b16 %v670
        %v2697 = vunpack.c.l.b16 %v671
        %v2698 = vunpack.c.h.b16 %v671
        %v2699 = vunpack.c.l.b16 %v672
        %v2700 = vunpack.c.h.b16 %v672
        %v2701 = vunpack.c.l.b16 %v673
        %v2702 = vunpack.c.h.b16 %v673
        %v2703 = vunpack.c.l.b16 %v674
        %v2704 = vunpack.c.h.b16 %v674
        %v2705 = vunpack.c.l.b16 %v675
        %v2706 = vunpack.c.h.b16 %v675
        %v2707 = vunpack.c.l.b16 %v676
        %v2708 = vunpack.c.h.b16 %v676
        %v2709 = vunpack.c.l.b16 %v677
        %v2710 = vunpack.c.h.b16 %v677
        %v2711 = vunpack.c.l.b16 %v678
        %v2712 = vunpack.c.h.b16 %v678
        %v2713 = vunpack.c.l.b16 %v679
        %v2714 = vunpack.c.h.b16 %v679
        %v2715 = vunpack.c.l.b16 %v680
        %v2716 = vunpack.c.h.b16 %v680
        %v2717 = vunpack.c.l.b16 %v681
        %v2718 = vunpack.c.h.b16 %v681
        %v2719 = vunpack.c.l.b16 %v682
        %v2720 = vunpack.c.h.b16 %v682
        %v2721 = vunpack.c.l.b16 %v683
        %v2722 = vunpack.c.h.b16 %v683
        %v2723 = vunpack.c.l.b16 %v684
        %v2724 = vunpack.c.h.b16 %v684
        %v2725 = vunpack.c.l.b16 %v685
        %v2726 = vunpack.c.h.b16 %v685
        %v2727 = vunpack.c.l.b16 %v686
        %v2728 = vunpack.c.h.b16 %v686
        %v2729 = vunpack.c.l.b16 %v687
        %v2730 = vunpack.c.h.b16 %v687
        %v2731 = vunpack.c.l.b16 %v688
        %v2732 = vunpack.c.h.b16 %v688
        %v2733 = vunpack.c.l.b16 %v689
        %v2734 = vunpack.c.h.b16 %v689
        %v2735 = vunpack.c.l.b16 %v690
        %v2736 = vunpack.c.h.b16 %v690
        %v2737 = vunpack.c.l.b16 %v691
        %v2738 = vunpack.c.h.b16 %v691
        %v2739 = vunpack.c.l.b16 %v692
        %v2740 = vunpack.c.h.b16 %v692
        %v2741 = vunpack.c.l.b16 %v693
        %v2742 = vunpack.c.h.b16 %v693
        %v2743 = vunpack.c.l.b16 %v694
        %v2744 = vunpack.c.h.b16 %v694
        %v2745 = vunpack.c.l.b16 %v695
        %v2746 = vunpack.c.h.b16 %v695
        %v2747 = vunpack.c.l.b16 %v696
        %v2748 = vunpack.c.h.b16 %v696
        %v2749 = vunpack.c.l.b16 %v697
        %v2750 = vunpack.c.h.b16 %v697
        %v2751 = vunpack.c.l.b16 %v698
        %v2752 = vunpack.c.h.b16 %v698
        %v2753 = vunpack.c.l.b16 %v699
        %v2754 = vunpack.c.h.b16 %v699
        %v2755 = vunpack.c.l.b16 %v700
        %v2756 = vunpack.c.h.b16 %v700
        %v2757 = vunpack.c.l.b16 %v701
        %v2758 = vunpack.c.h.b16 %v701
        %v2759 = vunpack.c.l.b16 %v702
        %v2760 = vunpack.c.h.b16 %v702
        %v2761 = vunpack.c.l.b16 %v703
        %v2762 = vunpack.c.h.b16 %v703
        %v2763 = vunpack.c.l.b16 %v704
        %v2764 = vunpack.c.h.b16 %v704
        %v2765 = vunpack.c.l.b16 %v705
        %v2766 = vunpack.c.h.b16 %v705
        %v2767 = vunpack.c.l.b16 %v706
        %v2768 = vunpack.c.h.b16 %v706
        %v2769 = vunpack.c.l.b16 %v707
        %v2770 = vunpack.c.h.b16 %v707
        %v2771 = vunpack.c.l.b16 %v708
        %v2772 = vunpack.c.h.b16 %v708
        %v2773 = vunpack.c.l.b16 %v709
        %v2774 = vunpack.c.h.b16 %v709
        %v2775 = vunpack.c.l.b16 %v710
        %v2776 = vunpack.c.h.b16 %v710
        %v2777 = vunpack.c.l.b16 %v711
        %v2778 = vunpack.c.h.b16 %v711
        %v2779 = vunpack.c.l.b16 %v712
        %v2780 = vunpack.c.h.b16 %v712
        %v2781 = vunpack.c.l.b16 %v713
        %v2782 = vunpack.c.h.b16 %v713
        %v2783 = vunpack.c.l.b16 %v714
        %v2784 = vunpack.c.h.b16 %v714
        %v2785 = vunpack.c.l.b16 %v715
        %v2786 = vunpack.c.h.b16 %v715
        %v2787 = vunpack.c.l.b16 %v716
        %v2788 = vunpack.c.h.b16 %v716
        %v2789 = vunpack.c.l.b16 %v717
        %v2790 = vunpack.c.h.b16 %v717
        %v2791 = vunpack.c.l.b16 %v718
        %v2792 = vunpack.c.h.b16 %v718
        %v2793 = vunpack.c.l.b16 %v719
        %v2794 = vunpack.c.h.b16 %v719
        %v2795 = vunpack.c.l.b16 %v720
        %v2796 = vunpack.c.h.b16 %v720
        %v2797 = vunpack.c.l.b16 %v721
        %v2798 = vunpack.c.h.b16 %v721
        %v2799 = vunpack.c.l.b16 %v722
        %v2800 = vunpack.c.h.b16 %v722
        %v2801 = vunpack.c.l.b16 %v723
        %v2802 = vunpack.c.h.b16 %v723
        %v2803 = vunpack.c.l.b16 %v724
        %v2804 = vunpack.c.h.b16 %v724
        %v2805 = vunpack.c.l.b16 %v725
        %v2806 = vunpack.c.h.b16 %v725
        %v2807 = vunpack.c.l.b16 %v726
        %v2808 = vunpack.c.h.b16 %v726
        %v2809 = vunpack.c.l.b16 %v727
        %v2810 = vunpack.c.h.b16 %v727
        %v2811 = vunpack.c.l.b16 %v728
        %v2812 = vunpack.c.h.b16 %v728
        %v2813 = vunpack.c.l.b16 %v729
        %v2814 = vunpack.c.h.b16 %v729
        %v2815 = vunpack.c.l.b16 %v730
        %v2816 = vunpack.c.h.b16 %v730
        %v2817 = vunpack.c.l.b16 %v731
        %v2818 = vunpack.c.h.b16 %v731
        %v2819 = vunpack.c.l.b16 %v732
        %v2820 = vunpack.c.h.b16 %v732
        %v2821 = vunpack.c.l.b16 %v733
        %v2822 = vunpack.c.h.b16 %v733
        %v2823 = vunpack.c.l.b16 %v734
        %v2824 = vunpack.c.h.b16 %v734
        %v2825 = vunpack.c.l.b16 %v735
        %v2826 = vunpack.c.h.b16 %v735
        %v2827 = vunpack.c.l.b16 %v736
        %v2828 = vunpack.c.h.b16 %v736
        %v2829 = vunpack.c.l.b16 %v737
        %v2830 = vunpack.c.h.b16 %v737
        %v2831 = vunpack.c.l.b16 %v738
        %v2832 = vunpack.c.h.b16 %v738
        %v2833 = vunpack.c.l.b16 %v739
        %v2834 = vunpack.c.h.b16 %v739
        %v2835 = vunpack.c.l.b16 %v740
        %v2836 = vunpack.c.h.b16 %v740
        %v2837 = vunpack.c.l.b16 %v741
        %v2838 = vunpack.c.h.b16 %v741
        %v2839 = vunpack.c.l.b16 %v742
        %v2840 = vunpack.c.h.b16 %v742
        %v2841 = vunpack.c.l.b16 %v743
        %v2842 = vunpack.c.h.b16 %v743
        %v2843 = vunpack.c.l.b16 %v744
        %v2844 = vunpack.c.h.b16 %v744
        %v2845 = vunpack.c.l.b16 %v745
        %v2846 = vunpack.c.h.b16 %v745
        %v2847 = vunpack.c.l.b16 %v746
        %v2848 = vunpack.c.h.b16 %v746
        %v2849 = vunpack.c.l.b16 %v747
        %v2850 = vunpack.c.h.b16 %v747
        %v2851 = vunpack.c.l.b16 %v748
        %v2852 = vunpack.c.h.b16 %v748
        %v2853 = vunpack.c.l.b16 %v749
        %v2854 = vunpack.c.h.b16 %v749
        %v2855 = vunpack.c.l.b16 %v750
        %v2856 = vunpack.c.h.b16 %v750
        %v2857 = vunpack.c.l.b16 %v751
        %v2858 = vunpack.c.h.b16 %v751
        %v2859 = vunpack.c.l.b16 %v752
        %v2860 = vunpack.c.h.b16 %v752
        %v2861 = vunpack.c.l.b16 %v753
        %v2862 = vunpack.c.h.b16 %v753
        %v2863 = vunpack.c.l.b16 %v754
        %v2864 = vunpack.c.h.b16 %v754
        %v2865 = vunpack.c.l.b16 %v755
        %v2866 = vunpack.c.h.b16 %v755
        %v2867 = vunpack.c.l.b16 %v756
        %v2868 = vunpack.c.h.b16 %v756
        %v2869 = vunpack.c.l.b16 %v757
        %v2870 = vunpack.c.h.b16 %v757
        %v2871 = vunpack.c.l.b16 %v758
        %v2872 = vunpack.c.h.b16 %v758
        %v2873 = vunpack.c.l.b16 %v759
        %v2874 = vunpack.c.h.b16 %v759
        %v2875 = vunpack.c.l.b16 %v760
        %v2876 = vunpack.c.h.b16 %v760
        %v2877 = vunpack.c.l.b16 %v761
        %v2878 = vunpack.c.h.b16 %v761
        %v2879 = vunpack.c.l.b16 %v762
        %v2880 = vunpack.c.h.b16 %v762
        %v2881 = vunpack.c.l.b16 %v763
        %v2882 = vunpack.c.h.b16 %v763
        %v2883 = vunpack.c.l.b16 %v764
        %v2884 = vunpack.c.h.b16 %v764
        %v2885 = vunpack.c.l.b16 %v765
        %v2886 = vunpack.c.h.b16 %v765
        %v2887 = vunpack.c.l.b16 %v766
        %v2888 = vunpack.c.h.b16 %v766
        %v2889 = vunpack.c.l.b16 %v767
        %v2890 = vunpack.c.h.b16 %v767
        %v2891 = vunpack.c.l.b16 %v768
        %v2892 = vunpack.c.h.b16 %v768
        %v2893 = vunpack.c.l.b16 %v769
        %v2894 = vunpack.c.h.b16 %v769
        %v2895 = vunpack.c.l.b16 %v770
        %v2896 = vunpack.c.h.b16 %v770
        %v2897 = vunpack.c.l.b16 %v771
        %v2898 = vunpack.c.h.b16 %v771
        %v2899 = vunpack.c.l.b16 %v772
        %v2900 = vunpack.c.h.b16 %v772
        %v2901 = vunpack.c.l.b16 %v773
        %v2902 = vunpack.c.h.b16 %v773
        %v2903 = vunpack.c.l.b16 %v774
        %v2904 = vunpack.c.h.b16 %v774
        %v2905 = vunpack.c.l.b16 %v775
        %v2906 = vunpack.c.h.b16 %v775
        %v2907 = vunpack.c.l.b16 %v776
        %v2908 = vunpack.c.h.b16 %v776
        %v2909 = vunpack.c.l.b16 %v777
        %v2910 = vunpack.c.h.b16 %v777
        %v2911 = vunpack.c.l.b16 %v778
        %v2912 = vunpack.c.h.b16 %v778
        %v2913 = vunpack.c.l.b16 %v779
        %v2914 = vunpack.c.h.b16 %v779
        %v2915 = vunpack.c.l.b16 %v780
        %v2916 = vunpack.c.h.b16 %v780
        %v2917 = vunpack.c.l.b16 %v781
        %v2918 = vunpack.c.h.b16 %v781
        %v2919 = vunpack.c.l.b16 %v782
        %v2920 = vunpack.c.h.b16 %v782
        %v2921 = vunpack.c.l.b16 %v783
        %v2922 = vunpack.c.h.b16 %v783
        %v2923 = vunpack.c.l.b16 %v784
        %v2924 = vunpack.c.h.b16 %v784
        %v2925 = vunpack.c.l.b16 %v785
        %v2926 = vunpack.c.h.b16 %v785
        %v2927 = vunpack.c.l.b16 %v786
        %v2928 = vunpack.c.h.b16 %v786
        %v2929 = vunpack.c.l.b16 %v787
        %v2930 = vunpack.c.h.b16 %v787
        %v2931 = vunpack.c.l.b16 %v788
        %v2932 = vunpack.c.h.b16 %v788
        %v2933 = vunpack.c.l.b16 %v789
        %v2934 = vunpack.c.h.b16 %v789
        %v2935 = vunpack.c.l.b16 %v790
        %v2936 = vunpack.c.h.b16 %v790
        %v2937 = vunpack.c.l.b16 %v791
        %v2938 = vunpack.c.h.b16 %v791
        %v2939 = vunpack.c.l.b16 %v792
        %v2940 = vunpack.c.h.b16 %v792
        %v2941 = vunpack.c.l.b16 %v793
        %v2942 = vunpack.c.h.b16 %v793
        %v2943 = vunpack.c.l.b16 %v794
        %v2944 = vunpack.c.h.b16 %v794
        %v2945 = vunpack.c.l.b16 %v795
        %v2946 = vunpack.c.h.b16 %v795
        %v2947 = vunpack.c.l.b16 %v796
        %v2948 = vunpack.c.h.b16 %v796
        %v2949 = vunpack.c.l.b16 %v797
        %v2950 = vunpack.c.h.b16 %v797
        %v2951 = vunpack.c.l.b16 %v798
        %v2952 = vunpack.c.h.b16 %v798
        %v2953 = vunpack.c.l.b16 %v799
        %v2954 = vunpack.c.h.b16 %v799
        %v2955 = vunpack.c.l.b16 %v800
        %v2956 = vunpack.c.h.b16 %v800
        %v2957 = vunpack.c.l.b16 %v801
        %v2958 = vunpack.c.h.b16 %v801
        %v2959 = vunpack.c.l.b16 %v802
        %v2960 = vunpack.c.h.b16 %v802
        %v2961 = vunpack.c.l.b16 %v803
        %v2962 = vunpack.c.h.b16 %v803
        %v2963 = vunpack.c.l.b16 %v804
        %v2964 = vunpack.c.h.b16 %v804
        %v2965 = vunpack.c.l.b16 %v805
        %v2966 = vunpack.c.h.b16 %v805
        %v2967 = vunpack.c.l.b16 %v806
        %v2968 = vunpack.c.h.b16 %v806
        %v2969 = vunpack.c.l.b16 %v807
        %v2970 = vunpack.c.h.b16 %v807
        %v2971 = vunpack.c.l.b16 %v808
        %v2972 = vunpack.c.h.b16 %v808
        %v2973 = vunpack.c.l.b16 %v809
        %v2974 = vunpack.c.h.b16 %v809
        %v2975 = vunpack.c.l.b16 %v810
        %v2976 = vunpack.c.h.b16 %v810
        %v2977 = vunpack.c.l.b16 %v811
        %v2978 = vunpack.c.h.b16 %v811
        %v2979 = vunpack.c.l.b16 %v812
        %v2980 = vunpack.c.h.b16 %v812
        %v2981 = vunpack.c.l.b16 %v813
        %v2982 = vunpack.c.h.b16 %v813
        %v2983 = vunpack.c.l.b16 %v814
        %v2984 = vunpack.c.h.b16 %v814
        %v2985 = vunpack.c.l.b16 %v815
        %v2986 = vunpack.c.h.b16 %v815
        %v2987 = vunpack.c.l.b16 %v816
        %v2988 = vunpack.c.h.b16 %v816
        %v2989 = vunpack.c.l.b16 %v817
        %v2990 = vunpack.c.h.b16 %v817
        %v2991 = vunpack.c.l.b16 %v818
        %v2992 = vunpack.c.h.b16 %v818
        %v2993 = vunpack.c.l.b16 %v819
        %v2994 = vunpack.c.h.b16 %v819
        %v2995 = vunpack.c.l.b16 %v820
        %v2996 = vunpack.c.h.b16 %v820
        %v2997 = vunpack.c.l.b16 %v821
        %v2998 = vunpack.c.h.b16 %v821
        %v2999 = vunpack.c.l.b16 %v822
        %v3000 = vunpack.c.h.b16 %v822
        %v3001 = vunpack.c.l.b16 %v823
        %v3002 = vunpack.c.h.b16 %v823
        %v3003 = vunpack.c.l.b16 %v824
        %v3004 = vunpack.c.h.b16 %v824
        %v3005 = vunpack.c.l.b16 %v825
        %v3006 = vunpack.c.h.b16 %v825
        %v3007 = vunpack.c.l.b16 %v826
        %v3008 = vunpack.c.h.b16 %v826
        %v3009 = vunpack.c.l.b16 %v827
        %v3010 = vunpack.c.h.b16 %v827
        %v3011 = vunpack.c.l.b16 %v828
        %v3012 = vunpack.c.h.b16 %v828
        %v3013 = vunpack.c.l.b16 %v829
        %v3014 = vunpack.c.h.b16 %v829
        %v3015 = vunpack.c.l.b16 %v830
        %v3016 = vunpack.c.h.b16 %v830
        %v3017 = vunpack.c.l.b16 %v831
        %v3018 = vunpack.c.h.b16 %v831
        %v3019 = vunpack.c.l.b16 %v832
        %v3020 = vunpack.c.h.b16 %v832
        %v3021 = vunpack.c.l.b16 %v833
        %v3022 = vunpack.c.h.b16 %v833
        %v3023 = vunpack.c.l.b16 %v834
        %v3024 = vunpack.c.h.b16 %v834
        %v3025 = vunpack.c.l.b16 %v835
        %v3026 = vunpack.c.h.b16 %v835
        %v3027 = vunpack.c.l.b16 %v836
        %v3028 = vunpack.c.h.b16 %v836
        %v3029 = vunpack.c.l.b16 %v837
        %v3030 = vunpack.c.h.b16 %v837
        %v3031 = vunpack.c.l.b16 %v838
        %v3032 = vunpack.c.h.b16 %v838
        %v3033 = vunpack.c.l.b16 %v839
        %v3034 = vunpack.c.h.b16 %v839
        %v3035 = vunpack.c.l.b16 %v840
        %v3036 = vunpack.c.h.b16 %v840
        %v3037 = vunpack.c.l.b16 %v841
        %v3038 = vunpack.c.h.b16 %v841
        %v3039 = vunpack.c.l.b16 %v842
        %v3040 = vunpack.c.h.b16 %v842
        %v3041 = vunpack.c.l.b16 %v843
        %v3042 = vunpack.c.h.b16 %v843
        %v3043 = vunpack.c.l.b16 %v844
        %v3044 = vunpack.c.h.b16 %v844
        %v3045 = vunpack.c.l.b16 %v845
        %v3046 = vunpack.c.h.b16 %v845
        %v3047 = vunpack.c.l.b16 %v846
        %v3048 = vunpack.c.h.b16 %v846
        %v3049 = vunpack.c.l.b16 %v847
        %v3050 = vunpack.c.h.b16 %v847
        %v3051 = vunpack.c.l.b16 %v848
        %v3052 = vunpack.c.h.b16 %v848
        %v3053 = vunpack.c.l.b16 %v849
        %v3054 = vunpack.c.h.b16 %v849
        %v3055 = vunpack.c.l.b16 %v850
        %v3056 = vunpack.c.h.b16 %v850
        %v3057 = vunpack.c.l.b16 %v851
        %v3058 = vunpack.c.h.b16 %v851
        %v3059 = vunpack.c.l.b16 %v852
        %v3060 = vunpack.c.h.b16 %v852
        %v3061 = vunpack.c.l.b16 %v853
        %v3062 = vunpack.c.h.b16 %v853
        %v3063 = vunpack.c.l.b16 %v854
        %v3064 = vunpack.c.h.b16 %v854
        %v3065 = vunpack.c.l.b16 %v855
        %v3066 = vunpack.c.h.b16 %v855
        %v3067 = vunpack.c.l.b16 %v856
        %v3068 = vunpack.c.h.b16 %v856
        %v3069 = vunpack.c.l.b16 %v857
        %v3070 = vunpack.c.h.b16 %v857
        %v3071 = vunpack.c.l.b16 %v858
        %v3072 = vunpack.c.h.b16 %v858
        %v3073 = vunpack.c.l.b16 %v859
        %v3074 = vunpack.c.h.b16 %v859
        %v3075 = vunpack.c.l.b16 %v860
        %v3076 = vunpack.c.h.b16 %v860
        %v3077 = vunpack.c.l.b16 %v861
        %v3078 = vunpack.c.h.b16 %v861
        %v3079 = vunpack.c.l.b16 %v862
        %v3080 = vunpack.c.h.b16 %v862
        %v3081 = vunpack.c.l.b16 %v863
        %v3082 = vunpack.c.h.b16 %v863
        %v3083 = vunpack.c.l.b16 %v864
        %v3084 = vunpack.c.h.b16 %v864
        %v3085 = vunpack.c.l.b16 %v865
        %v3086 = vunpack.c.h.b16 %v865
        %v3087 = vunpack.c.l.b16 %v866
        %v3088 = vunpack.c.h.b16 %v866
        %v3089 = vunpack.c.l.b16 %v867
        %v3090 = vunpack.c.h.b16 %v867
        %v3091 = vunpack.c.l.b16 %v868
        %v3092 = vunpack.c.h.b16 %v868
        %v3093 = vunpack.c.l.b16 %v869
        %v3094 = vunpack.c.h.b16 %v869
        %v3095 = vunpack.c.l.b16 %v870
        %v3096 = vunpack.c.h.b16 %v870
        %v3097 = vunpack.c.l.b16 %v871
        %v3098 = vunpack.c.h.b16 %v871
        %v3099 = vunpack.c.l.b16 %v872
        %v3100 = vunpack.c.h.b16 %v872
        %v3101 = vunpack.c.l.b16 %v873
        %v3102 = vunpack.c.h.b16 %v873
        %v3103 = vunpack.c.l.b16 %v874
        %v3104 = vunpack.c.h.b16 %v874
        %v3105 = vunpack.c.l.b16 %v875
        %v3106 = vunpack.c.h.b16 %v875
        %v3107 = vunpack.c.l.b16 %v876
        %v3108 = vunpack.c.h.b16 %v876
        %v3109 = vunpack.c.l.b16 %v877
        %v3110 = vunpack.c.h.b16 %v877
        %v3111 = vunpack.c.l.b16 %v878
        %v3112 = vunpack.c.h.b16 %v878
        %v3113 = vunpack.c.l.b16 %v879
        %v3114 = vunpack.c.h.b16 %v879
        %v3115 = vunpack.c.l.b16 %v880
        %v3116 = vunpack.c.h.b16 %v880
        %v3117 = vunpack.c.l.b16 %v881
        %v3118 = vunpack.c.h.b16 %v881
        %v3119 = vunpack.c.l.b16 %v882
        %v3120 = vunpack.c.h.b16 %v882
        %v3121 = vunpack.c.l.b16 %v883
        %v3122 = vunpack.c.h.b16 %v883
        %v3123 = vunpack.c.l.b16 %v884
        %v3124 = vunpack.c.h.b16 %v884
        %v3125 = vunpack.c.l.b16 %v885
        %v3126 = vunpack.c.h.b16 %v885
        %v3127 = vunpack.c.l.b16 %v886
        %v3128 = vunpack.c.h.b16 %v886
        %v3129 = vunpack.c.l.b16 %v887
        %v3130 = vunpack.c.h.b16 %v887
        %v3131 = vunpack.c.l.b16 %v888
        %v3132 = vunpack.c.h.b16 %v888
        %v3133 = vunpack.c.l.b16 %v889
        %v3134 = vunpack.c.h.b16 %v889
        %v3135 = vunpack.c.l.b16 %v890
        %v3136 = vunpack.c.h.b16 %v890
        %v3137 = vunpack.c.l.b16 %v891
        %v3138 = vunpack.c.h.b16 %v891
        %v3139 = vunpack.c.l.b16 %v892
        %v3140 = vunpack.c.h.b16 %v892
        %v3141 = vunpack.c.l.b16 %v893
        %v3142 = vunpack.c.h.b16 %v893
        %v3143 = vunpack.c.l.b16 %v894
        %v3144 = vunpack.c.h.b16 %v894
        %v3145 = vunpack.c.l.b16 %v895
        %v3146 = vunpack.c.h.b16 %v895
        %v3147 = vunpack.c.l.b16 %v896
        %v3148 = vunpack.c.h.b16 %v896
        %v3149 = vunpack.c.l.b16 %v897
        %v3150 = vunpack.c.h.b16 %v897
        %v3151 = vunpack.c.l.b16 %v898
        %v3152 = vunpack.c.h.b16 %v898
        %v3153 = vunpack.c.l.b16 %v899
        %v3154 = vunpack.c.h.b16 %v899
        %v3155 = vunpack.c.l.b16 %v900
        %v3156 = vunpack.c.h.b16 %v900
        %v3157 = vunpack.c.l.b16 %v901
        %v3158 = vunpack.c.h.b16 %v901
        %v3159 = vunpack.c.l.b16 %v902
        %v3160 = vunpack.c.h.b16 %v902
        %v3161 = vunpack.c.l.b16 %v903
        %v3162 = vunpack.c.h.b16 %v903
        %v3163 = vunpack.c.l.b16 %v904
        %v3164 = vunpack.c.h.b16 %v904
        %v3165 = vunpack.c.l.b16 %v905
        %v3166 = vunpack.c.h.b16 %v905
        %v3167 = vunpack.c.l.b16 %v906
        %v3168 = vunpack.c.h.b16 %v906
        %v3169 = vunpack.c.l.b16 %v907
        %v3170 = vunpack.c.h.b16 %v907
        %v3171 = vunpack.c.l.b16 %v908
        %v3172 = vunpack.c.h.b16 %v908
        %v3173 = vunpack.c.l.b16 %v909
        %v3174 = vunpack.c.h.b16 %v909
        %v3175 = vunpack.c.l.b16 %v910
        %v3176 = vunpack.c.h.b16 %v910
        %v3177 = vunpack.c.l.b16 %v911
        %v3178 = vunpack.c.h.b16 %v911
        %v3179 = vunpack.c.l.b16 %v912
        %v3180 = vunpack.c.h.b16 %v912
        %v3181 = vunpack.c.l.b16 %v913
        %v3182 = vunpack.c.h.b16 %v913
        %v3183 = vunpack.c.l.b16 %v914
        %v3184 = vunpack.c.h.b16 %v914
        %v3185 = vunpack.c.l.b16 %v915
        %v3186 = vunpack.c.h.b16 %v915
        %v3187 = vunpack.c.l.b16 %v916
        %v3188 = vunpack.c.h.b16 %v916
        %v3189 = vunpack.c.l.b16 %v917
        %v3190 = vunpack.c.h.b16 %v917
        %v3191 = vunpack.c.l.b16 %v918
        %v3192 = vunpack.c.h.b16 %v918
        %v3193 = vunpack.c.l.b16 %v919
        %v3194 = vunpack.c.h.b16 %v919
        %v3195 = vunpack.c.l.b16 %v920
        %v3196 = vunpack.c.h.b16 %v920
        %v3197 = vunpack.c.l.b16 %v921
        %v3198 = vunpack.c.h.b16 %v921
        %v3199 = vunpack.c.l.b16 %v922
        %v3200 = vunpack.c.h.b16 %v922
        %v3201 = vunpack.c.l.b16 %v923
        %v3202 = vunpack.c.h.b16 %v923
        %v3203 = vunpack.c.l.b16 %v924
        %v3204 = vunpack.c.h.b16 %v924
        %v3205 = vunpack.c.l.b16 %v925
        %v3206 = vunpack.c.h.b16 %v925
        %v3207 = vunpack.c.l.b16 %v926
        %v3208 = vunpack.c.h.b16 %v926
        %v3209 = vunpack.c.l.b16 %v927
        %v3210 = vunpack.c.h.b16 %v927
        %v3211 = vunpack.c.l.b16 %v928
        %v3212 = vunpack.c.h.b16 %v928
        %v3213 = vunpack.c.l.b16 %v929
        %v3214 = vunpack.c.h.b16 %v929
        %v3215 = vunpack.c.l.b16 %v930
        %v3216 = vunpack.c.h.b16 %v930
        %v3217 = vunpack.c.l.b16 %v931
        %v3218 = vunpack.c.h.b16 %v931
        %v3219 = vunpack.c.l.b16 %v932
        %v3220 = vunpack.c.h.b16 %v932
        %v3221 = vunpack.c.l.b16 %v933
        %v3222 = vunpack.c.h.b16 %v933
        %v3223 = vunpack.c.l.b16 %v934
        %v3224 = vunpack.c.h.b16 %v934
        %v3225 = vunpack.c.l.b16 %v935
        %v3226 = vunpack.c.h.b16 %v935
        %v3227 = vunpack.c.l.b16 %v936
        %v3228 = vunpack.c.h.b16 %v936
        %v3229 = vunpack.c.l.b16 %v937
        %v3230 = vunpack.c.h.b16 %v937
        %v3231 = vunpack.c.l.b16 %v938
        %v3232 = vunpack.c.h.b16 %v938
        %v3233 = vunpack.c.l.b16 %v939
        %v3234 = vunpack.c.h.b16 %v939
        %v3235 = vunpack.c.l.b16 %v940
        %v3236 = vunpack.c.h.b16 %v940
        %v3237 = vunpack.c.l.b16 %v941
        %v3238 = vunpack.c.h.b16 %v941
        %v3239 = vunpack.c.l.b16 %v942
        %v3240 = vunpack.c.h.b16 %v942
        %v3241 = vunpack.c.l.b16 %v943
        %v3242 = vunpack.c.h.b16 %v943
        %v3243 = vunpack.c.l.b16 %v944
        %v3244 = vunpack.c.h.b16 %v944
        %v3245 = vunpack.c.l.b16 %v945
        %v3246 = vunpack.c.h.b16 %v945
        %v3247 = vunpack.c.l.b16 %v946
        %v3248 = vunpack.c.h.b16 %v946
        %v3249 = vunpack.c.l.b16 %v947
        %v3250 = vunpack.c.h.b16 %v947
        %v3251 = vunpack.c.l.b16 %v948
        %v3252 = vunpack.c.h.b16 %v948
        %v3253 = vunpack.c.l.b16 %v949
        %v3254 = vunpack.c.h.b16 %v949
        %v3255 = vunpack.c.l.b16 %v950
        %v3256 = vunpack.c.h.b16 %v950
        %v3257 = vunpack.c.l.b16 %v951
        %v3258 = vunpack.c.h.b16 %v951
        %v3259 = vunpack.c.l.b16 %v952
        %v3260 = vunpack.c.h.b16 %v952
        %v3261 = vunpack.c.l.b16 %v953
        %v3262 = vunpack.c.h.b16 %v953
        %v3263 = vunpack.c.l.b16 %v954
        %v3264 = vunpack.c.h.b16 %v954
        %v3265 = vunpack.c.l.b16 %v955
        %v3266 = vunpack.c.h.b16 %v955
        %v3267 = vunpack.c.l.b16 %v956
        %v3268 = vunpack.c.h.b16 %v956
        %v3269 = vunpack.c.l.b16 %v957
        %v3270 = vunpack.c.h.b16 %v957
        %v3271 = vunpack.c.l.b16 %v958
        %v3272 = vunpack.c.h.b16 %v958
        %v3273 = vunpack.c.l.b16 %v959
        %v3274 = vunpack.c.h.b16 %v959
        %v3275 = vunpack.c.l.b16 %v960
        %v3276 = vunpack.c.h.b16 %v960
        %v3277 = vunpack.c.l.b16 %v961
        %v3278 = vunpack.c.h.b16 %v961
        %v3279 = vunpack.c.l.b16 %v962
        %v3280 = vunpack.c.h.b16 %v962
        %v3281 = vunpack.c.l.b16 %v963
        %v3282 = vunpack.c.h.b16 %v963
        %v3283 = vunpack.c.l.b16 %v964
        %v3284 = vunpack.c.h.b16 %v964
        %v3285 = vunpack.c.l.b16 %v965
        %v3286 = vunpack.c.h.b16 %v965
        %v3287 = vunpack.c.l.b16 %v966
        %v3288 = vunpack.c.h.b16 %v966
        %v3289 = vunpack.c.l.b16 %v967
        %v3290 = vunpack.c.h.b16 %v967
        %v3291 = vunpack.c.l.b16 %v968
        %v3292 = vunpack.c.h.b16 %v968
        %v3293 = vunpack.c.l.b16 %v969
        %v3294 = vunpack.c.h.b16 %v969
        %v3295 = vunpack.c.l.b16 %v970
        %v3296 = vunpack.c.h.b16 %v970
        %v3297 = vunpack.c.l.b16 %v971
        %v3298 = vunpack.c.h.b16 %v971
        %v3299 = vunpack.c.l.b16 %v972
        %v3300 = vunpack.c.h.b16 %v972
        %v3301 = vunpack.c.l.b16 %v973
        %v3302 = vunpack.c.h.b16 %v973
        %v3303 = vunpack.c.l.b16 %v974
        %v3304 = vunpack.c.h.b16 %v974
        %v3305 = vunpack.c.l.b16 %v975
        %v3306 = vunpack.c.h.b16 %v975
        %v3307 = vunpack.c.l.b16 %v976
        %v3308 = vunpack.c.h.b16 %v976
        %v3309 = vunpack.c.l.b16 %v977
        %v3310 = vunpack.c.h.b16 %v977
        %v3311 = vunpack.c.l.b16 %v978
        %v3312 = vunpack.c.h.b16 %v978
        %v3313 = vunpack.c.l.b16 %v979
        %v3314 = vunpack.c.h.b16 %v979
        %v3315 = vunpack.c.l.b16 %v980
        %v3316 = vunpack.c.h.b16 %v980
        %v3317 = vunpack.c.l.b16 %v981
        %v3318 = vunpack.c.h.b16 %v981
        %v3319 = vunpack.c.l.b16 %v982
        %v3320 = vunpack.c.h.b16 %v982
        %v3321 = vunpack.c.l.b16 %v983
        %v3322 = vunpack.c.h.b16 %v983
        %v3323 = vunpack.c.l.b16 %v984
        %v3324 = vunpack.c.h.b16 %v984
        %v3325 = vunpack.c.l.b16 %v985
        %v3326 = vunpack.c.h.b16 %v985
        %v3327 = vunpack.c.l.b16 %v986
        %v3328 = vunpack.c.h.b16 %v986
        %v3329 = vunpack.c.l.b16 %v987
        %v3330 = vunpack.c.h.b16 %v987
        %v3331 = vunpack.c.l.b16 %v988
        %v3332 = vunpack.c.h.b16 %v988
        %v3333 = vunpack.c.l.b16 %v989
        %v3334 = vunpack.c.h.b16 %v989
        %v3335 = vunpack.c.l.b16 %v990
        %v3336 = vunpack.c.h.b16 %v990
        %v3337 = vunpack.c.l.b16 %v991
        %v3338 = vunpack.c.h.b16 %v991
        %v3339 = vunpack.c.l.b16 %v992
        %v3340 = vunpack.c.h.b16 %v992
        %v3341 = vunpack.c.l.b16 %v993
        %v3342 = vunpack.c.h.b16 %v993
        %v3343 = vunpack.c.l.b16 %v994
        %v3344 = vunpack.c.h.b16 %v994
        %v3345 = vunpack.c.l.b16 %v995
        %v3346 = vunpack.c.h.b16 %v995
        %v3347 = vunpack.c.l.b16 %v996
        %v3348 = vunpack.c.h.b16 %v996
        %v3349 = vunpack.c.l.b16 %v997
        %v3350 = vunpack.c.h.b16 %v997
        %v3351 = vunpack.c.l.b16 %v998
        %v3352 = vunpack.c.h.b16 %v998
        %v3353 = vunpack.c.l.b16 %v999
        %v3354 = vunpack.c.h.b16 %v999
        %v3355 = vunpack.c.l.b16 %v1000
        %v3356 = vunpack.c.h.b16 %v1000
        %v3357 = vunpack.c.l.b16 %v1001
        %v3358 = vunpack.c.h.b16 %v1001
        %v3359 = vunpack.c.l.b16 %v1002
        %v3360 = vunpack.c.h.b16 %v1002
        %v3361 = vunpack.c.l.b16 %v1003
        %v3362 = vunpack.c.h.b16 %v1003
        %v3363 = vunpack.c.l.b16 %v1004
        %v3364 = vunpack.c.h.b16 %v1004
        %v3365 = vpack.c.b16 %v1841, %v1829
        %v3366 = vpack.c.b16 %v1842, %v1830
        %v3367 = vpack.c.b16 %v1843, %v1831
        %v3368 = vpack.c.b16 %v1844, %v1832
        %v3369 = vpack.c.b16 %v1845, %v1833
        %v3370 = vpack.c.b16 %v1846, %v1834
        %v3371 = vpack.c.b16 %v1847, %v1835
        %v3372 = vpack.c.b16 %v1848, %v1836
        %v3373 = vpack.c.b16 %v1849, %v1837
        %v3374 = vpack.c.b16 %v1850, %v1838
        %v3375 = vpack.c.b16 %v1851, %v1839
        %v3376 = vpack.c.b16 %v1852, %v1840
        %v3377 = vpack.c.b16 %v1865, %v1853
        %v3378 = vpack.c.b16 %v1866, %v1854
        %v3379 = vpack.c.b16 %v1867, %v1855
        %v3380 = vpack.c.b16 %v1868, %v1856
        %v3381 = vpack.c.b16 %v1869, %v1857
        %v3382 = vpack.c.b16 %v1870, %v1858
        %v3383 = vpack.c.b16 %v1871, %v1859
        %v3384 = vpack.c.b16 %v1872, %v1860
        %v3385 = vpack.c.b16 %v1873, %v1861
        %v3386 = vpack.c.b16 %v1874, %v1862
        %v3387 = vpack.c.b16 %v1875, %v1863
        %v3388 = vpack.c.b16 %v1876, %v1864
        %v3389 = vpack.c.b16 %v1889, %v1877
        %v3390 = vpack.c.b16 %v1890, %v1878
        %v3391 = vpack.c.b16 %v1891, %v1879
        %v3392 = vpack.c.b16 %v1892, %v1880
        %v3393 = vpack.c.b16 %v1893, %v1881
        %v3394 = vpack.c.b16 %v1894, %v1882
        %v3395 = vpack.c.b16 %v1895, %v1883
        %v3396 = vpack.c.b16 %v1896, %v1884
        %v3397 = vpack.c.b16 %v1897, %v1885
        %v3398 = vpack.c.b16 %v1898, %v1886
        %v3399 = vpack.c.b16 %v1899, %v1887
        %v3400 = vpack.c.b16 %v1900, %v1888
        %v3401 = vpack.c.b16 %v1913, %v1901
        %v3402 = vpack.c.b16 %v1914, %v1902
        %v3403 = vpack.c.b16 %v1915, %v1903
        %v3404 = vpack.c.b16 %v1916, %v1904
        %v3405 = vpack.c.b16 %v1917, %v1905
        %v3406 = vpack.c.b16 %v1918, %v1906
        %v3407 = vpack.c.b16 %v1919, %v1907
        %v3408 = vpack.c.b16 %v1920, %v1908
        %v3409 = vpack.c.b16 %v1921, %v1909
        %v3410 = vpack.c.b16 %v1922, %v1910
        %v3411 = vpack.c.b16 %v1923, %v1911
        %v3412 = vpack.c.b16 %v1924, %v1912
        %v3413 = vpack.c.b16 %v1937, %v1925
        %v3414 = vpack.c.b16 %v1938, %v1926
        %v3415 = vpack.c.b16 %v1939, %v1927
        %v3416 = vpack.c.b16 %v1940, %v1928
        %v3417 = vpack.c.b16 %v1941, %v1929
        %v3418 = vpack.c.b16 %v1942, %v1930
        %v3419 = vpack.c.b16 %v1943, %v1931
        %v3420 = vpack.c.b16 %v1944, %v1932
        %v3421 = vpack.c.b16 %v1945, %v1933
        %v3422 = vpack.c.b16 %v1946, %v1934
        %v3423 = vpack.c.b16 %v1947, %v1935
        %v3424 = vpack.c.b16 %v1948, %v1936
        %v3425 = vpack.c.b16 %v1961, %v1949
        %v3426 = vpack.c.b16 %v1962, %v1950
        %v3427 = vpack.c.b16 %v1963, %v1951
        %v3428 = vpack.c.b16 %v1964, %v1952
        %v3429 = vpack.c.b16 %v1965, %v1953
        %v3430 = vpack.c.b16 %v1966, %v1954
        %v3431 = vpack.c.b16 %v1967, %v1955
        %v3432 = vpack.c.b16 %v1968, %v1956
        %v3433 = vpack.c.b16 %v1969, %v1957
        %v3434 = vpack.c.b16 %v1970, %v1958
        %v3435 = vpack.c.b16 %v1971, %v1959
        %v3436 = vpack.c.b16 %v1972, %v1960
        %v3437 = vpack.c.b16 %v1985, %v1973
        %v3438 = vpack.c.b16 %v1986, %v1974
        %v3439 = vpack.c.b16 %v1987, %v1975
        %v3440 = vpack.c.b16 %v1988, %v1976
        %v3441 = vpack.c.b16 %v1989, %v1977
        %v3442 = vpack.c.b16 %v1990, %v1978
        %v3443 = vpack.c.b16 %v1991, %v1979
        %v3444 = vpack.c.b16 %v1992, %v1980
        %v3445 = vpack.c.b16 %v1993, %v1981
        %v3446 = vpack.c.b16 %v1994, %v1982
        %v3447 = vpack.c.b16 %v1995, %v1983
        %v3448 = vpack.c.b16 %v1996, %v1984
        %v3449 = vpack.c.b16 %v2009, %v1997
        %v3450 = vpack.c.b16 %v2010, %v1998
        %v3451 = vpack.c.b16 %v2011, %v1999
        %v3452 = vpack.c.b16 %v2012, %v2000
        %v3453 = vpack.c.b16 %v2013, %v2001
        %v3454 = vpack.c.b16 %v2014, %v2002
        %v3455 = vpack.c.b16 %v2015, %v2003
        %v3456 = vpack.c.b16 %v2016, %v2004
        %v3457 = vpack.c.b16 %v2017, %v2005
        %v3458 = vpack.c.b16 %v2018, %v2006
        %v3459 = vpack.c.b16 %v2019, %v2007
        %v3460 = vpack.c.b16 %v2020, %v2008
        %v3461 = vpack.c.b16 %v2033, %v2021
        %v3462 = vpack.c.b16 %v2034, %v2022
        %v3463 = vpack.c.b16 %v2035, %v2023
        %v3464 = vpack.c.b16 %v2036, %v2024
        %v3465 = vpack.c.b16 %v2037, %v2025
        %v3466 = vpack.c.b16 %v2038, %v2026
        %v3467 = vpack.c.b16 %v2039, %v2027
        %v3468 = vpack.c.b16 %v2040, %v2028
        %v3469 = vpack.c.b16 %v2041, %v2029
        %v3470 = vpack.c.b16 %v2042, %v2030
        %v3471 = vpack.c.b16 %v2043, %v2031
        %v3472 = vpack.c.b16 %v2044, %v2032
        %v3473 = vpack.c.b16 %v2057, %v2045
        %v3474 = vpack.c.b16 %v2058, %v2046
        %v3475 = vpack.c.b16 %v2059, %v2047
        %v3476 = vpack.c.b16 %v2060, %v2048
        %v3477 = vpack.c.b16 %v2061, %v2049
        %v3478 = vpack.c.b16 %v2062, %v2050
        %v3479 = vpack.c.b16 %v2063, %v2051
        %v3480 = vpack.c.b16 %v2064, %v2052
        %v3481 = vpack.c.b16 %v2065, %v2053
        %v3482 = vpack.c.b16 %v2066, %v2054
        %v3483 = vpack.c.b16 %v2067, %v2055
        %v3484 = vpack.c.b16 %v2068, %v2056
        %v3485 = vpack.c.b16 %v2081, %v2069
        %v3486 = vpack.c.b16 %v2082, %v2070
        %v3487 = vpack.c.b16 %v2083, %v2071
        %v3488 = vpack.c.b16 %v2084, %v2072
        %v3489 = vpack.c.b16 %v2085, %v2073
        %v3490 = vpack.c.b16 %v2086, %v2074
        %v3491 = vpack.c.b16 %v2087, %v2075
        %v3492 = vpack.c.b16 %v2088, %v2076
        %v3493 = vpack.c.b16 %v2089, %v2077
        %v3494 = vpack.c.b16 %v2090, %v2078
        %v3495 = vpack.c.b16 %v2091, %v2079
        %v3496 = vpack.c.b16 %v2092, %v2080
        %v3497 = vpack.c.b16 %v2105, %v2093
        %v3498 = vpack.c.b16 %v2106, %v2094
        %v3499 = vpack.c.b16 %v2107, %v2095
        %v3500 = vpack.c.b16 %v2108, %v2096
        %v3501 = vpack.c.b16 %v2109, %v2097
        %v3502 = vpack.c.b16 %v2110, %v2098
        %v3503 = vpack.c.b16 %v2111, %v2099
        %v3504 = vpack.c.b16 %v2112, %v2100
        %v3505 = vpack.c.b16 %v2113, %v2101
        %v3506 = vpack.c.b16 %v2114, %v2102
        %v3507 = vpack.c.b16 %v2115, %v2103
        %v3508 = vpack.c.b16 %v2116, %v2104
        %v3509 = vpack.c.b16 %v2129, %v2117
        %v3510 = vpack.c.b16 %v2130, %v2118
        %v3511 = vpack.c.b16 %v2131, %v2119
        %v3512 = vpack.c.b16 %v2132, %v2120
        %v3513 = vpack.c.b16 %v2133, %v2121
        %v3514 = vpack.c.b16 %v2134, %v2122
        %v3515 = vpack.c.b16 %v2135, %v2123
        %v3516 = vpack.c.b16 %v2136, %v2124
        %v3517 = vpack.c.b16 %v2137, %v2125
        %v3518 = vpack.c.b16 %v2138, %v2126
        %v3519 = vpack.c.b16 %v2139, %v2127
        %v3520 = vpack.c.b16 %v2140, %v2128
        %v3521 = vpack.c.b16 %v2153, %v2141
        %v3522 = vpack.c.b16 %v2154, %v2142
        %v3523 = vpack.c.b16 %v2155, %v2143
        %v3524 = vpack.c.b16 %v2156, %v2144
        %v3525 = vpack.c.b16 %v2157, %v2145
        %v3526 = vpack.c.b16 %v2158, %v2146
        %v3527 = vpack.c.b16 %v2159, %v2147
        %v3528 = vpack.c.b16 %v2160, %v2148
        %v3529 = vpack.c.b16 %v2161, %v2149
        %v3530 = vpack.c.b16 %v2162, %v2150
        %v3531 = vpack.c.b16 %v2163, %v2151
        %v3532 = vpack.c.b16 %v2164, %v2152
        %v3533 = vpack.c.b16 %v2177, %v2165
        %v3534 = vpack.c.b16 %v2178, %v2166
        %v3535 = vpack.c.b16 %v2179, %v2167
        %v3536 = vpack.c.b16 %v2180, %v2168
        %v3537 = vpack.c.b16 %v2181, %v2169
        %v3538 = vpack.c.b16 %v2182, %v2170
        %v3539 = vpack.c.b16 %v2183, %v2171
        %v3540 = vpack.c.b16 %v2184, %v2172
        %v3541 = vpack.c.b16 %v2185, %v2173
        %v3542 = vpack.c.b16 %v2186, %v2174
        %v3543 = vpack.c.b16 %v2187, %v2175
        %v3544 = vpack.c.b16 %v2188, %v2176
        %v3545 = vpack.c.b16 %v2201, %v2189
        %v3546 = vpack.c.b16 %v2202, %v2190
        %v3547 = vpack.c.b16 %v2203, %v2191
        %v3548 = vpack.c.b16 %v2204, %v2192
        %v3549 = vpack.c.b16 %v2205, %v2193
        %v3550 = vpack.c.b16 %v2206, %v2194
        %v3551 = vpack.c.b16 %v2207, %v2195
        %v3552 = vpack.c.b16 %v2208, %v2196
        %v3553 = vpack.c.b16 %v2209, %v2197
        %v3554 = vpack.c.b16 %v2210, %v2198
        %v3555 = vpack.c.b16 %v2211, %v2199
        %v3556 = vpack.c.b16 %v2212, %v2200
        %v3557 = vpack.c.b16 %v2225, %v2213
        %v3558 = vpack.c.b16 %v2226, %v2214
        %v3559 = vpack.c.b16 %v2227, %v2215
        %v3560 = vpack.c.b16 %v2228, %v2216
        %v3561 = vpack.c.b16 %v2229, %v2217
        %v3562 = vpack.c.b16 %v2230, %v2218
        %v3563 = vpack.c.b16 %v2231, %v2219
        %v3564 = vpack.c.b16 %v2232, %v2220
        %v3565 = vpack.c.b16 %v2233, %v2221
        %v3566 = vpack.c.b16 %v2234, %v2222
        %v3567 = vpack.c.b16 %v2235, %v2223
        %v3568 = vpack.c.b16 %v2236, %v2224
        %v3569 = vpack.c.b16 %v2249, %v2237
        %v3570 = vpack.c.b16 %v2250, %v2238
        %v3571 = vpack.c.b16 %v2251, %v2239
        %v3572 = vpack.c.b16 %v2252, %v2240
        %v3573 = vpack.c.b16 %v2253, %v2241
        %v3574 = vpack.c.b16 %v2254, %v2242
        %v3575 = vpack.c.b16 %v2255, %v2243
        %v3576 = vpack.c.b16 %v2256, %v2244
        %v3577 = vpack.c.b16 %v2257, %v2245
        %v3578 = vpack.c.b16 %v2258, %v2246
        %v3579 = vpack.c.b16 %v2259, %v2247
        %v3580 = vpack.c.b16 %v2260, %v2248
        %v3581 = vpack.c.b16 %v2273, %v2261
        %v3582 = vpack.c.b16 %v2274, %v2262
        %v3583 = vpack.c.b16 %v2275, %v2263
        %v3584 = vpack.c.b16 %v2276, %v2264
        %v3585 = vpack.c.b16 %v2277, %v2265
        %v3586 = vpack.c.b16 %v2278, %v2266
        %v3587 = vpack.c.b16 %v2279, %v2267
        %v3588 = vpack.c.b16 %v2280, %v2268
        %v3589 = vpack.c.b16 %v2281, %v2269
        %v3590 = vpack.c.b16 %v2282, %v2270
        %v3591 = vpack.c.b16 %v2283, %v2271
        %v3592 = vpack.c.b16 %v2284, %v2272
        %v3593 = vpack.c.b16 %v2297, %v2285
        %v3594 = vpack.c.b16 %v2298, %v2286
        %v3595 = vpack.c.b16 %v2299, %v2287
        %v3596 = vpack.c.b16 %v2300, %v2288
        %v3597 = vpack.c.b16 %v2301, %v2289
        %v3598 = vpack.c.b16 %v2302, %v2290
        %v3599 = vpack.c.b16 %v2303, %v2291
        %v3600 = vpack.c.b16 %v2304, %v2292
        %v3601 = vpack.c.b16 %v2305, %v2293
        %v3602 = vpack.c.b16 %v2306, %v2294
        %v3603 = vpack.c.b16 %v2307, %v2295
        %v3604 = vpack.c.b16 %v2308, %v2296
        %v3605 = vpack.c.b16 %v2321, %v2309
        %v3606 = vpack.c.b16 %v2322, %v2310
        %v3607 = vpack.c.b16 %v2323, %v2311
        %v3608 = vpack.c.b16 %v2324, %v2312
        %v3609 = vpack.c.b16 %v2325, %v2313
        %v3610 = vpack.c.b16 %v2326, %v2314
        %v3611 = vpack.c.b16 %v2327, %v2315
        %v3612 = vpack.c.b16 %v2328, %v2316
        %v3613 = vpack.c.b16 %v2329, %v2317
        %v3614 = vpack.c.b16 %v2330, %v2318
        %v3615 = vpack.c.b16 %v2331, %v2319
        %v3616 = vpack.c.b16 %v2332, %v2320
        %v3617 = vpack.c.b16 %v2345, %v2333
        %v3618 = vpack.c.b16 %v2346, %v2334
        %v3619 = vpack.c.b16 %v2347, %v2335
        %v3620 = vpack.c.b16 %v2348, %v2336
        %v3621 = vpack.c.b16 %v2349, %v2337
        %v3622 = vpack.c.b16 %v2350, %v2338
        %v3623 = vpack.c.b16 %v2351, %v2339
        %v3624 = vpack.c.b16 %v2352, %v2340
        %v3625 = vpack.c.b16 %v2353, %v2341
        %v3626 = vpack.c.b16 %v2354, %v2342
        %v3627 = vpack.c.b16 %v2355, %v2343
        %v3628 = vpack.c.b16 %v2356, %v2344
        %v3629 = vpack.c.b16 %v2369, %v2357
        %v3630 = vpack.c.b16 %v2370, %v2358
        %v3631 = vpack.c.b16 %v2371, %v2359
        %v3632 = vpack.c.b16 %v2372, %v2360
        %v3633 = vpack.c.b16 %v2373, %v2361
        %v3634 = vpack.c.b16 %v2374, %v2362
        %v3635 = vpack.c.b16 %v2375, %v2363
        %v3636 = vpack.c.b16 %v2376, %v2364
        %v3637 = vpack.c.b16 %v2377, %v2365
        %v3638 = vpack.c.b16 %v2378, %v2366
        %v3639 = vpack.c.b16 %v2379, %v2367
        %v3640 = vpack.c.b16 %v2380, %v2368
        %v3641 = vpack.c.b16 %v2393, %v2381
        %v3642 = vpack.c.b16 %v2394, %v2382
        %v3643 = vpack.c.b16 %v2395, %v2383
        %v3644 = vpack.c.b16 %v2396, %v2384
        %v3645 = vpack.c.b16 %v2397, %v2385
        %v3646 = vpack.c.b16 %v2398, %v2386
        %v3647 = vpack.c.b16 %v2399, %v2387
        %v3648 = vpack.c.b16 %v2400, %v2388
        %v3649 = vpack.c.b16 %v2401, %v2389
        %v3650 = vpack.c.b16 %v2402, %v2390
        %v3651 = vpack.c.b16 %v2403, %v2391
        %v3652 = vpack.c.b16 %v2404, %v2392
        %v3653 = vpack.c.b16 %v2417, %v2405
        %v3654 = vpack.c.b16 %v2418, %v2406
        %v3655 = vpack.c.b16 %v2419, %v2407
        %v3656 = vpack.c.b16 %v2420, %v2408
        %v3657 = vpack.c.b16 %v2421, %v2409
        %v3658 = vpack.c.b16 %v2422, %v2410
        %v3659 = vpack.c.b16 %v2423, %v2411
        %v3660 = vpack.c.b16 %v2424, %v2412
        %v3661 = vpack.c.b16 %v2425, %v2413
        %v3662 = vpack.c.b16 %v2426, %v2414
        %v3663 = vpack.c.b16 %v2427, %v2415
        %v3664 = vpack.c.b16 %v2428, %v2416
        %v3665 = vpack.c.b16 %v2441, %v2429
        %v3666 = vpack.c.b16 %v2442, %v2430
        %v3667 = vpack.c.b16 %v2443, %v2431
        %v3668 = vpack.c.b16 %v2444, %v2432
        %v3669 = vpack.c.b16 %v2445, %v2433
        %v3670 = vpack.c.b16 %v2446, %v2434
        %v3671 = vpack.c.b16 %v2447, %v2435
        %v3672 = vpack.c.b16 %v2448, %v2436
        %v3673 = vpack.c.b16 %v2449, %v2437
        %v3674 = vpack.c.b16 %v2450, %v2438
        %v3675 = vpack.c.b16 %v2451, %v2439
        %v3676 = vpack.c.b16 %v2452, %v2440
        %v3677 = vpack.c.b16 %v2465, %v2453
        %v3678 = vpack.c.b16 %v2466, %v2454
        %v3679 = vpack.c.b16 %v2467, %v2455
        %v3680 = vpack.c.b16 %v2468, %v2456
        %v3681 = vpack.c.b16 %v2469, %v2457
        %v3682 = vpack.c.b16 %v2470, %v2458
        %v3683 = vpack.c.b16 %v2471, %v2459
        %v3684 = vpack.c.b16 %v2472, %v2460
        %v3685 = vpack.c.b16 %v2473, %v2461
        %v3686 = vpack.c.b16 %v2474, %v2462
        %v3687 = vpack.c.b16 %v2475, %v2463
        %v3688 = vpack.c.b16 %v2476, %v2464
        %v3689 = vpack.c.b16 %v2489, %v2477
        %v3690 = vpack.c.b16 %v2490, %v2478
        %v3691 = vpack.c.b16 %v2491, %v2479
        %v3692 = vpack.c.b16 %v2492, %v2480
        %v3693 = vpack.c.b16 %v2493, %v2481
        %v3694 = vpack.c.b16 %v2494, %v2482
        %v3695 = vpack.c.b16 %v2495, %v2483
        %v3696 = vpack.c.b16 %v2496, %v2484
        %v3697 = vpack.c.b16 %v2497, %v2485
        %v3698 = vpack.c.b16 %v2498, %v2486
        %v3699 = vpack.c.b16 %v2499, %v2487
        %v3700 = vpack.c.b16 %v2500, %v2488
        %v3701 = vpack.c.b16 %v2513, %v2501
        %v3702 = vpack.c.b16 %v2514, %v2502
        %v3703 = vpack.c.b16 %v2515, %v2503
        %v3704 = vpack.c.b16 %v2516, %v2504
        %v3705 = vpack.c.b16 %v2517, %v2505
        %v3706 = vpack.c.b16 %v2518, %v2506
        %v3707 = vpack.c.b16 %v2519, %v2507
        %v3708 = vpack.c.b16 %v2520, %v2508
        %v3709 = vpack.c.b16 %v2521, %v2509
        %v3710 = vpack.c.b16 %v2522, %v2510
        %v3711 = vpack.c.b16 %v2523, %v2511
        %v3712 = vpack.c.b16 %v2524, %v2512
        %v3713 = vpack.c.b16 %v2537, %v2525
        %v3714 = vpack.c.b16 %v2538, %v2526
        %v3715 = vpack.c.b16 %v2539, %v2527
        %v3716 = vpack.c.b16 %v2540, %v2528
        %v3717 = vpack.c.b16 %v2541, %v2529
        %v3718 = vpack.c.b16 %v2542, %v2530
        %v3719 = vpack.c.b16 %v2543, %v2531
        %v3720 = vpack.c.b16 %v2544, %v2532
        %v3721 = vpack.c.b16 %v2545, %v2533
        %v3722 = vpack.c.b16 %v2546, %v2534
        %v3723 = vpack.c.b16 %v2547, %v2535
        %v3724 = vpack.c.b16 %v2548, %v2536
        %v3725 = vpack.c.b16 %v2561, %v2549
        %v3726 = vpack.c.b16 %v2562, %v2550
        %v3727 = vpack.c.b16 %v2563, %v2551
        %v3728 = vpack.c.b16 %v2564, %v2552
        %v3729 = vpack.c.b16 %v2565, %v2553
        %v3730 = vpack.c.b16 %v2566, %v2554
        %v3731 = vpack.c.b16 %v2567, %v2555
        %v3732 = vpack.c.b16 %v2568, %v2556
        %v3733 = vpack.c.b16 %v2569, %v2557
        %v3734 = vpack.c.b16 %v2570, %v2558
        %v3735 = vpack.c.b16 %v2571, %v2559
        %v3736 = vpack.c.b16 %v2572, %v2560
        %v3737 = vpack.c.b16 %v2585, %v2573
        %v3738 = vpack.c.b16 %v2586, %v2574
        %v3739 = vpack.c.b16 %v2587, %v2575
        %v3740 = vpack.c.b16 %v2588, %v2576
        %v3741 = vpack.c.b16 %v2589, %v2577
        %v3742 = vpack.c.b16 %v2590, %v2578
        %v3743 = vpack.c.b16 %v2591, %v2579
        %v3744 = vpack.c.b16 %v2592, %v2580
        %v3745 = vpack.c.b16 %v2593, %v2581
        %v3746 = vpack.c.b16 %v2594, %v2582
        %v3747 = vpack.c.b16 %v2595, %v2583
        %v3748 = vpack.c.b16 %v2596, %v2584
        %v3749 = vpack.c.b16 %v2609, %v2597
        %v3750 = vpack.c.b16 %v2610, %v2598
        %v3751 = vpack.c.b16 %v2611, %v2599
        %v3752 = vpack.c.b16 %v2612, %v2600
        %v3753 = vpack.c.b16 %v2613, %v2601
        %v3754 = vpack.c.b16 %v2614, %v2602
        %v3755 = vpack.c.b16 %v2615, %v2603
        %v3756 = vpack.c.b16 %v2616, %v2604
        %v3757 = vpack.c.b16 %v2617, %v2605
        %v3758 = vpack.c.b16 %v2618, %v2606
        %v3759 = vpack.c.b16 %v2619, %v2607
        %v3760 = vpack.c.b16 %v2620, %v2608
        %v3761 = vpack.c.b16 %v2633, %v2621
        %v3762 = vpack.c.b16 %v2634, %v2622
        %v3763 = vpack.c.b16 %v2635, %v2623
        %v3764 = vpack.c.b16 %v2636, %v2624
        %v3765 = vpack.c.b16 %v2637, %v2625
        %v3766 = vpack.c.b16 %v2638, %v2626
        %v3767 = vpack.c.b16 %v2639, %v2627
        %v3768 = vpack.c.b16 %v2640, %v2628
        %v3769 = vpack.c.b16 %v2641, %v2629
        %v3770 = vpack.c.b16 %v2642, %v2630
        %v3771 = vpack.c.b16 %v2643, %v2631
        %v3772 = vpack.c.b16 %v2644, %v2632
        %v3773 = vpack.c.b16 %v2657, %v2645
        %v3774 = vpack.c.b16 %v2658, %v2646
        %v3775 = vpack.c.b16 %v2659, %v2647
        %v3776 = vpack.c.b16 %v2660, %v2648
        %v3777 = vpack.c.b16 %v2661, %v2649
        %v3778 = vpack.c.b16 %v2662, %v2650
        %v3779 = vpack.c.b16 %v2663, %v2651
        %v3780 = vpack.c.b16 %v2664, %v2652
        %v3781 = vpack.c.b16 %v2665, %v2653
        %v3782 = vpack.c.b16 %v2666, %v2654
        %v3783 = vpack.c.b16 %v2667, %v2655
        %v3784 = vpack.c.b16 %v2668, %v2656
        %v3785 = vpack.c.b16 %v2681, %v2669
        %v3786 = vpack.c.b16 %v2682, %v2670
        %v3787 = vpack.c.b16 %v2683, %v2671
        %v3788 = vpack.c.b16 %v2684, %v2672
        %v3789 = vpack.c.b16 %v2685, %v2673
        %v3790 = vpack.c.b16 %v2686, %v2674
        %v3791 = vpack.c.b16 %v2687, %v2675
        %v3792 = vpack.c.b16 %v2688, %v2676
        %v3793 = vpack.c.b16 %v2689, %v2677
        %v3794 = vpack.c.b16 %v2690, %v2678
        %v3795 = vpack.c.b16 %v2691, %v2679
        %v3796 = vpack.c.b16 %v2692, %v2680
        %v3797 = vpack.c.b16 %v2705, %v2693
        %v3798 = vpack.c.b16 %v2706, %v2694
        %v3799 = vpack.c.b16 %v2707, %v2695
        %v3800 = vpack.c.b16 %v2708, %v2696
        %v3801 = vpack.c.b16 %v2709, %v2697
        %v3802 = vpack.c.b16 %v2710, %v2698
        %v3803 = vpack.c.b16 %v2711, %v2699
        %v3804 = vpack.c.b16 %v2712, %v2700
        %v3805 = vpack.c.b16 %v2713, %v2701
        %v3806 = vpack.c.b16 %v2714, %v2702
        %v3807 = vpack.c.b16 %v2715, %v2703
        %v3808 = vpack.c.b16 %v2716, %v2704
        %v3809 = vpack.c.b16 %v2729, %v2717
        %v3810 = vpack.c.b16 %v2730, %v2718
        %v3811 = vpack.c.b16 %v2731, %v2719
        %v3812 = vpack.c.b16 %v2732, %v2720
        %v3813 = vpack.c.b16 %v2733, %v2721
        %v3814 = vpack.c.b16 %v2734, %v2722
        %v3815 = vpack.c.b16 %v2735, %v2723
        %v3816 = vpack.c.b16 %v2736, %v2724
        %v3817 = vpack.c.b16 %v2737, %v2725
        %v3818 = vpack.c.b16 %v2738, %v2726
        %v3819 = vpack.c.b16 %v2739, %v2727
        %v3820 = vpack.c.b16 %v2740, %v2728
        %v3821 = vpack.c.b16 %v2753, %v2741
        %v3822 = vpack.c.b16 %v2754, %v2742
        %v3823 = vpack.c.b16 %v2755, %v2743
        %v3824 = vpack.c.b16 %v2756, %v2744
        %v3825 = vpack.c.b16 %v2757, %v2745
        %v3826 = vpack.c.b16 %v2758, %v2746
        %v3827 = vpack.c.b16 %v2759, %v2747
        %v3828 = vpack.c.b16 %v2760, %v2748
        %v3829 = vpack.c.b16 %v2761, %v2749
        %v3830 = vpack.c.b16 %v2762, %v2750
        %v3831 = vpack.c.b16 %v2763, %v2751
        %v3832 = vpack.c.b16 %v2764, %v2752
        %v3833 = vpack.c.b16 %v2777, %v2765
        %v3834 = vpack.c.b16 %v2778, %v2766
        %v3835 = vpack.c.b16 %v2779, %v2767
        %v3836 = vpack.c.b16 %v2780, %v2768
        %v3837 = vpack.c.b16 %v2781, %v2769
        %v3838 = vpack.c.b16 %v2782, %v2770
        %v3839 = vpack.c.b16 %v2783, %v2771
        %v3840 = vpack.c.b16 %v2784, %v2772
        %v3841 = vpack.c.b16 %v2785, %v2773
        %v3842 = vpack.c.b16 %v2786, %v2774
        %v3843 = vpack.c.b16 %v2787, %v2775
        %v3844 = vpack.c.b16 %v2788, %v2776
        %v3845 = vpack.c.b16 %v2801, %v2789
        %v3846 = vpack.c.b16 %v2802, %v2790
        %v3847 = vpack.c.b16 %v2803, %v2791
        %v3848 = vpack.c.b16 %v2804, %v2792
        %v3849 = vpack.c.b16 %v2805, %v2793
        %v3850 = vpack.c.b16 %v2806, %v2794
        %v3851 = vpack.c.b16 %v2807, %v2795
        %v3852 = vpack.c.b16 %v2808, %v2796
        %v3853 = vpack.c.b16 %v2809, %v2797
        %v3854 = vpack.c.b16 %v2810, %v2798
        %v3855 = vpack.c.b16 %v2811, %v2799
        %v3856 = vpack.c.b16 %v2812, %v2800
        %v3857 = vpack.c.b16 %v2825, %v2813
        %v3858 = vpack.c.b16 %v2826, %v2814
        %v3859 = vpack.c.b16 %v2827, %v2815
        %v3860 = vpack.c.b16 %v2828, %v2816
        %v3861 = vpack.c.b16 %v2829, %v2817
        %v3862 = vpack.c.b16 %v2830, %v2818
        %v3863 = vpack.c.b16 %v2831, %v2819
        %v3864 = vpack.c.b16 %v2832, %v2820
        %v3865 = vpack.c.b16 %v2833, %v2821
        %v3866 = vpack.c.b16 %v2834, %v2822
        %v3867 = vpack.c.b16 %v2835, %v2823
        %v3868 = vpack.c.b16 %v2836, %v2824
        %v3869 = vpack.c.b16 %v2849, %v2837
        %v3870 = vpack.c.b16 %v2850, %v2838
        %v3871 = vpack.c.b16 %v2851, %v2839
        %v3872 = vpack.c.b16 %v2852, %v2840
        %v3873 = vpack.c.b16 %v2853, %v2841
        %v3874 = vpack.c.b16 %v2854, %v2842
        %v3875 = vpack.c.b16 %v2855, %v2843
        %v3876 = vpack.c.b16 %v2856, %v2844
        %v3877 = vpack.c.b16 %v2857, %v2845
        %v3878 = vpack.c.b16 %v2858, %v2846
        %v3879 = vpack.c.b16 %v2859, %v2847
        %v3880 = vpack.c.b16 %v2860, %v2848
        %v3881 = vpack.c.b16 %v2873, %v2861
        %v3882 = vpack.c.b16 %v2874, %v2862
        %v3883 = vpack.c.b16 %v2875, %v2863
        %v3884 = vpack.c.b16 %v2876, %v2864
        %v3885 = vpack.c.b16 %v2877, %v2865
        %v3886 = vpack.c.b16 %v2878, %v2866
        %v3887 = vpack.c.b16 %v2879, %v2867
        %v3888 = vpack.c.b16 %v2880, %v2868
        %v3889 = vpack.c.b16 %v2881, %v2869
        %v3890 = vpack.c.b16 %v2882, %v2870
        %v3891 = vpack.c.b16 %v2883, %v2871
        %v3892 = vpack.c.b16 %v2884, %v2872
        %v3893 = vpack.c.b16 %v2897, %v2885
        %v3894 = vpack.c.b16 %v2898, %v2886
        %v3895 = vpack.c.b16 %v2899, %v2887
        %v3896 = vpack.c.b16 %v2900, %v2888
        %v3897 = vpack.c.b16 %v2901, %v2889
        %v3898 = vpack.c.b16 %v2902, %v2890
        %v3899 = vpack.c.b16 %v2903, %v2891
        %v3900 = vpack.c.b16 %v2904, %v2892
        %v3901 = vpack.c.b16 %v2905, %v2893
        %v3902 = vpack.c.b16 %v2906, %v2894
        %v3903 = vpack.c.b16 %v2907, %v2895
        %v3904 = vpack.c.b16 %v2908, %v2896
        %v3905 = vpack.c.b16 %v2921, %v2909
        %v3906 = vpack.c.b16 %v2922, %v2910
        %v3907 = vpack.c.b16 %v2923, %v2911
        %v3908 = vpack.c.b16 %v2924, %v2912
        %v3909 = vpack.c.b16 %v2925, %v2913
        %v3910 = vpack.c.b16 %v2926, %v2914
        %v3911 = vpack.c.b16 %v2927, %v2915
        %v3912 = vpack.c.b16 %v2928, %v2916
        %v3913 = vpack.c.b16 %v2929, %v2917
        %v3914 = vpack.c.b16 %v2930, %v2918
        %v3915 = vpack.c.b16 %v2931, %v2919
        %v3916 = vpack.c.b16 %v2932, %v2920
        %v3917 = vpack.c.b16 %v2945, %v2933
        %v3918 = vpack.c.b16 %v2946, %v2934
        %v3919 = vpack.c.b16 %v2947, %v2935
        %v3920 = vpack.c.b16 %v2948, %v2936
        %v3921 = vpack.c.b16 %v2949, %v2937
        %v3922 = vpack.c.b16 %v2950, %v2938
        %v3923 = vpack.c.b16 %v2951, %v2939
        %v3924 = vpack.c.b16 %v2952, %v2940
        %v3925 = vpack.c.b16 %v2953, %v2941
        %v3926 = vpack.c.b16 %v2954, %v2942
        %v3927 = vpack.c.b16 %v2955, %v2943
        %v3928 = vpack.c.b16 %v2956, %v2944
        %v3929 = vpack.c.b16 %v2969, %v2957
        %v3930 = vpack.c.b16 %v2970, %v2958
        %v3931 = vpack.c.b16 %v2971, %v2959
        %v3932 = vpack.c.b16 %v2972, %v2960
        %v3933 = vpack.c.b16 %v2973, %v2961
        %v3934 = vpack.c.b16 %v2974, %v2962
        %v3935 = vpack.c.b16 %v2975, %v2963
        %v3936 = vpack.c.b16 %v2976, %v2964
        %v3937 = vpack.c.b16 %v2977, %v2965
        %v3938 = vpack.c.b16 %v2978, %v2966
        %v3939 = vpack.c.b16 %v2979, %v2967
        %v3940 = vpack.c.b16 %v2980, %v2968
        %v3941 = vpack.c.b16 %v2993, %v2981
        %v3942 = vpack.c.b16 %v2994, %v2982
        %v3943 = vpack.c.b16 %v2995, %v2983
        %v3944 = vpack.c.b16 %v2996, %v2984
        %v3945 = vpack.c.b16 %v2997, %v2985
        %v3946 = vpack.c.b16 %v2998, %v2986
        %v3947 = vpack.c.b16 %v2999, %v2987
        %v3948 = vpack.c.b16 %v3000, %v2988
        %v3949 = vpack.c.b16 %v3001, %v2989
        %v3950 = vpack.c.b16 %v3002, %v2990
        %v3951 = vpack.c.b16 %v3003, %v2991
        %v3952 = vpack.c.b16 %v3004, %v2992
        %v3953 = vpack.c.b16 %v3017, %v3005
        %v3954 = vpack.c.b16 %v3018, %v3006
        %v3955 = vpack.c.b16 %v3019, %v3007
        %v3956 = vpack.c.b16 %v3020, %v3008
        %v3957 = vpack.c.b16 %v3021, %v3009
        %v3958 = vpack.c.b16 %v3022, %v3010
        %v3959 = vpack.c.b16 %v3023, %v3011
        %v3960 = vpack.c.b16 %v3024, %v3012
        %v3961 = vpack.c.b16 %v3025, %v3013
        %v3962 = vpack.c.b16 %v3026, %v3014
        %v3963 = vpack.c.b16 %v3027, %v3015
        %v3964 = vpack.c.b16 %v3028, %v3016
        %v3965 = vpack.c.b16 %v3041, %v3029
        %v3966 = vpack.c.b16 %v3042, %v3030
        %v3967 = vpack.c.b16 %v3043, %v3031
        %v3968 = vpack.c.b16 %v3044, %v3032
        %v3969 = vpack.c.b16 %v3045, %v3033
        %v3970 = vpack.c.b16 %v3046, %v3034
        %v3971 = vpack.c.b16 %v3047, %v3035
        %v3972 = vpack.c.b16 %v3048, %v3036
        %v3973 = vpack.c.b16 %v3049, %v3037
        %v3974 = vpack.c.b16 %v3050, %v3038
        %v3975 = vpack.c.b16 %v3051, %v3039
        %v3976 = vpack.c.b16 %v3052, %v3040
        %v3977 = vpack.c.b16 %v3065, %v3053
        %v3978 = vpack.c.b16 %v3066, %v3054
        %v3979 = vpack.c.b16 %v3067, %v3055
        %v3980 = vpack.c.b16 %v3068, %v3056
        %v3981 = vpack.c.b16 %v3069, %v3057
        %v3982 = vpack.c.b16 %v3070, %v3058
        %v3983 = vpack.c.b16 %v3071, %v3059
        %v3984 = vpack.c.b16 %v3072, %v3060
        %v3985 = vpack.c.b16 %v3073, %v3061
        %v3986 = vpack.c.b16 %v3074, %v3062
        %v3987 = vpack.c.b16 %v3075, %v3063
        %v3988 = vpack.c.b16 %v3076, %v3064
        %v3989 = vpack.c.b16 %v3089, %v3077
        %v3990 = vpack.c.b16 %v3090, %v3078
        %v3991 = vpack.c.b16 %v3091, %v3079
        %v3992 = vpack.c.b16 %v3092, %v3080
        %v3993 = vpack.c.b16 %v3093, %v3081
        %v3994 = vpack.c.b16 %v3094, %v3082
        %v3995 = vpack.c.b16 %v3095, %v3083
        %v3996 = vpack.c.b16 %v3096, %v3084
        %v3997 = vpack.c.b16 %v3097, %v3085
        %v3998 = vpack.c.b16 %v3098, %v3086
        %v3999 = vpack.c.b16 %v3099, %v3087
        %v4000 = vpack.c.b16 %v3100, %v3088
        %v4001 = vpack.c.b16 %v3113, %v3101
        %v4002 = vpack.c.b16 %v3114, %v3102
        %v4003 = vpack.c.b16 %v3115, %v3103
        %v4004 = vpack.c.b16 %v3116, %v3104
        %v4005 = vpack.c.b16 %v3117, %v3105
        %v4006 = vpack.c.b16 %v3118, %v3106
        %v4007 = vpack.c.b16 %v3119, %v3107
        %v4008 = vpack.c.b16 %v3120, %v3108
        %v4009 = vpack.c.b16 %v3121, %v3109
        %v4010 = vpack.c.b16 %v3122, %v3110
        %v4011 = vpack.c.b16 %v3123, %v3111
        %v4012 = vpack.c.b16 %v3124, %v3112
        %v4013 = vpack.c.b16 %v3137, %v3125
        %v4014 = vpack.c.b16 %v3138, %v3126
        %v4015 = vpack.c.b16 %v3139, %v3127
        %v4016 = vpack.c.b16 %v3140, %v3128
        %v4017 = vpack.c.b16 %v3141, %v3129
        %v4018 = vpack.c.b16 %v3142, %v3130
        %v4019 = vpack.c.b16 %v3143, %v3131
        %v4020 = vpack.c.b16 %v3144, %v3132
        %v4021 = vpack.c.b16 %v3145, %v3133
        %v4022 = vpack.c.b16 %v3146, %v3134
        %v4023 = vpack.c.b16 %v3147, %v3135
        %v4024 = vpack.c.b16 %v3148, %v3136
        %v4025 = vpack.c.b16 %v3161, %v3149
        %v4026 = vpack.c.b16 %v3162, %v3150
        %v4027 = vpack.c.b16 %v3163, %v3151
        %v4028 = vpack.c.b16 %v3164, %v3152
        %v4029 = vpack.c.b16 %v3165, %v3153
        %v4030 = vpack.c.b16 %v3166, %v3154
        %v4031 = vpack.c.b16 %v3167, %v3155
        %v4032 = vpack.c.b16 %v3168, %v3156
        %v4033 = vpack.c.b16 %v3169, %v3157
        %v4034 = vpack.c.b16 %v3170, %v3158
        %v4035 = vpack.c.b16 %v3171, %v3159
        %v4036 = vpack.c.b16 %v3172, %v3160
        %v4037 = vpack.c.b16 %v3185, %v3173
        %v4038 = vpack.c.b16 %v3186, %v3174
        %v4039 = vpack.c.b16 %v3187, %v3175
        %v4040 = vpack.c.b16 %v3188, %v3176
        %v4041 = vpack.c.b16 %v3189, %v3177
        %v4042 = vpack.c.b16 %v3190, %v3178
        %v4043 = vpack.c.b16 %v3191, %v3179
        %v4044 = vpack.c.b16 %v3192, %v3180
        %v4045 = vpack.c.b16 %v3193, %v3181
        %v4046 = vpack.c.b16 %v3194, %v3182
        %v4047 = vpack.c.b16 %v3195, %v3183
        %v4048 = vpack.c.b16 %v3196, %v3184
        %v4049 = vpack.c.b16 %v3209, %v3197
        %v4050 = vpack.c.b16 %v3210, %v3198
        %v4051 = vpack.c.b16 %v3211, %v3199
        %v4052 = vpack.c.b16 %v3212, %v3200
        %v4053 = vpack.c.b16 %v3213, %v3201
        %v4054 = vpack.c.b16 %v3214, %v3202
        %v4055 = vpack.c.b16 %v3215, %v3203
        %v4056 = vpack.c.b16 %v3216, %v3204
        %v4057 = vpack.c.b16 %v3217, %v3205
        %v4058 = vpack.c.b16 %v3218, %v3206
        %v4059 = vpack.c.b16 %v3219, %v3207
        %v4060 = vpack.c.b16 %v3220, %v3208
        %v4061 = vpack.c.b16 %v3233, %v3221
        %v4062 = vpack.c.b16 %v3234, %v3222
        %v4063 = vpack.c.b16 %v3235, %v3223
        %v4064 = vpack.c.b16 %v3236, %v3224
        %v4065 = vpack.c.b16 %v3237, %v3225
        %v4066 = vpack.c.b16 %v3238, %v3226
        %v4067 = vpack.c.b16 %v3239, %v3227
        %v4068 = vpack.c.b16 %v3240, %v3228
        %v4069 = vpack.c.b16 %v3241, %v3229
        %v4070 = vpack.c.b16 %v3242, %v3230
        %v4071 = vpack.c.b16 %v3243, %v3231
        %v4072 = vpack.c.b16 %v3244, %v3232
        %v4073 = vpack.c.b16 %v3257, %v3245
        %v4074 = vpack.c.b16 %v3258, %v3246
        %v4075 = vpack.c.b16 %v3259, %v3247
        %v4076 = vpack.c.b16 %v3260, %v3248
        %v4077 = vpack.c.b16 %v3261, %v3249
        %v4078 = vpack.c.b16 %v3262, %v3250
        %v4079 = vpack.c.b16 %v3263, %v3251
        %v4080 = vpack.c.b16 %v3264, %v3252
        %v4081 = vpack.c.b16 %v3265, %v3253
        %v4082 = vpack.c.b16 %v3266, %v3254
        %v4083 = vpack.c.b16 %v3267, %v3255
        %v4084 = vpack.c.b16 %v3268, %v3256
        %v4085 = vpack.c.b16 %v3281, %v3269
        %v4086 = vpack.c.b16 %v3282, %v3270
        %v4087 = vpack.c.b16 %v3283, %v3271
        %v4088 = vpack.c.b16 %v3284, %v3272
        %v4089 = vpack.c.b16 %v3285, %v3273
        %v4090 = vpack.c.b16 %v3286, %v3274
        %v4091 = vpack.c.b16 %v3287, %v3275
        %v4092 = vpack.c.b16 %v3288, %v3276
        %v4093 = vpack.c.b16 %v3289, %v3277
        %v4094 = vpack.c.b16 %v3290, %v3278
        %v4095 = vpack.c.b16 %v3291, %v3279
        %v4096 = vpack.c.b16 %v3292, %v3280
        %v4097 = vpack.c.b16 %v3305, %v3293
        %v4098 = vpack.c.b16 %v3306, %v3294
        %v4099 = vpack.c.b16 %v3307, %v3295
        %v4100 = vpack.c.b16 %v3308, %v3296
        %v4101 = vpack.c.b16 %v3309, %v3297
        %v4102 = vpack.c.b16 %v3310, %v3298
        %v4103 = vpack.c.b16 %v3311, %v3299
        %v4104 = vpack.c.b16 %v3312, %v3300
        %v4105 = vpack.c.b16 %v3313, %v3301
        %v4106 = vpack.c.b16 %v3314, %v3302
        %v4107 = vpack.c.b16 %v3315, %v3303
        %v4108 = vpack.c.b16 %v3316, %v3304
        %v4109 = vpack.c.b16 %v3329, %v3317
        %v4110 = vpack.c.b16 %v3330, %v3318
        %v4111 = vpack.c.b16 %v3331, %v3319
        %v4112 = vpack.c.b16 %v3332, %v3320
        %v4113 = vpack.c.b16 %v3333, %v3321
        %v4114 = vpack.c.b16 %v3334, %v3322
        %v4115 = vpack.c.b16 %v3335, %v3323
        %v4116 = vpack.c.b16 %v3336, %v3324
        %v4117 = vpack.c.b16 %v3337, %v3325
        %v4118 = vpack.c.b16 %v3338, %v3326
        %v4119 = vpack.c.b16 %v3339, %v3327
        %v4120 = vpack.c.b16 %v3340, %v3328
        %v4121 = vpack.c.b16 %v3353, %v3341
        %v4122 = vpack.c.b16 %v3354, %v3342
        %v4123 = vpack.c.b16 %v3355, %v3343
        %v4124 = vpack.c.b16 %v3356, %v3344
        %v4125 = vpack.c.b16 %v3357, %v3345
        %v4126 = vpack.c.b16 %v3358, %v3346
        %v4127 = vpack.c.b16 %v3359, %v3347
        %v4128 = vpack.c.b16 %v3360, %v3348
        %v4129 = vpack.c.b16 %v3361, %v3349
        %v4130 = vpack.c.b16 %v3362, %v3350
        %v4131 = vpack.c.b16 %v3363, %v3351
        %v4132 = vpack.c.b16 %v3364, %v3352
        %4901 = vmatpush.bf16.msra.mxu0 %v3449
        %4902 = vmatpush.bf16.msra.mxu0 %v3437
        %4903 = vmatpush.bf16.msra.mxu0 %v3425
        %4904 = vmatpush.bf16.msra.mxu0 %v3413
        %4905 = vmatpush.bf16.msra.mxu0 %v3401
        %4906 = vmatpush.bf16.msra.mxu0 %v3389
        %4907 = vmatpush.bf16.msra.mxu0 %v3377
        %4908 = vmatpush.bf16.msra.mxu0 %v3365
        %4909 = vmatmul.bf16.gmra.mxu0 %v1045
        %v4910 = vpop.f32.mrf.mxu0
        %v4911 = vadd.f32 %v1009, %v4910
        %v4912 = vpop.f32.mrf.mxu0
        %4913 = vdwg.mxu0
        %4914 = vmatpush.bf16.msra.mxu0 %v3545
        %4915 = vmatpush.bf16.msra.mxu0 %v3533
        %4916 = vmatpush.bf16.msra.mxu0 %v3521
        %4917 = vmatpush.bf16.msra.mxu0 %v3509
        %4918 = vmatpush.bf16.msra.mxu0 %v3497
        %4919 = vmatpush.bf16.msra.mxu0 %v3485
        %4920 = vmatpush.bf16.msra.mxu0 %v3473
        %4921 = vmatpush.bf16.msra.mxu0 %v3461
        %4922 = vmatmul.bf16.gmra.mxu0 %v1046
        %v4923 = vpop.f32.mrf.mxu0
        %v4924 = vadd.f32 %v4911, %v4923
        %v4925 = vpop.f32.mrf.mxu0
        %4926 = vdwg.mxu0
        %4927 = vmatpush.bf16.msra.mxu0 %v3641
        %4928 = vmatpush.bf16.msra.mxu0 %v3629
        %4929 = vmatpush.bf16.msra.mxu0 %v3617
        %4930 = vmatpush.bf16.msra.mxu0 %v3605
        %4931 = vmatpush.bf16.msra.mxu0 %v3593
        %4932 = vmatpush.bf16.msra.mxu0 %v3581
        %4933 = vmatpush.bf16.msra.mxu0 %v3569
        %4934 = vmatpush.bf16.msra.mxu0 %v3557
        %4935 = vmatmul.bf16.gmra.mxu0 %v1047
        %v4936 = vpop.f32.mrf.mxu0
        %v4937 = vadd.f32 %v4924, %v4936
        %v4938 = vpop.f32.mrf.mxu0
        %4939 = vdwg.mxu0
        %4940 = vmatpush.bf16.msra.mxu0 %v3737
        %4941 = vmatpush.bf16.msra.mxu0 %v3725
        %4942 = vmatpush.bf16.msra.mxu0 %v3713
        %4943 = vmatpush.bf16.msra.mxu0 %v3701
        %4944 = vmatpush.bf16.msra.mxu0 %v3689
        %4945 = vmatpush.bf16.msra.mxu0 %v3677
        %4946 = vmatpush.bf16.msra.mxu0 %v3665
        %4947 = vmatpush.bf16.msra.mxu0 %v3653
        %4948 = vmatmul.bf16.gmra.mxu0 %v1048
        %v4949 = vpop.f32.mrf.mxu0
        %v4950 = vadd.f32 %v4937, %v4949
        %v4951 = vpop.f32.mrf.mxu0
        %4952 = vdwg.mxu0
        %4953 = vmatpush.bf16.msra.mxu0 %v3833
        %4954 = vmatpush.bf16.msra.mxu0 %v3821
        %4955 = vmatpush.bf16.msra.mxu0 %v3809
        %4956 = vmatpush.bf16.msra.mxu0 %v3797
        %4957 = vmatpush.bf16.msra.mxu0 %v3785
        %4958 = vmatpush.bf16.msra.mxu0 %v3773
        %4959 = vmatpush.bf16.msra.mxu0 %v3761
        %4960 = vmatpush.bf16.msra.mxu0 %v3749
        %4961 = vmatmul.bf16.gmra.mxu0 %v1049
        %v4962 = vpop.f32.mrf.mxu0
        %v4963 = vadd.f32 %v4950, %v4962
        %v4964 = vpop.f32.mrf.mxu0
        %4965 = vdwg.mxu0
        %4966 = vmatpush.bf16.msra.mxu0 %v3929
        %4967 = vmatpush.bf16.msra.mxu0 %v3917
        %4968 = vmatpush.bf16.msra.mxu0 %v3905
        %4969 = vmatpush.bf16.msra.mxu0 %v3893
        %4970 = vmatpush.bf16.msra.mxu0 %v3881
        %4971 = vmatpush.bf16.msra.mxu0 %v3869
        %4972 = vmatpush.bf16.msra.mxu0 %v3857
        %4973 = vmatpush.bf16.msra.mxu0 %v3845
        %4974 = vmatmul.bf16.gmra.mxu0 %v1050
        %v4975 = vpop.f32.mrf.mxu0
        %v4976 = vadd.f32 %v4963, %v4975
        %v4977 = vpop.f32.mrf.mxu0
        %4978 = vdwg.mxu0
        %4979 = vmatpush.bf16.msra.mxu0 %v4025
        %4980 = vmatpush.bf16.msra.mxu0 %v4013
        %4981 = vmatpush.bf16.msra.mxu0 %v4001
        %4982 = vmatpush.bf16.msra.mxu0 %v3989
        %4983 = vmatpush.bf16.msra.mxu0 %v3977
        %4984 = vmatpush.bf16.msra.mxu0 %v3965
        %4985 = vmatpush.bf16.msra.mxu0 %v3953
        %4986 = vmatpush.bf16.msra.mxu0 %v3941
        %4987 = vmatmul.bf16.gmra.mxu0 %v1051
        %v4988 = vpop.f32.mrf.mxu0
        %v4989 = vadd.f32 %v4976, %v4988
        %v4990 = vpop.f32.mrf.mxu0
        %4991 = vdwg.mxu0
        %4992 = vmatpush.bf16.msra.mxu0 %v4121
        %4993 = vmatpush.bf16.msra.mxu0 %v4109
        %4994 = vmatpush.bf16.msra.mxu0 %v4097
        %4995 = vmatpush.bf16.msra.mxu0 %v4085
        %4996 = vmatpush.bf16.msra.mxu0 %v4073
        %4997 = vmatpush.bf16.msra.mxu0 %v4061
        %4998 = vmatpush.bf16.msra.mxu0 %v4049
        %4999 = vmatpush.bf16.msra.mxu0 %v4037
        %5000 = vmatmul.bf16.gmra.mxu0 %v1052
        %v5001 = vpop.f32.mrf.mxu0
        %v5002 = vadd.f32 %v4989, %v5001
        %v5003 = vpop.f32.mrf.mxu0
        %5004 = vdwg.mxu0
        %5005 = vmatpush.bf16.msra.mxu0 %v3450
        %5006 = vmatpush.bf16.msra.mxu0 %v3438
        %5007 = vmatpush.bf16.msra.mxu0 %v3426
        %5008 = vmatpush.bf16.msra.mxu0 %v3414
        %5009 = vmatpush.bf16.msra.mxu0 %v3402
        %5010 = vmatpush.bf16.msra.mxu0 %v3390
        %5011 = vmatpush.bf16.msra.mxu0 %v3378
        %5012 = vmatpush.bf16.msra.mxu0 %v3366
        %5013 = vmatmul.bf16.gmra.mxu0 %v1045
        %v5014 = vpop.f32.mrf.mxu0
        %v5015 = vadd.f32 %v1010, %v5014
        %v5016 = vpop.f32.mrf.mxu0
        %5017 = vdwg.mxu0
        %5018 = vmatpush.bf16.msra.mxu0 %v3546
        %5019 = vmatpush.bf16.msra.mxu0 %v3534
        %5020 = vmatpush.bf16.msra.mxu0 %v3522
        %5021 = vmatpush.bf16.msra.mxu0 %v3510
        %5022 = vmatpush.bf16.msra.mxu0 %v3498
        %5023 = vmatpush.bf16.msra.mxu0 %v3486
        %5024 = vmatpush.bf16.msra.mxu0 %v3474
        %5025 = vmatpush.bf16.msra.mxu0 %v3462
        %5026 = vmatmul.bf16.gmra.mxu0 %v1046
        %v5027 = vpop.f32.mrf.mxu0
        %v5028 = vadd.f32 %v5015, %v5027
        %v5029 = vpop.f32.mrf.mxu0
        %5030 = vdwg.mxu0
        %5031 = vmatpush.bf16.msra.mxu0 %v3642
        %5032 = vmatpush.bf16.msra.mxu0 %v3630
        %5033 = vmatpush.bf16.msra.mxu0 %v3618
        %5034 = vmatpush.bf16.msra.mxu0 %v3606
        %5035 = vmatpush.bf16.msra.mxu0 %v3594
        %5036 = vmatpush.bf16.msra.mxu0 %v3582
        %5037 = vmatpush.bf16.msra.mxu0 %v3570
        %5038 = vmatpush.bf16.msra.mxu0 %v3558
        %5039 = vmatmul.bf16.gmra.mxu0 %v1047
        %v5040 = vpop.f32.mrf.mxu0
        %v5041 = vadd.f32 %v5028, %v5040
        %v5042 = vpop.f32.mrf.mxu0
        %5043 = vdwg.mxu0
        %5044 = vmatpush.bf16.msra.mxu0 %v3738
        %5045 = vmatpush.bf16.msra.mxu0 %v3726
        %5046 = vmatpush.bf16.msra.mxu0 %v3714
        %5047 = vmatpush.bf16.msra.mxu0 %v3702
        %5048 = vmatpush.bf16.msra.mxu0 %v3690
        %5049 = vmatpush.bf16.msra.mxu0 %v3678
        %5050 = vmatpush.bf16.msra.mxu0 %v3666
        %5051 = vmatpush.bf16.msra.mxu0 %v3654
        %5052 = vmatmul.bf16.gmra.mxu0 %v1048
        %v5053 = vpop.f32.mrf.mxu0
        %v5054 = vadd.f32 %v5041, %v5053
        %v5055 = vpop.f32.mrf.mxu0
        %5056 = vdwg.mxu0
        %5057 = vmatpush.bf16.msra.mxu0 %v3834
        %5058 = vmatpush.bf16.msra.mxu0 %v3822
        %5059 = vmatpush.bf16.msra.mxu0 %v3810
        %5060 = vmatpush.bf16.msra.mxu0 %v3798
        %5061 = vmatpush.bf16.msra.mxu0 %v3786
        %5062 = vmatpush.bf16.msra.mxu0 %v3774
        %5063 = vmatpush.bf16.msra.mxu0 %v3762
        %5064 = vmatpush.bf16.msra.mxu0 %v3750
        %5065 = vmatmul.bf16.gmra.mxu0 %v1049
        %v5066 = vpop.f32.mrf.mxu0
        %v5067 = vadd.f32 %v5054, %v5066
        %v5068 = vpop.f32.mrf.mxu0
        %5069 = vdwg.mxu0
        %5070 = vmatpush.bf16.msra.mxu0 %v3930
        %5071 = vmatpush.bf16.msra.mxu0 %v3918
        %5072 = vmatpush.bf16.msra.mxu0 %v3906
        %5073 = vmatpush.bf16.msra.mxu0 %v3894
        %5074 = vmatpush.bf16.msra.mxu0 %v3882
        %5075 = vmatpush.bf16.msra.mxu0 %v3870
        %5076 = vmatpush.bf16.msra.mxu0 %v3858
        %5077 = vmatpush.bf16.msra.mxu0 %v3846
        %5078 = vmatmul.bf16.gmra.mxu0 %v1050
        %v5079 = vpop.f32.mrf.mxu0
        %v5080 = vadd.f32 %v5067, %v5079
        %v5081 = vpop.f32.mrf.mxu0
        %5082 = vdwg.mxu0
        %5083 = vmatpush.bf16.msra.mxu0 %v4026
        %5084 = vmatpush.bf16.msra.mxu0 %v4014
        %5085 = vmatpush.bf16.msra.mxu0 %v4002
        %5086 = vmatpush.bf16.msra.mxu0 %v3990
        %5087 = vmatpush.bf16.msra.mxu0 %v3978
        %5088 = vmatpush.bf16.msra.mxu0 %v3966
        %5089 = vmatpush.bf16.msra.mxu0 %v3954
        %5090 = vmatpush.bf16.msra.mxu0 %v3942
        %5091 = vmatmul.bf16.gmra.mxu0 %v1051
        %v5092 = vpop.f32.mrf.mxu0
        %v5093 = vadd.f32 %v5080, %v5092
        %v5094 = vpop.f32.mrf.mxu0
        %5095 = vdwg.mxu0
        %5096 = vmatpush.bf16.msra.mxu0 %v4122
        %5097 = vmatpush.bf16.msra.mxu0 %v4110
        %5098 = vmatpush.bf16.msra.mxu0 %v4098
        %5099 = vmatpush.bf16.msra.mxu0 %v4086
        %5100 = vmatpush.bf16.msra.mxu0 %v4074
        %5101 = vmatpush.bf16.msra.mxu0 %v4062
        %5102 = vmatpush.bf16.msra.mxu0 %v4050
        %5103 = vmatpush.bf16.msra.mxu0 %v4038
        %5104 = vmatmul.bf16.gmra.mxu0 %v1052
        %v5105 = vpop.f32.mrf.mxu0
        %v5106 = vadd.f32 %v5093, %v5105
        %v5107 = vpop.f32.mrf.mxu0
        %5108 = vdwg.mxu0
        %5109 = vmatpush.bf16.msra.mxu0 %v3451
        %5110 = vmatpush.bf16.msra.mxu0 %v3439
        %5111 = vmatpush.bf16.msra.mxu0 %v3427
        %5112 = vmatpush.bf16.msra.mxu0 %v3415
        %5113 = vmatpush.bf16.msra.mxu0 %v3403
        %5114 = vmatpush.bf16.msra.mxu0 %v3391
        %5115 = vmatpush.bf16.msra.mxu0 %v3379
        %5116 = vmatpush.bf16.msra.mxu0 %v3367
        %5117 = vmatmul.bf16.gmra.mxu0 %v1045
        %v5118 = vpop.f32.mrf.mxu0
        %v5119 = vadd.f32 %v1011, %v5118
        %v5120 = vpop.f32.mrf.mxu0
        %5121 = vdwg.mxu0
        %5122 = vmatpush.bf16.msra.mxu0 %v3547
        %5123 = vmatpush.bf16.msra.mxu0 %v3535
        %5124 = vmatpush.bf16.msra.mxu0 %v3523
        %5125 = vmatpush.bf16.msra.mxu0 %v3511
        %5126 = vmatpush.bf16.msra.mxu0 %v3499
        %5127 = vmatpush.bf16.msra.mxu0 %v3487
        %5128 = vmatpush.bf16.msra.mxu0 %v3475
        %5129 = vmatpush.bf16.msra.mxu0 %v3463
        %5130 = vmatmul.bf16.gmra.mxu0 %v1046
        %v5131 = vpop.f32.mrf.mxu0
        %v5132 = vadd.f32 %v5119, %v5131
        %v5133 = vpop.f32.mrf.mxu0
        %5134 = vdwg.mxu0
        %5135 = vmatpush.bf16.msra.mxu0 %v3643
        %5136 = vmatpush.bf16.msra.mxu0 %v3631
        %5137 = vmatpush.bf16.msra.mxu0 %v3619
        %5138 = vmatpush.bf16.msra.mxu0 %v3607
        %5139 = vmatpush.bf16.msra.mxu0 %v3595
        %5140 = vmatpush.bf16.msra.mxu0 %v3583
        %5141 = vmatpush.bf16.msra.mxu0 %v3571
        %5142 = vmatpush.bf16.msra.mxu0 %v3559
        %5143 = vmatmul.bf16.gmra.mxu0 %v1047
        %v5144 = vpop.f32.mrf.mxu0
        %v5145 = vadd.f32 %v5132, %v5144
        %v5146 = vpop.f32.mrf.mxu0
        %5147 = vdwg.mxu0
        %5148 = vmatpush.bf16.msra.mxu0 %v3739
        %5149 = vmatpush.bf16.msra.mxu0 %v3727
        %5150 = vmatpush.bf16.msra.mxu0 %v3715
        %5151 = vmatpush.bf16.msra.mxu0 %v3703
        %5152 = vmatpush.bf16.msra.mxu0 %v3691
        %5153 = vmatpush.bf16.msra.mxu0 %v3679
        %5154 = vmatpush.bf16.msra.mxu0 %v3667
        %5155 = vmatpush.bf16.msra.mxu0 %v3655
        %5156 = vmatmul.bf16.gmra.mxu0 %v1048
        %v5157 = vpop.f32.mrf.mxu0
        %v5158 = vadd.f32 %v5145, %v5157
        %v5159 = vpop.f32.mrf.mxu0
        %5160 = vdwg.mxu0
        %5161 = vmatpush.bf16.msra.mxu0 %v3835
        %5162 = vmatpush.bf16.msra.mxu0 %v3823
        %5163 = vmatpush.bf16.msra.mxu0 %v3811
        %5164 = vmatpush.bf16.msra.mxu0 %v3799
        %5165 = vmatpush.bf16.msra.mxu0 %v3787
        %5166 = vmatpush.bf16.msra.mxu0 %v3775
        %5167 = vmatpush.bf16.msra.mxu0 %v3763
        %5168 = vmatpush.bf16.msra.mxu0 %v3751
        %5169 = vmatmul.bf16.gmra.mxu0 %v1049
        %v5170 = vpop.f32.mrf.mxu0
        %v5171 = vadd.f32 %v5158, %v5170
        %v5172 = vpop.f32.mrf.mxu0
        %5173 = vdwg.mxu0
        %5174 = vmatpush.bf16.msra.mxu0 %v3931
        %5175 = vmatpush.bf16.msra.mxu0 %v3919
        %5176 = vmatpush.bf16.msra.mxu0 %v3907
        %5177 = vmatpush.bf16.msra.mxu0 %v3895
        %5178 = vmatpush.bf16.msra.mxu0 %v3883
        %5179 = vmatpush.bf16.msra.mxu0 %v3871
        %5180 = vmatpush.bf16.msra.mxu0 %v3859
        %5181 = vmatpush.bf16.msra.mxu0 %v3847
        %5182 = vmatmul.bf16.gmra.mxu0 %v1050
        %v5183 = vpop.f32.mrf.mxu0
        %v5184 = vadd.f32 %v5171, %v5183
        %v5185 = vpop.f32.mrf.mxu0
        %5186 = vdwg.mxu0
        %5187 = vmatpush.bf16.msra.mxu0 %v4027
        %5188 = vmatpush.bf16.msra.mxu0 %v4015
        %5189 = vmatpush.bf16.msra.mxu0 %v4003
        %5190 = vmatpush.bf16.msra.mxu0 %v3991
        %5191 = vmatpush.bf16.msra.mxu0 %v3979
        %5192 = vmatpush.bf16.msra.mxu0 %v3967
        %5193 = vmatpush.bf16.msra.mxu0 %v3955
        %5194 = vmatpush.bf16.msra.mxu0 %v3943
        %5195 = vmatmul.bf16.gmra.mxu0 %v1051
        %v5196 = vpop.f32.mrf.mxu0
        %v5197 = vadd.f32 %v5184, %v5196
        %v5198 = vpop.f32.mrf.mxu0
        %5199 = vdwg.mxu0
        %5200 = vmatpush.bf16.msra.mxu0 %v4123
        %5201 = vmatpush.bf16.msra.mxu0 %v4111
        %5202 = vmatpush.bf16.msra.mxu0 %v4099
        %5203 = vmatpush.bf16.msra.mxu0 %v4087
        %5204 = vmatpush.bf16.msra.mxu0 %v4075
        %5205 = vmatpush.bf16.msra.mxu0 %v4063
        %5206 = vmatpush.bf16.msra.mxu0 %v4051
        %5207 = vmatpush.bf16.msra.mxu0 %v4039
        %5208 = vmatmul.bf16.gmra.mxu0 %v1052
        %v5209 = vpop.f32.mrf.mxu0
        %v5210 = vadd.f32 %v5197, %v5209
        %v5211 = vpop.f32.mrf.mxu0
        %5212 = vdwg.mxu0
        %5213 = vmatpush.bf16.msra.mxu0 %v3452
        %5214 = vmatpush.bf16.msra.mxu0 %v3440
        %5215 = vmatpush.bf16.msra.mxu0 %v3428
        %5216 = vmatpush.bf16.msra.mxu0 %v3416
        %5217 = vmatpush.bf16.msra.mxu0 %v3404
        %5218 = vmatpush.bf16.msra.mxu0 %v3392
        %5219 = vmatpush.bf16.msra.mxu0 %v3380
        %5220 = vmatpush.bf16.msra.mxu0 %v3368
        %5221 = vmatmul.bf16.gmra.mxu0 %v1045
        %v5222 = vpop.f32.mrf.mxu0
        %v5223 = vadd.f32 %v1012, %v5222
        %v5224 = vpop.f32.mrf.mxu0
        %5225 = vdwg.mxu0
        %5226 = vmatpush.bf16.msra.mxu0 %v3548
        %5227 = vmatpush.bf16.msra.mxu0 %v3536
        %5228 = vmatpush.bf16.msra.mxu0 %v3524
        %5229 = vmatpush.bf16.msra.mxu0 %v3512
        %5230 = vmatpush.bf16.msra.mxu0 %v3500
        %5231 = vmatpush.bf16.msra.mxu0 %v3488
        %5232 = vmatpush.bf16.msra.mxu0 %v3476
        %5233 = vmatpush.bf16.msra.mxu0 %v3464
        %5234 = vmatmul.bf16.gmra.mxu0 %v1046
        %v5235 = vpop.f32.mrf.mxu0
        %v5236 = vadd.f32 %v5223, %v5235
        %v5237 = vpop.f32.mrf.mxu0
        %5238 = vdwg.mxu0
        %5239 = vmatpush.bf16.msra.mxu0 %v3644
        %5240 = vmatpush.bf16.msra.mxu0 %v3632
        %5241 = vmatpush.bf16.msra.mxu0 %v3620
        %5242 = vmatpush.bf16.msra.mxu0 %v3608
        %5243 = vmatpush.bf16.msra.mxu0 %v3596
        %5244 = vmatpush.bf16.msra.mxu0 %v3584
        %5245 = vmatpush.bf16.msra.mxu0 %v3572
        %5246 = vmatpush.bf16.msra.mxu0 %v3560
        %5247 = vmatmul.bf16.gmra.mxu0 %v1047
        %v5248 = vpop.f32.mrf.mxu0
        %v5249 = vadd.f32 %v5236, %v5248
        %v5250 = vpop.f32.mrf.mxu0
        %5251 = vdwg.mxu0
        %5252 = vmatpush.bf16.msra.mxu0 %v3740
        %5253 = vmatpush.bf16.msra.mxu0 %v3728
        %5254 = vmatpush.bf16.msra.mxu0 %v3716
        %5255 = vmatpush.bf16.msra.mxu0 %v3704
        %5256 = vmatpush.bf16.msra.mxu0 %v3692
        %5257 = vmatpush.bf16.msra.mxu0 %v3680
        %5258 = vmatpush.bf16.msra.mxu0 %v3668
        %5259 = vmatpush.bf16.msra.mxu0 %v3656
        %5260 = vmatmul.bf16.gmra.mxu0 %v1048
        %v5261 = vpop.f32.mrf.mxu0
        %v5262 = vadd.f32 %v5249, %v5261
        %v5263 = vpop.f32.mrf.mxu0
        %5264 = vdwg.mxu0
        %5265 = vmatpush.bf16.msra.mxu0 %v3836
        %5266 = vmatpush.bf16.msra.mxu0 %v3824
        %5267 = vmatpush.bf16.msra.mxu0 %v3812
        %5268 = vmatpush.bf16.msra.mxu0 %v3800
        %5269 = vmatpush.bf16.msra.mxu0 %v3788
        %5270 = vmatpush.bf16.msra.mxu0 %v3776
        %5271 = vmatpush.bf16.msra.mxu0 %v3764
        %5272 = vmatpush.bf16.msra.mxu0 %v3752
        %5273 = vmatmul.bf16.gmra.mxu0 %v1049
        %v5274 = vpop.f32.mrf.mxu0
        %v5275 = vadd.f32 %v5262, %v5274
        %v5276 = vpop.f32.mrf.mxu0
        %5277 = vdwg.mxu0
        %5278 = vmatpush.bf16.msra.mxu0 %v3932
        %5279 = vmatpush.bf16.msra.mxu0 %v3920
        %5280 = vmatpush.bf16.msra.mxu0 %v3908
        %5281 = vmatpush.bf16.msra.mxu0 %v3896
        %5282 = vmatpush.bf16.msra.mxu0 %v3884
        %5283 = vmatpush.bf16.msra.mxu0 %v3872
        %5284 = vmatpush.bf16.msra.mxu0 %v3860
        %5285 = vmatpush.bf16.msra.mxu0 %v3848
        %5286 = vmatmul.bf16.gmra.mxu0 %v1050
        %v5287 = vpop.f32.mrf.mxu0
        %v5288 = vadd.f32 %v5275, %v5287
        %v5289 = vpop.f32.mrf.mxu0
        %5290 = vdwg.mxu0
        %5291 = vmatpush.bf16.msra.mxu0 %v4028
        %5292 = vmatpush.bf16.msra.mxu0 %v4016
        %5293 = vmatpush.bf16.msra.mxu0 %v4004
        %5294 = vmatpush.bf16.msra.mxu0 %v3992
        %5295 = vmatpush.bf16.msra.mxu0 %v3980
        %5296 = vmatpush.bf16.msra.mxu0 %v3968
        %5297 = vmatpush.bf16.msra.mxu0 %v3956
        %5298 = vmatpush.bf16.msra.mxu0 %v3944
        %5299 = vmatmul.bf16.gmra.mxu0 %v1051
        %v5300 = vpop.f32.mrf.mxu0
        %v5301 = vadd.f32 %v5288, %v5300
        %v5302 = vpop.f32.mrf.mxu0
        %5303 = vdwg.mxu0
        %5304 = vmatpush.bf16.msra.mxu0 %v4124
        %5305 = vmatpush.bf16.msra.mxu0 %v4112
        %5306 = vmatpush.bf16.msra.mxu0 %v4100
        %5307 = vmatpush.bf16.msra.mxu0 %v4088
        %5308 = vmatpush.bf16.msra.mxu0 %v4076
        %5309 = vmatpush.bf16.msra.mxu0 %v4064
        %5310 = vmatpush.bf16.msra.mxu0 %v4052
        %5311 = vmatpush.bf16.msra.mxu0 %v4040
        %5312 = vmatmul.bf16.gmra.mxu0 %v1052
        %v5313 = vpop.f32.mrf.mxu0
        %v5314 = vadd.f32 %v5301, %v5313
        %v5315 = vpop.f32.mrf.mxu0
        %5316 = vdwg.mxu0
        %5317 = vmatpush.bf16.msra.mxu0 %v3453
        %5318 = vmatpush.bf16.msra.mxu0 %v3441
        %5319 = vmatpush.bf16.msra.mxu0 %v3429
        %5320 = vmatpush.bf16.msra.mxu0 %v3417
        %5321 = vmatpush.bf16.msra.mxu0 %v3405
        %5322 = vmatpush.bf16.msra.mxu0 %v3393
        %5323 = vmatpush.bf16.msra.mxu0 %v3381
        %5324 = vmatpush.bf16.msra.mxu0 %v3369
        %5325 = vmatmul.bf16.gmra.mxu0 %v1045
        %v5326 = vpop.f32.mrf.mxu0
        %v5327 = vadd.f32 %v1013, %v5326
        %v5328 = vpop.f32.mrf.mxu0
        %5329 = vdwg.mxu0
        %5330 = vmatpush.bf16.msra.mxu0 %v3549
        %5331 = vmatpush.bf16.msra.mxu0 %v3537
        %5332 = vmatpush.bf16.msra.mxu0 %v3525
        %5333 = vmatpush.bf16.msra.mxu0 %v3513
        %5334 = vmatpush.bf16.msra.mxu0 %v3501
        %5335 = vmatpush.bf16.msra.mxu0 %v3489
        %5336 = vmatpush.bf16.msra.mxu0 %v3477
        %5337 = vmatpush.bf16.msra.mxu0 %v3465
        %5338 = vmatmul.bf16.gmra.mxu0 %v1046
        %v5339 = vpop.f32.mrf.mxu0
        %v5340 = vadd.f32 %v5327, %v5339
        %v5341 = vpop.f32.mrf.mxu0
        %5342 = vdwg.mxu0
        %5343 = vmatpush.bf16.msra.mxu0 %v3645
        %5344 = vmatpush.bf16.msra.mxu0 %v3633
        %5345 = vmatpush.bf16.msra.mxu0 %v3621
        %5346 = vmatpush.bf16.msra.mxu0 %v3609
        %5347 = vmatpush.bf16.msra.mxu0 %v3597
        %5348 = vmatpush.bf16.msra.mxu0 %v3585
        %5349 = vmatpush.bf16.msra.mxu0 %v3573
        %5350 = vmatpush.bf16.msra.mxu0 %v3561
        %5351 = vmatmul.bf16.gmra.mxu0 %v1047
        %v5352 = vpop.f32.mrf.mxu0
        %v5353 = vadd.f32 %v5340, %v5352
        %v5354 = vpop.f32.mrf.mxu0
        %5355 = vdwg.mxu0
        %5356 = vmatpush.bf16.msra.mxu0 %v3741
        %5357 = vmatpush.bf16.msra.mxu0 %v3729
        %5358 = vmatpush.bf16.msra.mxu0 %v3717
        %5359 = vmatpush.bf16.msra.mxu0 %v3705
        %5360 = vmatpush.bf16.msra.mxu0 %v3693
        %5361 = vmatpush.bf16.msra.mxu0 %v3681
        %5362 = vmatpush.bf16.msra.mxu0 %v3669
        %5363 = vmatpush.bf16.msra.mxu0 %v3657
        %5364 = vmatmul.bf16.gmra.mxu0 %v1048
        %v5365 = vpop.f32.mrf.mxu0
        %v5366 = vadd.f32 %v5353, %v5365
        %v5367 = vpop.f32.mrf.mxu0
        %5368 = vdwg.mxu0
        %5369 = vmatpush.bf16.msra.mxu0 %v3837
        %5370 = vmatpush.bf16.msra.mxu0 %v3825
        %5371 = vmatpush.bf16.msra.mxu0 %v3813
        %5372 = vmatpush.bf16.msra.mxu0 %v3801
        %5373 = vmatpush.bf16.msra.mxu0 %v3789
        %5374 = vmatpush.bf16.msra.mxu0 %v3777
        %5375 = vmatpush.bf16.msra.mxu0 %v3765
        %5376 = vmatpush.bf16.msra.mxu0 %v3753
        %5377 = vmatmul.bf16.gmra.mxu0 %v1049
        %v5378 = vpop.f32.mrf.mxu0
        %v5379 = vadd.f32 %v5366, %v5378
        %v5380 = vpop.f32.mrf.mxu0
        %5381 = vdwg.mxu0
        %5382 = vmatpush.bf16.msra.mxu0 %v3933
        %5383 = vmatpush.bf16.msra.mxu0 %v3921
        %5384 = vmatpush.bf16.msra.mxu0 %v3909
        %5385 = vmatpush.bf16.msra.mxu0 %v3897
        %5386 = vmatpush.bf16.msra.mxu0 %v3885
        %5387 = vmatpush.bf16.msra.mxu0 %v3873
        %5388 = vmatpush.bf16.msra.mxu0 %v3861
        %5389 = vmatpush.bf16.msra.mxu0 %v3849
        %5390 = vmatmul.bf16.gmra.mxu0 %v1050
        %v5391 = vpop.f32.mrf.mxu0
        %v5392 = vadd.f32 %v5379, %v5391
        %v5393 = vpop.f32.mrf.mxu0
        %5394 = vdwg.mxu0
        %5395 = vmatpush.bf16.msra.mxu0 %v4029
        %5396 = vmatpush.bf16.msra.mxu0 %v4017
        %5397 = vmatpush.bf16.msra.mxu0 %v4005
        %5398 = vmatpush.bf16.msra.mxu0 %v3993
        %5399 = vmatpush.bf16.msra.mxu0 %v3981
        %5400 = vmatpush.bf16.msra.mxu0 %v3969
        %5401 = vmatpush.bf16.msra.mxu0 %v3957
        %5402 = vmatpush.bf16.msra.mxu0 %v3945
        %5403 = vmatmul.bf16.gmra.mxu0 %v1051
        %v5404 = vpop.f32.mrf.mxu0
        %v5405 = vadd.f32 %v5392, %v5404
        %v5406 = vpop.f32.mrf.mxu0
        %5407 = vdwg.mxu0
        %5408 = vmatpush.bf16.msra.mxu0 %v4125
        %5409 = vmatpush.bf16.msra.mxu0 %v4113
        %5410 = vmatpush.bf16.msra.mxu0 %v4101
        %5411 = vmatpush.bf16.msra.mxu0 %v4089
        %5412 = vmatpush.bf16.msra.mxu0 %v4077
        %5413 = vmatpush.bf16.msra.mxu0 %v4065
        %5414 = vmatpush.bf16.msra.mxu0 %v4053
        %5415 = vmatpush.bf16.msra.mxu0 %v4041
        %5416 = vmatmul.bf16.gmra.mxu0 %v1052
        %v5417 = vpop.f32.mrf.mxu0
        %v5418 = vadd.f32 %v5405, %v5417
        %v5419 = vpop.f32.mrf.mxu0
        %5420 = vdwg.mxu0
        %5421 = vmatpush.bf16.msra.mxu0 %v3454
        %5422 = vmatpush.bf16.msra.mxu0 %v3442
        %5423 = vmatpush.bf16.msra.mxu0 %v3430
        %5424 = vmatpush.bf16.msra.mxu0 %v3418
        %5425 = vmatpush.bf16.msra.mxu0 %v3406
        %5426 = vmatpush.bf16.msra.mxu0 %v3394
        %5427 = vmatpush.bf16.msra.mxu0 %v3382
        %5428 = vmatpush.bf16.msra.mxu0 %v3370
        %5429 = vmatmul.bf16.gmra.mxu0 %v1045
        %v5430 = vpop.f32.mrf.mxu0
        %v5431 = vadd.f32 %v1014, %v5430
        %v5432 = vpop.f32.mrf.mxu0
        %5433 = vdwg.mxu0
        %5434 = vmatpush.bf16.msra.mxu0 %v3550
        %5435 = vmatpush.bf16.msra.mxu0 %v3538
        %5436 = vmatpush.bf16.msra.mxu0 %v3526
        %5437 = vmatpush.bf16.msra.mxu0 %v3514
        %5438 = vmatpush.bf16.msra.mxu0 %v3502
        %5439 = vmatpush.bf16.msra.mxu0 %v3490
        %5440 = vmatpush.bf16.msra.mxu0 %v3478
        %5441 = vmatpush.bf16.msra.mxu0 %v3466
        %5442 = vmatmul.bf16.gmra.mxu0 %v1046
        %v5443 = vpop.f32.mrf.mxu0
        %v5444 = vadd.f32 %v5431, %v5443
        %v5445 = vpop.f32.mrf.mxu0
        %5446 = vdwg.mxu0
        %5447 = vmatpush.bf16.msra.mxu0 %v3646
        %5448 = vmatpush.bf16.msra.mxu0 %v3634
        %5449 = vmatpush.bf16.msra.mxu0 %v3622
        %5450 = vmatpush.bf16.msra.mxu0 %v3610
        %5451 = vmatpush.bf16.msra.mxu0 %v3598
        %5452 = vmatpush.bf16.msra.mxu0 %v3586
        %5453 = vmatpush.bf16.msra.mxu0 %v3574
        %5454 = vmatpush.bf16.msra.mxu0 %v3562
        %5455 = vmatmul.bf16.gmra.mxu0 %v1047
        %v5456 = vpop.f32.mrf.mxu0
        %v5457 = vadd.f32 %v5444, %v5456
        %v5458 = vpop.f32.mrf.mxu0
        %5459 = vdwg.mxu0
        %5460 = vmatpush.bf16.msra.mxu0 %v3742
        %5461 = vmatpush.bf16.msra.mxu0 %v3730
        %5462 = vmatpush.bf16.msra.mxu0 %v3718
        %5463 = vmatpush.bf16.msra.mxu0 %v3706
        %5464 = vmatpush.bf16.msra.mxu0 %v3694
        %5465 = vmatpush.bf16.msra.mxu0 %v3682
        %5466 = vmatpush.bf16.msra.mxu0 %v3670
        %5467 = vmatpush.bf16.msra.mxu0 %v3658
        %5468 = vmatmul.bf16.gmra.mxu0 %v1048
        %v5469 = vpop.f32.mrf.mxu0
        %v5470 = vadd.f32 %v5457, %v5469
        %v5471 = vpop.f32.mrf.mxu0
        %5472 = vdwg.mxu0
        %5473 = vmatpush.bf16.msra.mxu0 %v3838
        %5474 = vmatpush.bf16.msra.mxu0 %v3826
        %5475 = vmatpush.bf16.msra.mxu0 %v3814
        %5476 = vmatpush.bf16.msra.mxu0 %v3802
        %5477 = vmatpush.bf16.msra.mxu0 %v3790
        %5478 = vmatpush.bf16.msra.mxu0 %v3778
        %5479 = vmatpush.bf16.msra.mxu0 %v3766
        %5480 = vmatpush.bf16.msra.mxu0 %v3754
        %5481 = vmatmul.bf16.gmra.mxu0 %v1049
        %v5482 = vpop.f32.mrf.mxu0
        %v5483 = vadd.f32 %v5470, %v5482
        %v5484 = vpop.f32.mrf.mxu0
        %5485 = vdwg.mxu0
        %5486 = vmatpush.bf16.msra.mxu0 %v3934
        %5487 = vmatpush.bf16.msra.mxu0 %v3922
        %5488 = vmatpush.bf16.msra.mxu0 %v3910
        %5489 = vmatpush.bf16.msra.mxu0 %v3898
        %5490 = vmatpush.bf16.msra.mxu0 %v3886
        %5491 = vmatpush.bf16.msra.mxu0 %v3874
        %5492 = vmatpush.bf16.msra.mxu0 %v3862
        %5493 = vmatpush.bf16.msra.mxu0 %v3850
        %5494 = vmatmul.bf16.gmra.mxu0 %v1050
        %v5495 = vpop.f32.mrf.mxu0
        %v5496 = vadd.f32 %v5483, %v5495
        %v5497 = vpop.f32.mrf.mxu0
        %5498 = vdwg.mxu0
        %5499 = vmatpush.bf16.msra.mxu0 %v4030
        %5500 = vmatpush.bf16.msra.mxu0 %v4018
        %5501 = vmatpush.bf16.msra.mxu0 %v4006
        %5502 = vmatpush.bf16.msra.mxu0 %v3994
        %5503 = vmatpush.bf16.msra.mxu0 %v3982
        %5504 = vmatpush.bf16.msra.mxu0 %v3970
        %5505 = vmatpush.bf16.msra.mxu0 %v3958
        %5506 = vmatpush.bf16.msra.mxu0 %v3946
        %5507 = vmatmul.bf16.gmra.mxu0 %v1051
        %v5508 = vpop.f32.mrf.mxu0
        %v5509 = vadd.f32 %v5496, %v5508
        %v5510 = vpop.f32.mrf.mxu0
        %5511 = vdwg.mxu0
        %5512 = vmatpush.bf16.msra.mxu0 %v4126
        %5513 = vmatpush.bf16.msra.mxu0 %v4114
        %5514 = vmatpush.bf16.msra.mxu0 %v4102
        %5515 = vmatpush.bf16.msra.mxu0 %v4090
        %5516 = vmatpush.bf16.msra.mxu0 %v4078
        %5517 = vmatpush.bf16.msra.mxu0 %v4066
        %5518 = vmatpush.bf16.msra.mxu0 %v4054
        %5519 = vmatpush.bf16.msra.mxu0 %v4042
        %5520 = vmatmul.bf16.gmra.mxu0 %v1052
        %v5521 = vpop.f32.mrf.mxu0
        %v5522 = vadd.f32 %v5509, %v5521
        %v5523 = vpop.f32.mrf.mxu0
        %5524 = vdwg.mxu0
        %5525 = vmatpush.bf16.msra.mxu0 %v3455
        %5526 = vmatpush.bf16.msra.mxu0 %v3443
        %5527 = vmatpush.bf16.msra.mxu0 %v3431
        %5528 = vmatpush.bf16.msra.mxu0 %v3419
        %5529 = vmatpush.bf16.msra.mxu0 %v3407
        %5530 = vmatpush.bf16.msra.mxu0 %v3395
        %5531 = vmatpush.bf16.msra.mxu0 %v3383
        %5532 = vmatpush.bf16.msra.mxu0 %v3371
        %5533 = vmatmul.bf16.gmra.mxu0 %v1045
        %v5534 = vpop.f32.mrf.mxu0
        %v5535 = vadd.f32 %v1015, %v5534
        %v5536 = vpop.f32.mrf.mxu0
        %5537 = vdwg.mxu0
        %5538 = vmatpush.bf16.msra.mxu0 %v3551
        %5539 = vmatpush.bf16.msra.mxu0 %v3539
        %5540 = vmatpush.bf16.msra.mxu0 %v3527
        %5541 = vmatpush.bf16.msra.mxu0 %v3515
        %5542 = vmatpush.bf16.msra.mxu0 %v3503
        %5543 = vmatpush.bf16.msra.mxu0 %v3491
        %5544 = vmatpush.bf16.msra.mxu0 %v3479
        %5545 = vmatpush.bf16.msra.mxu0 %v3467
        %5546 = vmatmul.bf16.gmra.mxu0 %v1046
        %v5547 = vpop.f32.mrf.mxu0
        %v5548 = vadd.f32 %v5535, %v5547
        %v5549 = vpop.f32.mrf.mxu0
        %5550 = vdwg.mxu0
        %5551 = vmatpush.bf16.msra.mxu0 %v3647
        %5552 = vmatpush.bf16.msra.mxu0 %v3635
        %5553 = vmatpush.bf16.msra.mxu0 %v3623
        %5554 = vmatpush.bf16.msra.mxu0 %v3611
        %5555 = vmatpush.bf16.msra.mxu0 %v3599
        %5556 = vmatpush.bf16.msra.mxu0 %v3587
        %5557 = vmatpush.bf16.msra.mxu0 %v3575
        %5558 = vmatpush.bf16.msra.mxu0 %v3563
        %5559 = vmatmul.bf16.gmra.mxu0 %v1047
        %v5560 = vpop.f32.mrf.mxu0
        %v5561 = vadd.f32 %v5548, %v5560
        %v5562 = vpop.f32.mrf.mxu0
        %5563 = vdwg.mxu0
        %5564 = vmatpush.bf16.msra.mxu0 %v3743
        %5565 = vmatpush.bf16.msra.mxu0 %v3731
        %5566 = vmatpush.bf16.msra.mxu0 %v3719
        %5567 = vmatpush.bf16.msra.mxu0 %v3707
        %5568 = vmatpush.bf16.msra.mxu0 %v3695
        %5569 = vmatpush.bf16.msra.mxu0 %v3683
        %5570 = vmatpush.bf16.msra.mxu0 %v3671
        %5571 = vmatpush.bf16.msra.mxu0 %v3659
        %5572 = vmatmul.bf16.gmra.mxu0 %v1048
        %v5573 = vpop.f32.mrf.mxu0
        %v5574 = vadd.f32 %v5561, %v5573
        %v5575 = vpop.f32.mrf.mxu0
        %5576 = vdwg.mxu0
        %5577 = vmatpush.bf16.msra.mxu0 %v3839
        %5578 = vmatpush.bf16.msra.mxu0 %v3827
        %5579 = vmatpush.bf16.msra.mxu0 %v3815
        %5580 = vmatpush.bf16.msra.mxu0 %v3803
        %5581 = vmatpush.bf16.msra.mxu0 %v3791
        %5582 = vmatpush.bf16.msra.mxu0 %v3779
        %5583 = vmatpush.bf16.msra.mxu0 %v3767
        %5584 = vmatpush.bf16.msra.mxu0 %v3755
        %5585 = vmatmul.bf16.gmra.mxu0 %v1049
        %v5586 = vpop.f32.mrf.mxu0
        %v5587 = vadd.f32 %v5574, %v5586
        %v5588 = vpop.f32.mrf.mxu0
        %5589 = vdwg.mxu0
        %5590 = vmatpush.bf16.msra.mxu0 %v3935
        %5591 = vmatpush.bf16.msra.mxu0 %v3923
        %5592 = vmatpush.bf16.msra.mxu0 %v3911
        %5593 = vmatpush.bf16.msra.mxu0 %v3899
        %5594 = vmatpush.bf16.msra.mxu0 %v3887
        %5595 = vmatpush.bf16.msra.mxu0 %v3875
        %5596 = vmatpush.bf16.msra.mxu0 %v3863
        %5597 = vmatpush.bf16.msra.mxu0 %v3851
        %5598 = vmatmul.bf16.gmra.mxu0 %v1050
        %v5599 = vpop.f32.mrf.mxu0
        %v5600 = vadd.f32 %v5587, %v5599
        %v5601 = vpop.f32.mrf.mxu0
        %5602 = vdwg.mxu0
        %5603 = vmatpush.bf16.msra.mxu0 %v4031
        %5604 = vmatpush.bf16.msra.mxu0 %v4019
        %5605 = vmatpush.bf16.msra.mxu0 %v4007
        %5606 = vmatpush.bf16.msra.mxu0 %v3995
        %5607 = vmatpush.bf16.msra.mxu0 %v3983
        %5608 = vmatpush.bf16.msra.mxu0 %v3971
        %5609 = vmatpush.bf16.msra.mxu0 %v3959
        %5610 = vmatpush.bf16.msra.mxu0 %v3947
        %5611 = vmatmul.bf16.gmra.mxu0 %v1051
        %v5612 = vpop.f32.mrf.mxu0
        %v5613 = vadd.f32 %v5600, %v5612
        %v5614 = vpop.f32.mrf.mxu0
        %5615 = vdwg.mxu0
        %5616 = vmatpush.bf16.msra.mxu0 %v4127
        %5617 = vmatpush.bf16.msra.mxu0 %v4115
        %5618 = vmatpush.bf16.msra.mxu0 %v4103
        %5619 = vmatpush.bf16.msra.mxu0 %v4091
        %5620 = vmatpush.bf16.msra.mxu0 %v4079
        %5621 = vmatpush.bf16.msra.mxu0 %v4067
        %5622 = vmatpush.bf16.msra.mxu0 %v4055
        %5623 = vmatpush.bf16.msra.mxu0 %v4043
        %5624 = vmatmul.bf16.gmra.mxu0 %v1052
        %v5625 = vpop.f32.mrf.mxu0
        %v5626 = vadd.f32 %v5613, %v5625
        %v5627 = vpop.f32.mrf.mxu0
        %5628 = vdwg.mxu0
        %5629 = vmatpush.bf16.msra.mxu0 %v3456
        %5630 = vmatpush.bf16.msra.mxu0 %v3444
        %5631 = vmatpush.bf16.msra.mxu0 %v3432
        %5632 = vmatpush.bf16.msra.mxu0 %v3420
        %5633 = vmatpush.bf16.msra.mxu0 %v3408
        %5634 = vmatpush.bf16.msra.mxu0 %v3396
        %5635 = vmatpush.bf16.msra.mxu0 %v3384
        %5636 = vmatpush.bf16.msra.mxu0 %v3372
        %5637 = vmatmul.bf16.gmra.mxu0 %v1045
        %v5638 = vpop.f32.mrf.mxu0
        %v5639 = vadd.f32 %v1016, %v5638
        %v5640 = vpop.f32.mrf.mxu0
        %5641 = vdwg.mxu0
        %5642 = vmatpush.bf16.msra.mxu0 %v3552
        %5643 = vmatpush.bf16.msra.mxu0 %v3540
        %5644 = vmatpush.bf16.msra.mxu0 %v3528
        %5645 = vmatpush.bf16.msra.mxu0 %v3516
        %5646 = vmatpush.bf16.msra.mxu0 %v3504
        %5647 = vmatpush.bf16.msra.mxu0 %v3492
        %5648 = vmatpush.bf16.msra.mxu0 %v3480
        %5649 = vmatpush.bf16.msra.mxu0 %v3468
        %5650 = vmatmul.bf16.gmra.mxu0 %v1046
        %v5651 = vpop.f32.mrf.mxu0
        %v5652 = vadd.f32 %v5639, %v5651
        %v5653 = vpop.f32.mrf.mxu0
        %5654 = vdwg.mxu0
        %5655 = vmatpush.bf16.msra.mxu0 %v3648
        %5656 = vmatpush.bf16.msra.mxu0 %v3636
        %5657 = vmatpush.bf16.msra.mxu0 %v3624
        %5658 = vmatpush.bf16.msra.mxu0 %v3612
        %5659 = vmatpush.bf16.msra.mxu0 %v3600
        %5660 = vmatpush.bf16.msra.mxu0 %v3588
        %5661 = vmatpush.bf16.msra.mxu0 %v3576
        %5662 = vmatpush.bf16.msra.mxu0 %v3564
        %5663 = vmatmul.bf16.gmra.mxu0 %v1047
        %v5664 = vpop.f32.mrf.mxu0
        %v5665 = vadd.f32 %v5652, %v5664
        %v5666 = vpop.f32.mrf.mxu0
        %5667 = vdwg.mxu0
        %5668 = vmatpush.bf16.msra.mxu0 %v3744
        %5669 = vmatpush.bf16.msra.mxu0 %v3732
        %5670 = vmatpush.bf16.msra.mxu0 %v3720
        %5671 = vmatpush.bf16.msra.mxu0 %v3708
        %5672 = vmatpush.bf16.msra.mxu0 %v3696
        %5673 = vmatpush.bf16.msra.mxu0 %v3684
        %5674 = vmatpush.bf16.msra.mxu0 %v3672
        %5675 = vmatpush.bf16.msra.mxu0 %v3660
        %5676 = vmatmul.bf16.gmra.mxu0 %v1048
        %v5677 = vpop.f32.mrf.mxu0
        %v5678 = vadd.f32 %v5665, %v5677
        %v5679 = vpop.f32.mrf.mxu0
        %5680 = vdwg.mxu0
        %5681 = vmatpush.bf16.msra.mxu0 %v3840
        %5682 = vmatpush.bf16.msra.mxu0 %v3828
        %5683 = vmatpush.bf16.msra.mxu0 %v3816
        %5684 = vmatpush.bf16.msra.mxu0 %v3804
        %5685 = vmatpush.bf16.msra.mxu0 %v3792
        %5686 = vmatpush.bf16.msra.mxu0 %v3780
        %5687 = vmatpush.bf16.msra.mxu0 %v3768
        %5688 = vmatpush.bf16.msra.mxu0 %v3756
        %5689 = vmatmul.bf16.gmra.mxu0 %v1049
        %v5690 = vpop.f32.mrf.mxu0
        %v5691 = vadd.f32 %v5678, %v5690
        %v5692 = vpop.f32.mrf.mxu0
        %5693 = vdwg.mxu0
        %5694 = vmatpush.bf16.msra.mxu0 %v3936
        %5695 = vmatpush.bf16.msra.mxu0 %v3924
        %5696 = vmatpush.bf16.msra.mxu0 %v3912
        %5697 = vmatpush.bf16.msra.mxu0 %v3900
        %5698 = vmatpush.bf16.msra.mxu0 %v3888
        %5699 = vmatpush.bf16.msra.mxu0 %v3876
        %5700 = vmatpush.bf16.msra.mxu0 %v3864
        %5701 = vmatpush.bf16.msra.mxu0 %v3852
        %5702 = vmatmul.bf16.gmra.mxu0 %v1050
        %v5703 = vpop.f32.mrf.mxu0
        %v5704 = vadd.f32 %v5691, %v5703
        %v5705 = vpop.f32.mrf.mxu0
        %5706 = vdwg.mxu0
        %5707 = vmatpush.bf16.msra.mxu0 %v4032
        %5708 = vmatpush.bf16.msra.mxu0 %v4020
        %5709 = vmatpush.bf16.msra.mxu0 %v4008
        %5710 = vmatpush.bf16.msra.mxu0 %v3996
        %5711 = vmatpush.bf16.msra.mxu0 %v3984
        %5712 = vmatpush.bf16.msra.mxu0 %v3972
        %5713 = vmatpush.bf16.msra.mxu0 %v3960
        %5714 = vmatpush.bf16.msra.mxu0 %v3948
        %5715 = vmatmul.bf16.gmra.mxu0 %v1051
        %v5716 = vpop.f32.mrf.mxu0
        %v5717 = vadd.f32 %v5704, %v5716
        %v5718 = vpop.f32.mrf.mxu0
        %5719 = vdwg.mxu0
        %5720 = vmatpush.bf16.msra.mxu0 %v4128
        %5721 = vmatpush.bf16.msra.mxu0 %v4116
        %5722 = vmatpush.bf16.msra.mxu0 %v4104
        %5723 = vmatpush.bf16.msra.mxu0 %v4092
        %5724 = vmatpush.bf16.msra.mxu0 %v4080
        %5725 = vmatpush.bf16.msra.mxu0 %v4068
        %5726 = vmatpush.bf16.msra.mxu0 %v4056
        %5727 = vmatpush.bf16.msra.mxu0 %v4044
        %5728 = vmatmul.bf16.gmra.mxu0 %v1052
        %v5729 = vpop.f32.mrf.mxu0
        %v5730 = vadd.f32 %v5717, %v5729
        %v5731 = vpop.f32.mrf.mxu0
        %5732 = vdwg.mxu0
        %5733 = vmatpush.bf16.msra.mxu0 %v3457
        %5734 = vmatpush.bf16.msra.mxu0 %v3445
        %5735 = vmatpush.bf16.msra.mxu0 %v3433
        %5736 = vmatpush.bf16.msra.mxu0 %v3421
        %5737 = vmatpush.bf16.msra.mxu0 %v3409
        %5738 = vmatpush.bf16.msra.mxu0 %v3397
        %5739 = vmatpush.bf16.msra.mxu0 %v3385
        %5740 = vmatpush.bf16.msra.mxu0 %v3373
        %5741 = vmatmul.bf16.gmra.mxu0 %v1045
        %v5742 = vpop.f32.mrf.mxu0
        %v5743 = vadd.f32 %v1017, %v5742
        %v5744 = vpop.f32.mrf.mxu0
        %5745 = vdwg.mxu0
        %5746 = vmatpush.bf16.msra.mxu0 %v3553
        %5747 = vmatpush.bf16.msra.mxu0 %v3541
        %5748 = vmatpush.bf16.msra.mxu0 %v3529
        %5749 = vmatpush.bf16.msra.mxu0 %v3517
        %5750 = vmatpush.bf16.msra.mxu0 %v3505
        %5751 = vmatpush.bf16.msra.mxu0 %v3493
        %5752 = vmatpush.bf16.msra.mxu0 %v3481
        %5753 = vmatpush.bf16.msra.mxu0 %v3469
        %5754 = vmatmul.bf16.gmra.mxu0 %v1046
        %v5755 = vpop.f32.mrf.mxu0
        %v5756 = vadd.f32 %v5743, %v5755
        %v5757 = vpop.f32.mrf.mxu0
        %5758 = vdwg.mxu0
        %5759 = vmatpush.bf16.msra.mxu0 %v3649
        %5760 = vmatpush.bf16.msra.mxu0 %v3637
        %5761 = vmatpush.bf16.msra.mxu0 %v3625
        %5762 = vmatpush.bf16.msra.mxu0 %v3613
        %5763 = vmatpush.bf16.msra.mxu0 %v3601
        %5764 = vmatpush.bf16.msra.mxu0 %v3589
        %5765 = vmatpush.bf16.msra.mxu0 %v3577
        %5766 = vmatpush.bf16.msra.mxu0 %v3565
        %5767 = vmatmul.bf16.gmra.mxu0 %v1047
        %v5768 = vpop.f32.mrf.mxu0
        %v5769 = vadd.f32 %v5756, %v5768
        %v5770 = vpop.f32.mrf.mxu0
        %5771 = vdwg.mxu0
        %5772 = vmatpush.bf16.msra.mxu0 %v3745
        %5773 = vmatpush.bf16.msra.mxu0 %v3733
        %5774 = vmatpush.bf16.msra.mxu0 %v3721
        %5775 = vmatpush.bf16.msra.mxu0 %v3709
        %5776 = vmatpush.bf16.msra.mxu0 %v3697
        %5777 = vmatpush.bf16.msra.mxu0 %v3685
        %5778 = vmatpush.bf16.msra.mxu0 %v3673
        %5779 = vmatpush.bf16.msra.mxu0 %v3661
        %5780 = vmatmul.bf16.gmra.mxu0 %v1048
        %v5781 = vpop.f32.mrf.mxu0
        %v5782 = vadd.f32 %v5769, %v5781
        %v5783 = vpop.f32.mrf.mxu0
        %5784 = vdwg.mxu0
        %5785 = vmatpush.bf16.msra.mxu0 %v3841
        %5786 = vmatpush.bf16.msra.mxu0 %v3829
        %5787 = vmatpush.bf16.msra.mxu0 %v3817
        %5788 = vmatpush.bf16.msra.mxu0 %v3805
        %5789 = vmatpush.bf16.msra.mxu0 %v3793
        %5790 = vmatpush.bf16.msra.mxu0 %v3781
        %5791 = vmatpush.bf16.msra.mxu0 %v3769
        %5792 = vmatpush.bf16.msra.mxu0 %v3757
        %5793 = vmatmul.bf16.gmra.mxu0 %v1049
        %v5794 = vpop.f32.mrf.mxu0
        %v5795 = vadd.f32 %v5782, %v5794
        %v5796 = vpop.f32.mrf.mxu0
        %5797 = vdwg.mxu0
        %5798 = vmatpush.bf16.msra.mxu0 %v3937
        %5799 = vmatpush.bf16.msra.mxu0 %v3925
        %5800 = vmatpush.bf16.msra.mxu0 %v3913
        %5801 = vmatpush.bf16.msra.mxu0 %v3901
        %5802 = vmatpush.bf16.msra.mxu0 %v3889
        %5803 = vmatpush.bf16.msra.mxu0 %v3877
        %5804 = vmatpush.bf16.msra.mxu0 %v3865
        %5805 = vmatpush.bf16.msra.mxu0 %v3853
        %5806 = vmatmul.bf16.gmra.mxu0 %v1050
        %v5807 = vpop.f32.mrf.mxu0
        %v5808 = vadd.f32 %v5795, %v5807
        %v5809 = vpop.f32.mrf.mxu0
        %5810 = vdwg.mxu0
        %5811 = vmatpush.bf16.msra.mxu0 %v4033
        %5812 = vmatpush.bf16.msra.mxu0 %v4021
        %5813 = vmatpush.bf16.msra.mxu0 %v4009
        %5814 = vmatpush.bf16.msra.mxu0 %v3997
        %5815 = vmatpush.bf16.msra.mxu0 %v3985
        %5816 = vmatpush.bf16.msra.mxu0 %v3973
        %5817 = vmatpush.bf16.msra.mxu0 %v3961
        %5818 = vmatpush.bf16.msra.mxu0 %v3949
        %5819 = vmatmul.bf16.gmra.mxu0 %v1051
        %v5820 = vpop.f32.mrf.mxu0
        %v5821 = vadd.f32 %v5808, %v5820
        %v5822 = vpop.f32.mrf.mxu0
        %5823 = vdwg.mxu0
        %5824 = vmatpush.bf16.msra.mxu0 %v4129
        %5825 = vmatpush.bf16.msra.mxu0 %v4117
        %5826 = vmatpush.bf16.msra.mxu0 %v4105
        %5827 = vmatpush.bf16.msra.mxu0 %v4093
        %5828 = vmatpush.bf16.msra.mxu0 %v4081
        %5829 = vmatpush.bf16.msra.mxu0 %v4069
        %5830 = vmatpush.bf16.msra.mxu0 %v4057
        %5831 = vmatpush.bf16.msra.mxu0 %v4045
        %5832 = vmatmul.bf16.gmra.mxu0 %v1052
        %v5833 = vpop.f32.mrf.mxu0
        %v5834 = vadd.f32 %v5821, %v5833
        %v5835 = vpop.f32.mrf.mxu0
        %5836 = vdwg.mxu0
        %5837 = vmatpush.bf16.msra.mxu0 %v3458
        %5838 = vmatpush.bf16.msra.mxu0 %v3446
        %5839 = vmatpush.bf16.msra.mxu0 %v3434
        %5840 = vmatpush.bf16.msra.mxu0 %v3422
        %5841 = vmatpush.bf16.msra.mxu0 %v3410
        %5842 = vmatpush.bf16.msra.mxu0 %v3398
        %5843 = vmatpush.bf16.msra.mxu0 %v3386
        %5844 = vmatpush.bf16.msra.mxu0 %v3374
        %5845 = vmatmul.bf16.gmra.mxu0 %v1045
        %v5846 = vpop.f32.mrf.mxu0
        %v5847 = vadd.f32 %v1018, %v5846
        %v5848 = vpop.f32.mrf.mxu0
        %5849 = vdwg.mxu0
        %5850 = vmatpush.bf16.msra.mxu0 %v3554
        %5851 = vmatpush.bf16.msra.mxu0 %v3542
        %5852 = vmatpush.bf16.msra.mxu0 %v3530
        %5853 = vmatpush.bf16.msra.mxu0 %v3518
        %5854 = vmatpush.bf16.msra.mxu0 %v3506
        %5855 = vmatpush.bf16.msra.mxu0 %v3494
        %5856 = vmatpush.bf16.msra.mxu0 %v3482
        %5857 = vmatpush.bf16.msra.mxu0 %v3470
        %5858 = vmatmul.bf16.gmra.mxu0 %v1046
        %v5859 = vpop.f32.mrf.mxu0
        %v5860 = vadd.f32 %v5847, %v5859
        %v5861 = vpop.f32.mrf.mxu0
        %5862 = vdwg.mxu0
        %5863 = vmatpush.bf16.msra.mxu0 %v3650
        %5864 = vmatpush.bf16.msra.mxu0 %v3638
        %5865 = vmatpush.bf16.msra.mxu0 %v3626
        %5866 = vmatpush.bf16.msra.mxu0 %v3614
        %5867 = vmatpush.bf16.msra.mxu0 %v3602
        %5868 = vmatpush.bf16.msra.mxu0 %v3590
        %5869 = vmatpush.bf16.msra.mxu0 %v3578
        %5870 = vmatpush.bf16.msra.mxu0 %v3566
        %5871 = vmatmul.bf16.gmra.mxu0 %v1047
        %v5872 = vpop.f32.mrf.mxu0
        %v5873 = vadd.f32 %v5860, %v5872
        %v5874 = vpop.f32.mrf.mxu0
        %5875 = vdwg.mxu0
        %5876 = vmatpush.bf16.msra.mxu0 %v3746
        %5877 = vmatpush.bf16.msra.mxu0 %v3734
        %5878 = vmatpush.bf16.msra.mxu0 %v3722
        %5879 = vmatpush.bf16.msra.mxu0 %v3710
        %5880 = vmatpush.bf16.msra.mxu0 %v3698
        %5881 = vmatpush.bf16.msra.mxu0 %v3686
        %5882 = vmatpush.bf16.msra.mxu0 %v3674
        %5883 = vmatpush.bf16.msra.mxu0 %v3662
        %5884 = vmatmul.bf16.gmra.mxu0 %v1048
        %v5885 = vpop.f32.mrf.mxu0
        %v5886 = vadd.f32 %v5873, %v5885
        %v5887 = vpop.f32.mrf.mxu0
        %5888 = vdwg.mxu0
        %5889 = vmatpush.bf16.msra.mxu0 %v3842
        %5890 = vmatpush.bf16.msra.mxu0 %v3830
        %5891 = vmatpush.bf16.msra.mxu0 %v3818
        %5892 = vmatpush.bf16.msra.mxu0 %v3806
        %5893 = vmatpush.bf16.msra.mxu0 %v3794
        %5894 = vmatpush.bf16.msra.mxu0 %v3782
        %5895 = vmatpush.bf16.msra.mxu0 %v3770
        %5896 = vmatpush.bf16.msra.mxu0 %v3758
        %5897 = vmatmul.bf16.gmra.mxu0 %v1049
        %v5898 = vpop.f32.mrf.mxu0
        %v5899 = vadd.f32 %v5886, %v5898
        %v5900 = vpop.f32.mrf.mxu0
        %5901 = vdwg.mxu0
        %5902 = vmatpush.bf16.msra.mxu0 %v3938
        %5903 = vmatpush.bf16.msra.mxu0 %v3926
        %5904 = vmatpush.bf16.msra.mxu0 %v3914
        %5905 = vmatpush.bf16.msra.mxu0 %v3902
        %5906 = vmatpush.bf16.msra.mxu0 %v3890
        %5907 = vmatpush.bf16.msra.mxu0 %v3878
        %5908 = vmatpush.bf16.msra.mxu0 %v3866
        %5909 = vmatpush.bf16.msra.mxu0 %v3854
        %5910 = vmatmul.bf16.gmra.mxu0 %v1050
        %v5911 = vpop.f32.mrf.mxu0
        %v5912 = vadd.f32 %v5899, %v5911
        %v5913 = vpop.f32.mrf.mxu0
        %5914 = vdwg.mxu0
        %5915 = vmatpush.bf16.msra.mxu0 %v4034
        %5916 = vmatpush.bf16.msra.mxu0 %v4022
        %5917 = vmatpush.bf16.msra.mxu0 %v4010
        %5918 = vmatpush.bf16.msra.mxu0 %v3998
        %5919 = vmatpush.bf16.msra.mxu0 %v3986
        %5920 = vmatpush.bf16.msra.mxu0 %v3974
        %5921 = vmatpush.bf16.msra.mxu0 %v3962
        %5922 = vmatpush.bf16.msra.mxu0 %v3950
        %5923 = vmatmul.bf16.gmra.mxu0 %v1051
        %v5924 = vpop.f32.mrf.mxu0
        %v5925 = vadd.f32 %v5912, %v5924
        %v5926 = vpop.f32.mrf.mxu0
        %5927 = vdwg.mxu0
        %5928 = vmatpush.bf16.msra.mxu0 %v4130
        %5929 = vmatpush.bf16.msra.mxu0 %v4118
        %5930 = vmatpush.bf16.msra.mxu0 %v4106
        %5931 = vmatpush.bf16.msra.mxu0 %v4094
        %5932 = vmatpush.bf16.msra.mxu0 %v4082
        %5933 = vmatpush.bf16.msra.mxu0 %v4070
        %5934 = vmatpush.bf16.msra.mxu0 %v4058
        %5935 = vmatpush.bf16.msra.mxu0 %v4046
        %5936 = vmatmul.bf16.gmra.mxu0 %v1052
        %v5937 = vpop.f32.mrf.mxu0
        %v5938 = vadd.f32 %v5925, %v5937
        %v5939 = vpop.f32.mrf.mxu0
        %5940 = vdwg.mxu0
        %5941 = vmatpush.bf16.msra.mxu0 %v3459
        %5942 = vmatpush.bf16.msra.mxu0 %v3447
        %5943 = vmatpush.bf16.msra.mxu0 %v3435
        %5944 = vmatpush.bf16.msra.mxu0 %v3423
        %5945 = vmatpush.bf16.msra.mxu0 %v3411
        %5946 = vmatpush.bf16.msra.mxu0 %v3399
        %5947 = vmatpush.bf16.msra.mxu0 %v3387
        %5948 = vmatpush.bf16.msra.mxu0 %v3375
        %5949 = vmatmul.bf16.gmra.mxu0 %v1045
        %v5950 = vpop.f32.mrf.mxu0
        %v5951 = vadd.f32 %v1019, %v5950
        %v5952 = vpop.f32.mrf.mxu0
        %5953 = vdwg.mxu0
        %5954 = vmatpush.bf16.msra.mxu0 %v3555
        %5955 = vmatpush.bf16.msra.mxu0 %v3543
        %5956 = vmatpush.bf16.msra.mxu0 %v3531
        %5957 = vmatpush.bf16.msra.mxu0 %v3519
        %5958 = vmatpush.bf16.msra.mxu0 %v3507
        %5959 = vmatpush.bf16.msra.mxu0 %v3495
        %5960 = vmatpush.bf16.msra.mxu0 %v3483
        %5961 = vmatpush.bf16.msra.mxu0 %v3471
        %5962 = vmatmul.bf16.gmra.mxu0 %v1046
        %v5963 = vpop.f32.mrf.mxu0
        %v5964 = vadd.f32 %v5951, %v5963
        %v5965 = vpop.f32.mrf.mxu0
        %5966 = vdwg.mxu0
        %5967 = vmatpush.bf16.msra.mxu0 %v3651
        %5968 = vmatpush.bf16.msra.mxu0 %v3639
        %5969 = vmatpush.bf16.msra.mxu0 %v3627
        %5970 = vmatpush.bf16.msra.mxu0 %v3615
        %5971 = vmatpush.bf16.msra.mxu0 %v3603
        %5972 = vmatpush.bf16.msra.mxu0 %v3591
        %5973 = vmatpush.bf16.msra.mxu0 %v3579
        %5974 = vmatpush.bf16.msra.mxu0 %v3567
        %5975 = vmatmul.bf16.gmra.mxu0 %v1047
        %v5976 = vpop.f32.mrf.mxu0
        %v5977 = vadd.f32 %v5964, %v5976
        %v5978 = vpop.f32.mrf.mxu0
        %5979 = vdwg.mxu0
        %5980 = vmatpush.bf16.msra.mxu0 %v3747
        %5981 = vmatpush.bf16.msra.mxu0 %v3735
        %5982 = vmatpush.bf16.msra.mxu0 %v3723
        %5983 = vmatpush.bf16.msra.mxu0 %v3711
        %5984 = vmatpush.bf16.msra.mxu0 %v3699
        %5985 = vmatpush.bf16.msra.mxu0 %v3687
        %5986 = vmatpush.bf16.msra.mxu0 %v3675
        %5987 = vmatpush.bf16.msra.mxu0 %v3663
        %5988 = vmatmul.bf16.gmra.mxu0 %v1048
        %v5989 = vpop.f32.mrf.mxu0
        %v5990 = vadd.f32 %v5977, %v5989
        %v5991 = vpop.f32.mrf.mxu0
        %5992 = vdwg.mxu0
        %5993 = vmatpush.bf16.msra.mxu0 %v3843
        %5994 = vmatpush.bf16.msra.mxu0 %v3831
        %5995 = vmatpush.bf16.msra.mxu0 %v3819
        %5996 = vmatpush.bf16.msra.mxu0 %v3807
        %5997 = vmatpush.bf16.msra.mxu0 %v3795
        %5998 = vmatpush.bf16.msra.mxu0 %v3783
        %5999 = vmatpush.bf16.msra.mxu0 %v3771
        %6000 = vmatpush.bf16.msra.mxu0 %v3759
        %6001 = vmatmul.bf16.gmra.mxu0 %v1049
        %v6002 = vpop.f32.mrf.mxu0
        %v6003 = vadd.f32 %v5990, %v6002
        %v6004 = vpop.f32.mrf.mxu0
        %6005 = vdwg.mxu0
        %6006 = vmatpush.bf16.msra.mxu0 %v3939
        %6007 = vmatpush.bf16.msra.mxu0 %v3927
        %6008 = vmatpush.bf16.msra.mxu0 %v3915
        %6009 = vmatpush.bf16.msra.mxu0 %v3903
        %6010 = vmatpush.bf16.msra.mxu0 %v3891
        %6011 = vmatpush.bf16.msra.mxu0 %v3879
        %6012 = vmatpush.bf16.msra.mxu0 %v3867
        %6013 = vmatpush.bf16.msra.mxu0 %v3855
        %6014 = vmatmul.bf16.gmra.mxu0 %v1050
        %v6015 = vpop.f32.mrf.mxu0
        %v6016 = vadd.f32 %v6003, %v6015
        %v6017 = vpop.f32.mrf.mxu0
        %6018 = vdwg.mxu0
        %6019 = vmatpush.bf16.msra.mxu0 %v4035
        %6020 = vmatpush.bf16.msra.mxu0 %v4023
        %6021 = vmatpush.bf16.msra.mxu0 %v4011
        %6022 = vmatpush.bf16.msra.mxu0 %v3999
        %6023 = vmatpush.bf16.msra.mxu0 %v3987
        %6024 = vmatpush.bf16.msra.mxu0 %v3975
        %6025 = vmatpush.bf16.msra.mxu0 %v3963
        %6026 = vmatpush.bf16.msra.mxu0 %v3951
        %6027 = vmatmul.bf16.gmra.mxu0 %v1051
        %v6028 = vpop.f32.mrf.mxu0
        %v6029 = vadd.f32 %v6016, %v6028
        %v6030 = vpop.f32.mrf.mxu0
        %6031 = vdwg.mxu0
        %6032 = vmatpush.bf16.msra.mxu0 %v4131
        %6033 = vmatpush.bf16.msra.mxu0 %v4119
        %6034 = vmatpush.bf16.msra.mxu0 %v4107
        %6035 = vmatpush.bf16.msra.mxu0 %v4095
        %6036 = vmatpush.bf16.msra.mxu0 %v4083
        %6037 = vmatpush.bf16.msra.mxu0 %v4071
        %6038 = vmatpush.bf16.msra.mxu0 %v4059
        %6039 = vmatpush.bf16.msra.mxu0 %v4047
        %6040 = vmatmul.bf16.gmra.mxu0 %v1052
        %v6041 = vpop.f32.mrf.mxu0
        %v6042 = vadd.f32 %v6029, %v6041
        %v6043 = vpop.f32.mrf.mxu0
        %6044 = vdwg.mxu0
        %6045 = vmatpush.bf16.msra.mxu0 %v3460
        %6046 = vmatpush.bf16.msra.mxu0 %v3448
        %6047 = vmatpush.bf16.msra.mxu0 %v3436
        %6048 = vmatpush.bf16.msra.mxu0 %v3424
        %6049 = vmatpush.bf16.msra.mxu0 %v3412
        %6050 = vmatpush.bf16.msra.mxu0 %v3400
        %6051 = vmatpush.bf16.msra.mxu0 %v3388
        %6052 = vmatpush.bf16.msra.mxu0 %v3376
        %6053 = vmatmul.bf16.gmra.mxu0 %v1045
        %v6054 = vpop.f32.mrf.mxu0
        %v6055 = vadd.f32 %v1020, %v6054
        %v6056 = vpop.f32.mrf.mxu0
        %6057 = vdwg.mxu0
        %6058 = vmatpush.bf16.msra.mxu0 %v3556
        %6059 = vmatpush.bf16.msra.mxu0 %v3544
        %6060 = vmatpush.bf16.msra.mxu0 %v3532
        %6061 = vmatpush.bf16.msra.mxu0 %v3520
        %6062 = vmatpush.bf16.msra.mxu0 %v3508
        %6063 = vmatpush.bf16.msra.mxu0 %v3496
        %6064 = vmatpush.bf16.msra.mxu0 %v3484
        %6065 = vmatpush.bf16.msra.mxu0 %v3472
        %6066 = vmatmul.bf16.gmra.mxu0 %v1046
        %v6067 = vpop.f32.mrf.mxu0
        %v6068 = vadd.f32 %v6055, %v6067
        %v6069 = vpop.f32.mrf.mxu0
        %6070 = vdwg.mxu0
        %6071 = vmatpush.bf16.msra.mxu0 %v3652
        %6072 = vmatpush.bf16.msra.mxu0 %v3640
        %6073 = vmatpush.bf16.msra.mxu0 %v3628
        %6074 = vmatpush.bf16.msra.mxu0 %v3616
        %6075 = vmatpush.bf16.msra.mxu0 %v3604
        %6076 = vmatpush.bf16.msra.mxu0 %v3592
        %6077 = vmatpush.bf16.msra.mxu0 %v3580
        %6078 = vmatpush.bf16.msra.mxu0 %v3568
        %6079 = vmatmul.bf16.gmra.mxu0 %v1047
        %v6080 = vpop.f32.mrf.mxu0
        %v6081 = vadd.f32 %v6068, %v6080
        %v6082 = vpop.f32.mrf.mxu0
        %6083 = vdwg.mxu0
        %6084 = vmatpush.bf16.msra.mxu0 %v3748
        %6085 = vmatpush.bf16.msra.mxu0 %v3736
        %6086 = vmatpush.bf16.msra.mxu0 %v3724
        %6087 = vmatpush.bf16.msra.mxu0 %v3712
        %6088 = vmatpush.bf16.msra.mxu0 %v3700
        %6089 = vmatpush.bf16.msra.mxu0 %v3688
        %6090 = vmatpush.bf16.msra.mxu0 %v3676
        %6091 = vmatpush.bf16.msra.mxu0 %v3664
        %6092 = vmatmul.bf16.gmra.mxu0 %v1048
        %v6093 = vpop.f32.mrf.mxu0
        %v6094 = vadd.f32 %v6081, %v6093
        %v6095 = vpop.f32.mrf.mxu0
        %6096 = vdwg.mxu0
        %6097 = vmatpush.bf16.msra.mxu0 %v3844
        %6098 = vmatpush.bf16.msra.mxu0 %v3832
        %6099 = vmatpush.bf16.msra.mxu0 %v3820
        %6100 = vmatpush.bf16.msra.mxu0 %v3808
        %6101 = vmatpush.bf16.msra.mxu0 %v3796
        %6102 = vmatpush.bf16.msra.mxu0 %v3784
        %6103 = vmatpush.bf16.msra.mxu0 %v3772
        %6104 = vmatpush.bf16.msra.mxu0 %v3760
        %6105 = vmatmul.bf16.gmra.mxu0 %v1049
        %v6106 = vpop.f32.mrf.mxu0
        %v6107 = vadd.f32 %v6094, %v6106
        %v6108 = vpop.f32.mrf.mxu0
        %6109 = vdwg.mxu0
        %6110 = vmatpush.bf16.msra.mxu0 %v3940
        %6111 = vmatpush.bf16.msra.mxu0 %v3928
        %6112 = vmatpush.bf16.msra.mxu0 %v3916
        %6113 = vmatpush.bf16.msra.mxu0 %v3904
        %6114 = vmatpush.bf16.msra.mxu0 %v3892
        %6115 = vmatpush.bf16.msra.mxu0 %v3880
        %6116 = vmatpush.bf16.msra.mxu0 %v3868
        %6117 = vmatpush.bf16.msra.mxu0 %v3856
        %6118 = vmatmul.bf16.gmra.mxu0 %v1050
        %v6119 = vpop.f32.mrf.mxu0
        %v6120 = vadd.f32 %v6107, %v6119
        %v6121 = vpop.f32.mrf.mxu0
        %6122 = vdwg.mxu0
        %6123 = vmatpush.bf16.msra.mxu0 %v4036
        %6124 = vmatpush.bf16.msra.mxu0 %v4024
        %6125 = vmatpush.bf16.msra.mxu0 %v4012
        %6126 = vmatpush.bf16.msra.mxu0 %v4000
        %6127 = vmatpush.bf16.msra.mxu0 %v3988
        %6128 = vmatpush.bf16.msra.mxu0 %v3976
        %6129 = vmatpush.bf16.msra.mxu0 %v3964
        %6130 = vmatpush.bf16.msra.mxu0 %v3952
        %6131 = vmatmul.bf16.gmra.mxu0 %v1051
        %v6132 = vpop.f32.mrf.mxu0
        %v6133 = vadd.f32 %v6120, %v6132
        %v6134 = vpop.f32.mrf.mxu0
        %6135 = vdwg.mxu0
        %6136 = vmatpush.bf16.msra.mxu0 %v4132
        %6137 = vmatpush.bf16.msra.mxu0 %v4120
        %6138 = vmatpush.bf16.msra.mxu0 %v4108
        %6139 = vmatpush.bf16.msra.mxu0 %v4096
        %6140 = vmatpush.bf16.msra.mxu0 %v4084
        %6141 = vmatpush.bf16.msra.mxu0 %v4072
        %6142 = vmatpush.bf16.msra.mxu0 %v4060
        %6143 = vmatpush.bf16.msra.mxu0 %v4048
        %6144 = vmatmul.bf16.gmra.mxu0 %v1052
        %v6145 = vpop.f32.mrf.mxu0
        %v6146 = vadd.f32 %v6133, %v6145
        %v6147 = vpop.f32.mrf.mxu0
        %6148 = vdwg.mxu0
        %v6149 = vtanh.pop %v5002
        %v6150 = vtanh.pop %v5106
        %v6151 = vtanh.pop %v5210
        %v6152 = vtanh.pop %v5314
        %v6153 = vtanh.pop %v5418
        %v6154 = vtanh.pop %v5522
        %v6155 = vtanh.pop %v5626
        %v6156 = vtanh.pop %v5730
        %v6157 = vtanh.pop %v5834
        %v6158 = vtanh.pop %v5938
        %v6159 = vtanh.pop %v6042
        %v6160 = vtanh.pop %v6146
        %6161 = vst [vmem:[%s229] sm:$0xff] %v6149
        %6162 = vst [vmem:[%s229 + $0x8] sm:$0xff] %v6150
        %6163 = vst [vmem:[%s229 + $0x10] sm:$0xff] %v6151
        %6164 = vst [vmem:[%s229 + $0x18] sm:$0xff] %v6152
        %6165 = vst [vmem:[%s229 + $0x20] sm:$0xff] %v6153
        %6166 = vst [vmem:[%s229 + $0x28] sm:$0xff] %v6154
        %6167 = vst [vmem:[%s229 + $0x30] sm:$0xff] %v6155
        %6168 = vst [vmem:[%s229 + $0x38] sm:$0xff] %v6156
        %6169 = vst [vmem:[%s229 + $0x40] sm:$0xff] %v6157
        %6170 = vst [vmem:[%s229 + $0x48] sm:$0xff] %v6158
        %6171 = vst [vmem:[%s229 + $0x50] sm:$0xff] %v6159
        %6172 = vst [vmem:[%s229 + $0x58] sm:$0xff] %v6160
        %s6173 = sand.u32 %s104, 1
        %s6174 = scalar_lea.sflag [#allocation4], %s6173
        %s6175 = sand.u32 %s104, 1
        %s6176 = smul.addr %s6175, 96
        %s6177 = scalar_lea.vmem [#allocation7], %s6176
        // Predicated region
        $region41: #{point_decoder.3} parent=31 // pred_check
          %p6178 = pneg %p114
        $region42: #{point_decoder.3} parent=31 // pred_check_branch
          %6180 = sbr.rel (%p6178) target = $region44
        $region43: #{point_decoder.3} parent=31 // pred_region
          %s6181 = smul.u32 12, %s23
          %6183 = vsyncadd %s6174, 0
          %s6184 = smul.addr %s6181, 8
          %s6185 = scalar_lea.hbm %s3, %s6184
          %s6187 = sshll.u32 %s6177, 4
          %s6188 = int_to_ptr.vmem [resolvable:$true] %s6187
          %s6189 = sshll.u32 %s6185, 4
          %s6190 = int_to_ptr.hbm [resolvable:$true] %s6189
          %6192 = dma.vmem_to_hbm [thread:$0]  %s6188, 1536, %s6190, %s6174
        $region44: #{point_decoder.3} parent=31 // pred_fallthru
          _
      $region32: #{point_decoder.3} parent=5 // pred_fallthru
        _
      %p6193 = scmp.le.s32.totalorder 2, %s18
      // Predicated region
      $region45: #{point_decoder.3} parent=5 // pred_check
        %p6194 = pneg %p6193
      $region46: #{point_decoder.3} parent=5 // pred_check_branch
        %6196 = sbr.rel (%p6194) target = $region48
      $region47: #{point_decoder.3} parent=5 // pred_region
        %s6197 = ssub.s32 %s18, 2
        // Predicated region
        $region49: #{point_decoder.3} parent=47 // pred_check
          %p6198 = pneg %p120
        $region50: #{point_decoder.3} parent=47 // pred_check_branch
          %6200 = sbr.rel (%p6198) target = $region52
        $region51: #{point_decoder.3} parent=47 // pred_region
          %s6201 = sand.u32 %s105, 1
          %s6202 = scalar_lea.sflag [#allocation4], %s6201
          %s6203 = sand.u32 %s105, 1
          %s6204 = smul.addr %s6203, 96
          %s6205 = scalar_lea.vmem [#allocation7], %s6204
          %6207 = dma.done %s6202, 1536
        $region52: #{point_decoder.3} parent=47 // pred_fallthru
          _
      $region48: #{point_decoder.3} parent=5 // pred_fallthru
        _
    $region6: #{point_decoder.3} parent=1 // loop_footer
      %s22 = sadd.s32 1, %s18
    $region7: #{point_decoder.3} parent=1 // loop_footer_branch
      %17 = sbr.rel target = $region3
    $region8: #{point_decoder.3} parent=1 // loop_exit
      _
    %6208 = vsyncpa [#allocation3], 1
    %s6209 = scalar_lea.sflag [#allocation3], 1
    %6210 = vsyncpa %s6209, 1
    %6211 = vsyncpa [#allocation6], 1
    %s6212 = scalar_lea.sflag [#allocation6], 1
    %6213 = vsyncpa %s6212, 1
    %6214 = vsyncpa [#allocation4], 1
    %s6215 = scalar_lea.sflag [#allocation4], 1
    %6216 = vsyncpa %s6215, 1

</llo_original>
